<compile_context>
chip_gen: v5e
topology: v5e:2x2
jax: 0.10.0
libtpu: 0.0.40
codegen_flags: <defaults>
</compile_context>

<pallas_src>
import jax
import jax.numpy as jnp
from jax import lax
from jax.experimental import pallas as pl
from jax.experimental.pallas import tpu as pltpu


def tsa_kernel(xs_ref, xl_ref, wq_ref, wk_ref, v_ref, we_ref, be_ref, out_ref):
    xs = xs_ref[...].astype(jnp.float32)          # (D, TB, N)
    xl = xl_ref[...].astype(jnp.float32)          # (T, Y, TB, N)
    T, Y, TB, N = xl.shape
    H = wq_ref.shape[0]

    # Accumulate A[t, y, b, n] = sum_h V[h, n, y] * tanh(Q[b, h, n] + Wk[h, n, y] * xl)
    # over an unrolled H loop so the (H, T, Y, TB, N) intermediate never exists.
    def h_body(h, acc):
        wq_h = wq_ref[h].astype(jnp.float32)      # (D, N)
        wk_h = wk_ref[h].astype(jnp.float32)      # (Y, N)
        v_h = v_ref[h].astype(jnp.float32)        # (Y, N)
        # Q_h[b, n] = sum_d Wq[h, n, d] * x_short[b, n, d]
        # (leading-axis reduce over D -> VPU adds, N stays on lanes)
        q_h = jnp.sum(wq_h[:, None, :] * xs, axis=0)                      # (TB, N)
        s_h = jnp.tanh(q_h[None, None, :, :] + wk_h[None, :, None, :] * xl)  # (T,Y,TB,N)
        return acc + v_h[None, :, None, :] * s_h

    a = lax.fori_loop(0, H, h_body, jnp.zeros((T, Y, TB, N), jnp.float32),
                      unroll=True)

    # Softmax over the T axis (axis 0 -> leading-axis max/sum, pure VPU).
    a_max = jnp.max(a, axis=0, keepdims=True)
    e = jnp.exp(a - a_max)
    denom = jnp.sum(e, axis=0, keepdims=True)
    a_sm = e * pl.reciprocal(denom, approx=True)

    # x_long_new[y, b, n] = sum_t A_[t, y, b, n] * x_long[t, y, b, n]
    x_new = jnp.sum(a_sm * xl, axis=0)                                    # (Y, TB, N)

    # TODO(synk): TimeEncoder definition was not provided in the source file;
    # implemented here as a per-node linear map Y -> dim_long_hidden (+ bias).
    we = we_ref[...].astype(jnp.float32)                                  # (Y, L, N)
    be = be_ref[...].astype(jnp.float32)                                  # (L, N)
    # Contraction over Y is again a leading-axis reduce (VPU).  At production
    # N, tile/loop this over Y to bound the (Y, TB, L, N) intermediate.
    out = jnp.sum(x_new[:, :, None, :] * we[:, None, :, :], axis=0)       # (TB, L, N)
    out = out + be[None, :, :]
    out_ref[...] = out.astype(out_ref.dtype)


def tsa_forward(x_long, x_short, Wq, Wk, V, W_enc, b_enc):
    B, N, T, Y = x_long.shape
    D = x_short.shape[-1]
    H = Wq.shape[0]
    L = W_enc.shape[-1]

    # One-time lane-dense re-layout (N last everywhere, contracted dims leading).
    xs_t = jnp.transpose(x_short, (2, 0, 1))     # (D, B, N)
    xl_t = jnp.transpose(x_long, (2, 3, 0, 1))   # (T, Y, B, N)
    wq_t = jnp.transpose(Wq, (0, 2, 1))          # (H, D, N)
    wk_t = jnp.transpose(Wk, (0, 2, 1))          # (H, Y, N)
    v_t = jnp.transpose(V, (0, 2, 1))            # (H, Y, N)
    we_t = jnp.transpose(W_enc, (1, 2, 0))       # (Y, L, N)
    be_t = jnp.transpose(b_enc, (1, 0))          # (L, N)

    # Batch tile: TB sits in the second-to-last block dim of xs/xl, so it must
    # be a multiple of 8 (sublane) or equal to B.
    TB = 8 if B % 8 == 0 else B
    grid = (B // TB,)

    # Advisory cost estimate for XLA's scheduler.
    flops = B * N * (2 * H * D + 4 * H * T * Y + 7 * T * Y + 2 * Y * L)
    transcendentals = B * N * (H * T * Y + T * Y + Y)
    bytes_accessed = 4 * (x_long.size + x_short.size + Wq.size + Wk.size
                          + V.size + W_enc.size + b_enc.size + B * N * L)
    ce = pl.CostEstimate(flops=flops, transcendentals=transcendentals,
                         bytes_accessed=bytes_accessed)

    out_t = pl.pallas_call(
        tsa_kernel,
        out_shape=jax.ShapeDtypeStruct((B, L, N), jnp.float32),
        grid_spec=pltpu.PrefetchScalarGridSpec(
            num_scalar_prefetch=0,
            grid=grid,
            in_specs=[
                pl.BlockSpec((D, TB, N), lambda b: (0, b, 0)),        # x_short
                pl.BlockSpec((T, Y, TB, N), lambda b: (0, 0, b, 0)),  # x_long
                pl.BlockSpec((H, D, N), lambda b: (0, 0, 0)),         # Wq
                pl.BlockSpec((H, Y, N), lambda b: (0, 0, 0)),         # Wk
                pl.BlockSpec((H, Y, N), lambda b: (0, 0, 0)),         # V
                pl.BlockSpec((Y, L, N), lambda b: (0, 0, 0)),         # W_enc
                pl.BlockSpec((L, N), lambda b: (0, 0)),               # b_enc
            ],
            out_specs=pl.BlockSpec((TB, L, N), lambda b: (b, 0, 0)),
        ),
        compiler_params=pltpu.CompilerParams(
            dimension_semantics=("parallel",),
        ),
        cost_estimate=ce,
    )(xs_t, xl_t, wq_t, wk_t, v_t, we_t, be_t)

    return jnp.transpose(out_t, (0, 2, 1))       # (B, N, L)


def tsa_reference(x_long, x_short, Wq, Wk, V, W_enc, b_enc):
    """Pure-JAX reference mirroring the PyTorch forward."""
    Q = jnp.einsum('hnd,bnd->bhn', Wq, x_short)[..., None, None]   # (B,H,N,1,1)
    K = jnp.einsum('hny,bnty->bhnty', Wk, x_long)                  # (B,H,N,T,Y)
    A = jnp.einsum('hny,bhnty->bnty', V, jnp.tanh(Q + K))          # (B,N,T,Y)
    A_ = jax.nn.softmax(A, axis=2)                                 # softmax over T
    x_new = jnp.sum(A_ * x_long, axis=2)                           # (B,N,Y)
    return jnp.einsum('bny,nyl->bnl', x_new, W_enc) + b_enc[None]  # (B,N,L)


if __name__ == "__main__":
    # Small but TPU-layout-friendly shapes (N carries the 128-lane axis,
    # B // TB = 2 parallel grid steps, ~0.5 MiB of x_long per step).
    B = 16           # batch
    N = 128          # num_nodes
    D = 16           # dim_short_hidden + dim_clusters_hidden
    T = 8            # number of yearly segments in x_long
    Y = 16           # yearly_window
    H = 8            # dim_tsa_hidden
    L = 32           # dim_long_hidden

    key = jax.random.PRNGKey(0)
    k_xl, k_xs, k_wq, k_wk, k_v, k_we, k_be = jax.random.split(key, 7)

    x_long = jax.random.normal(k_xl, (B, N, T, Y), dtype=jnp.float32)
    x_short = jax.random.normal(k_xs, (B, N, D), dtype=jnp.float32)
    Wq = 0.1 * jax.random.normal(k_wq, (H, N, D), dtype=jnp.float32)
    Wk = 0.1 * jax.random.normal(k_wk, (H, N, Y), dtype=jnp.float32)
    V = 0.1 * jax.random.normal(k_v, (H, N, Y), dtype=jnp.float32)
    W_enc = 0.1 * jax.random.normal(k_we, (N, Y, L), dtype=jnp.float32)
    b_enc = 0.01 * jax.random.normal(k_be, (N, L), dtype=jnp.float32)

    out = tsa_forward(x_long, x_short, Wq, Wk, V, W_enc, b_enc)
    out = jax.block_until_ready(out)

    ref = tsa_reference(x_long, x_short, Wq, Wk, V, W_enc, b_enc)
    assert out.shape == (B, N, L)
    # Slightly loosened tolerance: the softmax denominator uses the EUP
    # approximate reciprocal (pl.reciprocal(approx=True)).
    assert jnp.allclose(out, ref, atol=2e-3, rtol=2e-3), (
        "mismatch vs reference, max abs diff = %g" % float(jnp.max(jnp.abs(out - ref))))

    print("KERNEL_OK")
</pallas_src>

<mosaic_0001>
module attributes {stable_mosaic.version = 11 : i64} {
  func.func @tsa_kernel(%arg0: i32, %arg1: memref<16x8x128xf32, #tpu.memory_space<vmem>>, %arg2: memref<8x16x8x128xf32, #tpu.memory_space<vmem>>, %arg3: memref<8x16x128xf32, #tpu.memory_space<vmem>>, %arg4: memref<8x16x128xf32, #tpu.memory_space<vmem>>, %arg5: memref<8x16x128xf32, #tpu.memory_space<vmem>>, %arg6: memref<16x32x128xf32, #tpu.memory_space<vmem>>, %arg7: memref<32x128xf32, #tpu.memory_space<vmem>>, %arg8: memref<8x32x128xf32, #tpu.memory_space<vmem>>) attributes {dimension_semantics = [#tpu.dimension_semantics<parallel>], iteration_bounds = array<i64: 2>, scalar_prefetch = 0 : i64, scratch_operands = 0 : i64, tpu.core_type = #tpu.core_type<tc>, window_params = [{transform_indices = @transform_0, window_bounds = array<i64: 16, 8, 128>}, {transform_indices = @transform_1, window_bounds = array<i64: 8, 16, 8, 128>}, {pipeline_mode = #tpu.pipeline_mode<synchronous>, transform_indices = @transform_2, window_bounds = array<i64: 8, 16, 128>}, {pipeline_mode = #tpu.pipeline_mode<synchronous>, transform_indices = @transform_3, window_bounds = array<i64: 8, 16, 128>}, {pipeline_mode = #tpu.pipeline_mode<synchronous>, transform_indices = @transform_4, window_bounds = array<i64: 8, 16, 128>}, {pipeline_mode = #tpu.pipeline_mode<synchronous>, transform_indices = @transform_5, window_bounds = array<i64: 16, 32, 128>}, {pipeline_mode = #tpu.pipeline_mode<synchronous>, transform_indices = @transform_6, window_bounds = array<i64: 32, 128>}, {transform_indices = @transform_7, window_bounds = array<i64: 8, 32, 128>}]} {
    %c0 = arith.constant 0 : index
    %c0_0 = arith.constant 0 : index
    %c0_1 = arith.constant 0 : index
    %0 = vector.load %arg1[%c0, %c0_0, %c0_1] : memref<16x8x128xf32, #tpu.memory_space<vmem>>, vector<16x8x128xf32>
    %c0_2 = arith.constant 0 : index
    %c0_3 = arith.constant 0 : index
    %c0_4 = arith.constant 0 : index
    %c0_5 = arith.constant 0 : index
    %1 = vector.load %arg2[%c0_2, %c0_3, %c0_4, %c0_5] : memref<8x16x8x128xf32, #tpu.memory_space<vmem>>, vector<8x16x8x128xf32>
    %cst = arith.constant 0.000000e+00 : f32
    %2 = vector.broadcast %cst : f32 to vector<8x16x8x128xf32>
    %c0_i32 = arith.constant 0 : i32
    %3 = arith.index_cast %c0_i32 : i32 to index
    %c0_6 = arith.constant 0 : index
    %c0_7 = arith.constant 0 : index
    %4 = vector.load %arg3[%3, %c0_6, %c0_7] : memref<8x16x128xf32, #tpu.memory_space<vmem>>, vector<1x16x128xf32>
    %5 = vector.shape_cast %4 : vector<1x16x128xf32> to vector<16x128xf32>
    %6 = arith.index_cast %c0_i32 : i32 to index
    %c0_8 = arith.constant 0 : index
    %c0_9 = arith.constant 0 : index
    %7 = vector.load %arg4[%6, %c0_8, %c0_9] : memref<8x16x128xf32, #tpu.memory_space<vmem>>, vector<1x16x128xf32>
    %8 = vector.shape_cast %7 : vector<1x16x128xf32> to vector<16x128xf32>
    %9 = arith.index_cast %c0_i32 : i32 to index
    %c0_10 = arith.constant 0 : index
    %c0_11 = arith.constant 0 : index
    %10 = vector.load %arg5[%9, %c0_10, %c0_11] : memref<8x16x128xf32, #tpu.memory_space<vmem>>, vector<1x16x128xf32>
    %11 = vector.shape_cast %10 : vector<1x16x128xf32> to vector<16x128xf32>
    %12 = vector.shape_cast %5 : vector<16x128xf32> to vector<16x1x128xf32>
    %13 = vector.broadcast %12 : vector<16x1x128xf32> to vector<16x8x128xf32>
    %14 = arith.mulf %13, %0 : vector<16x8x128xf32>
    %cst_12 = arith.constant dense<0.000000e+00> : vector<8x128xf32>
    %15 = vector.multi_reduction <add>, %14, %cst_12 [0] : vector<16x8x128xf32> to vector<8x128xf32>
    %16 = vector.shape_cast %15 : vector<8x128xf32> to vector<1x1x8x128xf32>
    %17 = vector.shape_cast %8 : vector<16x128xf32> to vector<1x16x1x128xf32>
    %18 = vector.broadcast %17 : vector<1x16x1x128xf32> to vector<8x16x8x128xf32>
    %19 = arith.mulf %18, %1 : vector<8x16x8x128xf32>
    %20 = vector.broadcast %16 : vector<1x1x8x128xf32> to vector<8x16x8x128xf32>
    %21 = arith.addf %20, %19 : vector<8x16x8x128xf32>
    %22 = math.tanh %21 : vector<8x16x8x128xf32>
    %23 = vector.shape_cast %11 : vector<16x128xf32> to vector<1x16x1x128xf32>
    %24 = vector.broadcast %23 : vector<1x16x1x128xf32> to vector<8x16x8x128xf32>
    %25 = arith.mulf %24, %22 : vector<8x16x8x128xf32>
    %26 = arith.addf %2, %25 : vector<8x16x8x128xf32>
    %c1_i32 = arith.constant 1 : i32
    %27 = arith.index_cast %c1_i32 : i32 to index
    %c0_13 = arith.constant 0 : index
    %c0_14 = arith.constant 0 : index
    %28 = vector.load %arg3[%27, %c0_13, %c0_14] : memref<8x16x128xf32, #tpu.memory_space<vmem>>, vector<1x16x128xf32>
    %29 = vector.shape_cast %28 : vector<1x16x128xf32> to vector<16x128xf32>
    %30 = arith.index_cast %c1_i32 : i32 to index
    %c0_15 = arith.constant 0 : index
    %c0_16 = arith.constant 0 : index
    %31 = vector.load %arg4[%30, %c0_15, %c0_16] : memref<8x16x128xf32, #tpu.memory_space<vmem>>, vector<1x16x128xf32>
    %32 = vector.shape_cast %31 : vector<1x16x128xf32> to vector<16x128xf32>
    %33 = arith.index_cast %c1_i32 : i32 to index
    %c0_17 = arith.constant 0 : index
    %c0_18 = arith.constant 0 : index
    %34 = vector.load %arg5[%33, %c0_17, %c0_18] : memref<8x16x128xf32, #tpu.memory_space<vmem>>, vector<1x16x128xf32>
    %35 = vector.shape_cast %34 : vector<1x16x128xf32> to vector<16x128xf32>
    %36 = vector.shape_cast %29 : vector<16x128xf32> to vector<16x1x128xf32>
    %37 = vector.broadcast %36 : vector<16x1x128xf32> to vector<16x8x128xf32>
    %38 = arith.mulf %37, %0 : vector<16x8x128xf32>
    %cst_19 = arith.constant dense<0.000000e+00> : vector<8x128xf32>
    %39 = vector.multi_reduction <add>, %38, %cst_19 [0] : vector<16x8x128xf32> to vector<8x128xf32>
    %40 = vector.shape_cast %39 : vector<8x128xf32> to vector<1x1x8x128xf32>
    %41 = vector.shape_cast %32 : vector<16x128xf32> to vector<1x16x1x128xf32>
    %42 = vector.broadcast %41 : vector<1x16x1x128xf32> to vector<8x16x8x128xf32>
    %43 = arith.mulf %42, %1 : vector<8x16x8x128xf32>
    %44 = vector.broadcast %40 : vector<1x1x8x128xf32> to vector<8x16x8x128xf32>
    %45 = arith.addf %44, %43 : vector<8x16x8x128xf32>
    %46 = math.tanh %45 : vector<8x16x8x128xf32>
    %47 = vector.shape_cast %35 : vector<16x128xf32> to vector<1x16x1x128xf32>
    %48 = vector.broadcast %47 : vector<1x16x1x128xf32> to vector<8x16x8x128xf32>
    %49 = arith.mulf %48, %46 : vector<8x16x8x128xf32>
    %50 = arith.addf %26, %49 : vector<8x16x8x128xf32>
    %c2_i32 = arith.constant 2 : i32
    %51 = arith.index_cast %c2_i32 : i32 to index
    %c0_20 = arith.constant 0 : index
    %c0_21 = arith.constant 0 : index
    %52 = vector.load %arg3[%51, %c0_20, %c0_21] : memref<8x16x128xf32, #tpu.memory_space<vmem>>, vector<1x16x128xf32>
    %53 = vector.shape_cast %52 : vector<1x16x128xf32> to vector<16x128xf32>
    %54 = arith.index_cast %c2_i32 : i32 to index
    %c0_22 = arith.constant 0 : index
    %c0_23 = arith.constant 0 : index
    %55 = vector.load %arg4[%54, %c0_22, %c0_23] : memref<8x16x128xf32, #tpu.memory_space<vmem>>, vector<1x16x128xf32>
    %56 = vector.shape_cast %55 : vector<1x16x128xf32> to vector<16x128xf32>
    %57 = arith.index_cast %c2_i32 : i32 to index
    %c0_24 = arith.constant 0 : index
    %c0_25 = arith.constant 0 : index
    %58 = vector.load %arg5[%57, %c0_24, %c0_25] : memref<8x16x128xf32, #tpu.memory_space<vmem>>, vector<1x16x128xf32>
    %59 = vector.shape_cast %58 : vector<1x16x128xf32> to vector<16x128xf32>
    %60 = vector.shape_cast %53 : vector<16x128xf32> to vector<16x1x128xf32>
    %61 = vector.broadcast %60 : vector<16x1x128xf32> to vector<16x8x128xf32>
    %62 = arith.mulf %61, %0 : vector<16x8x128xf32>
    %cst_26 = arith.constant dense<0.000000e+00> : vector<8x128xf32>
    %63 = vector.multi_reduction <add>, %62, %cst_26 [0] : vector<16x8x128xf32> to vector<8x128xf32>
    %64 = vector.shape_cast %63 : vector<8x128xf32> to vector<1x1x8x128xf32>
    %65 = vector.shape_cast %56 : vector<16x128xf32> to vector<1x16x1x128xf32>
    %66 = vector.broadcast %65 : vector<1x16x1x128xf32> to vector<8x16x8x128xf32>
    %67 = arith.mulf %66, %1 : vector<8x16x8x128xf32>
    %68 = vector.broadcast %64 : vector<1x1x8x128xf32> to vector<8x16x8x128xf32>
    %69 = arith.addf %68, %67 : vector<8x16x8x128xf32>
    %70 = math.tanh %69 : vector<8x16x8x128xf32>
    %71 = vector.shape_cast %59 : vector<16x128xf32> to vector<1x16x1x128xf32>
    %72 = vector.broadcast %71 : vector<1x16x1x128xf32> to vector<8x16x8x128xf32>
    %73 = arith.mulf %72, %70 : vector<8x16x8x128xf32>
    %74 = arith.addf %50, %73 : vector<8x16x8x128xf32>
    %c3_i32 = arith.constant 3 : i32
    %75 = arith.index_cast %c3_i32 : i32 to index
    %c0_27 = arith.constant 0 : index
    %c0_28 = arith.constant 0 : index
    %76 = vector.load %arg3[%75, %c0_27, %c0_28] : memref<8x16x128xf32, #tpu.memory_space<vmem>>, vector<1x16x128xf32>
    %77 = vector.shape_cast %76 : vector<1x16x128xf32> to vector<16x128xf32>
    %78 = arith.index_cast %c3_i32 : i32 to index
    %c0_29 = arith.constant 0 : index
    %c0_30 = arith.constant 0 : index
    %79 = vector.load %arg4[%78, %c0_29, %c0_30] : memref<8x16x128xf32, #tpu.memory_space<vmem>>, vector<1x16x128xf32>
    %80 = vector.shape_cast %79 : vector<1x16x128xf32> to vector<16x128xf32>
    %81 = arith.index_cast %c3_i32 : i32 to index
    %c0_31 = arith.constant 0 : index
    %c0_32 = arith.constant 0 : index
    %82 = vector.load %arg5[%81, %c0_31, %c0_32] : memref<8x16x128xf32, #tpu.memory_space<vmem>>, vector<1x16x128xf32>
    %83 = vector.shape_cast %82 : vector<1x16x128xf32> to vector<16x128xf32>
    %84 = vector.shape_cast %77 : vector<16x128xf32> to vector<16x1x128xf32>
    %85 = vector.broadcast %84 : vector<16x1x128xf32> to vector<16x8x128xf32>
    %86 = arith.mulf %85, %0 : vector<16x8x128xf32>
    %cst_33 = arith.constant dense<0.000000e+00> : vector<8x128xf32>
    %87 = vector.multi_reduction <add>, %86, %cst_33 [0] : vector<16x8x128xf32> to vector<8x128xf32>
    %88 = vector.shape_cast %87 : vector<8x128xf32> to vector<1x1x8x128xf32>
    %89 = vector.shape_cast %80 : vector<16x128xf32> to vector<1x16x1x128xf32>
    %90 = vector.broadcast %89 : vector<1x16x1x128xf32> to vector<8x16x8x128xf32>
    %91 = arith.mulf %90, %1 : vector<8x16x8x128xf32>
    %92 = vector.broadcast %88 : vector<1x1x8x128xf32> to vector<8x16x8x128xf32>
    %93 = arith.addf %92, %91 : vector<8x16x8x128xf32>
    %94 = math.tanh %93 : vector<8x16x8x128xf32>
    %95 = vector.shape_cast %83 : vector<16x128xf32> to vector<1x16x1x128xf32>
    %96 = vector.broadcast %95 : vector<1x16x1x128xf32> to vector<8x16x8x128xf32>
    %97 = arith.mulf %96, %94 : vector<8x16x8x128xf32>
    %98 = arith.addf %74, %97 : vector<8x16x8x128xf32>
    %c4_i32 = arith.constant 4 : i32
    %99 = arith.index_cast %c4_i32 : i32 to index
    %c0_34 = arith.constant 0 : index
    %c0_35 = arith.constant 0 : index
    %100 = vector.load %arg3[%99, %c0_34, %c0_35] : memref<8x16x128xf32, #tpu.memory_space<vmem>>, vector<1x16x128xf32>
    %101 = vector.shape_cast %100 : vector<1x16x128xf32> to vector<16x128xf32>
    %102 = arith.index_cast %c4_i32 : i32 to index
    %c0_36 = arith.constant 0 : index
    %c0_37 = arith.constant 0 : index
    %103 = vector.load %arg4[%102, %c0_36, %c0_37] : memref<8x16x128xf32, #tpu.memory_space<vmem>>, vector<1x16x128xf32>
    %104 = vector.shape_cast %103 : vector<1x16x128xf32> to vector<16x128xf32>
    %105 = arith.index_cast %c4_i32 : i32 to index
    %c0_38 = arith.constant 0 : index
    %c0_39 = arith.constant 0 : index
    %106 = vector.load %arg5[%105, %c0_38, %c0_39] : memref<8x16x128xf32, #tpu.memory_space<vmem>>, vector<1x16x128xf32>
    %107 = vector.shape_cast %106 : vector<1x16x128xf32> to vector<16x128xf32>
    %108 = vector.shape_cast %101 : vector<16x128xf32> to vector<16x1x128xf32>
    %109 = vector.broadcast %108 : vector<16x1x128xf32> to vector<16x8x128xf32>
    %110 = arith.mulf %109, %0 : vector<16x8x128xf32>
    %cst_40 = arith.constant dense<0.000000e+00> : vector<8x128xf32>
    %111 = vector.multi_reduction <add>, %110, %cst_40 [0] : vector<16x8x128xf32> to vector<8x128xf32>
    %112 = vector.shape_cast %111 : vector<8x128xf32> to vector<1x1x8x128xf32>
    %113 = vector.shape_cast %104 : vector<16x128xf32> to vector<1x16x1x128xf32>
    %114 = vector.broadcast %113 : vector<1x16x1x128xf32> to vector<8x16x8x128xf32>
    %115 = arith.mulf %114, %1 : vector<8x16x8x128xf32>
    %116 = vector.broadcast %112 : vector<1x1x8x128xf32> to vector<8x16x8x128xf32>
    %117 = arith.addf %116, %115 : vector<8x16x8x128xf32>
    %118 = math.tanh %117 : vector<8x16x8x128xf32>
    %119 = vector.shape_cast %107 : vector<16x128xf32> to vector<1x16x1x128xf32>
    %120 = vector.broadcast %119 : vector<1x16x1x128xf32> to vector<8x16x8x128xf32>
    %121 = arith.mulf %120, %118 : vector<8x16x8x128xf32>
    %122 = arith.addf %98, %121 : vector<8x16x8x128xf32>
    %c5_i32 = arith.constant 5 : i32
    %123 = arith.index_cast %c5_i32 : i32 to index
    %c0_41 = arith.constant 0 : index
    %c0_42 = arith.constant 0 : index
    %124 = vector.load %arg3[%123, %c0_41, %c0_42] : memref<8x16x128xf32, #tpu.memory_space<vmem>>, vector<1x16x128xf32>
    %125 = vector.shape_cast %124 : vector<1x16x128xf32> to vector<16x128xf32>
    %126 = arith.index_cast %c5_i32 : i32 to index
    %c0_43 = arith.constant 0 : index
    %c0_44 = arith.constant 0 : index
    %127 = vector.load %arg4[%126, %c0_43, %c0_44] : memref<8x16x128xf32, #tpu.memory_space<vmem>>, vector<1x16x128xf32>
    %128 = vector.shape_cast %127 : vector<1x16x128xf32> to vector<16x128xf32>
    %129 = arith.index_cast %c5_i32 : i32 to index
    %c0_45 = arith.constant 0 : index
    %c0_46 = arith.constant 0 : index
    %130 = vector.load %arg5[%129, %c0_45, %c0_46] : memref<8x16x128xf32, #tpu.memory_space<vmem>>, vector<1x16x128xf32>
    %131 = vector.shape_cast %130 : vector<1x16x128xf32> to vector<16x128xf32>
    %132 = vector.shape_cast %125 : vector<16x128xf32> to vector<16x1x128xf32>
    %133 = vector.broadcast %132 : vector<16x1x128xf32> to vector<16x8x128xf32>
    %134 = arith.mulf %133, %0 : vector<16x8x128xf32>
    %cst_47 = arith.constant dense<0.000000e+00> : vector<8x128xf32>
    %135 = vector.multi_reduction <add>, %134, %cst_47 [0] : vector<16x8x128xf32> to vector<8x128xf32>
    %136 = vector.shape_cast %135 : vector<8x128xf32> to vector<1x1x8x128xf32>
    %137 = vector.shape_cast %128 : vector<16x128xf32> to vector<1x16x1x128xf32>
    %138 = vector.broadcast %137 : vector<1x16x1x128xf32> to vector<8x16x8x128xf32>
    %139 = arith.mulf %138, %1 : vector<8x16x8x128xf32>
    %140 = vector.broadcast %136 : vector<1x1x8x128xf32> to vector<8x16x8x128xf32>
    %141 = arith.addf %140, %139 : vector<8x16x8x128xf32>
    %142 = math.tanh %141 : vector<8x16x8x128xf32>
    %143 = vector.shape_cast %131 : vector<16x128xf32> to vector<1x16x1x128xf32>
    %144 = vector.broadcast %143 : vector<1x16x1x128xf32> to vector<8x16x8x128xf32>
    %145 = arith.mulf %144, %142 : vector<8x16x8x128xf32>
    %146 = arith.addf %122, %145 : vector<8x16x8x128xf32>
    %c6_i32 = arith.constant 6 : i32
    %147 = arith.index_cast %c6_i32 : i32 to index
    %c0_48 = arith.constant 0 : index
    %c0_49 = arith.constant 0 : index
    %148 = vector.load %arg3[%147, %c0_48, %c0_49] : memref<8x16x128xf32, #tpu.memory_space<vmem>>, vector<1x16x128xf32>
    %149 = vector.shape_cast %148 : vector<1x16x128xf32> to vector<16x128xf32>
    %150 = arith.index_cast %c6_i32 : i32 to index
    %c0_50 = arith.constant 0 : index
    %c0_51 = arith.constant 0 : index
    %151 = vector.load %arg4[%150, %c0_50, %c0_51] : memref<8x16x128xf32, #tpu.memory_space<vmem>>, vector<1x16x128xf32>
    %152 = vector.shape_cast %151 : vector<1x16x128xf32> to vector<16x128xf32>
    %153 = arith.index_cast %c6_i32 : i32 to index
    %c0_52 = arith.constant 0 : index
    %c0_53 = arith.constant 0 : index
    %154 = vector.load %arg5[%153, %c0_52, %c0_53] : memref<8x16x128xf32, #tpu.memory_space<vmem>>, vector<1x16x128xf32>
    %155 = vector.shape_cast %154 : vector<1x16x128xf32> to vector<16x128xf32>
    %156 = vector.shape_cast %149 : vector<16x128xf32> to vector<16x1x128xf32>
    %157 = vector.broadcast %156 : vector<16x1x128xf32> to vector<16x8x128xf32>
    %158 = arith.mulf %157, %0 : vector<16x8x128xf32>
    %cst_54 = arith.constant dense<0.000000e+00> : vector<8x128xf32>
    %159 = vector.multi_reduction <add>, %158, %cst_54 [0] : vector<16x8x128xf32> to vector<8x128xf32>
    %160 = vector.shape_cast %159 : vector<8x128xf32> to vector<1x1x8x128xf32>
    %161 = vector.shape_cast %152 : vector<16x128xf32> to vector<1x16x1x128xf32>
    %162 = vector.broadcast %161 : vector<1x16x1x128xf32> to vector<8x16x8x128xf32>
    %163 = arith.mulf %162, %1 : vector<8x16x8x128xf32>
    %164 = vector.broadcast %160 : vector<1x1x8x128xf32> to vector<8x16x8x128xf32>
    %165 = arith.addf %164, %163 : vector<8x16x8x128xf32>
    %166 = math.tanh %165 : vector<8x16x8x128xf32>
    %167 = vector.shape_cast %155 : vector<16x128xf32> to vector<1x16x1x128xf32>
    %168 = vector.broadcast %167 : vector<1x16x1x128xf32> to vector<8x16x8x128xf32>
    %169 = arith.mulf %168, %166 : vector<8x16x8x128xf32>
    %170 = arith.addf %146, %169 : vector<8x16x8x128xf32>
    %c7_i32 = arith.constant 7 : i32
    %171 = arith.index_cast %c7_i32 : i32 to index
    %c0_55 = arith.constant 0 : index
    %c0_56 = arith.constant 0 : index
    %172 = vector.load %arg3[%171, %c0_55, %c0_56] : memref<8x16x128xf32, #tpu.memory_space<vmem>>, vector<1x16x128xf32>
    %173 = vector.shape_cast %172 : vector<1x16x128xf32> to vector<16x128xf32>
    %174 = arith.index_cast %c7_i32 : i32 to index
    %c0_57 = arith.constant 0 : index
    %c0_58 = arith.constant 0 : index
    %175 = vector.load %arg4[%174, %c0_57, %c0_58] : memref<8x16x128xf32, #tpu.memory_space<vmem>>, vector<1x16x128xf32>
    %176 = vector.shape_cast %175 : vector<1x16x128xf32> to vector<16x128xf32>
    %177 = arith.index_cast %c7_i32 : i32 to index
    %c0_59 = arith.constant 0 : index
    %c0_60 = arith.constant 0 : index
    %178 = vector.load %arg5[%177, %c0_59, %c0_60] : memref<8x16x128xf32, #tpu.memory_space<vmem>>, vector<1x16x128xf32>
    %179 = vector.shape_cast %178 : vector<1x16x128xf32> to vector<16x128xf32>
    %180 = vector.shape_cast %173 : vector<16x128xf32> to vector<16x1x128xf32>
    %181 = vector.broadcast %180 : vector<16x1x128xf32> to vector<16x8x128xf32>
    %182 = arith.mulf %181, %0 : vector<16x8x128xf32>
    %cst_61 = arith.constant dense<0.000000e+00> : vector<8x128xf32>
    %183 = vector.multi_reduction <add>, %182, %cst_61 [0] : vector<16x8x128xf32> to vector<8x128xf32>
    %184 = vector.shape_cast %183 : vector<8x128xf32> to vector<1x1x8x128xf32>
    %185 = vector.shape_cast %176 : vector<16x128xf32> to vector<1x16x1x128xf32>
    %186 = vector.broadcast %185 : vector<1x16x1x128xf32> to vector<8x16x8x128xf32>
    %187 = arith.mulf %186, %1 : vector<8x16x8x128xf32>
    %188 = vector.broadcast %184 : vector<1x1x8x128xf32> to vector<8x16x8x128xf32>
    %189 = arith.addf %188, %187 : vector<8x16x8x128xf32>
    %190 = math.tanh %189 : vector<8x16x8x128xf32>
    %191 = vector.shape_cast %179 : vector<16x128xf32> to vector<1x16x1x128xf32>
    %192 = vector.broadcast %191 : vector<1x16x1x128xf32> to vector<8x16x8x128xf32>
    %193 = arith.mulf %192, %190 : vector<8x16x8x128xf32>
    %194 = arith.addf %170, %193 : vector<8x16x8x128xf32>
    %c8_i32 = arith.constant 8 : i32
    %cst_62 = arith.constant dense<0xFF800000> : vector<16x8x128xf32>
    %195 = vector.multi_reduction <maximumf>, %194, %cst_62 [0] : vector<8x16x8x128xf32> to vector<16x8x128xf32>
    %196 = vector.shape_cast %195 : vector<16x8x128xf32> to vector<1x16x8x128xf32>
    %197 = vector.broadcast %196 : vector<1x16x8x128xf32> to vector<8x16x8x128xf32>
    %198 = arith.subf %194, %197 : vector<8x16x8x128xf32>
    %199 = math.exp %198 : vector<8x16x8x128xf32>
    %cst_63 = arith.constant dense<0.000000e+00> : vector<16x8x128xf32>
    %200 = vector.multi_reduction <add>, %199, %cst_63 [0] : vector<8x16x8x128xf32> to vector<16x8x128xf32>
    %201 = vector.shape_cast %200 : vector<16x8x128xf32> to vector<1x16x8x128xf32>
    %202 = tpu.reciprocal %201 {approx = true} : vector<1x16x8x128xf32> -> vector<1x16x8x128xf32>
    %203 = vector.broadcast %202 : vector<1x16x8x128xf32> to vector<8x16x8x128xf32>
    %204 = arith.mulf %199, %203 : vector<8x16x8x128xf32>
    %205 = arith.mulf %204, %1 : vector<8x16x8x128xf32>
    %cst_64 = arith.constant dense<0.000000e+00> : vector<16x8x128xf32>
    %206 = vector.multi_reduction <add>, %205, %cst_64 [0] : vector<8x16x8x128xf32> to vector<16x8x128xf32>
    %c0_65 = arith.constant 0 : index
    %c0_66 = arith.constant 0 : index
    %c0_67 = arith.constant 0 : index
    %207 = vector.load %arg6[%c0_65, %c0_66, %c0_67] : memref<16x32x128xf32, #tpu.memory_space<vmem>>, vector<16x32x128xf32>
    %c0_68 = arith.constant 0 : index
    %c0_69 = arith.constant 0 : index
    %208 = vector.load %arg7[%c0_68, %c0_69] : memref<32x128xf32, #tpu.memory_space<vmem>>, vector<32x128xf32>
    %209 = vector.shape_cast %206 : vector<16x8x128xf32> to vector<16x8x1x128xf32>
    %210 = vector.shape_cast %207 : vector<16x32x128xf32> to vector<16x1x32x128xf32>
    %211 = vector.broadcast %209 : vector<16x8x1x128xf32> to vector<16x8x32x128xf32>
    %212 = vector.broadcast %210 : vector<16x1x32x128xf32> to vector<16x8x32x128xf32>
    %213 = arith.mulf %211, %212 : vector<16x8x32x128xf32>
    %cst_70 = arith.constant dense<0.000000e+00> : vector<8x32x128xf32>
    %214 = vector.multi_reduction <add>, %213, %cst_70 [0] : vector<16x8x32x128xf32> to vector<8x32x128xf32>
    %215 = vector.shape_cast %208 : vector<32x128xf32> to vector<1x32x128xf32>
    %216 = vector.broadcast %215 : vector<1x32x128xf32> to vector<8x32x128xf32>
    %217 = arith.addf %214, %216 : vector<8x32x128xf32>
    %c0_71 = arith.constant 0 : index
    %c0_72 = arith.constant 0 : index
    %c0_73 = arith.constant 0 : index
    %218 = vector.load %arg8[%c0_71, %c0_72, %c0_73] : memref<8x32x128xf32, #tpu.memory_space<vmem>>, vector<8x32x128xf32>
    tpu.vector_store %arg8[%c0_71, %c0_72, %c0_73], %217 {strides = array<i32>} : memref<8x32x128xf32, #tpu.memory_space<vmem>>, vector<8x32x128xf32>,
    return
  }
  func.func @transform_0(%arg0: i32) -> (i32, i32, i32) {
    %c0_i32 = arith.constant 0 : i32
    %c0_i32_0 = arith.constant 0 : i32
    %c0_i32_1 = arith.constant 0 : i32
    return %c0_i32, %arg0, %c0_i32_0 : i32, i32, i32
  }
  func.func @transform_1(%arg0: i32) -> (i32, i32, i32, i32) {
    %c0_i32 = arith.constant 0 : i32
    %c0_i32_0 = arith.constant 0 : i32
    %c0_i32_1 = arith.constant 0 : i32
    %c0_i32_2 = arith.constant 0 : i32
    return %c0_i32, %c0_i32_0, %arg0, %c0_i32_1 : i32, i32, i32, i32
  }
  func.func @transform_2(%arg0: i32) -> (i32, i32, i32) {
    %c0_i32 = arith.constant 0 : i32
    %c0_i32_0 = arith.constant 0 : i32
    %c0_i32_1 = arith.constant 0 : i32
    %c0_i32_2 = arith.constant 0 : i32
    return %c0_i32, %c0_i32_0, %c0_i32_1 : i32, i32, i32
  }
  func.func @transform_3(%arg0: i32) -> (i32, i32, i32) {
    %c0_i32 = arith.constant 0 : i32
    %c0_i32_0 = arith.constant 0 : i32
    %c0_i32_1 = arith.constant 0 : i32
    %c0_i32_2 = arith.constant 0 : i32
    return %c0_i32, %c0_i32_0, %c0_i32_1 : i32, i32, i32
  }
  func.func @transform_4(%arg0: i32) -> (i32, i32, i32) {
    %c0_i32 = arith.constant 0 : i32
    %c0_i32_0 = arith.constant 0 : i32
    %c0_i32_1 = arith.constant 0 : i32
    %c0_i32_2 = arith.constant 0 : i32
    return %c0_i32, %c0_i32_0, %c0_i32_1 : i32, i32, i32
  }
  func.func @transform_5(%arg0: i32) -> (i32, i32, i32) {
    %c0_i32 = arith.constant 0 : i32
    %c0_i32_0 = arith.constant 0 : i32
    %c0_i32_1 = arith.constant 0 : i32
    %c0_i32_2 = arith.constant 0 : i32
    return %c0_i32, %c0_i32_0, %c0_i32_1 : i32, i32, i32
  }
  func.func @transform_6(%arg0: i32) -> (i32, i32) {
    %c0_i32 = arith.constant 0 : i32
    %c0_i32_0 = arith.constant 0 : i32
    %c0_i32_1 = arith.constant 0 : i32
    return %c0_i32, %c0_i32_0 : i32, i32
  }
  func.func @transform_7(%arg0: i32) -> (i32, i32, i32) {
    %c0_i32 = arith.constant 0 : i32
    %c0_i32_0 = arith.constant 0 : i32
    %c0_i32_1 = arith.constant 0 : i32
    return %arg0, %c0_i32, %c0_i32_0 : i32, i32, i32
  }
}

</mosaic_0001>

<llo_original>
// kernel: tpu_custom_call.1
$region0: #{tpu_custom_call.1}
  #allocation0 [shape = 'u32[]', space=smem, size = 0x4, offset = 0x4, fixed_abs, tag = 'smem constant byte address 0x4 - core index']
  #allocation1 [shape = 'u32[72,128]{1,0:T(1,128)}', space=vmem, size = 0x9000, scoped, tag = 'internal scratch']
  %s0 = inlined_call_operand.hbm [shape: f32[16,16,128], index: 0, kind: input, shape index: {}]
  %s1 = inlined_call_operand.hbm [shape: f32[8,16,16,128], index: 1, kind: input, shape index: {}]
  %s2 = inlined_call_operand.hbm [shape: f32[8,16,128], index: 2, kind: input, shape index: {}]
  %s3 = inlined_call_operand.hbm [shape: f32[8,16,128], index: 3, kind: input, shape index: {}]
  %s4 = inlined_call_operand.hbm [shape: f32[8,16,128], index: 4, kind: input, shape index: {}]
  %s5 = inlined_call_operand.hbm [shape: f32[16,32,128], index: 5, kind: input, shape index: {}]
  %s6 = inlined_call_operand.hbm [shape: f32[32,128], index: 6, kind: input, shape index: {}]
  %s7 = inlined_call_operand.hbm [shape: f32[16,32,128], index: 7, kind: output, shape index: {}]
  %s8 = sld [smem:[#allocation0]]
  $region89: #{tpu_custom_call.1} parent=0
    _
  %s10 = ssub.s32 1, %s8
  %s11 = scalar_select 0, %s10, %s8
  $region1: #{tpu_custom_call.1} parent=0
    #allocation2 [shape = 'u8[131072]{0}', space=vmem, size = 0x20000, scoped, tag = 'input window, operand 0']
    #allocation3 [shape = 's32[2]{0}', space=sflag, size = 0x8, scoped, tag = 'scoped memory for tpu_custom_call.1']
    #allocation4 [shape = 's32[2]{0}', space=sflag, size = 0x8, scoped, tag = 'scoped memory for tpu_custom_call.1']
    #allocation5 [shape = 'u8[1048576]{0}', space=vmem, size = 0x100000, scoped, tag = 'input window, operand 1']
    #allocation6 [shape = 's32[2]{0}', space=sflag, size = 0x8, scoped, tag = 'scoped memory for tpu_custom_call.1']
    #allocation7 [shape = 'u8[65536]{0}', space=vmem, size = 0x10000, scoped, tag = 'input window, operand 2, single buffered']
    #allocation8 [shape = 'u8[65536]{0}', space=vmem, size = 0x10000, scoped, tag = 'input window, operand 3, single buffered']
    #allocation9 [shape = 's32[1]{0}', space=sflag, size = 0x4, scoped, tag = 'scoped memory for tpu_custom_call.1']
    #allocation10 [shape = 'u8[65536]{0}', space=vmem, size = 0x10000, scoped, tag = 'input window, operand 4, single buffered']
    #allocation11 [shape = 'u8[262144]{0}', space=vmem, size = 0x40000, scoped, tag = 'input window, operand 5, single buffered']
    #allocation12 [shape = 's32[1]{0}', space=sflag, size = 0x4, scoped, tag = 'scoped memory for tpu_custom_call.1']
    #allocation13 [shape = 'u8[16384]{0}', space=vmem, size = 0x4000, scoped, tag = 'input window, operand 6, single buffered']
    #allocation14 [shape = 'u8[262144]{0}', space=vmem, size = 0x40000, scoped, tag = 'output window, operand 0']
    %12 = vsyncpa [#allocation3], 0
    %s13 = scalar_lea.sflag [#allocation3], 1
    %14 = vsyncpa %s13, 0
    %15 = vsyncpa [#allocation6], 0
    %s16 = scalar_lea.sflag [#allocation6], 1
    %17 = vsyncpa %s16, 0
    %18 = vsyncpa [#allocation9], 0
    %19 = vsyncpa [#allocation12], 0
    %20 = vsyncpa [#allocation4], 0
    %s21 = scalar_lea.sflag [#allocation4], 1
    %22 = vsyncpa %s21, 0
    loop: start=0, step=1, limit=4
    $region2: #{tpu_custom_call.1} parent=1 // loop_pre_header
      _
    $region3: #{tpu_custom_call.1} parent=1 // loop_header
      %s24 = sphi 0, %s28
      %p25 = scmp.ge.s32.totalorder %s24, 4
      %s34 = sphi 0, %s36
      %s37 = sphi 0, %s34
      %s38 = sphi 0, %s37
      %s54 = sphi 0, %s38
      %s60 = sphi 0, %s62
      %s63 = sphi 0, %s60
      %s64 = sphi 0, %s63
      %s80 = sphi 0, %s64
      %s84 = sphi 0, %s84
      %s86 = sphi 0, %s84
      %s87 = sphi 0, %s86
      %s101 = sphi 0, %s87
      %s105 = sphi 0, %s105
      %s107 = sphi 0, %s105
      %s108 = sphi 0, %s107
      %s122 = sphi 0, %s108
      %s126 = sphi 0, %s126
      %s128 = sphi 0, %s126
      %s129 = sphi 0, %s128
      %s143 = sphi 0, %s129
      %s147 = sphi 0, %s147
      %s149 = sphi 0, %s147
      %s150 = sphi 0, %s149
      %s164 = sphi 0, %s150
      %s168 = sphi 0, %s168
      %s170 = sphi 0, %s168
      %s171 = sphi 0, %s170
      %s185 = sphi 0, %s171
      %s191 = sphi 0, %s193
      %s194 = sphi 0, %s191
      %s195 = sphi 0, %s194
      %s211 = sphi 0, %s195
    $region4: #{tpu_custom_call.1} parent=1 // loop_header_branch
      %27 = sbr.rel (%p25) target = $region8
    $region5: #{tpu_custom_call.1} parent=1 // loop_body
      %s29 = ssub.s32 %s24, 1
      %s30 = ssub.s32 %s24, 2
      %s31 = sadd.s32 %s24, 1
      %s32 = ssub.s32 %s24, %s31
      %p33 = scmp.eq.s32.totalorder %s32, 0
      %s35 = sadd.s32 %s34, 1
      %s36 = scalar_select %p33, %s34, %s35
      %p39 = pneg %p33
      %p40 = scmp.eq.s32.totalorder %s24, 1
      %p41 = por %p39, %p40
      %p42 = scmp.ne.s32.totalorder %s34, %s37
      %p43 = scmp.eq.s32.totalorder %s24, 0
      %p44 = por %p42, %p43
      %p45 = scmp.ne.s32.totalorder %s34, %s37
      %p46 = scmp.eq.s32.totalorder %s29, 1
      %p47 = por %p45, %p46
      %p48 = scmp.ne.s32.totalorder %s37, %s38
      %p49 = scmp.eq.s32.totalorder %s29, 0
      %p50 = por %p48, %p49
      %p51 = scmp.ne.s32.totalorder %s37, %s38
      %p52 = scmp.eq.s32.totalorder %s30, 1
      %p53 = por %p51, %p52
      %p55 = scmp.ne.s32.totalorder %s38, %s54
      %p56 = scmp.eq.s32.totalorder %s30, 0
      %p57 = por %p55, %p56
      %s58 = ssub.s32 %s24, %s31
      %p59 = scmp.eq.s32.totalorder %s58, 0
      %s61 = sadd.s32 %s60, 1
      %s62 = scalar_select %p59, %s60, %s61
      %p65 = pneg %p59
      %p66 = scmp.eq.s32.totalorder %s24, 1
      %p67 = por %p65, %p66
      %p68 = scmp.ne.s32.totalorder %s60, %s63
      %p69 = scmp.eq.s32.totalorder %s24, 0
      %p70 = por %p68, %p69
      %p71 = scmp.ne.s32.totalorder %s60, %s63
      %p72 = scmp.eq.s32.totalorder %s29, 1
      %p73 = por %p71, %p72
      %p74 = scmp.ne.s32.totalorder %s63, %s64
      %p75 = scmp.eq.s32.totalorder %s29, 0
      %p76 = por %p74, %p75
      %p77 = scmp.ne.s32.totalorder %s63, %s64
      %p78 = scmp.eq.s32.totalorder %s30, 1
      %p79 = por %p77, %p78
      %p81 = scmp.ne.s32.totalorder %s64, %s80
      %p82 = scmp.eq.s32.totalorder %s30, 0
      %p83 = por %p81, %p82
      %s85 = sadd.s32 %s84, 1
      %p88 = scmp.eq.s32.totalorder %s24, 1
      %p89 = scmp.ne.s32.totalorder %s84, %s86
      %p90 = scmp.eq.s32.totalorder %s24, 0
      %p91 = por %p89, %p90
      %p92 = scmp.ne.s32.totalorder %s84, %s86
      %p93 = scmp.eq.s32.totalorder %s29, 1
      %p94 = por %p92, %p93
      %p95 = scmp.ne.s32.totalorder %s86, %s87
      %p96 = scmp.eq.s32.totalorder %s29, 0
      %p97 = por %p95, %p96
      %p98 = scmp.ne.s32.totalorder %s86, %s87
      %p99 = scmp.eq.s32.totalorder %s30, 1
      %p100 = por %p98, %p99
      %p102 = scmp.ne.s32.totalorder %s87, %s101
      %p103 = scmp.eq.s32.totalorder %s30, 0
      %p104 = por %p102, %p103
      %s106 = sadd.s32 %s105, 1
      %p109 = scmp.eq.s32.totalorder %s24, 1
      %p110 = scmp.ne.s32.totalorder %s105, %s107
      %p111 = scmp.eq.s32.totalorder %s24, 0
      %p112 = por %p110, %p111
      %p113 = scmp.ne.s32.totalorder %s105, %s107
      %p114 = scmp.eq.s32.totalorder %s29, 1
      %p115 = por %p113, %p114
      %p116 = scmp.ne.s32.totalorder %s107, %s108
      %p117 = scmp.eq.s32.totalorder %s29, 0
      %p118 = por %p116, %p117
      %p119 = scmp.ne.s32.totalorder %s107, %s108
      %p120 = scmp.eq.s32.totalorder %s30, 1
      %p121 = por %p119, %p120
      %p123 = scmp.ne.s32.totalorder %s108, %s122
      %p124 = scmp.eq.s32.totalorder %s30, 0
      %p125 = por %p123, %p124
      %s127 = sadd.s32 %s126, 1
      %p130 = scmp.eq.s32.totalorder %s24, 1
      %p131 = scmp.ne.s32.totalorder %s126, %s128
      %p132 = scmp.eq.s32.totalorder %s24, 0
      %p133 = por %p131, %p132
      %p134 = scmp.ne.s32.totalorder %s126, %s128
      %p135 = scmp.eq.s32.totalorder %s29, 1
      %p136 = por %p134, %p135
      %p137 = scmp.ne.s32.totalorder %s128, %s129
      %p138 = scmp.eq.s32.totalorder %s29, 0
      %p139 = por %p137, %p138
      %p140 = scmp.ne.s32.totalorder %s128, %s129
      %p141 = scmp.eq.s32.totalorder %s30, 1
      %p142 = por %p140, %p141
      %p144 = scmp.ne.s32.totalorder %s129, %s143
      %p145 = scmp.eq.s32.totalorder %s30, 0
      %p146 = por %p144, %p145
      %s148 = sadd.s32 %s147, 1
      %p151 = scmp.eq.s32.totalorder %s24, 1
      %p152 = scmp.ne.s32.totalorder %s147, %s149
      %p153 = scmp.eq.s32.totalorder %s24, 0
      %p154 = por %p152, %p153
      %p155 = scmp.ne.s32.totalorder %s147, %s149
      %p156 = scmp.eq.s32.totalorder %s29, 1
      %p157 = por %p155, %p156
      %p158 = scmp.ne.s32.totalorder %s149, %s150
      %p159 = scmp.eq.s32.totalorder %s29, 0
      %p160 = por %p158, %p159
      %p161 = scmp.ne.s32.totalorder %s149, %s150
      %p162 = scmp.eq.s32.totalorder %s30, 1
      %p163 = por %p161, %p162
      %p165 = scmp.ne.s32.totalorder %s150, %s164
      %p166 = scmp.eq.s32.totalorder %s30, 0
      %p167 = por %p165, %p166
      %s169 = sadd.s32 %s168, 1
      %p172 = scmp.eq.s32.totalorder %s24, 1
      %p173 = scmp.ne.s32.totalorder %s168, %s170
      %p174 = scmp.eq.s32.totalorder %s24, 0
      %p175 = por %p173, %p174
      %p176 = scmp.ne.s32.totalorder %s168, %s170
      %p177 = scmp.eq.s32.totalorder %s29, 1
      %p178 = por %p176, %p177
      %p179 = scmp.ne.s32.totalorder %s170, %s171
      %p180 = scmp.eq.s32.totalorder %s29, 0
      %p181 = por %p179, %p180
      %p182 = scmp.ne.s32.totalorder %s170, %s171
      %p183 = scmp.eq.s32.totalorder %s30, 1
      %p184 = por %p182, %p183
      %p186 = scmp.ne.s32.totalorder %s171, %s185
      %p187 = scmp.eq.s32.totalorder %s30, 0
      %p188 = por %p186, %p187
      %s189 = ssub.s32 %s24, %s31
      %p190 = scmp.eq.s32.totalorder %s189, 0
      %s192 = sadd.s32 %s191, 1
      %s193 = scalar_select %p190, %s191, %s192
      %p196 = pneg %p190
      %p197 = scmp.eq.s32.totalorder %s24, 1
      %p198 = por %p196, %p197
      %p199 = scmp.ne.s32.totalorder %s191, %s194
      %p200 = scmp.eq.s32.totalorder %s24, 0
      %p201 = por %p199, %p200
      %p202 = scmp.ne.s32.totalorder %s191, %s194
      %p203 = scmp.eq.s32.totalorder %s29, 1
      %p204 = por %p202, %p203
      %p205 = scmp.ne.s32.totalorder %s194, %s195
      %p206 = scmp.eq.s32.totalorder %s29, 0
      %p207 = por %p205, %p206
      %p208 = scmp.ne.s32.totalorder %s194, %s195
      %p209 = scmp.eq.s32.totalorder %s30, 1
      %p210 = por %p208, %p209
      %p212 = scmp.ne.s32.totalorder %s195, %s211
      %p213 = scmp.eq.s32.totalorder %s30, 0
      %p214 = por %p212, %p213
      %p215 = scmp.le.s32.totalorder 1, %s24
      %p216 = scmp.lt.s32.totalorder %s24, 3
      %p217 = pnand %p215, %p216
      %p218 = pneg %p217
      // Predicated region
      $region9: #{tpu_custom_call.1} parent=5 // pred_check
        _
      $region10: #{tpu_custom_call.1} parent=5 // pred_check_branch
        %220 = sbr.rel (%p217) target = $region12
      $region11: #{tpu_custom_call.1} parent=5 // pred_region
        %s221 = ssub.s32 %s24, 1
        // Predicated region
        $region13: #{tpu_custom_call.1} parent=11 // pred_check
          %p222 = pneg %p97
        $region14: #{tpu_custom_call.1} parent=11 // pred_check_branch
          %224 = sbr.rel (%p222) target = $region16
        $region15: #{tpu_custom_call.1} parent=11 // pred_region
          %226 = vsyncadd [#allocation6], 0
          %s227 = sshll.u32 %s2, 4
          %s228 = int_to_ptr.hbm [resolvable:$true] %s227
          %s229 = sshll.u32 [#allocation7], 4
          %s230 = int_to_ptr.vmem [resolvable:$true] %s229
          %235 = dma.hbm_to_vmem [thread:$0]  %s228, 2048, %s230, [#allocation6], 128, 128, 8
        $region16: #{tpu_custom_call.1} parent=11 // pred_fallthru
          _
        // Predicated region
        $region17: #{tpu_custom_call.1} parent=11 // pred_check
          %p236 = pneg %p118
        $region18: #{tpu_custom_call.1} parent=11 // pred_check_branch
          %238 = sbr.rel (%p236) target = $region20
        $region19: #{tpu_custom_call.1} parent=11 // pred_region
          %240 = vsyncadd [#allocation9], 0
          %s241 = sshll.u32 %s3, 4
          %s242 = int_to_ptr.hbm [resolvable:$true] %s241
          %s243 = sshll.u32 [#allocation8], 4
          %s244 = int_to_ptr.vmem [resolvable:$true] %s243
          %249 = dma.hbm_to_vmem [thread:$0]  %s242, 2048, %s244, [#allocation9], 128, 128, 8
        $region20: #{tpu_custom_call.1} parent=11 // pred_fallthru
          _
        // Predicated region
        $region21: #{tpu_custom_call.1} parent=11 // pred_check
          %p250 = pneg %p139
        $region22: #{tpu_custom_call.1} parent=11 // pred_check_branch
          %252 = sbr.rel (%p250) target = $region24
        $region23: #{tpu_custom_call.1} parent=11 // pred_region
          %254 = vsyncadd [#allocation9], 0
          %s255 = sshll.u32 %s4, 4
          %s256 = int_to_ptr.hbm [resolvable:$true] %s255
          %s257 = sshll.u32 [#allocation10], 4
          %s258 = int_to_ptr.vmem [resolvable:$true] %s257
          %263 = dma.hbm_to_vmem [thread:$0]  %s256, 2048, %s258, [#allocation9], 128, 128, 8
        $region24: #{tpu_custom_call.1} parent=11 // pred_fallthru
          _
        // Predicated region
        $region25: #{tpu_custom_call.1} parent=11 // pred_check
          %p264 = pneg %p160
        $region26: #{tpu_custom_call.1} parent=11 // pred_check_branch
          %266 = sbr.rel (%p264) target = $region28
        $region27: #{tpu_custom_call.1} parent=11 // pred_region
          %268 = vsyncadd [#allocation12], 0
          %s269 = sshll.u32 %s5, 4
          %s270 = int_to_ptr.hbm [resolvable:$true] %s269
          %s271 = sshll.u32 [#allocation11], 4
          %s272 = int_to_ptr.vmem [resolvable:$true] %s271
          %277 = dma.hbm_to_vmem [thread:$0]  %s270, 8192, %s272, [#allocation12], 128, 128, 8
        $region28: #{tpu_custom_call.1} parent=11 // pred_fallthru
          _
        // Predicated region
        $region29: #{tpu_custom_call.1} parent=11 // pred_check
          %p278 = pneg %p181
        $region30: #{tpu_custom_call.1} parent=11 // pred_check_branch
          %280 = sbr.rel (%p278) target = $region32
        $region31: #{tpu_custom_call.1} parent=11 // pred_region
          %282 = vsyncadd [#allocation12], 0
          %s283 = sshll.u32 %s6, 4
          %s284 = int_to_ptr.hbm [resolvable:$true] %s283
          %s285 = sshll.u32 [#allocation13], 4
          %s286 = int_to_ptr.vmem [resolvable:$true] %s285
          %291 = dma.hbm_to_vmem [thread:$0]  %s284, 512, %s286, [#allocation12], 128, 128, 8
        $region32: #{tpu_custom_call.1} parent=11 // pred_fallthru
          _
      $region12: #{tpu_custom_call.1} parent=5 // pred_fallthru
        _
      %p292 = scmp.lt.s32.totalorder %s24, 2
      // Predicated region
      $region33: #{tpu_custom_call.1} parent=5 // pred_check
        %p293 = pneg %p292
      $region34: #{tpu_custom_call.1} parent=5 // pred_check_branch
        %295 = sbr.rel (%p293) target = $region36
      $region35: #{tpu_custom_call.1} parent=5 // pred_region
        // Predicated region
        $region37: #{tpu_custom_call.1} parent=35 // pred_check
          %p296 = pneg %p44
        $region38: #{tpu_custom_call.1} parent=35 // pred_check_branch
          %298 = sbr.rel (%p296) target = $region40
        $region39: #{tpu_custom_call.1} parent=35 // pred_region
          %s299 = sand.u32 %s34, 1
          %s300 = scalar_lea.sflag [#allocation3], %s299
          %s301 = sand.u32 %s34, 1
          %s302 = smul.addr %s301, 128
          %s303 = scalar_lea.vmem [#allocation2], %s302
          %305 = vsyncadd %s300, 0
          %s306 = smul.addr %s24, 8
          %s307 = scalar_lea.hbm %s0, %s306
          %s308 = sshll.u32 %s307, 4
          %s309 = int_to_ptr.hbm [resolvable:$true] %s308
          %s310 = sshll.u32 %s303, 4
          %s311 = int_to_ptr.vmem [resolvable:$true] %s310
          %316 = dma.hbm_to_vmem [thread:$0]  %s309, 2048, %s311, %s300, 256, 128, 8
        $region40: #{tpu_custom_call.1} parent=35 // pred_fallthru
          _
        // Predicated region
        $region41: #{tpu_custom_call.1} parent=35 // pred_check
          %p317 = pneg %p70
        $region42: #{tpu_custom_call.1} parent=35 // pred_check_branch
          %319 = sbr.rel (%p317) target = $region44
        $region43: #{tpu_custom_call.1} parent=35 // pred_region
          %s320 = sand.u32 %s24, 1
          %s321 = scalar_lea.sflag [#allocation6], %s320
          %s322 = sand.u32 %s60, 1
          %s323 = smul.addr %s322, 1024
          %s324 = scalar_lea.vmem [#allocation5], %s323
          %326 = vsyncadd %s321, 0
          %s327 = smul.addr %s24, 8
          %s328 = scalar_lea.hbm %s1, %s327
          %s329 = sshll.u32 %s328, 4
          %s330 = int_to_ptr.hbm [resolvable:$true] %s329
          %s331 = sshll.u32 %s324, 4
          %s332 = int_to_ptr.vmem [resolvable:$true] %s331
          %337 = dma.hbm_to_vmem [thread:$0]  %s330, 16384, %s332, %s321, 256, 128, 8
        $region44: #{tpu_custom_call.1} parent=35 // pred_fallthru
          _
      $region36: #{tpu_custom_call.1} parent=5 // pred_fallthru
        _
      %p338 = scmp.le.s32.totalorder 1, %s24
      %p339 = scmp.lt.s32.totalorder %s24, 3
      %p340 = pnand %p338, %p339
      %p341 = pneg %p340
      // Predicated region
      $region45: #{tpu_custom_call.1} parent=5 // pred_check
        _
      $region46: #{tpu_custom_call.1} parent=5 // pred_check_branch
        %343 = sbr.rel (%p340) target = $region48
      $region47: #{tpu_custom_call.1} parent=5 // pred_region
        %s344 = ssub.s32 %s24, 1
        %s345 = sand.u32 %s37, 1
        %s346 = scalar_lea.sflag [#allocation3], %s345
        %s347 = sand.u32 %s37, 1
        %s348 = smul.addr %s347, 128
        %s349 = scalar_lea.vmem [#allocation2], %s348
        // Predicated region
        $region49: #{tpu_custom_call.1} parent=47 // pred_check
          %p350 = pneg %p50
        $region50: #{tpu_custom_call.1} parent=47 // pred_check_branch
          %352 = sbr.rel (%p350) target = $region52
        $region51: #{tpu_custom_call.1} parent=47 // pred_region
          %354 = dma.done %s346, 2048
        $region52: #{tpu_custom_call.1} parent=47 // pred_fallthru
          _
        %s355 = sand.u32 %s29, 1
        %s356 = scalar_lea.sflag [#allocation6], %s355
        %s357 = sand.u32 %s63, 1
        %s358 = smul.addr %s357, 1024
        %s359 = scalar_lea.vmem [#allocation5], %s358
        // Predicated region
        $region53: #{tpu_custom_call.1} parent=47 // pred_check
          %p360 = pneg %p76
        $region54: #{tpu_custom_call.1} parent=47 // pred_check_branch
          %362 = sbr.rel (%p360) target = $region56
        $region55: #{tpu_custom_call.1} parent=47 // pred_region
          %364 = dma.done %s356, 16384
        $region56: #{tpu_custom_call.1} parent=47 // pred_fallthru
          _
        // Predicated region
        $region57: #{tpu_custom_call.1} parent=47 // pred_check
          %p365 = pneg %p97
        $region58: #{tpu_custom_call.1} parent=47 // pred_check_branch
          %367 = sbr.rel (%p365) target = $region60
        $region59: #{tpu_custom_call.1} parent=47 // pred_region
          %369 = dma.done [#allocation6], 2048
        $region60: #{tpu_custom_call.1} parent=47 // pred_fallthru
          _
        // Predicated region
        $region61: #{tpu_custom_call.1} parent=47 // pred_check
          %p370 = pneg %p118
        $region62: #{tpu_custom_call.1} parent=47 // pred_check_branch
          %372 = sbr.rel (%p370) target = $region64
        $region63: #{tpu_custom_call.1} parent=47 // pred_region
          %374 = dma.done [#allocation9], 2048
        $region64: #{tpu_custom_call.1} parent=47 // pred_fallthru
          _
        // Predicated region
        $region65: #{tpu_custom_call.1} parent=47 // pred_check
          %p375 = pneg %p139
        $region66: #{tpu_custom_call.1} parent=47 // pred_check_branch
          %377 = sbr.rel (%p375) target = $region68
        $region67: #{tpu_custom_call.1} parent=47 // pred_region
          %379 = dma.done [#allocation9], 2048
        $region68: #{tpu_custom_call.1} parent=47 // pred_fallthru
          _
        // Predicated region
        $region69: #{tpu_custom_call.1} parent=47 // pred_check
          %p380 = pneg %p160
        $region70: #{tpu_custom_call.1} parent=47 // pred_check_branch
          %382 = sbr.rel (%p380) target = $region72
        $region71: #{tpu_custom_call.1} parent=47 // pred_region
          %384 = dma.done [#allocation12], 8192
        $region72: #{tpu_custom_call.1} parent=47 // pred_fallthru
          _
        // Predicated region
        $region73: #{tpu_custom_call.1} parent=47 // pred_check
          %p385 = pneg %p181
        $region74: #{tpu_custom_call.1} parent=47 // pred_check_branch
          %387 = sbr.rel (%p385) target = $region76
        $region75: #{tpu_custom_call.1} parent=47 // pred_region
          %389 = dma.done [#allocation12], 512
        $region76: #{tpu_custom_call.1} parent=47 // pred_fallthru
          _
        %s390 = sand.u32 %s37, 1
        %s391 = scalar_lea.sflag [#allocation3], %s390
        %s392 = sand.u32 %s37, 1
        %s393 = smul.addr %s392, 128
        %s394 = scalar_lea.vmem [#allocation2], %s393
        %p395 = pneg %p50
        %p396 = pneg %p47
        %s397 = sand.u32 %s29, 1
        %s398 = scalar_lea.sflag [#allocation6], %s397
        %s399 = sand.u32 %s63, 1
        %s400 = smul.addr %s399, 1024
        %s401 = scalar_lea.vmem [#allocation5], %s400
        %p402 = pneg %p76
        %p403 = pneg %p73
        %p404 = pneg %p97
        %p405 = pneg %p94
        %p406 = pneg %p118
        %p407 = pneg %p115
        %p408 = pneg %p139
        %p409 = pneg %p136
        %p410 = pneg %p160
        %p411 = pneg %p157
        %p412 = pneg %p181
        %p413 = pneg %p178
        %p414 = pneg %p207
        %p415 = pneg %p204
        %s416 = sand.u32 %s194, 1
        %s417 = scalar_lea.sflag [#allocation4], %s416
        %s418 = sand.u32 %s194, 1
        %s419 = smul.addr %s418, 256
        %s420 = scalar_lea.vmem [#allocation14], %s419
        %s421 = smul.u32 8, %s29
        %v422 = vld [vmem:[%s349] sm:$0xff]
        %v423 = vld [vmem:[%s349 + $0x8] sm:$0xff]
        %v424 = vld [vmem:[%s349 + $0x10] sm:$0xff]
        %v425 = vld [vmem:[%s349 + $0x18] sm:$0xff]
        %v426 = vld [vmem:[%s349 + $0x20] sm:$0xff]
        %v427 = vld [vmem:[%s349 + $0x28] sm:$0xff]
        %v428 = vld [vmem:[%s349 + $0x30] sm:$0xff]
        %v429 = vld [vmem:[%s349 + $0x38] sm:$0xff]
        %v430 = vld [vmem:[%s349 + $0x40] sm:$0xff]
        %v431 = vld [vmem:[%s349 + $0x48] sm:$0xff]
        %v432 = vld [vmem:[%s349 + $0x50] sm:$0xff]
        %v433 = vld [vmem:[%s349 + $0x58] sm:$0xff]
        %v434 = vld [vmem:[%s349 + $0x60] sm:$0xff]
        %v435 = vld [vmem:[%s349 + $0x68] sm:$0xff]
        %v436 = vld [vmem:[%s349 + $0x70] sm:$0xff]
        %v437 = vld [vmem:[%s349 + $0x78] sm:$0xff]
        %v438 = vld [vmem:[%s359] sm:$0xff]
        %v439 = vld [vmem:[%s359 + $0x8] sm:$0xff]
        %v440 = vld [vmem:[%s359 + $0x10] sm:$0xff]
        %v441 = vld [vmem:[%s359 + $0x18] sm:$0xff]
        %v442 = vld [vmem:[%s359 + $0x20] sm:$0xff]
        %v443 = vld [vmem:[%s359 + $0x28] sm:$0xff]
        %v444 = vld [vmem:[%s359 + $0x30] sm:$0xff]
        %v445 = vld [vmem:[%s359 + $0x38] sm:$0xff]
        %v446 = vld [vmem:[%s359 + $0x40] sm:$0xff]
        %v447 = vld [vmem:[%s359 + $0x48] sm:$0xff]
        %v448 = vld [vmem:[%s359 + $0x50] sm:$0xff]
        %v449 = vld [vmem:[%s359 + $0x58] sm:$0xff]
        %v450 = vld [vmem:[%s359 + $0x60] sm:$0xff]
        %v451 = vld [vmem:[%s359 + $0x68] sm:$0xff]
        %v452 = vld [vmem:[%s359 + $0x70] sm:$0xff]
        %v453 = vld [vmem:[%s359 + $0x78] sm:$0xff]
        %v454 = vld [vmem:[%s359 + $0x80] sm:$0xff]
        %v455 = vld [vmem:[%s359 + $0x88] sm:$0xff]
        %v456 = vld [vmem:[%s359 + $0x90] sm:$0xff]
        %v457 = vld [vmem:[%s359 + $0x98] sm:$0xff]
        %v458 = vld [vmem:[%s359 + $0xa0] sm:$0xff]
        %v459 = vld [vmem:[%s359 + $0xa8] sm:$0xff]
        %v460 = vld [vmem:[%s359 + $0xb0] sm:$0xff]
        %v461 = vld [vmem:[%s359 + $0xb8] sm:$0xff]
        %v462 = vld [vmem:[%s359 + $0xc0] sm:$0xff]
        %v463 = vld [vmem:[%s359 + $0xc8] sm:$0xff]
        %v464 = vld [vmem:[%s359 + $0xd0] sm:$0xff]
        %v465 = vld [vmem:[%s359 + $0xd8] sm:$0xff]
        %v466 = vld [vmem:[%s359 + $0xe0] sm:$0xff]
        %v467 = vld [vmem:[%s359 + $0xe8] sm:$0xff]
        %v468 = vld [vmem:[%s359 + $0xf0] sm:$0xff]
        %v469 = vld [vmem:[%s359 + $0xf8] sm:$0xff]
        %v470 = vld [vmem:[%s359 + $0x100] sm:$0xff]
        %v471 = vld [vmem:[%s359 + $0x108] sm:$0xff]
        %v472 = vld [vmem:[%s359 + $0x110] sm:$0xff]
        %v473 = vld [vmem:[%s359 + $0x118] sm:$0xff]
        %v474 = vld [vmem:[%s359 + $0x120] sm:$0xff]
        %v475 = vld [vmem:[%s359 + $0x128] sm:$0xff]
        %v476 = vld [vmem:[%s359 + $0x130] sm:$0xff]
        %v477 = vld [vmem:[%s359 + $0x138] sm:$0xff]
        %v478 = vld [vmem:[%s359 + $0x140] sm:$0xff]
        %v479 = vld [vmem:[%s359 + $0x148] sm:$0xff]
        %v480 = vld [vmem:[%s359 + $0x150] sm:$0xff]
        %v481 = vld [vmem:[%s359 + $0x158] sm:$0xff]
        %v482 = vld [vmem:[%s359 + $0x160] sm:$0xff]
        %v483 = vld [vmem:[%s359 + $0x168] sm:$0xff]
        %v484 = vld [vmem:[%s359 + $0x170] sm:$0xff]
        %v485 = vld [vmem:[%s359 + $0x178] sm:$0xff]
        %v486 = vld [vmem:[%s359 + $0x180] sm:$0xff]
        %v487 = vld [vmem:[%s359 + $0x188] sm:$0xff]
        %v488 = vld [vmem:[%s359 + $0x190] sm:$0xff]
        %v489 = vld [vmem:[%s359 + $0x198] sm:$0xff]
        %v490 = vld [vmem:[%s359 + $0x1a0] sm:$0xff]
        %v491 = vld [vmem:[%s359 + $0x1a8] sm:$0xff]
        %v492 = vld [vmem:[%s359 + $0x1b0] sm:$0xff]
        %v493 = vld [vmem:[%s359 + $0x1b8] sm:$0xff]
        %v494 = vld [vmem:[%s359 + $0x1c0] sm:$0xff]
        %v495 = vld [vmem:[%s359 + $0x1c8] sm:$0xff]
        %v496 = vld [vmem:[%s359 + $0x1d0] sm:$0xff]
        %v497 = vld [vmem:[%s359 + $0x1d8] sm:$0xff]
        %v498 = vld [vmem:[%s359 + $0x1e0] sm:$0xff]
        %v499 = vld [vmem:[%s359 + $0x1e8] sm:$0xff]
        %v500 = vld [vmem:[%s359 + $0x1f0] sm:$0xff]
        %v501 = vld [vmem:[%s359 + $0x1f8] sm:$0xff]
        %v502 = vld [vmem:[%s359 + $0x200] sm:$0xff]
        %v503 = vld [vmem:[%s359 + $0x208] sm:$0xff]
        %v504 = vld [vmem:[%s359 + $0x210] sm:$0xff]
        %v505 = vld [vmem:[%s359 + $0x218] sm:$0xff]
        %v506 = vld [vmem:[%s359 + $0x220] sm:$0xff]
        %v507 = vld [vmem:[%s359 + $0x228] sm:$0xff]
        %v508 = vld [vmem:[%s359 + $0x230] sm:$0xff]
        %v509 = vld [vmem:[%s359 + $0x238] sm:$0xff]
        %v510 = vld [vmem:[%s359 + $0x240] sm:$0xff]
        %v511 = vld [vmem:[%s359 + $0x248] sm:$0xff]
        %v512 = vld [vmem:[%s359 + $0x250] sm:$0xff]
        %v513 = vld [vmem:[%s359 + $0x258] sm:$0xff]
        %v514 = vld [vmem:[%s359 + $0x260] sm:$0xff]
        %v515 = vld [vmem:[%s359 + $0x268] sm:$0xff]
        %v516 = vld [vmem:[%s359 + $0x270] sm:$0xff]
        %v517 = vld [vmem:[%s359 + $0x278] sm:$0xff]
        %v518 = vld [vmem:[%s359 + $0x280] sm:$0xff]
        %v519 = vld [vmem:[%s359 + $0x288] sm:$0xff]
        %v520 = vld [vmem:[%s359 + $0x290] sm:$0xff]
        %v521 = vld [vmem:[%s359 + $0x298] sm:$0xff]
        %v522 = vld [vmem:[%s359 + $0x2a0] sm:$0xff]
        %v523 = vld [vmem:[%s359 + $0x2a8] sm:$0xff]
        %v524 = vld [vmem:[%s359 + $0x2b0] sm:$0xff]
        %v525 = vld [vmem:[%s359 + $0x2b8] sm:$0xff]
        %v526 = vld [vmem:[%s359 + $0x2c0] sm:$0xff]
        %v527 = vld [vmem:[%s359 + $0x2c8] sm:$0xff]
        %v528 = vld [vmem:[%s359 + $0x2d0] sm:$0xff]
        %v529 = vld [vmem:[%s359 + $0x2d8] sm:$0xff]
        %v530 = vld [vmem:[%s359 + $0x2e0] sm:$0xff]
        %v531 = vld [vmem:[%s359 + $0x2e8] sm:$0xff]
        %v532 = vld [vmem:[%s359 + $0x2f0] sm:$0xff]
        %v533 = vld [vmem:[%s359 + $0x2f8] sm:$0xff]
        %v534 = vld [vmem:[%s359 + $0x300] sm:$0xff]
        %v535 = vld [vmem:[%s359 + $0x308] sm:$0xff]
        %v536 = vld [vmem:[%s359 + $0x310] sm:$0xff]
        %v537 = vld [vmem:[%s359 + $0x318] sm:$0xff]
        %v538 = vld [vmem:[%s359 + $0x320] sm:$0xff]
        %v539 = vld [vmem:[%s359 + $0x328] sm:$0xff]
        %v540 = vld [vmem:[%s359 + $0x330] sm:$0xff]
        %v541 = vld [vmem:[%s359 + $0x338] sm:$0xff]
        %v542 = vld [vmem:[%s359 + $0x340] sm:$0xff]
        %v543 = vld [vmem:[%s359 + $0x348] sm:$0xff]
        %v544 = vld [vmem:[%s359 + $0x350] sm:$0xff]
        %v545 = vld [vmem:[%s359 + $0x358] sm:$0xff]
        %v546 = vld [vmem:[%s359 + $0x360] sm:$0xff]
        %v547 = vld [vmem:[%s359 + $0x368] sm:$0xff]
        %v548 = vld [vmem:[%s359 + $0x370] sm:$0xff]
        %v549 = vld [vmem:[%s359 + $0x378] sm:$0xff]
        %v550 = vld [vmem:[%s359 + $0x380] sm:$0xff]
        %v551 = vld [vmem:[%s359 + $0x388] sm:$0xff]
        %v552 = vld [vmem:[%s359 + $0x390] sm:$0xff]
        %v553 = vld [vmem:[%s359 + $0x398] sm:$0xff]
        %v554 = vld [vmem:[%s359 + $0x3a0] sm:$0xff]
        %v555 = vld [vmem:[%s359 + $0x3a8] sm:$0xff]
        %v556 = vld [vmem:[%s359 + $0x3b0] sm:$0xff]
        %v557 = vld [vmem:[%s359 + $0x3b8] sm:$0xff]
        %v558 = vld [vmem:[%s359 + $0x3c0] sm:$0xff]
        %v559 = vld [vmem:[%s359 + $0x3c8] sm:$0xff]
        %v560 = vld [vmem:[%s359 + $0x3d0] sm:$0xff]
        %v561 = vld [vmem:[%s359 + $0x3d8] sm:$0xff]
        %v562 = vld [vmem:[%s359 + $0x3e0] sm:$0xff]
        %v563 = vld [vmem:[%s359 + $0x3e8] sm:$0xff]
        %v564 = vld [vmem:[%s359 + $0x3f0] sm:$0xff]
        %v565 = vld [vmem:[%s359 + $0x3f8] sm:$0xff]
        %v566 = vld [vmem:[#allocation7] sm:$0xff]
        %v567 = vld [vmem:[#allocation7 + $0x8] sm:$0xff]
        %v568 = vld [vmem:[#allocation8] sm:$0xff]
        %v569 = vld [vmem:[#allocation8 + $0x8] sm:$0xff]
        %v570 = vld [vmem:[#allocation10] sm:$0xff]
        %v571 = vld [vmem:[#allocation10 + $0x8] sm:$0xff]
        %v574 = vrot.slane %v566, 1
        %v575 = vrot.slane %v566, 2
        %v576 = vrot.slane %v566, 3
        %v577 = vrot.slane %v566, 4
        %v578 = vrot.slane %v566, 5
        %v579 = vrot.slane %v566, 6
        %v580 = vrot.slane %v566, 7
        %v581 = vrot.slane %v567, 1
        %v582 = vrot.slane %v567, 2
        %v583 = vrot.slane %v567, 3
        %v584 = vrot.slane %v567, 4
        %v585 = vrot.slane %v567, 5
        %v586 = vrot.slane %v567, 6
        %v587 = vrot.slane %v567, 7
        %v588 = vperm.slane %v566, 0
        %v589 = vperm.slane %v574, 0
        %v590 = vperm.slane %v575, 0
        %v591 = vperm.slane %v576, 0
        %v592 = vperm.slane %v577, 0
        %v593 = vperm.slane %v578, 0
        %v594 = vperm.slane %v579, 0
        %v595 = vperm.slane %v580, 0
        %v596 = vperm.slane %v567, 0
        %v597 = vperm.slane %v581, 0
        %v598 = vperm.slane %v582, 0
        %v599 = vperm.slane %v583, 0
        %v600 = vperm.slane %v584, 0
        %v601 = vperm.slane %v585, 0
        %v602 = vperm.slane %v586, 0
        %v603 = vperm.slane %v587, 0
        %v620 = vmul.f32 %v588, %v422
        %v621 = vmul.f32 %v589, %v423
        %v622 = vmul.f32 %v590, %v424
        %v623 = vmul.f32 %v591, %v425
        %v624 = vmul.f32 %v592, %v426
        %v625 = vmul.f32 %v593, %v427
        %v626 = vmul.f32 %v594, %v428
        %v627 = vmul.f32 %v595, %v429
        %v628 = vmul.f32 %v596, %v430
        %v629 = vmul.f32 %v597, %v431
        %v630 = vmul.f32 %v598, %v432
        %v631 = vmul.f32 %v599, %v433
        %v632 = vmul.f32 %v600, %v434
        %v633 = vmul.f32 %v601, %v435
        %v634 = vmul.f32 %v602, %v436
        %v635 = vmul.f32 %v603, %v437
        %v636 = vadd.f32 %v620, %v621
        %v637 = vadd.f32 %v636, %v622
        %v638 = vadd.f32 %v637, %v623
        %v639 = vadd.f32 %v638, %v624
        %v640 = vadd.f32 %v639, %v625
        %v641 = vadd.f32 %v640, %v626
        %v642 = vadd.f32 %v641, %v627
        %v643 = vadd.f32 %v642, %v628
        %v644 = vadd.f32 %v643, %v629
        %v645 = vadd.f32 %v644, %v630
        %v646 = vadd.f32 %v645, %v631
        %v647 = vadd.f32 %v646, %v632
        %v648 = vadd.f32 %v647, %v633
        %v649 = vadd.f32 %v648, %v634
        %v650 = vadd.f32 %v649, %v635
        %v653 = vrot.slane %v568, 1
        %v654 = vrot.slane %v568, 2
        %v655 = vrot.slane %v568, 3
        %v656 = vrot.slane %v568, 4
        %v657 = vrot.slane %v568, 5
        %v658 = vrot.slane %v568, 6
        %v659 = vrot.slane %v568, 7
        %v660 = vrot.slane %v569, 1
        %v661 = vrot.slane %v569, 2
        %v662 = vrot.slane %v569, 3
        %v663 = vrot.slane %v569, 4
        %v664 = vrot.slane %v569, 5
        %v665 = vrot.slane %v569, 6
        %v666 = vrot.slane %v569, 7
        %v667 = vperm.slane %v568, 0
        %v668 = vperm.slane %v653, 0
        %v669 = vperm.slane %v654, 0
        %v670 = vperm.slane %v655, 0
        %v671 = vperm.slane %v656, 0
        %v672 = vperm.slane %v657, 0
        %v673 = vperm.slane %v658, 0
        %v674 = vperm.slane %v659, 0
        %v675 = vperm.slane %v569, 0
        %v676 = vperm.slane %v660, 0
        %v677 = vperm.slane %v661, 0
        %v678 = vperm.slane %v662, 0
        %v679 = vperm.slane %v663, 0
        %v680 = vperm.slane %v664, 0
        %v681 = vperm.slane %v665, 0
        %v682 = vperm.slane %v666, 0
        %v699 = vmul.f32 %v667, %v438
        %v700 = vmul.f32 %v668, %v439
        %v701 = vmul.f32 %v669, %v440
        %v702 = vmul.f32 %v670, %v441
        %v703 = vmul.f32 %v671, %v442
        %v704 = vmul.f32 %v672, %v443
        %v705 = vmul.f32 %v673, %v444
        %v706 = vmul.f32 %v674, %v445
        %v707 = vmul.f32 %v675, %v446
        %v708 = vmul.f32 %v676, %v447
        %v709 = vmul.f32 %v677, %v448
        %v710 = vmul.f32 %v678, %v449
        %v711 = vmul.f32 %v679, %v450
        %v712 = vmul.f32 %v680, %v451
        %v713 = vmul.f32 %v681, %v452
        %v714 = vmul.f32 %v682, %v453
        %v715 = vmul.f32 %v667, %v454
        %v716 = vmul.f32 %v668, %v455
        %v717 = vmul.f32 %v669, %v456
        %v718 = vmul.f32 %v670, %v457
        %v719 = vmul.f32 %v671, %v458
        %v720 = vmul.f32 %v672, %v459
        %v721 = vmul.f32 %v673, %v460
        %v722 = vmul.f32 %v674, %v461
        %v723 = vmul.f32 %v675, %v462
        %v724 = vmul.f32 %v676, %v463
        %v725 = vmul.f32 %v677, %v464
        %v726 = vmul.f32 %v678, %v465
        %v727 = vmul.f32 %v679, %v466
        %v728 = vmul.f32 %v680, %v467
        %v729 = vmul.f32 %v681, %v468
        %v730 = vmul.f32 %v682, %v469
        %v731 = vmul.f32 %v667, %v470
        %v732 = vmul.f32 %v668, %v471
        %v733 = vmul.f32 %v669, %v472
        %v734 = vmul.f32 %v670, %v473
        %v735 = vmul.f32 %v671, %v474
        %v736 = vmul.f32 %v672, %v475
        %v737 = vmul.f32 %v673, %v476
        %v738 = vmul.f32 %v674, %v477
        %v739 = vmul.f32 %v675, %v478
        %v740 = vmul.f32 %v676, %v479
        %v741 = vmul.f32 %v677, %v480
        %v742 = vmul.f32 %v678, %v481
        %v743 = vmul.f32 %v679, %v482
        %v744 = vmul.f32 %v680, %v483
        %v745 = vmul.f32 %v681, %v484
        %v746 = vmul.f32 %v682, %v485
        %v747 = vmul.f32 %v667, %v486
        %v748 = vmul.f32 %v668, %v487
        %v749 = vmul.f32 %v669, %v488
        %v750 = vmul.f32 %v670, %v489
        %v751 = vmul.f32 %v671, %v490
        %v752 = vmul.f32 %v672, %v491
        %v753 = vmul.f32 %v673, %v492
        %v754 = vmul.f32 %v674, %v493
        %v755 = vmul.f32 %v675, %v494
        %v756 = vmul.f32 %v676, %v495
        %v757 = vmul.f32 %v677, %v496
        %v758 = vmul.f32 %v678, %v497
        %v759 = vmul.f32 %v679, %v498
        %v760 = vmul.f32 %v680, %v499
        %v761 = vmul.f32 %v681, %v500
        %v762 = vmul.f32 %v682, %v501
        %v763 = vmul.f32 %v667, %v502
        %v764 = vmul.f32 %v668, %v503
        %v765 = vmul.f32 %v669, %v504
        %v766 = vmul.f32 %v670, %v505
        %v767 = vmul.f32 %v671, %v506
        %v768 = vmul.f32 %v672, %v507
        %v769 = vmul.f32 %v673, %v508
        %v770 = vmul.f32 %v674, %v509
        %v771 = vmul.f32 %v675, %v510
        %v772 = vmul.f32 %v676, %v511
        %v773 = vmul.f32 %v677, %v512
        %v774 = vmul.f32 %v678, %v513
        %v775 = vmul.f32 %v679, %v514
        %v776 = vmul.f32 %v680, %v515
        %v777 = vmul.f32 %v681, %v516
        %v778 = vmul.f32 %v682, %v517
        %v779 = vmul.f32 %v667, %v518
        %v780 = vmul.f32 %v668, %v519
        %v781 = vmul.f32 %v669, %v520
        %v782 = vmul.f32 %v670, %v521
        %v783 = vmul.f32 %v671, %v522
        %v784 = vmul.f32 %v672, %v523
        %v785 = vmul.f32 %v673, %v524
        %v786 = vmul.f32 %v674, %v525
        %v787 = vmul.f32 %v675, %v526
        %v788 = vmul.f32 %v676, %v527
        %v789 = vmul.f32 %v677, %v528
        %v790 = vmul.f32 %v678, %v529
        %v791 = vmul.f32 %v679, %v530
        %v792 = vmul.f32 %v680, %v531
        %v793 = vmul.f32 %v681, %v532
        %v794 = vmul.f32 %v682, %v533
        %v795 = vmul.f32 %v667, %v534
        %v796 = vmul.f32 %v668, %v535
        %v797 = vmul.f32 %v669, %v536
        %v798 = vmul.f32 %v670, %v537
        %v799 = vmul.f32 %v671, %v538
        %v800 = vmul.f32 %v672, %v539
        %v801 = vmul.f32 %v673, %v540
        %v802 = vmul.f32 %v674, %v541
        %v803 = vmul.f32 %v675, %v542
        %v804 = vmul.f32 %v676, %v543
        %v805 = vmul.f32 %v677, %v544
        %v806 = vmul.f32 %v678, %v545
        %v807 = vmul.f32 %v679, %v546
        %v808 = vmul.f32 %v680, %v547
        %v809 = vmul.f32 %v681, %v548
        %v810 = vmul.f32 %v682, %v549
        %v811 = vmul.f32 %v667, %v550
        %v812 = vmul.f32 %v668, %v551
        %v813 = vmul.f32 %v669, %v552
        %v814 = vmul.f32 %v670, %v553
        %v815 = vmul.f32 %v671, %v554
        %v816 = vmul.f32 %v672, %v555
        %v817 = vmul.f32 %v673, %v556
        %v818 = vmul.f32 %v674, %v557
        %v819 = vmul.f32 %v675, %v558
        %v820 = vmul.f32 %v676, %v559
        %v821 = vmul.f32 %v677, %v560
        %v822 = vmul.f32 %v678, %v561
        %v823 = vmul.f32 %v679, %v562
        %v824 = vmul.f32 %v680, %v563
        %v825 = vmul.f32 %v681, %v564
        %v826 = vmul.f32 %v682, %v565
        %v827 = vadd.f32 %v650, %v699
        %v828 = vadd.f32 %v650, %v700
        %v829 = vadd.f32 %v650, %v701
        %v830 = vadd.f32 %v650, %v702
        %v831 = vadd.f32 %v650, %v703
        %v832 = vadd.f32 %v650, %v704
        %v833 = vadd.f32 %v650, %v705
        %v834 = vadd.f32 %v650, %v706
        %v835 = vadd.f32 %v650, %v707
        %v836 = vadd.f32 %v650, %v708
        %v837 = vadd.f32 %v650, %v709
        %v838 = vadd.f32 %v650, %v710
        %v839 = vadd.f32 %v650, %v711
        %v840 = vadd.f32 %v650, %v712
        %v841 = vadd.f32 %v650, %v713
        %v842 = vadd.f32 %v650, %v714
        %v843 = vadd.f32 %v650, %v715
        %v844 = vadd.f32 %v650, %v716
        %v845 = vadd.f32 %v650, %v717
        %v846 = vadd.f32 %v650, %v718
        %v847 = vadd.f32 %v650, %v719
        %v848 = vadd.f32 %v650, %v720
        %v849 = vadd.f32 %v650, %v721
        %v850 = vadd.f32 %v650, %v722
        %v851 = vadd.f32 %v650, %v723
        %v852 = vadd.f32 %v650, %v724
        %v853 = vadd.f32 %v650, %v725
        %v854 = vadd.f32 %v650, %v726
        %v855 = vadd.f32 %v650, %v727
        %v856 = vadd.f32 %v650, %v728
        %v857 = vadd.f32 %v650, %v729
        %v858 = vadd.f32 %v650, %v730
        %v859 = vadd.f32 %v650, %v731
        %v860 = vadd.f32 %v650, %v732
        %v861 = vadd.f32 %v650, %v733
        %v862 = vadd.f32 %v650, %v734
        %v863 = vadd.f32 %v650, %v735
        %v864 = vadd.f32 %v650, %v736
        %v865 = vadd.f32 %v650, %v737
        %v866 = vadd.f32 %v650, %v738
        %v867 = vadd.f32 %v650, %v739
        %v868 = vadd.f32 %v650, %v740
        %v869 = vadd.f32 %v650, %v741
        %v870 = vadd.f32 %v650, %v742
        %v871 = vadd.f32 %v650, %v743
        %v872 = vadd.f32 %v650, %v744
        %v873 = vadd.f32 %v650, %v745
        %v874 = vadd.f32 %v650, %v746
        %v875 = vadd.f32 %v650, %v747
        %v876 = vadd.f32 %v650, %v748
        %v877 = vadd.f32 %v650, %v749
        %v878 = vadd.f32 %v650, %v750
        %v879 = vadd.f32 %v650, %v751
        %v880 = vadd.f32 %v650, %v752
        %v881 = vadd.f32 %v650, %v753
        %v882 = vadd.f32 %v650, %v754
        %v883 = vadd.f32 %v650, %v755
        %v884 = vadd.f32 %v650, %v756
        %v885 = vadd.f32 %v650, %v757
        %v886 = vadd.f32 %v650, %v758
        %v887 = vadd.f32 %v650, %v759
        %v888 = vadd.f32 %v650, %v760
        %v889 = vadd.f32 %v650, %v761
        %v890 = vadd.f32 %v650, %v762
        %v891 = vadd.f32 %v650, %v763
        %v892 = vadd.f32 %v650, %v764
        %v893 = vadd.f32 %v650, %v765
        %v894 = vadd.f32 %v650, %v766
        %v895 = vadd.f32 %v650, %v767
        %v896 = vadd.f32 %v650, %v768
        %v897 = vadd.f32 %v650, %v769
        %v898 = vadd.f32 %v650, %v770
        %v899 = vadd.f32 %v650, %v771
        %v900 = vadd.f32 %v650, %v772
        %v901 = vadd.f32 %v650, %v773
        %v902 = vadd.f32 %v650, %v774
        %v903 = vadd.f32 %v650, %v775
        %v904 = vadd.f32 %v650, %v776
        %v905 = vadd.f32 %v650, %v777
        %v906 = vadd.f32 %v650, %v778
        %v907 = vadd.f32 %v650, %v779
        %v908 = vadd.f32 %v650, %v780
        %v909 = vadd.f32 %v650, %v781
        %v910 = vadd.f32 %v650, %v782
        %v911 = vadd.f32 %v650, %v783
        %v912 = vadd.f32 %v650, %v784
        %v913 = vadd.f32 %v650, %v785
        %v914 = vadd.f32 %v650, %v786
        %v915 = vadd.f32 %v650, %v787
        %v916 = vadd.f32 %v650, %v788
        %v917 = vadd.f32 %v650, %v789
        %v918 = vadd.f32 %v650, %v790
        %v919 = vadd.f32 %v650, %v791
        %v920 = vadd.f32 %v650, %v792
        %v921 = vadd.f32 %v650, %v793
        %v922 = vadd.f32 %v650, %v794
        %v923 = vadd.f32 %v650, %v795
        %v924 = vadd.f32 %v650, %v796
        %v925 = vadd.f32 %v650, %v797
        %v926 = vadd.f32 %v650, %v798
        %v927 = vadd.f32 %v650, %v799
        %v928 = vadd.f32 %v650, %v800
        %v929 = vadd.f32 %v650, %v801
        %v930 = vadd.f32 %v650, %v802
        %v931 = vadd.f32 %v650, %v803
        %v932 = vadd.f32 %v650, %v804
        %v933 = vadd.f32 %v650, %v805
        %v934 = vadd.f32 %v650, %v806
        %v935 = vadd.f32 %v650, %v807
        %v936 = vadd.f32 %v650, %v808
        %v937 = vadd.f32 %v650, %v809
        %v938 = vadd.f32 %v650, %v810
        %v939 = vadd.f32 %v650, %v811
        %v940 = vadd.f32 %v650, %v812
        %v941 = vadd.f32 %v650, %v813
        %v942 = vadd.f32 %v650, %v814
        %v943 = vadd.f32 %v650, %v815
        %v944 = vadd.f32 %v650, %v816
        %v945 = vadd.f32 %v650, %v817
        %v946 = vadd.f32 %v650, %v818
        %v947 = vadd.f32 %v650, %v819
        %v948 = vadd.f32 %v650, %v820
        %v949 = vadd.f32 %v650, %v821
        %v950 = vadd.f32 %v650, %v822
        %v951 = vadd.f32 %v650, %v823
        %v952 = vadd.f32 %v650, %v824
        %v953 = vadd.f32 %v650, %v825
        %v954 = vadd.f32 %v650, %v826
        %v955 = vtanh.pop %v827
        %v956 = vtanh.pop %v828
        %v957 = vtanh.pop %v829
        %v958 = vtanh.pop %v830
        %v959 = vtanh.pop %v831
        %v960 = vtanh.pop %v832
        %v961 = vtanh.pop %v833
        %v962 = vtanh.pop %v834
        %v963 = vtanh.pop %v835
        %v964 = vtanh.pop %v836
        %v965 = vtanh.pop %v837
        %v966 = vtanh.pop %v838
        %v967 = vtanh.pop %v839
        %v968 = vtanh.pop %v840
        %v969 = vtanh.pop %v841
        %v970 = vtanh.pop %v842
        %v971 = vtanh.pop %v843
        %v972 = vtanh.pop %v844
        %v973 = vtanh.pop %v845
        %v974 = vtanh.pop %v846
        %v975 = vtanh.pop %v847
        %v976 = vtanh.pop %v848
        %v977 = vtanh.pop %v849
        %v978 = vtanh.pop %v850
        %v979 = vtanh.pop %v851
        %v980 = vtanh.pop %v852
        %v981 = vtanh.pop %v853
        %v982 = vtanh.pop %v854
        %v983 = vtanh.pop %v855
        %v984 = vtanh.pop %v856
        %v985 = vtanh.pop %v857
        %v986 = vtanh.pop %v858
        %v987 = vtanh.pop %v859
        %v988 = vtanh.pop %v860
        %v989 = vtanh.pop %v861
        %v990 = vtanh.pop %v862
        %v991 = vtanh.pop %v863
        %v992 = vtanh.pop %v864
        %v993 = vtanh.pop %v865
        %v994 = vtanh.pop %v866
        %v995 = vtanh.pop %v867
        %v996 = vtanh.pop %v868
        %v997 = vtanh.pop %v869
        %v998 = vtanh.pop %v870
        %v999 = vtanh.pop %v871
        %v1000 = vtanh.pop %v872
        %v1001 = vtanh.pop %v873
        %v1002 = vtanh.pop %v874
        %v1003 = vtanh.pop %v875
        %v1004 = vtanh.pop %v876
        %v1005 = vtanh.pop %v877
        %v1006 = vtanh.pop %v878
        %v1007 = vtanh.pop %v879
        %v1008 = vtanh.pop %v880
        %v1009 = vtanh.pop %v881
        %v1010 = vtanh.pop %v882
        %v1011 = vtanh.pop %v883
        %v1012 = vtanh.pop %v884
        %v1013 = vtanh.pop %v885
        %v1014 = vtanh.pop %v886
        %v1015 = vtanh.pop %v887
        %v1016 = vtanh.pop %v888
        %v1017 = vtanh.pop %v889
        %v1018 = vtanh.pop %v890
        %v1019 = vtanh.pop %v891
        %v1020 = vtanh.pop %v892
        %v1021 = vtanh.pop %v893
        %v1022 = vtanh.pop %v894
        %v1023 = vtanh.pop %v895
        %v1024 = vtanh.pop %v896
        %v1025 = vtanh.pop %v897
        %v1026 = vtanh.pop %v898
        %v1027 = vtanh.pop %v899
        %v1028 = vtanh.pop %v900
        %v1029 = vtanh.pop %v901
        %v1030 = vtanh.pop %v902
        %v1031 = vtanh.pop %v903
        %v1032 = vtanh.pop %v904
        %v1033 = vtanh.pop %v905
        %v1034 = vtanh.pop %v906
        %v1035 = vtanh.pop %v907
        %v1036 = vtanh.pop %v908
        %v1037 = vtanh.pop %v909
        %v1038 = vtanh.pop %v910
        %v1039 = vtanh.pop %v911
        %v1040 = vtanh.pop %v912
        %v1041 = vtanh.pop %v913
        %v1042 = vtanh.pop %v914
        %v1043 = vtanh.pop %v915
        %v1044 = vtanh.pop %v916
        %v1045 = vtanh.pop %v917
        %v1046 = vtanh.pop %v918
        %v1047 = vtanh.pop %v919
        %v1048 = vtanh.pop %v920
        %v1049 = vtanh.pop %v921
        %v1050 = vtanh.pop %v922
        %v1051 = vtanh.pop %v923
        %v1052 = vtanh.pop %v924
        %v1053 = vtanh.pop %v925
        %v1054 = vtanh.pop %v926
        %v1055 = vtanh.pop %v927
        %v1056 = vtanh.pop %v928
        %v1057 = vtanh.pop %v929
        %v1058 = vtanh.pop %v930
        %v1059 = vtanh.pop %v931
        %v1060 = vtanh.pop %v932
        %v1061 = vtanh.pop %v933
        %v1062 = vtanh.pop %v934
        %v1063 = vtanh.pop %v935
        %v1064 = vtanh.pop %v936
        %v1065 = vtanh.pop %v937
        %v1066 = vtanh.pop %v938
        %v1067 = vtanh.pop %v939
        %v1068 = vtanh.pop %v940
        %v1069 = vtanh.pop %v941
        %v1070 = vtanh.pop %v942
        %v1071 = vtanh.pop %v943
        %v1072 = vtanh.pop %v944
        %v1073 = vtanh.pop %v945
        %v1074 = vtanh.pop %v946
        %v1075 = vtanh.pop %v947
        %v1076 = vtanh.pop %v948
        %v1077 = vtanh.pop %v949
        %v1078 = vtanh.pop %v950
        %v1079 = vtanh.pop %v951
        %v1080 = vtanh.pop %v952
        %v1081 = vtanh.pop %v953
        %v1082 = vtanh.pop %v954
        %v1085 = vrot.slane %v570, 1
        %v1086 = vrot.slane %v570, 2
        %v1087 = vrot.slane %v570, 3
        %v1088 = vrot.slane %v570, 4
        %v1089 = vrot.slane %v570, 5
        %v1090 = vrot.slane %v570, 6
        %v1091 = vrot.slane %v570, 7
        %v1092 = vrot.slane %v571, 1
        %v1093 = vrot.slane %v571, 2
        %v1094 = vrot.slane %v571, 3
        %v1095 = vrot.slane %v571, 4
        %v1096 = vrot.slane %v571, 5
        %v1097 = vrot.slane %v571, 6
        %v1098 = vrot.slane %v571, 7
        %v1099 = vperm.slane %v570, 0
        %v1100 = vperm.slane %v1085, 0
        %v1101 = vperm.slane %v1086, 0
        %v1102 = vperm.slane %v1087, 0
        %v1103 = vperm.slane %v1088, 0
        %v1104 = vperm.slane %v1089, 0
        %v1105 = vperm.slane %v1090, 0
        %v1106 = vperm.slane %v1091, 0
        %v1107 = vperm.slane %v571, 0
        %v1108 = vperm.slane %v1092, 0
        %v1109 = vperm.slane %v1093, 0
        %v1110 = vperm.slane %v1094, 0
        %v1111 = vperm.slane %v1095, 0
        %v1112 = vperm.slane %v1096, 0
        %v1113 = vperm.slane %v1097, 0
        %v1114 = vperm.slane %v1098, 0
        %v1131 = vmul.f32 %v1099, %v955
        %v1132 = vmul.f32 %v1100, %v956
        %v1133 = vmul.f32 %v1101, %v957
        %v1134 = vmul.f32 %v1102, %v958
        %v1135 = vmul.f32 %v1103, %v959
        %v1136 = vmul.f32 %v1104, %v960
        %v1137 = vmul.f32 %v1105, %v961
        %v1138 = vmul.f32 %v1106, %v962
        %v1139 = vmul.f32 %v1107, %v963
        %v1140 = vmul.f32 %v1108, %v964
        %v1141 = vmul.f32 %v1109, %v965
        %v1142 = vmul.f32 %v1110, %v966
        %v1143 = vmul.f32 %v1111, %v967
        %v1144 = vmul.f32 %v1112, %v968
        %v1145 = vmul.f32 %v1113, %v969
        %v1146 = vmul.f32 %v1114, %v970
        %v1147 = vmul.f32 %v1099, %v971
        %v1148 = vmul.f32 %v1100, %v972
        %v1149 = vmul.f32 %v1101, %v973
        %v1150 = vmul.f32 %v1102, %v974
        %v1151 = vmul.f32 %v1103, %v975
        %v1152 = vmul.f32 %v1104, %v976
        %v1153 = vmul.f32 %v1105, %v977
        %v1154 = vmul.f32 %v1106, %v978
        %v1155 = vmul.f32 %v1107, %v979
        %v1156 = vmul.f32 %v1108, %v980
        %v1157 = vmul.f32 %v1109, %v981
        %v1158 = vmul.f32 %v1110, %v982
        %v1159 = vmul.f32 %v1111, %v983
        %v1160 = vmul.f32 %v1112, %v984
        %v1161 = vmul.f32 %v1113, %v985
        %v1162 = vmul.f32 %v1114, %v986
        %v1163 = vmul.f32 %v1099, %v987
        %v1164 = vmul.f32 %v1100, %v988
        %v1165 = vmul.f32 %v1101, %v989
        %v1166 = vmul.f32 %v1102, %v990
        %v1167 = vmul.f32 %v1103, %v991
        %v1168 = vmul.f32 %v1104, %v992
        %v1169 = vmul.f32 %v1105, %v993
        %v1170 = vmul.f32 %v1106, %v994
        %v1171 = vmul.f32 %v1107, %v995
        %v1172 = vmul.f32 %v1108, %v996
        %v1173 = vmul.f32 %v1109, %v997
        %v1174 = vmul.f32 %v1110, %v998
        %v1175 = vmul.f32 %v1111, %v999
        %v1176 = vmul.f32 %v1112, %v1000
        %v1177 = vmul.f32 %v1113, %v1001
        %v1178 = vmul.f32 %v1114, %v1002
        %v1179 = vmul.f32 %v1099, %v1003
        %v1180 = vmul.f32 %v1100, %v1004
        %v1181 = vmul.f32 %v1101, %v1005
        %v1182 = vmul.f32 %v1102, %v1006
        %v1183 = vmul.f32 %v1103, %v1007
        %v1184 = vmul.f32 %v1104, %v1008
        %v1185 = vmul.f32 %v1105, %v1009
        %v1186 = vmul.f32 %v1106, %v1010
        %v1187 = vmul.f32 %v1107, %v1011
        %v1188 = vmul.f32 %v1108, %v1012
        %v1189 = vmul.f32 %v1109, %v1013
        %v1190 = vmul.f32 %v1110, %v1014
        %v1191 = vmul.f32 %v1111, %v1015
        %v1192 = vmul.f32 %v1112, %v1016
        %v1193 = vmul.f32 %v1113, %v1017
        %v1194 = vmul.f32 %v1114, %v1018
        %v1195 = vmul.f32 %v1099, %v1019
        %v1196 = vmul.f32 %v1100, %v1020
        %v1197 = vmul.f32 %v1101, %v1021
        %v1198 = vmul.f32 %v1102, %v1022
        %v1199 = vmul.f32 %v1103, %v1023
        %v1200 = vmul.f32 %v1104, %v1024
        %v1201 = vmul.f32 %v1105, %v1025
        %v1202 = vmul.f32 %v1106, %v1026
        %v1203 = vmul.f32 %v1107, %v1027
        %v1204 = vmul.f32 %v1108, %v1028
        %v1205 = vmul.f32 %v1109, %v1029
        %v1206 = vmul.f32 %v1110, %v1030
        %v1207 = vmul.f32 %v1111, %v1031
        %v1208 = vmul.f32 %v1112, %v1032
        %v1209 = vmul.f32 %v1113, %v1033
        %v1210 = vmul.f32 %v1114, %v1034
        %v1211 = vmul.f32 %v1099, %v1035
        %v1212 = vmul.f32 %v1100, %v1036
        %v1213 = vmul.f32 %v1101, %v1037
        %v1214 = vmul.f32 %v1102, %v1038
        %v1215 = vmul.f32 %v1103, %v1039
        %v1216 = vmul.f32 %v1104, %v1040
        %v1217 = vmul.f32 %v1105, %v1041
        %v1218 = vmul.f32 %v1106, %v1042
        %v1219 = vmul.f32 %v1107, %v1043
        %v1220 = vmul.f32 %v1108, %v1044
        %v1221 = vmul.f32 %v1109, %v1045
        %v1222 = vmul.f32 %v1110, %v1046
        %v1223 = vmul.f32 %v1111, %v1047
        %v1224 = vmul.f32 %v1112, %v1048
        %v1225 = vmul.f32 %v1113, %v1049
        %v1226 = vmul.f32 %v1114, %v1050
        %v1227 = vmul.f32 %v1099, %v1051
        %v1228 = vmul.f32 %v1100, %v1052
        %v1229 = vmul.f32 %v1101, %v1053
        %v1230 = vmul.f32 %v1102, %v1054
        %v1231 = vmul.f32 %v1103, %v1055
        %v1232 = vmul.f32 %v1104, %v1056
        %v1233 = vmul.f32 %v1105, %v1057
        %v1234 = vmul.f32 %v1106, %v1058
        %v1235 = vmul.f32 %v1107, %v1059
        %v1236 = vmul.f32 %v1108, %v1060
        %v1237 = vmul.f32 %v1109, %v1061
        %v1238 = vmul.f32 %v1110, %v1062
        %v1239 = vmul.f32 %v1111, %v1063
        %v1240 = vmul.f32 %v1112, %v1064
        %v1241 = vmul.f32 %v1113, %v1065
        %v1242 = vmul.f32 %v1114, %v1066
        %v1243 = vmul.f32 %v1099, %v1067
        %v1244 = vmul.f32 %v1100, %v1068
        %v1245 = vmul.f32 %v1101, %v1069
        %v1246 = vmul.f32 %v1102, %v1070
        %v1247 = vmul.f32 %v1103, %v1071
        %v1248 = vmul.f32 %v1104, %v1072
        %v1249 = vmul.f32 %v1105, %v1073
        %v1250 = vmul.f32 %v1106, %v1074
        %v1251 = vmul.f32 %v1107, %v1075
        %v1252 = vmul.f32 %v1108, %v1076
        %v1253 = vmul.f32 %v1109, %v1077
        %v1254 = vmul.f32 %v1110, %v1078
        %v1255 = vmul.f32 %v1111, %v1079
        %v1256 = vmul.f32 %v1112, %v1080
        %v1257 = vmul.f32 %v1113, %v1081
        %v1258 = vmul.f32 %v1114, %v1082
        %v1259 = vadd.f32 %v1131, 0.0
        %v1260 = vadd.f32 %v1132, 0.0
        %v1261 = vadd.f32 %v1133, 0.0
        %v1262 = vadd.f32 %v1134, 0.0
        %v1263 = vadd.f32 %v1135, 0.0
        %v1264 = vadd.f32 %v1136, 0.0
        %v1265 = vadd.f32 %v1137, 0.0
        %v1266 = vadd.f32 %v1138, 0.0
        %v1267 = vadd.f32 %v1139, 0.0
        %v1268 = vadd.f32 %v1140, 0.0
        %v1269 = vadd.f32 %v1141, 0.0
        %v1270 = vadd.f32 %v1142, 0.0
        %v1271 = vadd.f32 %v1143, 0.0
        %v1272 = vadd.f32 %v1144, 0.0
        %v1273 = vadd.f32 %v1145, 0.0
        %v1274 = vadd.f32 %v1146, 0.0
        %v1275 = vadd.f32 %v1147, 0.0
        %v1276 = vadd.f32 %v1148, 0.0
        %v1277 = vadd.f32 %v1149, 0.0
        %v1278 = vadd.f32 %v1150, 0.0
        %v1279 = vadd.f32 %v1151, 0.0
        %v1280 = vadd.f32 %v1152, 0.0
        %v1281 = vadd.f32 %v1153, 0.0
        %v1282 = vadd.f32 %v1154, 0.0
        %v1283 = vadd.f32 %v1155, 0.0
        %v1284 = vadd.f32 %v1156, 0.0
        %v1285 = vadd.f32 %v1157, 0.0
        %v1286 = vadd.f32 %v1158, 0.0
        %v1287 = vadd.f32 %v1159, 0.0
        %v1288 = vadd.f32 %v1160, 0.0
        %v1289 = vadd.f32 %v1161, 0.0
        %v1290 = vadd.f32 %v1162, 0.0
        %v1291 = vadd.f32 %v1163, 0.0
        %v1292 = vadd.f32 %v1164, 0.0
        %v1293 = vadd.f32 %v1165, 0.0
        %v1294 = vadd.f32 %v1166, 0.0
        %v1295 = vadd.f32 %v1167, 0.0
        %v1296 = vadd.f32 %v1168, 0.0
        %v1297 = vadd.f32 %v1169, 0.0
        %v1298 = vadd.f32 %v1170, 0.0
        %v1299 = vadd.f32 %v1171, 0.0
        %v1300 = vadd.f32 %v1172, 0.0
        %v1301 = vadd.f32 %v1173, 0.0
        %v1302 = vadd.f32 %v1174, 0.0
        %v1303 = vadd.f32 %v1175, 0.0
        %v1304 = vadd.f32 %v1176, 0.0
        %v1305 = vadd.f32 %v1177, 0.0
        %v1306 = vadd.f32 %v1178, 0.0
        %v1307 = vadd.f32 %v1179, 0.0
        %v1308 = vadd.f32 %v1180, 0.0
        %v1309 = vadd.f32 %v1181, 0.0
        %v1310 = vadd.f32 %v1182, 0.0
        %v1311 = vadd.f32 %v1183, 0.0
        %v1312 = vadd.f32 %v1184, 0.0
        %v1313 = vadd.f32 %v1185, 0.0
        %v1314 = vadd.f32 %v1186, 0.0
        %v1315 = vadd.f32 %v1187, 0.0
        %v1316 = vadd.f32 %v1188, 0.0
        %v1317 = vadd.f32 %v1189, 0.0
        %v1318 = vadd.f32 %v1190, 0.0
        %v1319 = vadd.f32 %v1191, 0.0
        %v1320 = vadd.f32 %v1192, 0.0
        %v1321 = vadd.f32 %v1193, 0.0
        %v1322 = vadd.f32 %v1194, 0.0
        %v1323 = vadd.f32 %v1195, 0.0
        %v1324 = vadd.f32 %v1196, 0.0
        %v1325 = vadd.f32 %v1197, 0.0
        %v1326 = vadd.f32 %v1198, 0.0
        %v1327 = vadd.f32 %v1199, 0.0
        %v1328 = vadd.f32 %v1200, 0.0
        %v1329 = vadd.f32 %v1201, 0.0
        %v1330 = vadd.f32 %v1202, 0.0
        %v1331 = vadd.f32 %v1203, 0.0
        %v1332 = vadd.f32 %v1204, 0.0
        %v1333 = vadd.f32 %v1205, 0.0
        %v1334 = vadd.f32 %v1206, 0.0
        %v1335 = vadd.f32 %v1207, 0.0
        %v1336 = vadd.f32 %v1208, 0.0
        %v1337 = vadd.f32 %v1209, 0.0
        %v1338 = vadd.f32 %v1210, 0.0
        %v1339 = vadd.f32 %v1211, 0.0
        %v1340 = vadd.f32 %v1212, 0.0
        %v1341 = vadd.f32 %v1213, 0.0
        %v1342 = vadd.f32 %v1214, 0.0
        %v1343 = vadd.f32 %v1215, 0.0
        %v1344 = vadd.f32 %v1216, 0.0
        %v1345 = vadd.f32 %v1217, 0.0
        %v1346 = vadd.f32 %v1218, 0.0
        %v1347 = vadd.f32 %v1219, 0.0
        %v1348 = vadd.f32 %v1220, 0.0
        %v1349 = vadd.f32 %v1221, 0.0
        %v1350 = vadd.f32 %v1222, 0.0
        %v1351 = vadd.f32 %v1223, 0.0
        %v1352 = vadd.f32 %v1224, 0.0
        %v1353 = vadd.f32 %v1225, 0.0
        %v1354 = vadd.f32 %v1226, 0.0
        %v1355 = vadd.f32 %v1227, 0.0
        %v1356 = vadd.f32 %v1228, 0.0
        %v1357 = vadd.f32 %v1229, 0.0
        %v1358 = vadd.f32 %v1230, 0.0
        %v1359 = vadd.f32 %v1231, 0.0
        %v1360 = vadd.f32 %v1232, 0.0
        %v1361 = vadd.f32 %v1233, 0.0
        %v1362 = vadd.f32 %v1234, 0.0
        %v1363 = vadd.f32 %v1235, 0.0
        %v1364 = vadd.f32 %v1236, 0.0
        %v1365 = vadd.f32 %v1237, 0.0
        %v1366 = vadd.f32 %v1238, 0.0
        %v1367 = vadd.f32 %v1239, 0.0
        %v1368 = vadd.f32 %v1240, 0.0
        %v1369 = vadd.f32 %v1241, 0.0
        %v1370 = vadd.f32 %v1242, 0.0
        %v1371 = vadd.f32 %v1243, 0.0
        %v1372 = vadd.f32 %v1244, 0.0
        %v1373 = vadd.f32 %v1245, 0.0
        %v1374 = vadd.f32 %v1246, 0.0
        %v1375 = vadd.f32 %v1247, 0.0
        %v1376 = vadd.f32 %v1248, 0.0
        %v1377 = vadd.f32 %v1249, 0.0
        %v1378 = vadd.f32 %v1250, 0.0
        %v1379 = vadd.f32 %v1251, 0.0
        %v1380 = vadd.f32 %v1252, 0.0
        %v1381 = vadd.f32 %v1253, 0.0
        %v1382 = vadd.f32 %v1254, 0.0
        %v1383 = vadd.f32 %v1255, 0.0
        %v1384 = vadd.f32 %v1256, 0.0
        %v1385 = vadd.f32 %v1257, 0.0
        %v1386 = vadd.f32 %v1258, 0.0
        %s1387 = scalar_lea.vmem [#allocation7], 16
        %v1388 = vld [vmem:[%s1387] sm:$0xff]
        %v1389 = vld [vmem:[%s1387 + $0x8] sm:$0xff]
        %s1390 = scalar_lea.vmem [#allocation8], 16
        %v1391 = vld [vmem:[%s1390] sm:$0xff]
        %v1392 = vld [vmem:[%s1390 + $0x8] sm:$0xff]
        %s1393 = scalar_lea.vmem [#allocation10], 16
        %v1394 = vld [vmem:[%s1393] sm:$0xff]
        %v1395 = vld [vmem:[%s1393 + $0x8] sm:$0xff]
        %v1398 = vrot.slane %v1388, 1
        %v1399 = vrot.slane %v1388, 2
        %v1400 = vrot.slane %v1388, 3
        %v1401 = vrot.slane %v1388, 4
        %v1402 = vrot.slane %v1388, 5
        %v1403 = vrot.slane %v1388, 6
        %v1404 = vrot.slane %v1388, 7
        %v1405 = vrot.slane %v1389, 1
        %v1406 = vrot.slane %v1389, 2
        %v1407 = vrot.slane %v1389, 3
        %v1408 = vrot.slane %v1389, 4
        %v1409 = vrot.slane %v1389, 5
        %v1410 = vrot.slane %v1389, 6
        %v1411 = vrot.slane %v1389, 7
        %v1412 = vperm.slane %v1388, 0
        %v1413 = vperm.slane %v1398, 0
        %v1414 = vperm.slane %v1399, 0
        %v1415 = vperm.slane %v1400, 0
        %v1416 = vperm.slane %v1401, 0
        %v1417 = vperm.slane %v1402, 0
        %v1418 = vperm.slane %v1403, 0
        %v1419 = vperm.slane %v1404, 0
        %v1420 = vperm.slane %v1389, 0
        %v1421 = vperm.slane %v1405, 0
        %v1422 = vperm.slane %v1406, 0
        %v1423 = vperm.slane %v1407, 0
        %v1424 = vperm.slane %v1408, 0
        %v1425 = vperm.slane %v1409, 0
        %v1426 = vperm.slane %v1410, 0
        %v1427 = vperm.slane %v1411, 0
        %v1444 = vmul.f32 %v1412, %v422
        %v1445 = vmul.f32 %v1413, %v423
        %v1446 = vmul.f32 %v1414, %v424
        %v1447 = vmul.f32 %v1415, %v425
        %v1448 = vmul.f32 %v1416, %v426
        %v1449 = vmul.f32 %v1417, %v427
        %v1450 = vmul.f32 %v1418, %v428
        %v1451 = vmul.f32 %v1419, %v429
        %v1452 = vmul.f32 %v1420, %v430
        %v1453 = vmul.f32 %v1421, %v431
        %v1454 = vmul.f32 %v1422, %v432
        %v1455 = vmul.f32 %v1423, %v433
        %v1456 = vmul.f32 %v1424, %v434
        %v1457 = vmul.f32 %v1425, %v435
        %v1458 = vmul.f32 %v1426, %v436
        %v1459 = vmul.f32 %v1427, %v437
        %v1460 = vadd.f32 %v1444, %v1445
        %v1461 = vadd.f32 %v1460, %v1446
        %v1462 = vadd.f32 %v1461, %v1447
        %v1463 = vadd.f32 %v1462, %v1448
        %v1464 = vadd.f32 %v1463, %v1449
        %v1465 = vadd.f32 %v1464, %v1450
        %v1466 = vadd.f32 %v1465, %v1451
        %v1467 = vadd.f32 %v1466, %v1452
        %v1468 = vadd.f32 %v1467, %v1453
        %v1469 = vadd.f32 %v1468, %v1454
        %v1470 = vadd.f32 %v1469, %v1455
        %v1471 = vadd.f32 %v1470, %v1456
        %v1472 = vadd.f32 %v1471, %v1457
        %v1473 = vadd.f32 %v1472, %v1458
        %v1474 = vadd.f32 %v1473, %v1459
        %v1477 = vrot.slane %v1391, 1
        %v1478 = vrot.slane %v1391, 2
        %v1479 = vrot.slane %v1391, 3
        %v1480 = vrot.slane %v1391, 4
        %v1481 = vrot.slane %v1391, 5
        %v1482 = vrot.slane %v1391, 6
        %v1483 = vrot.slane %v1391, 7
        %v1484 = vrot.slane %v1392, 1
        %v1485 = vrot.slane %v1392, 2
        %v1486 = vrot.slane %v1392, 3
        %v1487 = vrot.slane %v1392, 4
        %v1488 = vrot.slane %v1392, 5
        %v1489 = vrot.slane %v1392, 6
        %v1490 = vrot.slane %v1392, 7
        %v1491 = vperm.slane %v1391, 0
        %v1492 = vperm.slane %v1477, 0
        %v1493 = vperm.slane %v1478, 0
        %v1494 = vperm.slane %v1479, 0
        %v1495 = vperm.slane %v1480, 0
        %v1496 = vperm.slane %v1481, 0
        %v1497 = vperm.slane %v1482, 0
        %v1498 = vperm.slane %v1483, 0
        %v1499 = vperm.slane %v1392, 0
        %v1500 = vperm.slane %v1484, 0
        %v1501 = vperm.slane %v1485, 0
        %v1502 = vperm.slane %v1486, 0
        %v1503 = vperm.slane %v1487, 0
        %v1504 = vperm.slane %v1488, 0
        %v1505 = vperm.slane %v1489, 0
        %v1506 = vperm.slane %v1490, 0
        %v1523 = vmul.f32 %v1491, %v438
        %v1524 = vmul.f32 %v1492, %v439
        %v1525 = vmul.f32 %v1493, %v440
        %v1526 = vmul.f32 %v1494, %v441
        %v1527 = vmul.f32 %v1495, %v442
        %v1528 = vmul.f32 %v1496, %v443
        %v1529 = vmul.f32 %v1497, %v444
        %v1530 = vmul.f32 %v1498, %v445
        %v1531 = vmul.f32 %v1499, %v446
        %v1532 = vmul.f32 %v1500, %v447
        %v1533 = vmul.f32 %v1501, %v448
        %v1534 = vmul.f32 %v1502, %v449
        %v1535 = vmul.f32 %v1503, %v450
        %v1536 = vmul.f32 %v1504, %v451
        %v1537 = vmul.f32 %v1505, %v452
        %v1538 = vmul.f32 %v1506, %v453
        %v1539 = vmul.f32 %v1491, %v454
        %v1540 = vmul.f32 %v1492, %v455
        %v1541 = vmul.f32 %v1493, %v456
        %v1542 = vmul.f32 %v1494, %v457
        %v1543 = vmul.f32 %v1495, %v458
        %v1544 = vmul.f32 %v1496, %v459
        %v1545 = vmul.f32 %v1497, %v460
        %v1546 = vmul.f32 %v1498, %v461
        %v1547 = vmul.f32 %v1499, %v462
        %v1548 = vmul.f32 %v1500, %v463
        %v1549 = vmul.f32 %v1501, %v464
        %v1550 = vmul.f32 %v1502, %v465
        %v1551 = vmul.f32 %v1503, %v466
        %v1552 = vmul.f32 %v1504, %v467
        %v1553 = vmul.f32 %v1505, %v468
        %v1554 = vmul.f32 %v1506, %v469
        %v1555 = vmul.f32 %v1491, %v470
        %v1556 = vmul.f32 %v1492, %v471
        %v1557 = vmul.f32 %v1493, %v472
        %v1558 = vmul.f32 %v1494, %v473
        %v1559 = vmul.f32 %v1495, %v474
        %v1560 = vmul.f32 %v1496, %v475
        %v1561 = vmul.f32 %v1497, %v476
        %v1562 = vmul.f32 %v1498, %v477
        %v1563 = vmul.f32 %v1499, %v478
        %v1564 = vmul.f32 %v1500, %v479
        %v1565 = vmul.f32 %v1501, %v480
        %v1566 = vmul.f32 %v1502, %v481
        %v1567 = vmul.f32 %v1503, %v482
        %v1568 = vmul.f32 %v1504, %v483
        %v1569 = vmul.f32 %v1505, %v484
        %v1570 = vmul.f32 %v1506, %v485
        %v1571 = vmul.f32 %v1491, %v486
        %v1572 = vmul.f32 %v1492, %v487
        %v1573 = vmul.f32 %v1493, %v488
        %v1574 = vmul.f32 %v1494, %v489
        %v1575 = vmul.f32 %v1495, %v490
        %v1576 = vmul.f32 %v1496, %v491
        %v1577 = vmul.f32 %v1497, %v492
        %v1578 = vmul.f32 %v1498, %v493
        %v1579 = vmul.f32 %v1499, %v494
        %v1580 = vmul.f32 %v1500, %v495
        %v1581 = vmul.f32 %v1501, %v496
        %v1582 = vmul.f32 %v1502, %v497
        %v1583 = vmul.f32 %v1503, %v498
        %v1584 = vmul.f32 %v1504, %v499
        %v1585 = vmul.f32 %v1505, %v500
        %v1586 = vmul.f32 %v1506, %v501
        %v1587 = vmul.f32 %v1491, %v502
        %v1588 = vmul.f32 %v1492, %v503
        %v1589 = vmul.f32 %v1493, %v504
        %v1590 = vmul.f32 %v1494, %v505
        %v1591 = vmul.f32 %v1495, %v506
        %v1592 = vmul.f32 %v1496, %v507
        %v1593 = vmul.f32 %v1497, %v508
        %v1594 = vmul.f32 %v1498, %v509
        %v1595 = vmul.f32 %v1499, %v510
        %v1596 = vmul.f32 %v1500, %v511
        %v1597 = vmul.f32 %v1501, %v512
        %v1598 = vmul.f32 %v1502, %v513
        %v1599 = vmul.f32 %v1503, %v514
        %v1600 = vmul.f32 %v1504, %v515
        %v1601 = vmul.f32 %v1505, %v516
        %v1602 = vmul.f32 %v1506, %v517
        %v1603 = vmul.f32 %v1491, %v518
        %v1604 = vmul.f32 %v1492, %v519
        %v1605 = vmul.f32 %v1493, %v520
        %v1606 = vmul.f32 %v1494, %v521
        %v1607 = vmul.f32 %v1495, %v522
        %v1608 = vmul.f32 %v1496, %v523
        %v1609 = vmul.f32 %v1497, %v524
        %v1610 = vmul.f32 %v1498, %v525
        %v1611 = vmul.f32 %v1499, %v526
        %v1612 = vmul.f32 %v1500, %v527
        %v1613 = vmul.f32 %v1501, %v528
        %v1614 = vmul.f32 %v1502, %v529
        %v1615 = vmul.f32 %v1503, %v530
        %v1616 = vmul.f32 %v1504, %v531
        %v1617 = vmul.f32 %v1505, %v532
        %v1618 = vmul.f32 %v1506, %v533
        %v1619 = vmul.f32 %v1491, %v534
        %v1620 = vmul.f32 %v1492, %v535
        %v1621 = vmul.f32 %v1493, %v536
        %v1622 = vmul.f32 %v1494, %v537
        %v1623 = vmul.f32 %v1495, %v538
        %v1624 = vmul.f32 %v1496, %v539
        %v1625 = vmul.f32 %v1497, %v540
        %v1626 = vmul.f32 %v1498, %v541
        %v1627 = vmul.f32 %v1499, %v542
        %v1628 = vmul.f32 %v1500, %v543
        %v1629 = vmul.f32 %v1501, %v544
        %v1630 = vmul.f32 %v1502, %v545
        %v1631 = vmul.f32 %v1503, %v546
        %v1632 = vmul.f32 %v1504, %v547
        %v1633 = vmul.f32 %v1505, %v548
        %v1634 = vmul.f32 %v1506, %v549
        %v1635 = vmul.f32 %v1491, %v550
        %v1636 = vmul.f32 %v1492, %v551
        %v1637 = vmul.f32 %v1493, %v552
        %v1638 = vmul.f32 %v1494, %v553
        %v1639 = vmul.f32 %v1495, %v554
        %v1640 = vmul.f32 %v1496, %v555
        %v1641 = vmul.f32 %v1497, %v556
        %v1642 = vmul.f32 %v1498, %v557
        %v1643 = vmul.f32 %v1499, %v558
        %v1644 = vmul.f32 %v1500, %v559
        %v1645 = vmul.f32 %v1501, %v560
        %v1646 = vmul.f32 %v1502, %v561
        %v1647 = vmul.f32 %v1503, %v562
        %v1648 = vmul.f32 %v1504, %v563
        %v1649 = vmul.f32 %v1505, %v564
        %v1650 = vmul.f32 %v1506, %v565
        %v1651 = vadd.f32 %v1474, %v1523
        %v1652 = vadd.f32 %v1474, %v1524
        %v1653 = vadd.f32 %v1474, %v1525
        %v1654 = vadd.f32 %v1474, %v1526
        %v1655 = vadd.f32 %v1474, %v1527
        %v1656 = vadd.f32 %v1474, %v1528
        %v1657 = vadd.f32 %v1474, %v1529
        %v1658 = vadd.f32 %v1474, %v1530
        %v1659 = vadd.f32 %v1474, %v1531
        %v1660 = vadd.f32 %v1474, %v1532
        %v1661 = vadd.f32 %v1474, %v1533
        %v1662 = vadd.f32 %v1474, %v1534
        %v1663 = vadd.f32 %v1474, %v1535
        %v1664 = vadd.f32 %v1474, %v1536
        %v1665 = vadd.f32 %v1474, %v1537
        %v1666 = vadd.f32 %v1474, %v1538
        %v1667 = vadd.f32 %v1474, %v1539
        %v1668 = vadd.f32 %v1474, %v1540
        %v1669 = vadd.f32 %v1474, %v1541
        %v1670 = vadd.f32 %v1474, %v1542
        %v1671 = vadd.f32 %v1474, %v1543
        %v1672 = vadd.f32 %v1474, %v1544
        %v1673 = vadd.f32 %v1474, %v1545
        %v1674 = vadd.f32 %v1474, %v1546
        %v1675 = vadd.f32 %v1474, %v1547
        %v1676 = vadd.f32 %v1474, %v1548
        %v1677 = vadd.f32 %v1474, %v1549
        %v1678 = vadd.f32 %v1474, %v1550
        %v1679 = vadd.f32 %v1474, %v1551
        %v1680 = vadd.f32 %v1474, %v1552
        %v1681 = vadd.f32 %v1474, %v1553
        %v1682 = vadd.f32 %v1474, %v1554
        %v1683 = vadd.f32 %v1474, %v1555
        %v1684 = vadd.f32 %v1474, %v1556
        %v1685 = vadd.f32 %v1474, %v1557
        %v1686 = vadd.f32 %v1474, %v1558
        %v1687 = vadd.f32 %v1474, %v1559
        %v1688 = vadd.f32 %v1474, %v1560
        %v1689 = vadd.f32 %v1474, %v1561
        %v1690 = vadd.f32 %v1474, %v1562
        %v1691 = vadd.f32 %v1474, %v1563
        %v1692 = vadd.f32 %v1474, %v1564
        %v1693 = vadd.f32 %v1474, %v1565
        %v1694 = vadd.f32 %v1474, %v1566
        %v1695 = vadd.f32 %v1474, %v1567
        %v1696 = vadd.f32 %v1474, %v1568
        %v1697 = vadd.f32 %v1474, %v1569
        %v1698 = vadd.f32 %v1474, %v1570
        %v1699 = vadd.f32 %v1474, %v1571
        %v1700 = vadd.f32 %v1474, %v1572
        %v1701 = vadd.f32 %v1474, %v1573
        %v1702 = vadd.f32 %v1474, %v1574
        %v1703 = vadd.f32 %v1474, %v1575
        %v1704 = vadd.f32 %v1474, %v1576
        %v1705 = vadd.f32 %v1474, %v1577
        %v1706 = vadd.f32 %v1474, %v1578
        %v1707 = vadd.f32 %v1474, %v1579
        %v1708 = vadd.f32 %v1474, %v1580
        %v1709 = vadd.f32 %v1474, %v1581
        %v1710 = vadd.f32 %v1474, %v1582
        %v1711 = vadd.f32 %v1474, %v1583
        %v1712 = vadd.f32 %v1474, %v1584
        %v1713 = vadd.f32 %v1474, %v1585
        %v1714 = vadd.f32 %v1474, %v1586
        %v1715 = vadd.f32 %v1474, %v1587
        %v1716 = vadd.f32 %v1474, %v1588
        %v1717 = vadd.f32 %v1474, %v1589
        %v1718 = vadd.f32 %v1474, %v1590
        %v1719 = vadd.f32 %v1474, %v1591
        %v1720 = vadd.f32 %v1474, %v1592
        %v1721 = vadd.f32 %v1474, %v1593
        %v1722 = vadd.f32 %v1474, %v1594
        %v1723 = vadd.f32 %v1474, %v1595
        %v1724 = vadd.f32 %v1474, %v1596
        %v1725 = vadd.f32 %v1474, %v1597
        %v1726 = vadd.f32 %v1474, %v1598
        %v1727 = vadd.f32 %v1474, %v1599
        %v1728 = vadd.f32 %v1474, %v1600
        %v1729 = vadd.f32 %v1474, %v1601
        %v1730 = vadd.f32 %v1474, %v1602
        %v1731 = vadd.f32 %v1474, %v1603
        %v1732 = vadd.f32 %v1474, %v1604
        %v1733 = vadd.f32 %v1474, %v1605
        %v1734 = vadd.f32 %v1474, %v1606
        %v1735 = vadd.f32 %v1474, %v1607
        %v1736 = vadd.f32 %v1474, %v1608
        %v1737 = vadd.f32 %v1474, %v1609
        %v1738 = vadd.f32 %v1474, %v1610
        %v1739 = vadd.f32 %v1474, %v1611
        %v1740 = vadd.f32 %v1474, %v1612
        %v1741 = vadd.f32 %v1474, %v1613
        %v1742 = vadd.f32 %v1474, %v1614
        %v1743 = vadd.f32 %v1474, %v1615
        %v1744 = vadd.f32 %v1474, %v1616
        %v1745 = vadd.f32 %v1474, %v1617
        %v1746 = vadd.f32 %v1474, %v1618
        %v1747 = vadd.f32 %v1474, %v1619
        %v1748 = vadd.f32 %v1474, %v1620
        %v1749 = vadd.f32 %v1474, %v1621
        %v1750 = vadd.f32 %v1474, %v1622
        %v1751 = vadd.f32 %v1474, %v1623
        %v1752 = vadd.f32 %v1474, %v1624
        %v1753 = vadd.f32 %v1474, %v1625
        %v1754 = vadd.f32 %v1474, %v1626
        %v1755 = vadd.f32 %v1474, %v1627
        %v1756 = vadd.f32 %v1474, %v1628
        %v1757 = vadd.f32 %v1474, %v1629
        %v1758 = vadd.f32 %v1474, %v1630
        %v1759 = vadd.f32 %v1474, %v1631
        %v1760 = vadd.f32 %v1474, %v1632
        %v1761 = vadd.f32 %v1474, %v1633
        %v1762 = vadd.f32 %v1474, %v1634
        %v1763 = vadd.f32 %v1474, %v1635
        %v1764 = vadd.f32 %v1474, %v1636
        %v1765 = vadd.f32 %v1474, %v1637
        %v1766 = vadd.f32 %v1474, %v1638
        %v1767 = vadd.f32 %v1474, %v1639
        %v1768 = vadd.f32 %v1474, %v1640
        %v1769 = vadd.f32 %v1474, %v1641
        %v1770 = vadd.f32 %v1474, %v1642
        %v1771 = vadd.f32 %v1474, %v1643
        %v1772 = vadd.f32 %v1474, %v1644
        %v1773 = vadd.f32 %v1474, %v1645
        %v1774 = vadd.f32 %v1474, %v1646
        %v1775 = vadd.f32 %v1474, %v1647
        %v1776 = vadd.f32 %v1474, %v1648
        %v1777 = vadd.f32 %v1474, %v1649
        %v1778 = vadd.f32 %v1474, %v1650
        %v1779 = vtanh.pop %v1651
        %v1780 = vtanh.pop %v1652
        %v1781 = vtanh.pop %v1653
        %v1782 = vtanh.pop %v1654
        %v1783 = vtanh.pop %v1655
        %v1784 = vtanh.pop %v1656
        %v1785 = vtanh.pop %v1657
        %v1786 = vtanh.pop %v1658
        %v1787 = vtanh.pop %v1659
        %v1788 = vtanh.pop %v1660
        %v1789 = vtanh.pop %v1661
        %v1790 = vtanh.pop %v1662
        %v1791 = vtanh.pop %v1663
        %v1792 = vtanh.pop %v1664
        %v1793 = vtanh.pop %v1665
        %v1794 = vtanh.pop %v1666
        %v1795 = vtanh.pop %v1667
        %v1796 = vtanh.pop %v1668
        %v1797 = vtanh.pop %v1669
        %v1798 = vtanh.pop %v1670
        %v1799 = vtanh.pop %v1671
        %v1800 = vtanh.pop %v1672
        %v1801 = vtanh.pop %v1673
        %v1802 = vtanh.pop %v1674
        %v1803 = vtanh.pop %v1675
        %v1804 = vtanh.pop %v1676
        %v1805 = vtanh.pop %v1677
        %v1806 = vtanh.pop %v1678
        %v1807 = vtanh.pop %v1679
        %v1808 = vtanh.pop %v1680
        %v1809 = vtanh.pop %v1681
        %v1810 = vtanh.pop %v1682
        %v1811 = vtanh.pop %v1683
        %v1812 = vtanh.pop %v1684
        %v1813 = vtanh.pop %v1685
        %v1814 = vtanh.pop %v1686
        %v1815 = vtanh.pop %v1687
        %v1816 = vtanh.pop %v1688
        %v1817 = vtanh.pop %v1689
        %v1818 = vtanh.pop %v1690
        %v1819 = vtanh.pop %v1691
        %v1820 = vtanh.pop %v1692
        %v1821 = vtanh.pop %v1693
        %v1822 = vtanh.pop %v1694
        %v1823 = vtanh.pop %v1695
        %v1824 = vtanh.pop %v1696
        %v1825 = vtanh.pop %v1697
        %v1826 = vtanh.pop %v1698
        %v1827 = vtanh.pop %v1699
        %v1828 = vtanh.pop %v1700
        %v1829 = vtanh.pop %v1701
        %v1830 = vtanh.pop %v1702
        %v1831 = vtanh.pop %v1703
        %v1832 = vtanh.pop %v1704
        %v1833 = vtanh.pop %v1705
        %v1834 = vtanh.pop %v1706
        %v1835 = vtanh.pop %v1707
        %v1836 = vtanh.pop %v1708
        %v1837 = vtanh.pop %v1709
        %v1838 = vtanh.pop %v1710
        %v1839 = vtanh.pop %v1711
        %v1840 = vtanh.pop %v1712
        %v1841 = vtanh.pop %v1713
        %v1842 = vtanh.pop %v1714
        %v1843 = vtanh.pop %v1715
        %v1844 = vtanh.pop %v1716
        %v1845 = vtanh.pop %v1717
        %v1846 = vtanh.pop %v1718
        %v1847 = vtanh.pop %v1719
        %v1848 = vtanh.pop %v1720
        %v1849 = vtanh.pop %v1721
        %v1850 = vtanh.pop %v1722
        %v1851 = vtanh.pop %v1723
        %v1852 = vtanh.pop %v1724
        %v1853 = vtanh.pop %v1725
        %v1854 = vtanh.pop %v1726
        %v1855 = vtanh.pop %v1727
        %v1856 = vtanh.pop %v1728
        %v1857 = vtanh.pop %v1729
        %v1858 = vtanh.pop %v1730
        %v1859 = vtanh.pop %v1731
        %v1860 = vtanh.pop %v1732
        %v1861 = vtanh.pop %v1733
        %v1862 = vtanh.pop %v1734
        %v1863 = vtanh.pop %v1735
        %v1864 = vtanh.pop %v1736
        %v1865 = vtanh.pop %v1737
        %v1866 = vtanh.pop %v1738
        %v1867 = vtanh.pop %v1739
        %v1868 = vtanh.pop %v1740
        %v1869 = vtanh.pop %v1741
        %v1870 = vtanh.pop %v1742
        %v1871 = vtanh.pop %v1743
        %v1872 = vtanh.pop %v1744
        %v1873 = vtanh.pop %v1745
        %v1874 = vtanh.pop %v1746
        %v1875 = vtanh.pop %v1747
        %v1876 = vtanh.pop %v1748
        %v1877 = vtanh.pop %v1749
        %v1878 = vtanh.pop %v1750
        %v1879 = vtanh.pop %v1751
        %v1880 = vtanh.pop %v1752
        %v1881 = vtanh.pop %v1753
        %v1882 = vtanh.pop %v1754
        %v1883 = vtanh.pop %v1755
        %v1884 = vtanh.pop %v1756
        %v1885 = vtanh.pop %v1757
        %v1886 = vtanh.pop %v1758
        %v1887 = vtanh.pop %v1759
        %v1888 = vtanh.pop %v1760
        %v1889 = vtanh.pop %v1761
        %v1890 = vtanh.pop %v1762
        %v1891 = vtanh.pop %v1763
        %v1892 = vtanh.pop %v1764
        %v1893 = vtanh.pop %v1765
        %v1894 = vtanh.pop %v1766
        %v1895 = vtanh.pop %v1767
        %v1896 = vtanh.pop %v1768
        %v1897 = vtanh.pop %v1769
        %v1898 = vtanh.pop %v1770
        %v1899 = vtanh.pop %v1771
        %v1900 = vtanh.pop %v1772
        %v1901 = vtanh.pop %v1773
        %v1902 = vtanh.pop %v1774
        %v1903 = vtanh.pop %v1775
        %v1904 = vtanh.pop %v1776
        %v1905 = vtanh.pop %v1777
        %v1906 = vtanh.pop %v1778
        %v1909 = vrot.slane %v1394, 1
        %v1910 = vrot.slane %v1394, 2
        %v1911 = vrot.slane %v1394, 3
        %v1912 = vrot.slane %v1394, 4
        %v1913 = vrot.slane %v1394, 5
        %v1914 = vrot.slane %v1394, 6
        %v1915 = vrot.slane %v1394, 7
        %v1916 = vrot.slane %v1395, 1
        %v1917 = vrot.slane %v1395, 2
        %v1918 = vrot.slane %v1395, 3
        %v1919 = vrot.slane %v1395, 4
        %v1920 = vrot.slane %v1395, 5
        %v1921 = vrot.slane %v1395, 6
        %v1922 = vrot.slane %v1395, 7
        %v1923 = vperm.slane %v1394, 0
        %v1924 = vperm.slane %v1909, 0
        %v1925 = vperm.slane %v1910, 0
        %v1926 = vperm.slane %v1911, 0
        %v1927 = vperm.slane %v1912, 0
        %v1928 = vperm.slane %v1913, 0
        %v1929 = vperm.slane %v1914, 0
        %v1930 = vperm.slane %v1915, 0
        %v1931 = vperm.slane %v1395, 0
        %v1932 = vperm.slane %v1916, 0
        %v1933 = vperm.slane %v1917, 0
        %v1934 = vperm.slane %v1918, 0
        %v1935 = vperm.slane %v1919, 0
        %v1936 = vperm.slane %v1920, 0
        %v1937 = vperm.slane %v1921, 0
        %v1938 = vperm.slane %v1922, 0
        %v1955 = vmul.f32 %v1923, %v1779
        %v1956 = vmul.f32 %v1924, %v1780
        %v1957 = vmul.f32 %v1925, %v1781
        %v1958 = vmul.f32 %v1926, %v1782
        %v1959 = vmul.f32 %v1927, %v1783
        %v1960 = vmul.f32 %v1928, %v1784
        %v1961 = vmul.f32 %v1929, %v1785
        %v1962 = vmul.f32 %v1930, %v1786
        %v1963 = vmul.f32 %v1931, %v1787
        %v1964 = vmul.f32 %v1932, %v1788
        %v1965 = vmul.f32 %v1933, %v1789
        %v1966 = vmul.f32 %v1934, %v1790
        %v1967 = vmul.f32 %v1935, %v1791
        %v1968 = vmul.f32 %v1936, %v1792
        %v1969 = vmul.f32 %v1937, %v1793
        %v1970 = vmul.f32 %v1938, %v1794
        %v1971 = vmul.f32 %v1923, %v1795
        %v1972 = vmul.f32 %v1924, %v1796
        %v1973 = vmul.f32 %v1925, %v1797
        %v1974 = vmul.f32 %v1926, %v1798
        %v1975 = vmul.f32 %v1927, %v1799
        %v1976 = vmul.f32 %v1928, %v1800
        %v1977 = vmul.f32 %v1929, %v1801
        %v1978 = vmul.f32 %v1930, %v1802
        %v1979 = vmul.f32 %v1931, %v1803
        %v1980 = vmul.f32 %v1932, %v1804
        %v1981 = vmul.f32 %v1933, %v1805
        %v1982 = vmul.f32 %v1934, %v1806
        %v1983 = vmul.f32 %v1935, %v1807
        %v1984 = vmul.f32 %v1936, %v1808
        %v1985 = vmul.f32 %v1937, %v1809
        %v1986 = vmul.f32 %v1938, %v1810
        %v1987 = vmul.f32 %v1923, %v1811
        %v1988 = vmul.f32 %v1924, %v1812
        %v1989 = vmul.f32 %v1925, %v1813
        %v1990 = vmul.f32 %v1926, %v1814
        %v1991 = vmul.f32 %v1927, %v1815
        %v1992 = vmul.f32 %v1928, %v1816
        %v1993 = vmul.f32 %v1929, %v1817
        %v1994 = vmul.f32 %v1930, %v1818
        %v1995 = vmul.f32 %v1931, %v1819
        %v1996 = vmul.f32 %v1932, %v1820
        %v1997 = vmul.f32 %v1933, %v1821
        %v1998 = vmul.f32 %v1934, %v1822
        %v1999 = vmul.f32 %v1935, %v1823
        %v2000 = vmul.f32 %v1936, %v1824
        %v2001 = vmul.f32 %v1937, %v1825
        %v2002 = vmul.f32 %v1938, %v1826
        %v2003 = vmul.f32 %v1923, %v1827
        %v2004 = vmul.f32 %v1924, %v1828
        %v2005 = vmul.f32 %v1925, %v1829
        %v2006 = vmul.f32 %v1926, %v1830
        %v2007 = vmul.f32 %v1927, %v1831
        %v2008 = vmul.f32 %v1928, %v1832
        %v2009 = vmul.f32 %v1929, %v1833
        %v2010 = vmul.f32 %v1930, %v1834
        %v2011 = vmul.f32 %v1931, %v1835
        %v2012 = vmul.f32 %v1932, %v1836
        %v2013 = vmul.f32 %v1933, %v1837
        %v2014 = vmul.f32 %v1934, %v1838
        %v2015 = vmul.f32 %v1935, %v1839
        %v2016 = vmul.f32 %v1936, %v1840
        %v2017 = vmul.f32 %v1937, %v1841
        %v2018 = vmul.f32 %v1938, %v1842
        %v2019 = vmul.f32 %v1923, %v1843
        %v2020 = vmul.f32 %v1924, %v1844
        %v2021 = vmul.f32 %v1925, %v1845
        %v2022 = vmul.f32 %v1926, %v1846
        %v2023 = vmul.f32 %v1927, %v1847
        %v2024 = vmul.f32 %v1928, %v1848
        %v2025 = vmul.f32 %v1929, %v1849
        %v2026 = vmul.f32 %v1930, %v1850
        %v2027 = vmul.f32 %v1931, %v1851
        %v2028 = vmul.f32 %v1932, %v1852
        %v2029 = vmul.f32 %v1933, %v1853
        %v2030 = vmul.f32 %v1934, %v1854
        %v2031 = vmul.f32 %v1935, %v1855
        %v2032 = vmul.f32 %v1936, %v1856
        %v2033 = vmul.f32 %v1937, %v1857
        %v2034 = vmul.f32 %v1938, %v1858
        %v2035 = vmul.f32 %v1923, %v1859
        %v2036 = vmul.f32 %v1924, %v1860
        %v2037 = vmul.f32 %v1925, %v1861
        %v2038 = vmul.f32 %v1926, %v1862
        %v2039 = vmul.f32 %v1927, %v1863
        %v2040 = vmul.f32 %v1928, %v1864
        %v2041 = vmul.f32 %v1929, %v1865
        %v2042 = vmul.f32 %v1930, %v1866
        %v2043 = vmul.f32 %v1931, %v1867
        %v2044 = vmul.f32 %v1932, %v1868
        %v2045 = vmul.f32 %v1933, %v1869
        %v2046 = vmul.f32 %v1934, %v1870
        %v2047 = vmul.f32 %v1935, %v1871
        %v2048 = vmul.f32 %v1936, %v1872
        %v2049 = vmul.f32 %v1937, %v1873
        %v2050 = vmul.f32 %v1938, %v1874
        %v2051 = vmul.f32 %v1923, %v1875
        %v2052 = vmul.f32 %v1924, %v1876
        %v2053 = vmul.f32 %v1925, %v1877
        %v2054 = vmul.f32 %v1926, %v1878
        %v2055 = vmul.f32 %v1927, %v1879
        %v2056 = vmul.f32 %v1928, %v1880
        %v2057 = vmul.f32 %v1929, %v1881
        %v2058 = vmul.f32 %v1930, %v1882
        %v2059 = vmul.f32 %v1931, %v1883
        %v2060 = vmul.f32 %v1932, %v1884
        %v2061 = vmul.f32 %v1933, %v1885
        %v2062 = vmul.f32 %v1934, %v1886
        %v2063 = vmul.f32 %v1935, %v1887
        %v2064 = vmul.f32 %v1936, %v1888
        %v2065 = vmul.f32 %v1937, %v1889
        %v2066 = vmul.f32 %v1938, %v1890
        %v2067 = vmul.f32 %v1923, %v1891
        %v2068 = vmul.f32 %v1924, %v1892
        %v2069 = vmul.f32 %v1925, %v1893
        %v2070 = vmul.f32 %v1926, %v1894
        %v2071 = vmul.f32 %v1927, %v1895
        %v2072 = vmul.f32 %v1928, %v1896
        %v2073 = vmul.f32 %v1929, %v1897
        %v2074 = vmul.f32 %v1930, %v1898
        %v2075 = vmul.f32 %v1931, %v1899
        %v2076 = vmul.f32 %v1932, %v1900
        %v2077 = vmul.f32 %v1933, %v1901
        %v2078 = vmul.f32 %v1934, %v1902
        %v2079 = vmul.f32 %v1935, %v1903
        %v2080 = vmul.f32 %v1936, %v1904
        %v2081 = vmul.f32 %v1937, %v1905
        %v2082 = vmul.f32 %v1938, %v1906
        %v2083 = vadd.f32 %v1259, %v1955
        %v2084 = vadd.f32 %v1260, %v1956
        %v2085 = vadd.f32 %v1261, %v1957
        %v2086 = vadd.f32 %v1262, %v1958
        %v2087 = vadd.f32 %v1263, %v1959
        %v2088 = vadd.f32 %v1264, %v1960
        %v2089 = vadd.f32 %v1265, %v1961
        %v2090 = vadd.f32 %v1266, %v1962
        %v2091 = vadd.f32 %v1267, %v1963
        %v2092 = vadd.f32 %v1268, %v1964
        %v2093 = vadd.f32 %v1269, %v1965
        %v2094 = vadd.f32 %v1270, %v1966
        %v2095 = vadd.f32 %v1271, %v1967
        %v2096 = vadd.f32 %v1272, %v1968
        %v2097 = vadd.f32 %v1273, %v1969
        %v2098 = vadd.f32 %v1274, %v1970
        %v2099 = vadd.f32 %v1275, %v1971
        %v2100 = vadd.f32 %v1276, %v1972
        %v2101 = vadd.f32 %v1277, %v1973
        %v2102 = vadd.f32 %v1278, %v1974
        %v2103 = vadd.f32 %v1279, %v1975
        %v2104 = vadd.f32 %v1280, %v1976
        %v2105 = vadd.f32 %v1281, %v1977
        %v2106 = vadd.f32 %v1282, %v1978
        %v2107 = vadd.f32 %v1283, %v1979
        %v2108 = vadd.f32 %v1284, %v1980
        %v2109 = vadd.f32 %v1285, %v1981
        %v2110 = vadd.f32 %v1286, %v1982
        %v2111 = vadd.f32 %v1287, %v1983
        %v2112 = vadd.f32 %v1288, %v1984
        %v2113 = vadd.f32 %v1289, %v1985
        %v2114 = vadd.f32 %v1290, %v1986
        %v2115 = vadd.f32 %v1291, %v1987
        %v2116 = vadd.f32 %v1292, %v1988
        %v2117 = vadd.f32 %v1293, %v1989
        %v2118 = vadd.f32 %v1294, %v1990
        %v2119 = vadd.f32 %v1295, %v1991
        %v2120 = vadd.f32 %v1296, %v1992
        %v2121 = vadd.f32 %v1297, %v1993
        %v2122 = vadd.f32 %v1298, %v1994
        %v2123 = vadd.f32 %v1299, %v1995
        %v2124 = vadd.f32 %v1300, %v1996
        %v2125 = vadd.f32 %v1301, %v1997
        %v2126 = vadd.f32 %v1302, %v1998
        %v2127 = vadd.f32 %v1303, %v1999
        %v2128 = vadd.f32 %v1304, %v2000
        %v2129 = vadd.f32 %v1305, %v2001
        %v2130 = vadd.f32 %v1306, %v2002
        %v2131 = vadd.f32 %v1307, %v2003
        %v2132 = vadd.f32 %v1308, %v2004
        %v2133 = vadd.f32 %v1309, %v2005
        %v2134 = vadd.f32 %v1310, %v2006
        %v2135 = vadd.f32 %v1311, %v2007
        %v2136 = vadd.f32 %v1312, %v2008
        %v2137 = vadd.f32 %v1313, %v2009
        %v2138 = vadd.f32 %v1314, %v2010
        %v2139 = vadd.f32 %v1315, %v2011
        %v2140 = vadd.f32 %v1316, %v2012
        %v2141 = vadd.f32 %v1317, %v2013
        %v2142 = vadd.f32 %v1318, %v2014
        %v2143 = vadd.f32 %v1319, %v2015
        %v2144 = vadd.f32 %v1320, %v2016
        %v2145 = vadd.f32 %v1321, %v2017
        %v2146 = vadd.f32 %v1322, %v2018
        %v2147 = vadd.f32 %v1323, %v2019
        %v2148 = vadd.f32 %v1324, %v2020
        %v2149 = vadd.f32 %v1325, %v2021
        %v2150 = vadd.f32 %v1326, %v2022
        %v2151 = vadd.f32 %v1327, %v2023
        %v2152 = vadd.f32 %v1328, %v2024
        %v2153 = vadd.f32 %v1329, %v2025
        %v2154 = vadd.f32 %v1330, %v2026
        %v2155 = vadd.f32 %v1331, %v2027
        %v2156 = vadd.f32 %v1332, %v2028
        %v2157 = vadd.f32 %v1333, %v2029
        %v2158 = vadd.f32 %v1334, %v2030
        %v2159 = vadd.f32 %v1335, %v2031
        %v2160 = vadd.f32 %v1336, %v2032
        %v2161 = vadd.f32 %v1337, %v2033
        %v2162 = vadd.f32 %v1338, %v2034
        %v2163 = vadd.f32 %v1339, %v2035
        %v2164 = vadd.f32 %v1340, %v2036
        %v2165 = vadd.f32 %v1341, %v2037
        %v2166 = vadd.f32 %v1342, %v2038
        %v2167 = vadd.f32 %v1343, %v2039
        %v2168 = vadd.f32 %v1344, %v2040
        %v2169 = vadd.f32 %v1345, %v2041
        %v2170 = vadd.f32 %v1346, %v2042
        %v2171 = vadd.f32 %v1347, %v2043
        %v2172 = vadd.f32 %v1348, %v2044
        %v2173 = vadd.f32 %v1349, %v2045
        %v2174 = vadd.f32 %v1350, %v2046
        %v2175 = vadd.f32 %v1351, %v2047
        %v2176 = vadd.f32 %v1352, %v2048
        %v2177 = vadd.f32 %v1353, %v2049
        %v2178 = vadd.f32 %v1354, %v2050
        %v2179 = vadd.f32 %v1355, %v2051
        %v2180 = vadd.f32 %v1356, %v2052
        %v2181 = vadd.f32 %v1357, %v2053
        %v2182 = vadd.f32 %v1358, %v2054
        %v2183 = vadd.f32 %v1359, %v2055
        %v2184 = vadd.f32 %v1360, %v2056
        %v2185 = vadd.f32 %v1361, %v2057
        %v2186 = vadd.f32 %v1362, %v2058
        %v2187 = vadd.f32 %v1363, %v2059
        %v2188 = vadd.f32 %v1364, %v2060
        %v2189 = vadd.f32 %v1365, %v2061
        %v2190 = vadd.f32 %v1366, %v2062
        %v2191 = vadd.f32 %v1367, %v2063
        %v2192 = vadd.f32 %v1368, %v2064
        %v2193 = vadd.f32 %v1369, %v2065
        %v2194 = vadd.f32 %v1370, %v2066
        %v2195 = vadd.f32 %v1371, %v2067
        %v2196 = vadd.f32 %v1372, %v2068
        %v2197 = vadd.f32 %v1373, %v2069
        %v2198 = vadd.f32 %v1374, %v2070
        %v2199 = vadd.f32 %v1375, %v2071
        %v2200 = vadd.f32 %v1376, %v2072
        %v2201 = vadd.f32 %v1377, %v2073
        %v2202 = vadd.f32 %v1378, %v2074
        %v2203 = vadd.f32 %v1379, %v2075
        %v2204 = vadd.f32 %v1380, %v2076
        %v2205 = vadd.f32 %v1381, %v2077
        %v2206 = vadd.f32 %v1382, %v2078
        %v2207 = vadd.f32 %v1383, %v2079
        %v2208 = vadd.f32 %v1384, %v2080
        %v2209 = vadd.f32 %v1385, %v2081
        %v2210 = vadd.f32 %v1386, %v2082
        %s2211 = scalar_lea.vmem [#allocation7], 32
        %v2212 = vld [vmem:[%s2211] sm:$0xff]
        %v2213 = vld [vmem:[%s2211 + $0x8] sm:$0xff]
        %s2214 = scalar_lea.vmem [#allocation8], 32
        %v2215 = vld [vmem:[%s2214] sm:$0xff]
        %v2216 = vld [vmem:[%s2214 + $0x8] sm:$0xff]
        %s2217 = scalar_lea.vmem [#allocation10], 32
        %v2218 = vld [vmem:[%s2217] sm:$0xff]
        %v2219 = vld [vmem:[%s2217 + $0x8] sm:$0xff]
        %v2222 = vrot.slane %v2212, 1
        %v2223 = vrot.slane %v2212, 2
        %v2224 = vrot.slane %v2212, 3
        %v2225 = vrot.slane %v2212, 4
        %v2226 = vrot.slane %v2212, 5
        %v2227 = vrot.slane %v2212, 6
        %v2228 = vrot.slane %v2212, 7
        %v2229 = vrot.slane %v2213, 1
        %v2230 = vrot.slane %v2213, 2
        %v2231 = vrot.slane %v2213, 3
        %v2232 = vrot.slane %v2213, 4
        %v2233 = vrot.slane %v2213, 5
        %v2234 = vrot.slane %v2213, 6
        %v2235 = vrot.slane %v2213, 7
        %v2236 = vperm.slane %v2212, 0
        %v2237 = vperm.slane %v2222, 0
        %v2238 = vperm.slane %v2223, 0
        %v2239 = vperm.slane %v2224, 0
        %v2240 = vperm.slane %v2225, 0
        %v2241 = vperm.slane %v2226, 0
        %v2242 = vperm.slane %v2227, 0
        %v2243 = vperm.slane %v2228, 0
        %v2244 = vperm.slane %v2213, 0
        %v2245 = vperm.slane %v2229, 0
        %v2246 = vperm.slane %v2230, 0
        %v2247 = vperm.slane %v2231, 0
        %v2248 = vperm.slane %v2232, 0
        %v2249 = vperm.slane %v2233, 0
        %v2250 = vperm.slane %v2234, 0
        %v2251 = vperm.slane %v2235, 0
        %v2268 = vmul.f32 %v2236, %v422
        %v2269 = vmul.f32 %v2237, %v423
        %v2270 = vmul.f32 %v2238, %v424
        %v2271 = vmul.f32 %v2239, %v425
        %v2272 = vmul.f32 %v2240, %v426
        %v2273 = vmul.f32 %v2241, %v427
        %v2274 = vmul.f32 %v2242, %v428
        %v2275 = vmul.f32 %v2243, %v429
        %v2276 = vmul.f32 %v2244, %v430
        %v2277 = vmul.f32 %v2245, %v431
        %v2278 = vmul.f32 %v2246, %v432
        %v2279 = vmul.f32 %v2247, %v433
        %v2280 = vmul.f32 %v2248, %v434
        %v2281 = vmul.f32 %v2249, %v435
        %v2282 = vmul.f32 %v2250, %v436
        %v2283 = vmul.f32 %v2251, %v437
        %v2284 = vadd.f32 %v2268, %v2269
        %v2285 = vadd.f32 %v2284, %v2270
        %v2286 = vadd.f32 %v2285, %v2271
        %v2287 = vadd.f32 %v2286, %v2272
        %v2288 = vadd.f32 %v2287, %v2273
        %v2289 = vadd.f32 %v2288, %v2274
        %v2290 = vadd.f32 %v2289, %v2275
        %v2291 = vadd.f32 %v2290, %v2276
        %v2292 = vadd.f32 %v2291, %v2277
        %v2293 = vadd.f32 %v2292, %v2278
        %v2294 = vadd.f32 %v2293, %v2279
        %v2295 = vadd.f32 %v2294, %v2280
        %v2296 = vadd.f32 %v2295, %v2281
        %v2297 = vadd.f32 %v2296, %v2282
        %v2298 = vadd.f32 %v2297, %v2283
        %v2301 = vrot.slane %v2215, 1
        %v2302 = vrot.slane %v2215, 2
        %v2303 = vrot.slane %v2215, 3
        %v2304 = vrot.slane %v2215, 4
        %v2305 = vrot.slane %v2215, 5
        %v2306 = vrot.slane %v2215, 6
        %v2307 = vrot.slane %v2215, 7
        %v2308 = vrot.slane %v2216, 1
        %v2309 = vrot.slane %v2216, 2
        %v2310 = vrot.slane %v2216, 3
        %v2311 = vrot.slane %v2216, 4
        %v2312 = vrot.slane %v2216, 5
        %v2313 = vrot.slane %v2216, 6
        %v2314 = vrot.slane %v2216, 7
        %v2315 = vperm.slane %v2215, 0
        %v2316 = vperm.slane %v2301, 0
        %v2317 = vperm.slane %v2302, 0
        %v2318 = vperm.slane %v2303, 0
        %v2319 = vperm.slane %v2304, 0
        %v2320 = vperm.slane %v2305, 0
        %v2321 = vperm.slane %v2306, 0
        %v2322 = vperm.slane %v2307, 0
        %v2323 = vperm.slane %v2216, 0
        %v2324 = vperm.slane %v2308, 0
        %v2325 = vperm.slane %v2309, 0
        %v2326 = vperm.slane %v2310, 0
        %v2327 = vperm.slane %v2311, 0
        %v2328 = vperm.slane %v2312, 0
        %v2329 = vperm.slane %v2313, 0
        %v2330 = vperm.slane %v2314, 0
        %v2347 = vmul.f32 %v2315, %v438
        %v2348 = vmul.f32 %v2316, %v439
        %v2349 = vmul.f32 %v2317, %v440
        %v2350 = vmul.f32 %v2318, %v441
        %v2351 = vmul.f32 %v2319, %v442
        %v2352 = vmul.f32 %v2320, %v443
        %v2353 = vmul.f32 %v2321, %v444
        %v2354 = vmul.f32 %v2322, %v445
        %v2355 = vmul.f32 %v2323, %v446
        %v2356 = vmul.f32 %v2324, %v447
        %v2357 = vmul.f32 %v2325, %v448
        %v2358 = vmul.f32 %v2326, %v449
        %v2359 = vmul.f32 %v2327, %v450
        %v2360 = vmul.f32 %v2328, %v451
        %v2361 = vmul.f32 %v2329, %v452
        %v2362 = vmul.f32 %v2330, %v453
        %v2363 = vmul.f32 %v2315, %v454
        %v2364 = vmul.f32 %v2316, %v455
        %v2365 = vmul.f32 %v2317, %v456
        %v2366 = vmul.f32 %v2318, %v457
        %v2367 = vmul.f32 %v2319, %v458
        %v2368 = vmul.f32 %v2320, %v459
        %v2369 = vmul.f32 %v2321, %v460
        %v2370 = vmul.f32 %v2322, %v461
        %v2371 = vmul.f32 %v2323, %v462
        %v2372 = vmul.f32 %v2324, %v463
        %v2373 = vmul.f32 %v2325, %v464
        %v2374 = vmul.f32 %v2326, %v465
        %v2375 = vmul.f32 %v2327, %v466
        %v2376 = vmul.f32 %v2328, %v467
        %v2377 = vmul.f32 %v2329, %v468
        %v2378 = vmul.f32 %v2330, %v469
        %v2379 = vmul.f32 %v2315, %v470
        %v2380 = vmul.f32 %v2316, %v471
        %v2381 = vmul.f32 %v2317, %v472
        %v2382 = vmul.f32 %v2318, %v473
        %v2383 = vmul.f32 %v2319, %v474
        %v2384 = vmul.f32 %v2320, %v475
        %v2385 = vmul.f32 %v2321, %v476
        %v2386 = vmul.f32 %v2322, %v477
        %v2387 = vmul.f32 %v2323, %v478
        %v2388 = vmul.f32 %v2324, %v479
        %v2389 = vmul.f32 %v2325, %v480
        %v2390 = vmul.f32 %v2326, %v481
        %v2391 = vmul.f32 %v2327, %v482
        %v2392 = vmul.f32 %v2328, %v483
        %v2393 = vmul.f32 %v2329, %v484
        %v2394 = vmul.f32 %v2330, %v485
        %v2395 = vmul.f32 %v2315, %v486
        %v2396 = vmul.f32 %v2316, %v487
        %v2397 = vmul.f32 %v2317, %v488
        %v2398 = vmul.f32 %v2318, %v489
        %v2399 = vmul.f32 %v2319, %v490
        %v2400 = vmul.f32 %v2320, %v491
        %v2401 = vmul.f32 %v2321, %v492
        %v2402 = vmul.f32 %v2322, %v493
        %v2403 = vmul.f32 %v2323, %v494
        %v2404 = vmul.f32 %v2324, %v495
        %v2405 = vmul.f32 %v2325, %v496
        %v2406 = vmul.f32 %v2326, %v497
        %v2407 = vmul.f32 %v2327, %v498
        %v2408 = vmul.f32 %v2328, %v499
        %v2409 = vmul.f32 %v2329, %v500
        %v2410 = vmul.f32 %v2330, %v501
        %v2411 = vmul.f32 %v2315, %v502
        %v2412 = vmul.f32 %v2316, %v503
        %v2413 = vmul.f32 %v2317, %v504
        %v2414 = vmul.f32 %v2318, %v505
        %v2415 = vmul.f32 %v2319, %v506
        %v2416 = vmul.f32 %v2320, %v507
        %v2417 = vmul.f32 %v2321, %v508
        %v2418 = vmul.f32 %v2322, %v509
        %v2419 = vmul.f32 %v2323, %v510
        %v2420 = vmul.f32 %v2324, %v511
        %v2421 = vmul.f32 %v2325, %v512
        %v2422 = vmul.f32 %v2326, %v513
        %v2423 = vmul.f32 %v2327, %v514
        %v2424 = vmul.f32 %v2328, %v515
        %v2425 = vmul.f32 %v2329, %v516
        %v2426 = vmul.f32 %v2330, %v517
        %v2427 = vmul.f32 %v2315, %v518
        %v2428 = vmul.f32 %v2316, %v519
        %v2429 = vmul.f32 %v2317, %v520
        %v2430 = vmul.f32 %v2318, %v521
        %v2431 = vmul.f32 %v2319, %v522
        %v2432 = vmul.f32 %v2320, %v523
        %v2433 = vmul.f32 %v2321, %v524
        %v2434 = vmul.f32 %v2322, %v525
        %v2435 = vmul.f32 %v2323, %v526
        %v2436 = vmul.f32 %v2324, %v527
        %v2437 = vmul.f32 %v2325, %v528
        %v2438 = vmul.f32 %v2326, %v529
        %v2439 = vmul.f32 %v2327, %v530
        %v2440 = vmul.f32 %v2328, %v531
        %v2441 = vmul.f32 %v2329, %v532
        %v2442 = vmul.f32 %v2330, %v533
        %v2443 = vmul.f32 %v2315, %v534
        %v2444 = vmul.f32 %v2316, %v535
        %v2445 = vmul.f32 %v2317, %v536
        %v2446 = vmul.f32 %v2318, %v537
        %v2447 = vmul.f32 %v2319, %v538
        %v2448 = vmul.f32 %v2320, %v539
        %v2449 = vmul.f32 %v2321, %v540
        %v2450 = vmul.f32 %v2322, %v541
        %v2451 = vmul.f32 %v2323, %v542
        %v2452 = vmul.f32 %v2324, %v543
        %v2453 = vmul.f32 %v2325, %v544
        %v2454 = vmul.f32 %v2326, %v545
        %v2455 = vmul.f32 %v2327, %v546
        %v2456 = vmul.f32 %v2328, %v547
        %v2457 = vmul.f32 %v2329, %v548
        %v2458 = vmul.f32 %v2330, %v549
        %v2459 = vmul.f32 %v2315, %v550
        %v2460 = vmul.f32 %v2316, %v551
        %v2461 = vmul.f32 %v2317, %v552
        %v2462 = vmul.f32 %v2318, %v553
        %v2463 = vmul.f32 %v2319, %v554
        %v2464 = vmul.f32 %v2320, %v555
        %v2465 = vmul.f32 %v2321, %v556
        %v2466 = vmul.f32 %v2322, %v557
        %v2467 = vmul.f32 %v2323, %v558
        %v2468 = vmul.f32 %v2324, %v559
        %v2469 = vmul.f32 %v2325, %v560
        %v2470 = vmul.f32 %v2326, %v561
        %v2471 = vmul.f32 %v2327, %v562
        %v2472 = vmul.f32 %v2328, %v563
        %v2473 = vmul.f32 %v2329, %v564
        %v2474 = vmul.f32 %v2330, %v565
        %v2475 = vadd.f32 %v2298, %v2347
        %v2476 = vadd.f32 %v2298, %v2348
        %v2477 = vadd.f32 %v2298, %v2349
        %v2478 = vadd.f32 %v2298, %v2350
        %v2479 = vadd.f32 %v2298, %v2351
        %v2480 = vadd.f32 %v2298, %v2352
        %v2481 = vadd.f32 %v2298, %v2353
        %v2482 = vadd.f32 %v2298, %v2354
        %v2483 = vadd.f32 %v2298, %v2355
        %v2484 = vadd.f32 %v2298, %v2356
        %v2485 = vadd.f32 %v2298, %v2357
        %v2486 = vadd.f32 %v2298, %v2358
        %v2487 = vadd.f32 %v2298, %v2359
        %v2488 = vadd.f32 %v2298, %v2360
        %v2489 = vadd.f32 %v2298, %v2361
        %v2490 = vadd.f32 %v2298, %v2362
        %v2491 = vadd.f32 %v2298, %v2363
        %v2492 = vadd.f32 %v2298, %v2364
        %v2493 = vadd.f32 %v2298, %v2365
        %v2494 = vadd.f32 %v2298, %v2366
        %v2495 = vadd.f32 %v2298, %v2367
        %v2496 = vadd.f32 %v2298, %v2368
        %v2497 = vadd.f32 %v2298, %v2369
        %v2498 = vadd.f32 %v2298, %v2370
        %v2499 = vadd.f32 %v2298, %v2371
        %v2500 = vadd.f32 %v2298, %v2372
        %v2501 = vadd.f32 %v2298, %v2373
        %v2502 = vadd.f32 %v2298, %v2374
        %v2503 = vadd.f32 %v2298, %v2375
        %v2504 = vadd.f32 %v2298, %v2376
        %v2505 = vadd.f32 %v2298, %v2377
        %v2506 = vadd.f32 %v2298, %v2378
        %v2507 = vadd.f32 %v2298, %v2379
        %v2508 = vadd.f32 %v2298, %v2380
        %v2509 = vadd.f32 %v2298, %v2381
        %v2510 = vadd.f32 %v2298, %v2382
        %v2511 = vadd.f32 %v2298, %v2383
        %v2512 = vadd.f32 %v2298, %v2384
        %v2513 = vadd.f32 %v2298, %v2385
        %v2514 = vadd.f32 %v2298, %v2386
        %v2515 = vadd.f32 %v2298, %v2387
        %v2516 = vadd.f32 %v2298, %v2388
        %v2517 = vadd.f32 %v2298, %v2389
        %v2518 = vadd.f32 %v2298, %v2390
        %v2519 = vadd.f32 %v2298, %v2391
        %v2520 = vadd.f32 %v2298, %v2392
        %v2521 = vadd.f32 %v2298, %v2393
        %v2522 = vadd.f32 %v2298, %v2394
        %v2523 = vadd.f32 %v2298, %v2395
        %v2524 = vadd.f32 %v2298, %v2396
        %v2525 = vadd.f32 %v2298, %v2397
        %v2526 = vadd.f32 %v2298, %v2398
        %v2527 = vadd.f32 %v2298, %v2399
        %v2528 = vadd.f32 %v2298, %v2400
        %v2529 = vadd.f32 %v2298, %v2401
        %v2530 = vadd.f32 %v2298, %v2402
        %v2531 = vadd.f32 %v2298, %v2403
        %v2532 = vadd.f32 %v2298, %v2404
        %v2533 = vadd.f32 %v2298, %v2405
        %v2534 = vadd.f32 %v2298, %v2406
        %v2535 = vadd.f32 %v2298, %v2407
        %v2536 = vadd.f32 %v2298, %v2408
        %v2537 = vadd.f32 %v2298, %v2409
        %v2538 = vadd.f32 %v2298, %v2410
        %v2539 = vadd.f32 %v2298, %v2411
        %v2540 = vadd.f32 %v2298, %v2412
        %v2541 = vadd.f32 %v2298, %v2413
        %v2542 = vadd.f32 %v2298, %v2414
        %v2543 = vadd.f32 %v2298, %v2415
        %v2544 = vadd.f32 %v2298, %v2416
        %v2545 = vadd.f32 %v2298, %v2417
        %v2546 = vadd.f32 %v2298, %v2418
        %v2547 = vadd.f32 %v2298, %v2419
        %v2548 = vadd.f32 %v2298, %v2420
        %v2549 = vadd.f32 %v2298, %v2421
        %v2550 = vadd.f32 %v2298, %v2422
        %v2551 = vadd.f32 %v2298, %v2423
        %v2552 = vadd.f32 %v2298, %v2424
        %v2553 = vadd.f32 %v2298, %v2425
        %v2554 = vadd.f32 %v2298, %v2426
        %v2555 = vadd.f32 %v2298, %v2427
        %v2556 = vadd.f32 %v2298, %v2428
        %v2557 = vadd.f32 %v2298, %v2429
        %v2558 = vadd.f32 %v2298, %v2430
        %v2559 = vadd.f32 %v2298, %v2431
        %v2560 = vadd.f32 %v2298, %v2432
        %v2561 = vadd.f32 %v2298, %v2433
        %v2562 = vadd.f32 %v2298, %v2434
        %v2563 = vadd.f32 %v2298, %v2435
        %v2564 = vadd.f32 %v2298, %v2436
        %v2565 = vadd.f32 %v2298, %v2437
        %v2566 = vadd.f32 %v2298, %v2438
        %v2567 = vadd.f32 %v2298, %v2439
        %v2568 = vadd.f32 %v2298, %v2440
        %v2569 = vadd.f32 %v2298, %v2441
        %v2570 = vadd.f32 %v2298, %v2442
        %v2571 = vadd.f32 %v2298, %v2443
        %v2572 = vadd.f32 %v2298, %v2444
        %v2573 = vadd.f32 %v2298, %v2445
        %v2574 = vadd.f32 %v2298, %v2446
        %v2575 = vadd.f32 %v2298, %v2447
        %v2576 = vadd.f32 %v2298, %v2448
        %v2577 = vadd.f32 %v2298, %v2449
        %v2578 = vadd.f32 %v2298, %v2450
        %v2579 = vadd.f32 %v2298, %v2451
        %v2580 = vadd.f32 %v2298, %v2452
        %v2581 = vadd.f32 %v2298, %v2453
        %v2582 = vadd.f32 %v2298, %v2454
        %v2583 = vadd.f32 %v2298, %v2455
        %v2584 = vadd.f32 %v2298, %v2456
        %v2585 = vadd.f32 %v2298, %v2457
        %v2586 = vadd.f32 %v2298, %v2458
        %v2587 = vadd.f32 %v2298, %v2459
        %v2588 = vadd.f32 %v2298, %v2460
        %v2589 = vadd.f32 %v2298, %v2461
        %v2590 = vadd.f32 %v2298, %v2462
        %v2591 = vadd.f32 %v2298, %v2463
        %v2592 = vadd.f32 %v2298, %v2464
        %v2593 = vadd.f32 %v2298, %v2465
        %v2594 = vadd.f32 %v2298, %v2466
        %v2595 = vadd.f32 %v2298, %v2467
        %v2596 = vadd.f32 %v2298, %v2468
        %v2597 = vadd.f32 %v2298, %v2469
        %v2598 = vadd.f32 %v2298, %v2470
        %v2599 = vadd.f32 %v2298, %v2471
        %v2600 = vadd.f32 %v2298, %v2472
        %v2601 = vadd.f32 %v2298, %v2473
        %v2602 = vadd.f32 %v2298, %v2474
        %v2603 = vtanh.pop %v2475
        %v2604 = vtanh.pop %v2476
        %v2605 = vtanh.pop %v2477
        %v2606 = vtanh.pop %v2478
        %v2607 = vtanh.pop %v2479
        %v2608 = vtanh.pop %v2480
        %v2609 = vtanh.pop %v2481
        %v2610 = vtanh.pop %v2482
        %v2611 = vtanh.pop %v2483
        %v2612 = vtanh.pop %v2484
        %v2613 = vtanh.pop %v2485
        %v2614 = vtanh.pop %v2486
        %v2615 = vtanh.pop %v2487
        %v2616 = vtanh.pop %v2488
        %v2617 = vtanh.pop %v2489
        %v2618 = vtanh.pop %v2490
        %v2619 = vtanh.pop %v2491
        %v2620 = vtanh.pop %v2492
        %v2621 = vtanh.pop %v2493
        %v2622 = vtanh.pop %v2494
        %v2623 = vtanh.pop %v2495
        %v2624 = vtanh.pop %v2496
        %v2625 = vtanh.pop %v2497
        %v2626 = vtanh.pop %v2498
        %v2627 = vtanh.pop %v2499
        %v2628 = vtanh.pop %v2500
        %v2629 = vtanh.pop %v2501
        %v2630 = vtanh.pop %v2502
        %v2631 = vtanh.pop %v2503
        %v2632 = vtanh.pop %v2504
        %v2633 = vtanh.pop %v2505
        %v2634 = vtanh.pop %v2506
        %v2635 = vtanh.pop %v2507
        %v2636 = vtanh.pop %v2508
        %v2637 = vtanh.pop %v2509
        %v2638 = vtanh.pop %v2510
        %v2639 = vtanh.pop %v2511
        %v2640 = vtanh.pop %v2512
        %v2641 = vtanh.pop %v2513
        %v2642 = vtanh.pop %v2514
        %v2643 = vtanh.pop %v2515
        %v2644 = vtanh.pop %v2516
        %v2645 = vtanh.pop %v2517
        %v2646 = vtanh.pop %v2518
        %v2647 = vtanh.pop %v2519
        %v2648 = vtanh.pop %v2520
        %v2649 = vtanh.pop %v2521
        %v2650 = vtanh.pop %v2522
        %v2651 = vtanh.pop %v2523
        %v2652 = vtanh.pop %v2524
        %v2653 = vtanh.pop %v2525
        %v2654 = vtanh.pop %v2526
        %v2655 = vtanh.pop %v2527
        %v2656 = vtanh.pop %v2528
        %v2657 = vtanh.pop %v2529
        %v2658 = vtanh.pop %v2530
        %v2659 = vtanh.pop %v2531
        %v2660 = vtanh.pop %v2532
        %v2661 = vtanh.pop %v2533
        %v2662 = vtanh.pop %v2534
        %v2663 = vtanh.pop %v2535
        %v2664 = vtanh.pop %v2536
        %v2665 = vtanh.pop %v2537
        %v2666 = vtanh.pop %v2538
        %v2667 = vtanh.pop %v2539
        %v2668 = vtanh.pop %v2540
        %v2669 = vtanh.pop %v2541
        %v2670 = vtanh.pop %v2542
        %v2671 = vtanh.pop %v2543
        %v2672 = vtanh.pop %v2544
        %v2673 = vtanh.pop %v2545
        %v2674 = vtanh.pop %v2546
        %v2675 = vtanh.pop %v2547
        %v2676 = vtanh.pop %v2548
        %v2677 = vtanh.pop %v2549
        %v2678 = vtanh.pop %v2550
        %v2679 = vtanh.pop %v2551
        %v2680 = vtanh.pop %v2552
        %v2681 = vtanh.pop %v2553
        %v2682 = vtanh.pop %v2554
        %v2683 = vtanh.pop %v2555
        %v2684 = vtanh.pop %v2556
        %v2685 = vtanh.pop %v2557
        %v2686 = vtanh.pop %v2558
        %v2687 = vtanh.pop %v2559
        %v2688 = vtanh.pop %v2560
        %v2689 = vtanh.pop %v2561
        %v2690 = vtanh.pop %v2562
        %v2691 = vtanh.pop %v2563
        %v2692 = vtanh.pop %v2564
        %v2693 = vtanh.pop %v2565
        %v2694 = vtanh.pop %v2566
        %v2695 = vtanh.pop %v2567
        %v2696 = vtanh.pop %v2568
        %v2697 = vtanh.pop %v2569
        %v2698 = vtanh.pop %v2570
        %v2699 = vtanh.pop %v2571
        %v2700 = vtanh.pop %v2572
        %v2701 = vtanh.pop %v2573
        %v2702 = vtanh.pop %v2574
        %v2703 = vtanh.pop %v2575
        %v2704 = vtanh.pop %v2576
        %v2705 = vtanh.pop %v2577
        %v2706 = vtanh.pop %v2578
        %v2707 = vtanh.pop %v2579
        %v2708 = vtanh.pop %v2580
        %v2709 = vtanh.pop %v2581
        %v2710 = vtanh.pop %v2582
        %v2711 = vtanh.pop %v2583
        %v2712 = vtanh.pop %v2584
        %v2713 = vtanh.pop %v2585
        %v2714 = vtanh.pop %v2586
        %v2715 = vtanh.pop %v2587
        %v2716 = vtanh.pop %v2588
        %v2717 = vtanh.pop %v2589
        %v2718 = vtanh.pop %v2590
        %v2719 = vtanh.pop %v2591
        %v2720 = vtanh.pop %v2592
        %v2721 = vtanh.pop %v2593
        %v2722 = vtanh.pop %v2594
        %v2723 = vtanh.pop %v2595
        %v2724 = vtanh.pop %v2596
        %v2725 = vtanh.pop %v2597
        %v2726 = vtanh.pop %v2598
        %v2727 = vtanh.pop %v2599
        %v2728 = vtanh.pop %v2600
        %v2729 = vtanh.pop %v2601
        %v2730 = vtanh.pop %v2602
        %v2733 = vrot.slane %v2218, 1
        %v2734 = vrot.slane %v2218, 2
        %v2735 = vrot.slane %v2218, 3
        %v2736 = vrot.slane %v2218, 4
        %v2737 = vrot.slane %v2218, 5
        %v2738 = vrot.slane %v2218, 6
        %v2739 = vrot.slane %v2218, 7
        %v2740 = vrot.slane %v2219, 1
        %v2741 = vrot.slane %v2219, 2
        %v2742 = vrot.slane %v2219, 3
        %v2743 = vrot.slane %v2219, 4
        %v2744 = vrot.slane %v2219, 5
        %v2745 = vrot.slane %v2219, 6
        %v2746 = vrot.slane %v2219, 7
        %v2747 = vperm.slane %v2218, 0
        %v2748 = vperm.slane %v2733, 0
        %v2749 = vperm.slane %v2734, 0
        %v2750 = vperm.slane %v2735, 0
        %v2751 = vperm.slane %v2736, 0
        %v2752 = vperm.slane %v2737, 0
        %v2753 = vperm.slane %v2738, 0
        %v2754 = vperm.slane %v2739, 0
        %v2755 = vperm.slane %v2219, 0
        %v2756 = vperm.slane %v2740, 0
        %v2757 = vperm.slane %v2741, 0
        %v2758 = vperm.slane %v2742, 0
        %v2759 = vperm.slane %v2743, 0
        %v2760 = vperm.slane %v2744, 0
        %v2761 = vperm.slane %v2745, 0
        %v2762 = vperm.slane %v2746, 0
        %v2779 = vmul.f32 %v2747, %v2603
        %v2780 = vmul.f32 %v2748, %v2604
        %v2781 = vmul.f32 %v2749, %v2605
        %v2782 = vmul.f32 %v2750, %v2606
        %v2783 = vmul.f32 %v2751, %v2607
        %v2784 = vmul.f32 %v2752, %v2608
        %v2785 = vmul.f32 %v2753, %v2609
        %v2786 = vmul.f32 %v2754, %v2610
        %v2787 = vmul.f32 %v2755, %v2611
        %v2788 = vmul.f32 %v2756, %v2612
        %v2789 = vmul.f32 %v2757, %v2613
        %v2790 = vmul.f32 %v2758, %v2614
        %v2791 = vmul.f32 %v2759, %v2615
        %v2792 = vmul.f32 %v2760, %v2616
        %v2793 = vmul.f32 %v2761, %v2617
        %v2794 = vmul.f32 %v2762, %v2618
        %v2795 = vmul.f32 %v2747, %v2619
        %v2796 = vmul.f32 %v2748, %v2620
        %v2797 = vmul.f32 %v2749, %v2621
        %v2798 = vmul.f32 %v2750, %v2622
        %v2799 = vmul.f32 %v2751, %v2623
        %v2800 = vmul.f32 %v2752, %v2624
        %v2801 = vmul.f32 %v2753, %v2625
        %v2802 = vmul.f32 %v2754, %v2626
        %v2803 = vmul.f32 %v2755, %v2627
        %v2804 = vmul.f32 %v2756, %v2628
        %v2805 = vmul.f32 %v2757, %v2629
        %v2806 = vmul.f32 %v2758, %v2630
        %v2807 = vmul.f32 %v2759, %v2631
        %v2808 = vmul.f32 %v2760, %v2632
        %v2809 = vmul.f32 %v2761, %v2633
        %v2810 = vmul.f32 %v2762, %v2634
        %v2811 = vmul.f32 %v2747, %v2635
        %v2812 = vmul.f32 %v2748, %v2636
        %v2813 = vmul.f32 %v2749, %v2637
        %v2814 = vmul.f32 %v2750, %v2638
        %v2815 = vmul.f32 %v2751, %v2639
        %v2816 = vmul.f32 %v2752, %v2640
        %v2817 = vmul.f32 %v2753, %v2641
        %v2818 = vmul.f32 %v2754, %v2642
        %v2819 = vmul.f32 %v2755, %v2643
        %v2820 = vmul.f32 %v2756, %v2644
        %v2821 = vmul.f32 %v2757, %v2645
        %v2822 = vmul.f32 %v2758, %v2646
        %v2823 = vmul.f32 %v2759, %v2647
        %v2824 = vmul.f32 %v2760, %v2648
        %v2825 = vmul.f32 %v2761, %v2649
        %v2826 = vmul.f32 %v2762, %v2650
        %v2827 = vmul.f32 %v2747, %v2651
        %v2828 = vmul.f32 %v2748, %v2652
        %v2829 = vmul.f32 %v2749, %v2653
        %v2830 = vmul.f32 %v2750, %v2654
        %v2831 = vmul.f32 %v2751, %v2655
        %v2832 = vmul.f32 %v2752, %v2656
        %v2833 = vmul.f32 %v2753, %v2657
        %v2834 = vmul.f32 %v2754, %v2658
        %v2835 = vmul.f32 %v2755, %v2659
        %v2836 = vmul.f32 %v2756, %v2660
        %v2837 = vmul.f32 %v2757, %v2661
        %v2838 = vmul.f32 %v2758, %v2662
        %v2839 = vmul.f32 %v2759, %v2663
        %v2840 = vmul.f32 %v2760, %v2664
        %v2841 = vmul.f32 %v2761, %v2665
        %v2842 = vmul.f32 %v2762, %v2666
        %v2843 = vmul.f32 %v2747, %v2667
        %v2844 = vmul.f32 %v2748, %v2668
        %v2845 = vmul.f32 %v2749, %v2669
        %v2846 = vmul.f32 %v2750, %v2670
        %v2847 = vmul.f32 %v2751, %v2671
        %v2848 = vmul.f32 %v2752, %v2672
        %v2849 = vmul.f32 %v2753, %v2673
        %v2850 = vmul.f32 %v2754, %v2674
        %v2851 = vmul.f32 %v2755, %v2675
        %v2852 = vmul.f32 %v2756, %v2676
        %v2853 = vmul.f32 %v2757, %v2677
        %v2854 = vmul.f32 %v2758, %v2678
        %v2855 = vmul.f32 %v2759, %v2679
        %v2856 = vmul.f32 %v2760, %v2680
        %v2857 = vmul.f32 %v2761, %v2681
        %v2858 = vmul.f32 %v2762, %v2682
        %v2859 = vmul.f32 %v2747, %v2683
        %v2860 = vmul.f32 %v2748, %v2684
        %v2861 = vmul.f32 %v2749, %v2685
        %v2862 = vmul.f32 %v2750, %v2686
        %v2863 = vmul.f32 %v2751, %v2687
        %v2864 = vmul.f32 %v2752, %v2688
        %v2865 = vmul.f32 %v2753, %v2689
        %v2866 = vmul.f32 %v2754, %v2690
        %v2867 = vmul.f32 %v2755, %v2691
        %v2868 = vmul.f32 %v2756, %v2692
        %v2869 = vmul.f32 %v2757, %v2693
        %v2870 = vmul.f32 %v2758, %v2694
        %v2871 = vmul.f32 %v2759, %v2695
        %v2872 = vmul.f32 %v2760, %v2696
        %v2873 = vmul.f32 %v2761, %v2697
        %v2874 = vmul.f32 %v2762, %v2698
        %v2875 = vmul.f32 %v2747, %v2699
        %v2876 = vmul.f32 %v2748, %v2700
        %v2877 = vmul.f32 %v2749, %v2701
        %v2878 = vmul.f32 %v2750, %v2702
        %v2879 = vmul.f32 %v2751, %v2703
        %v2880 = vmul.f32 %v2752, %v2704
        %v2881 = vmul.f32 %v2753, %v2705
        %v2882 = vmul.f32 %v2754, %v2706
        %v2883 = vmul.f32 %v2755, %v2707
        %v2884 = vmul.f32 %v2756, %v2708
        %v2885 = vmul.f32 %v2757, %v2709
        %v2886 = vmul.f32 %v2758, %v2710
        %v2887 = vmul.f32 %v2759, %v2711
        %v2888 = vmul.f32 %v2760, %v2712
        %v2889 = vmul.f32 %v2761, %v2713
        %v2890 = vmul.f32 %v2762, %v2714
        %v2891 = vmul.f32 %v2747, %v2715
        %v2892 = vmul.f32 %v2748, %v2716
        %v2893 = vmul.f32 %v2749, %v2717
        %v2894 = vmul.f32 %v2750, %v2718
        %v2895 = vmul.f32 %v2751, %v2719
        %v2896 = vmul.f32 %v2752, %v2720
        %v2897 = vmul.f32 %v2753, %v2721
        %v2898 = vmul.f32 %v2754, %v2722
        %v2899 = vmul.f32 %v2755, %v2723
        %v2900 = vmul.f32 %v2756, %v2724
        %v2901 = vmul.f32 %v2757, %v2725
        %v2902 = vmul.f32 %v2758, %v2726
        %v2903 = vmul.f32 %v2759, %v2727
        %v2904 = vmul.f32 %v2760, %v2728
        %v2905 = vmul.f32 %v2761, %v2729
        %v2906 = vmul.f32 %v2762, %v2730
        %v2907 = vadd.f32 %v2083, %v2779
        %v2908 = vadd.f32 %v2084, %v2780
        %v2909 = vadd.f32 %v2085, %v2781
        %v2910 = vadd.f32 %v2086, %v2782
        %v2911 = vadd.f32 %v2087, %v2783
        %v2912 = vadd.f32 %v2088, %v2784
        %v2913 = vadd.f32 %v2089, %v2785
        %v2914 = vadd.f32 %v2090, %v2786
        %v2915 = vadd.f32 %v2091, %v2787
        %v2916 = vadd.f32 %v2092, %v2788
        %v2917 = vadd.f32 %v2093, %v2789
        %v2918 = vadd.f32 %v2094, %v2790
        %v2919 = vadd.f32 %v2095, %v2791
        %v2920 = vadd.f32 %v2096, %v2792
        %v2921 = vadd.f32 %v2097, %v2793
        %v2922 = vadd.f32 %v2098, %v2794
        %v2923 = vadd.f32 %v2099, %v2795
        %v2924 = vadd.f32 %v2100, %v2796
        %v2925 = vadd.f32 %v2101, %v2797
        %v2926 = vadd.f32 %v2102, %v2798
        %v2927 = vadd.f32 %v2103, %v2799
        %v2928 = vadd.f32 %v2104, %v2800
        %v2929 = vadd.f32 %v2105, %v2801
        %v2930 = vadd.f32 %v2106, %v2802
        %v2931 = vadd.f32 %v2107, %v2803
        %v2932 = vadd.f32 %v2108, %v2804
        %v2933 = vadd.f32 %v2109, %v2805
        %v2934 = vadd.f32 %v2110, %v2806
        %v2935 = vadd.f32 %v2111, %v2807
        %v2936 = vadd.f32 %v2112, %v2808
        %v2937 = vadd.f32 %v2113, %v2809
        %v2938 = vadd.f32 %v2114, %v2810
        %v2939 = vadd.f32 %v2115, %v2811
        %v2940 = vadd.f32 %v2116, %v2812
        %v2941 = vadd.f32 %v2117, %v2813
        %v2942 = vadd.f32 %v2118, %v2814
        %v2943 = vadd.f32 %v2119, %v2815
        %v2944 = vadd.f32 %v2120, %v2816
        %v2945 = vadd.f32 %v2121, %v2817
        %v2946 = vadd.f32 %v2122, %v2818
        %v2947 = vadd.f32 %v2123, %v2819
        %v2948 = vadd.f32 %v2124, %v2820
        %v2949 = vadd.f32 %v2125, %v2821
        %v2950 = vadd.f32 %v2126, %v2822
        %v2951 = vadd.f32 %v2127, %v2823
        %v2952 = vadd.f32 %v2128, %v2824
        %v2953 = vadd.f32 %v2129, %v2825
        %v2954 = vadd.f32 %v2130, %v2826
        %v2955 = vadd.f32 %v2131, %v2827
        %v2956 = vadd.f32 %v2132, %v2828
        %v2957 = vadd.f32 %v2133, %v2829
        %v2958 = vadd.f32 %v2134, %v2830
        %v2959 = vadd.f32 %v2135, %v2831
        %v2960 = vadd.f32 %v2136, %v2832
        %v2961 = vadd.f32 %v2137, %v2833
        %v2962 = vadd.f32 %v2138, %v2834
        %v2963 = vadd.f32 %v2139, %v2835
        %v2964 = vadd.f32 %v2140, %v2836
        %v2965 = vadd.f32 %v2141, %v2837
        %v2966 = vadd.f32 %v2142, %v2838
        %v2967 = vadd.f32 %v2143, %v2839
        %v2968 = vadd.f32 %v2144, %v2840
        %v2969 = vadd.f32 %v2145, %v2841
        %v2970 = vadd.f32 %v2146, %v2842
        %v2971 = vadd.f32 %v2147, %v2843
        %v2972 = vadd.f32 %v2148, %v2844
        %v2973 = vadd.f32 %v2149, %v2845
        %v2974 = vadd.f32 %v2150, %v2846
        %v2975 = vadd.f32 %v2151, %v2847
        %v2976 = vadd.f32 %v2152, %v2848
        %v2977 = vadd.f32 %v2153, %v2849
        %v2978 = vadd.f32 %v2154, %v2850
        %v2979 = vadd.f32 %v2155, %v2851
        %v2980 = vadd.f32 %v2156, %v2852
        %v2981 = vadd.f32 %v2157, %v2853
        %v2982 = vadd.f32 %v2158, %v2854
        %v2983 = vadd.f32 %v2159, %v2855
        %v2984 = vadd.f32 %v2160, %v2856
        %v2985 = vadd.f32 %v2161, %v2857
        %v2986 = vadd.f32 %v2162, %v2858
        %v2987 = vadd.f32 %v2163, %v2859
        %v2988 = vadd.f32 %v2164, %v2860
        %v2989 = vadd.f32 %v2165, %v2861
        %v2990 = vadd.f32 %v2166, %v2862
        %v2991 = vadd.f32 %v2167, %v2863
        %v2992 = vadd.f32 %v2168, %v2864
        %v2993 = vadd.f32 %v2169, %v2865
        %v2994 = vadd.f32 %v2170, %v2866
        %v2995 = vadd.f32 %v2171, %v2867
        %v2996 = vadd.f32 %v2172, %v2868
        %v2997 = vadd.f32 %v2173, %v2869
        %v2998 = vadd.f32 %v2174, %v2870
        %v2999 = vadd.f32 %v2175, %v2871
        %v3000 = vadd.f32 %v2176, %v2872
        %v3001 = vadd.f32 %v2177, %v2873
        %v3002 = vadd.f32 %v2178, %v2874
        %v3003 = vadd.f32 %v2179, %v2875
        %v3004 = vadd.f32 %v2180, %v2876
        %v3005 = vadd.f32 %v2181, %v2877
        %v3006 = vadd.f32 %v2182, %v2878
        %v3007 = vadd.f32 %v2183, %v2879
        %v3008 = vadd.f32 %v2184, %v2880
        %v3009 = vadd.f32 %v2185, %v2881
        %v3010 = vadd.f32 %v2186, %v2882
        %v3011 = vadd.f32 %v2187, %v2883
        %v3012 = vadd.f32 %v2188, %v2884
        %v3013 = vadd.f32 %v2189, %v2885
        %v3014 = vadd.f32 %v2190, %v2886
        %v3015 = vadd.f32 %v2191, %v2887
        %v3016 = vadd.f32 %v2192, %v2888
        %v3017 = vadd.f32 %v2193, %v2889
        %v3018 = vadd.f32 %v2194, %v2890
        %v3019 = vadd.f32 %v2195, %v2891
        %v3020 = vadd.f32 %v2196, %v2892
        %v3021 = vadd.f32 %v2197, %v2893
        %v3022 = vadd.f32 %v2198, %v2894
        %v3023 = vadd.f32 %v2199, %v2895
        %v3024 = vadd.f32 %v2200, %v2896
        %v3025 = vadd.f32 %v2201, %v2897
        %v3026 = vadd.f32 %v2202, %v2898
        %v3027 = vadd.f32 %v2203, %v2899
        %v3028 = vadd.f32 %v2204, %v2900
        %v3029 = vadd.f32 %v2205, %v2901
        %v3030 = vadd.f32 %v2206, %v2902
        %v3031 = vadd.f32 %v2207, %v2903
        %v3032 = vadd.f32 %v2208, %v2904
        %v3033 = vadd.f32 %v2209, %v2905
        %v3034 = vadd.f32 %v2210, %v2906
        %s3035 = scalar_lea.vmem [#allocation7], 48
        %v3036 = vld [vmem:[%s3035] sm:$0xff]
        %v3037 = vld [vmem:[%s3035 + $0x8] sm:$0xff]
        %s3038 = scalar_lea.vmem [#allocation8], 48
        %v3039 = vld [vmem:[%s3038] sm:$0xff]
        %v3040 = vld [vmem:[%s3038 + $0x8] sm:$0xff]
        %s3041 = scalar_lea.vmem [#allocation10], 48
        %v3042 = vld [vmem:[%s3041] sm:$0xff]
        %v3043 = vld [vmem:[%s3041 + $0x8] sm:$0xff]
        %v3046 = vrot.slane %v3036, 1
        %v3047 = vrot.slane %v3036, 2
        %v3048 = vrot.slane %v3036, 3
        %v3049 = vrot.slane %v3036, 4
        %v3050 = vrot.slane %v3036, 5
        %v3051 = vrot.slane %v3036, 6
        %v3052 = vrot.slane %v3036, 7
        %v3053 = vrot.slane %v3037, 1
        %v3054 = vrot.slane %v3037, 2
        %v3055 = vrot.slane %v3037, 3
        %v3056 = vrot.slane %v3037, 4
        %v3057 = vrot.slane %v3037, 5
        %v3058 = vrot.slane %v3037, 6
        %v3059 = vrot.slane %v3037, 7
        %v3060 = vperm.slane %v3036, 0
        %v3061 = vperm.slane %v3046, 0
        %v3062 = vperm.slane %v3047, 0
        %v3063 = vperm.slane %v3048, 0
        %v3064 = vperm.slane %v3049, 0
        %v3065 = vperm.slane %v3050, 0
        %v3066 = vperm.slane %v3051, 0
        %v3067 = vperm.slane %v3052, 0
        %v3068 = vperm.slane %v3037, 0
        %v3069 = vperm.slane %v3053, 0
        %v3070 = vperm.slane %v3054, 0
        %v3071 = vperm.slane %v3055, 0
        %v3072 = vperm.slane %v3056, 0
        %v3073 = vperm.slane %v3057, 0
        %v3074 = vperm.slane %v3058, 0
        %v3075 = vperm.slane %v3059, 0
        %v3092 = vmul.f32 %v3060, %v422
        %v3093 = vmul.f32 %v3061, %v423
        %v3094 = vmul.f32 %v3062, %v424
        %v3095 = vmul.f32 %v3063, %v425
        %v3096 = vmul.f32 %v3064, %v426
        %v3097 = vmul.f32 %v3065, %v427
        %v3098 = vmul.f32 %v3066, %v428
        %v3099 = vmul.f32 %v3067, %v429
        %v3100 = vmul.f32 %v3068, %v430
        %v3101 = vmul.f32 %v3069, %v431
        %v3102 = vmul.f32 %v3070, %v432
        %v3103 = vmul.f32 %v3071, %v433
        %v3104 = vmul.f32 %v3072, %v434
        %v3105 = vmul.f32 %v3073, %v435
        %v3106 = vmul.f32 %v3074, %v436
        %v3107 = vmul.f32 %v3075, %v437
        %v3108 = vadd.f32 %v3092, %v3093
        %v3109 = vadd.f32 %v3108, %v3094
        %v3110 = vadd.f32 %v3109, %v3095
        %v3111 = vadd.f32 %v3110, %v3096
        %v3112 = vadd.f32 %v3111, %v3097
        %v3113 = vadd.f32 %v3112, %v3098
        %v3114 = vadd.f32 %v3113, %v3099
        %v3115 = vadd.f32 %v3114, %v3100
        %v3116 = vadd.f32 %v3115, %v3101
        %v3117 = vadd.f32 %v3116, %v3102
        %v3118 = vadd.f32 %v3117, %v3103
        %v3119 = vadd.f32 %v3118, %v3104
        %v3120 = vadd.f32 %v3119, %v3105
        %v3121 = vadd.f32 %v3120, %v3106
        %v3122 = vadd.f32 %v3121, %v3107
        %v3125 = vrot.slane %v3039, 1
        %v3126 = vrot.slane %v3039, 2
        %v3127 = vrot.slane %v3039, 3
        %v3128 = vrot.slane %v3039, 4
        %v3129 = vrot.slane %v3039, 5
        %v3130 = vrot.slane %v3039, 6
        %v3131 = vrot.slane %v3039, 7
        %v3132 = vrot.slane %v3040, 1
        %v3133 = vrot.slane %v3040, 2
        %v3134 = vrot.slane %v3040, 3
        %v3135 = vrot.slane %v3040, 4
        %v3136 = vrot.slane %v3040, 5
        %v3137 = vrot.slane %v3040, 6
        %v3138 = vrot.slane %v3040, 7
        %v3139 = vperm.slane %v3039, 0
        %v3140 = vperm.slane %v3125, 0
        %v3141 = vperm.slane %v3126, 0
        %v3142 = vperm.slane %v3127, 0
        %v3143 = vperm.slane %v3128, 0
        %v3144 = vperm.slane %v3129, 0
        %v3145 = vperm.slane %v3130, 0
        %v3146 = vperm.slane %v3131, 0
        %v3147 = vperm.slane %v3040, 0
        %v3148 = vperm.slane %v3132, 0
        %v3149 = vperm.slane %v3133, 0
        %v3150 = vperm.slane %v3134, 0
        %v3151 = vperm.slane %v3135, 0
        %v3152 = vperm.slane %v3136, 0
        %v3153 = vperm.slane %v3137, 0
        %v3154 = vperm.slane %v3138, 0
        %v3171 = vmul.f32 %v3139, %v438
        %v3172 = vmul.f32 %v3140, %v439
        %v3173 = vmul.f32 %v3141, %v440
        %v3174 = vmul.f32 %v3142, %v441
        %v3175 = vmul.f32 %v3143, %v442
        %v3176 = vmul.f32 %v3144, %v443
        %v3177 = vmul.f32 %v3145, %v444
        %v3178 = vmul.f32 %v3146, %v445
        %v3179 = vmul.f32 %v3147, %v446
        %v3180 = vmul.f32 %v3148, %v447
        %v3181 = vmul.f32 %v3149, %v448
        %v3182 = vmul.f32 %v3150, %v449
        %v3183 = vmul.f32 %v3151, %v450
        %v3184 = vmul.f32 %v3152, %v451
        %v3185 = vmul.f32 %v3153, %v452
        %v3186 = vmul.f32 %v3154, %v453
        %v3187 = vmul.f32 %v3139, %v454
        %v3188 = vmul.f32 %v3140, %v455
        %v3189 = vmul.f32 %v3141, %v456
        %v3190 = vmul.f32 %v3142, %v457
        %v3191 = vmul.f32 %v3143, %v458
        %v3192 = vmul.f32 %v3144, %v459
        %v3193 = vmul.f32 %v3145, %v460
        %v3194 = vmul.f32 %v3146, %v461
        %v3195 = vmul.f32 %v3147, %v462
        %v3196 = vmul.f32 %v3148, %v463
        %v3197 = vmul.f32 %v3149, %v464
        %v3198 = vmul.f32 %v3150, %v465
        %v3199 = vmul.f32 %v3151, %v466
        %v3200 = vmul.f32 %v3152, %v467
        %v3201 = vmul.f32 %v3153, %v468
        %v3202 = vmul.f32 %v3154, %v469
        %v3203 = vmul.f32 %v3139, %v470
        %v3204 = vmul.f32 %v3140, %v471
        %v3205 = vmul.f32 %v3141, %v472
        %v3206 = vmul.f32 %v3142, %v473
        %v3207 = vmul.f32 %v3143, %v474
        %v3208 = vmul.f32 %v3144, %v475
        %v3209 = vmul.f32 %v3145, %v476
        %v3210 = vmul.f32 %v3146, %v477
        %v3211 = vmul.f32 %v3147, %v478
        %v3212 = vmul.f32 %v3148, %v479
        %v3213 = vmul.f32 %v3149, %v480
        %v3214 = vmul.f32 %v3150, %v481
        %v3215 = vmul.f32 %v3151, %v482
        %v3216 = vmul.f32 %v3152, %v483
        %v3217 = vmul.f32 %v3153, %v484
        %v3218 = vmul.f32 %v3154, %v485
        %v3219 = vmul.f32 %v3139, %v486
        %v3220 = vmul.f32 %v3140, %v487
        %v3221 = vmul.f32 %v3141, %v488
        %v3222 = vmul.f32 %v3142, %v489
        %v3223 = vmul.f32 %v3143, %v490
        %v3224 = vmul.f32 %v3144, %v491
        %v3225 = vmul.f32 %v3145, %v492
        %v3226 = vmul.f32 %v3146, %v493
        %v3227 = vmul.f32 %v3147, %v494
        %v3228 = vmul.f32 %v3148, %v495
        %v3229 = vmul.f32 %v3149, %v496
        %v3230 = vmul.f32 %v3150, %v497
        %v3231 = vmul.f32 %v3151, %v498
        %v3232 = vmul.f32 %v3152, %v499
        %v3233 = vmul.f32 %v3153, %v500
        %v3234 = vmul.f32 %v3154, %v501
        %v3235 = vmul.f32 %v3139, %v502
        %v3236 = vmul.f32 %v3140, %v503
        %v3237 = vmul.f32 %v3141, %v504
        %v3238 = vmul.f32 %v3142, %v505
        %v3239 = vmul.f32 %v3143, %v506
        %v3240 = vmul.f32 %v3144, %v507
        %v3241 = vmul.f32 %v3145, %v508
        %v3242 = vmul.f32 %v3146, %v509
        %v3243 = vmul.f32 %v3147, %v510
        %v3244 = vmul.f32 %v3148, %v511
        %v3245 = vmul.f32 %v3149, %v512
        %v3246 = vmul.f32 %v3150, %v513
        %v3247 = vmul.f32 %v3151, %v514
        %v3248 = vmul.f32 %v3152, %v515
        %v3249 = vmul.f32 %v3153, %v516
        %v3250 = vmul.f32 %v3154, %v517
        %v3251 = vmul.f32 %v3139, %v518
        %v3252 = vmul.f32 %v3140, %v519
        %v3253 = vmul.f32 %v3141, %v520
        %v3254 = vmul.f32 %v3142, %v521
        %v3255 = vmul.f32 %v3143, %v522
        %v3256 = vmul.f32 %v3144, %v523
        %v3257 = vmul.f32 %v3145, %v524
        %v3258 = vmul.f32 %v3146, %v525
        %v3259 = vmul.f32 %v3147, %v526
        %v3260 = vmul.f32 %v3148, %v527
        %v3261 = vmul.f32 %v3149, %v528
        %v3262 = vmul.f32 %v3150, %v529
        %v3263 = vmul.f32 %v3151, %v530
        %v3264 = vmul.f32 %v3152, %v531
        %v3265 = vmul.f32 %v3153, %v532
        %v3266 = vmul.f32 %v3154, %v533
        %v3267 = vmul.f32 %v3139, %v534
        %v3268 = vmul.f32 %v3140, %v535
        %v3269 = vmul.f32 %v3141, %v536
        %v3270 = vmul.f32 %v3142, %v537
        %v3271 = vmul.f32 %v3143, %v538
        %v3272 = vmul.f32 %v3144, %v539
        %v3273 = vmul.f32 %v3145, %v540
        %v3274 = vmul.f32 %v3146, %v541
        %v3275 = vmul.f32 %v3147, %v542
        %v3276 = vmul.f32 %v3148, %v543
        %v3277 = vmul.f32 %v3149, %v544
        %v3278 = vmul.f32 %v3150, %v545
        %v3279 = vmul.f32 %v3151, %v546
        %v3280 = vmul.f32 %v3152, %v547
        %v3281 = vmul.f32 %v3153, %v548
        %v3282 = vmul.f32 %v3154, %v549
        %v3283 = vmul.f32 %v3139, %v550
        %v3284 = vmul.f32 %v3140, %v551
        %v3285 = vmul.f32 %v3141, %v552
        %v3286 = vmul.f32 %v3142, %v553
        %v3287 = vmul.f32 %v3143, %v554
        %v3288 = vmul.f32 %v3144, %v555
        %v3289 = vmul.f32 %v3145, %v556
        %v3290 = vmul.f32 %v3146, %v557
        %v3291 = vmul.f32 %v3147, %v558
        %v3292 = vmul.f32 %v3148, %v559
        %v3293 = vmul.f32 %v3149, %v560
        %v3294 = vmul.f32 %v3150, %v561
        %v3295 = vmul.f32 %v3151, %v562
        %v3296 = vmul.f32 %v3152, %v563
        %v3297 = vmul.f32 %v3153, %v564
        %v3298 = vmul.f32 %v3154, %v565
        %v3299 = vadd.f32 %v3122, %v3171
        %v3300 = vadd.f32 %v3122, %v3172
        %v3301 = vadd.f32 %v3122, %v3173
        %v3302 = vadd.f32 %v3122, %v3174
        %v3303 = vadd.f32 %v3122, %v3175
        %v3304 = vadd.f32 %v3122, %v3176
        %v3305 = vadd.f32 %v3122, %v3177
        %v3306 = vadd.f32 %v3122, %v3178
        %v3307 = vadd.f32 %v3122, %v3179
        %v3308 = vadd.f32 %v3122, %v3180
        %v3309 = vadd.f32 %v3122, %v3181
        %v3310 = vadd.f32 %v3122, %v3182
        %v3311 = vadd.f32 %v3122, %v3183
        %v3312 = vadd.f32 %v3122, %v3184
        %v3313 = vadd.f32 %v3122, %v3185
        %v3314 = vadd.f32 %v3122, %v3186
        %v3315 = vadd.f32 %v3122, %v3187
        %v3316 = vadd.f32 %v3122, %v3188
        %v3317 = vadd.f32 %v3122, %v3189
        %v3318 = vadd.f32 %v3122, %v3190
        %v3319 = vadd.f32 %v3122, %v3191
        %v3320 = vadd.f32 %v3122, %v3192
        %v3321 = vadd.f32 %v3122, %v3193
        %v3322 = vadd.f32 %v3122, %v3194
        %v3323 = vadd.f32 %v3122, %v3195
        %v3324 = vadd.f32 %v3122, %v3196
        %v3325 = vadd.f32 %v3122, %v3197
        %v3326 = vadd.f32 %v3122, %v3198
        %v3327 = vadd.f32 %v3122, %v3199
        %v3328 = vadd.f32 %v3122, %v3200
        %v3329 = vadd.f32 %v3122, %v3201
        %v3330 = vadd.f32 %v3122, %v3202
        %v3331 = vadd.f32 %v3122, %v3203
        %v3332 = vadd.f32 %v3122, %v3204
        %v3333 = vadd.f32 %v3122, %v3205
        %v3334 = vadd.f32 %v3122, %v3206
        %v3335 = vadd.f32 %v3122, %v3207
        %v3336 = vadd.f32 %v3122, %v3208
        %v3337 = vadd.f32 %v3122, %v3209
        %v3338 = vadd.f32 %v3122, %v3210
        %v3339 = vadd.f32 %v3122, %v3211
        %v3340 = vadd.f32 %v3122, %v3212
        %v3341 = vadd.f32 %v3122, %v3213
        %v3342 = vadd.f32 %v3122, %v3214
        %v3343 = vadd.f32 %v3122, %v3215
        %v3344 = vadd.f32 %v3122, %v3216
        %v3345 = vadd.f32 %v3122, %v3217
        %v3346 = vadd.f32 %v3122, %v3218
        %v3347 = vadd.f32 %v3122, %v3219
        %v3348 = vadd.f32 %v3122, %v3220
        %v3349 = vadd.f32 %v3122, %v3221
        %v3350 = vadd.f32 %v3122, %v3222
        %v3351 = vadd.f32 %v3122, %v3223
        %v3352 = vadd.f32 %v3122, %v3224
        %v3353 = vadd.f32 %v3122, %v3225
        %v3354 = vadd.f32 %v3122, %v3226
        %v3355 = vadd.f32 %v3122, %v3227
        %v3356 = vadd.f32 %v3122, %v3228
        %v3357 = vadd.f32 %v3122, %v3229
        %v3358 = vadd.f32 %v3122, %v3230
        %v3359 = vadd.f32 %v3122, %v3231
        %v3360 = vadd.f32 %v3122, %v3232
        %v3361 = vadd.f32 %v3122, %v3233
        %v3362 = vadd.f32 %v3122, %v3234
        %v3363 = vadd.f32 %v3122, %v3235
        %v3364 = vadd.f32 %v3122, %v3236
        %v3365 = vadd.f32 %v3122, %v3237
        %v3366 = vadd.f32 %v3122, %v3238
        %v3367 = vadd.f32 %v3122, %v3239
        %v3368 = vadd.f32 %v3122, %v3240
        %v3369 = vadd.f32 %v3122, %v3241
        %v3370 = vadd.f32 %v3122, %v3242
        %v3371 = vadd.f32 %v3122, %v3243
        %v3372 = vadd.f32 %v3122, %v3244
        %v3373 = vadd.f32 %v3122, %v3245
        %v3374 = vadd.f32 %v3122, %v3246
        %v3375 = vadd.f32 %v3122, %v3247
        %v3376 = vadd.f32 %v3122, %v3248
        %v3377 = vadd.f32 %v3122, %v3249
        %v3378 = vadd.f32 %v3122, %v3250
        %v3379 = vadd.f32 %v3122, %v3251
        %v3380 = vadd.f32 %v3122, %v3252
        %v3381 = vadd.f32 %v3122, %v3253
        %v3382 = vadd.f32 %v3122, %v3254
        %v3383 = vadd.f32 %v3122, %v3255
        %v3384 = vadd.f32 %v3122, %v3256
        %v3385 = vadd.f32 %v3122, %v3257
        %v3386 = vadd.f32 %v3122, %v3258
        %v3387 = vadd.f32 %v3122, %v3259
        %v3388 = vadd.f32 %v3122, %v3260
        %v3389 = vadd.f32 %v3122, %v3261
        %v3390 = vadd.f32 %v3122, %v3262
        %v3391 = vadd.f32 %v3122, %v3263
        %v3392 = vadd.f32 %v3122, %v3264
        %v3393 = vadd.f32 %v3122, %v3265
        %v3394 = vadd.f32 %v3122, %v3266
        %v3395 = vadd.f32 %v3122, %v3267
        %v3396 = vadd.f32 %v3122, %v3268
        %v3397 = vadd.f32 %v3122, %v3269
        %v3398 = vadd.f32 %v3122, %v3270
        %v3399 = vadd.f32 %v3122, %v3271
        %v3400 = vadd.f32 %v3122, %v3272
        %v3401 = vadd.f32 %v3122, %v3273
        %v3402 = vadd.f32 %v3122, %v3274
        %v3403 = vadd.f32 %v3122, %v3275
        %v3404 = vadd.f32 %v3122, %v3276
        %v3405 = vadd.f32 %v3122, %v3277
        %v3406 = vadd.f32 %v3122, %v3278
        %v3407 = vadd.f32 %v3122, %v3279
        %v3408 = vadd.f32 %v3122, %v3280
        %v3409 = vadd.f32 %v3122, %v3281
        %v3410 = vadd.f32 %v3122, %v3282
        %v3411 = vadd.f32 %v3122, %v3283
        %v3412 = vadd.f32 %v3122, %v3284
        %v3413 = vadd.f32 %v3122, %v3285
        %v3414 = vadd.f32 %v3122, %v3286
        %v3415 = vadd.f32 %v3122, %v3287
        %v3416 = vadd.f32 %v3122, %v3288
        %v3417 = vadd.f32 %v3122, %v3289
        %v3418 = vadd.f32 %v3122, %v3290
        %v3419 = vadd.f32 %v3122, %v3291
        %v3420 = vadd.f32 %v3122, %v3292
        %v3421 = vadd.f32 %v3122, %v3293
        %v3422 = vadd.f32 %v3122, %v3294
        %v3423 = vadd.f32 %v3122, %v3295
        %v3424 = vadd.f32 %v3122, %v3296
        %v3425 = vadd.f32 %v3122, %v3297
        %v3426 = vadd.f32 %v3122, %v3298
        %v3427 = vtanh.pop %v3299
        %v3428 = vtanh.pop %v3300
        %v3429 = vtanh.pop %v3301
        %v3430 = vtanh.pop %v3302
        %v3431 = vtanh.pop %v3303
        %v3432 = vtanh.pop %v3304
        %v3433 = vtanh.pop %v3305
        %v3434 = vtanh.pop %v3306
        %v3435 = vtanh.pop %v3307
        %v3436 = vtanh.pop %v3308
        %v3437 = vtanh.pop %v3309
        %v3438 = vtanh.pop %v3310
        %v3439 = vtanh.pop %v3311
        %v3440 = vtanh.pop %v3312
        %v3441 = vtanh.pop %v3313
        %v3442 = vtanh.pop %v3314
        %v3443 = vtanh.pop %v3315
        %v3444 = vtanh.pop %v3316
        %v3445 = vtanh.pop %v3317
        %v3446 = vtanh.pop %v3318
        %v3447 = vtanh.pop %v3319
        %v3448 = vtanh.pop %v3320
        %v3449 = vtanh.pop %v3321
        %v3450 = vtanh.pop %v3322
        %v3451 = vtanh.pop %v3323
        %v3452 = vtanh.pop %v3324
        %v3453 = vtanh.pop %v3325
        %v3454 = vtanh.pop %v3326
        %v3455 = vtanh.pop %v3327
        %v3456 = vtanh.pop %v3328
        %v3457 = vtanh.pop %v3329
        %v3458 = vtanh.pop %v3330
        %v3459 = vtanh.pop %v3331
        %v3460 = vtanh.pop %v3332
        %v3461 = vtanh.pop %v3333
        %v3462 = vtanh.pop %v3334
        %v3463 = vtanh.pop %v3335
        %v3464 = vtanh.pop %v3336
        %v3465 = vtanh.pop %v3337
        %v3466 = vtanh.pop %v3338
        %v3467 = vtanh.pop %v3339
        %v3468 = vtanh.pop %v3340
        %v3469 = vtanh.pop %v3341
        %v3470 = vtanh.pop %v3342
        %v3471 = vtanh.pop %v3343
        %v3472 = vtanh.pop %v3344
        %v3473 = vtanh.pop %v3345
        %v3474 = vtanh.pop %v3346
        %v3475 = vtanh.pop %v3347
        %v3476 = vtanh.pop %v3348
        %v3477 = vtanh.pop %v3349
        %v3478 = vtanh.pop %v3350
        %v3479 = vtanh.pop %v3351
        %v3480 = vtanh.pop %v3352
        %v3481 = vtanh.pop %v3353
        %v3482 = vtanh.pop %v3354
        %v3483 = vtanh.pop %v3355
        %v3484 = vtanh.pop %v3356
        %v3485 = vtanh.pop %v3357
        %v3486 = vtanh.pop %v3358
        %v3487 = vtanh.pop %v3359
        %v3488 = vtanh.pop %v3360
        %v3489 = vtanh.pop %v3361
        %v3490 = vtanh.pop %v3362
        %v3491 = vtanh.pop %v3363
        %v3492 = vtanh.pop %v3364
        %v3493 = vtanh.pop %v3365
        %v3494 = vtanh.pop %v3366
        %v3495 = vtanh.pop %v3367
        %v3496 = vtanh.pop %v3368
        %v3497 = vtanh.pop %v3369
        %v3498 = vtanh.pop %v3370
        %v3499 = vtanh.pop %v3371
        %v3500 = vtanh.pop %v3372
        %v3501 = vtanh.pop %v3373
        %v3502 = vtanh.pop %v3374
        %v3503 = vtanh.pop %v3375
        %v3504 = vtanh.pop %v3376
        %v3505 = vtanh.pop %v3377
        %v3506 = vtanh.pop %v3378
        %v3507 = vtanh.pop %v3379
        %v3508 = vtanh.pop %v3380
        %v3509 = vtanh.pop %v3381
        %v3510 = vtanh.pop %v3382
        %v3511 = vtanh.pop %v3383
        %v3512 = vtanh.pop %v3384
        %v3513 = vtanh.pop %v3385
        %v3514 = vtanh.pop %v3386
        %v3515 = vtanh.pop %v3387
        %v3516 = vtanh.pop %v3388
        %v3517 = vtanh.pop %v3389
        %v3518 = vtanh.pop %v3390
        %v3519 = vtanh.pop %v3391
        %v3520 = vtanh.pop %v3392
        %v3521 = vtanh.pop %v3393
        %v3522 = vtanh.pop %v3394
        %v3523 = vtanh.pop %v3395
        %v3524 = vtanh.pop %v3396
        %v3525 = vtanh.pop %v3397
        %v3526 = vtanh.pop %v3398
        %v3527 = vtanh.pop %v3399
        %v3528 = vtanh.pop %v3400
        %v3529 = vtanh.pop %v3401
        %v3530 = vtanh.pop %v3402
        %v3531 = vtanh.pop %v3403
        %v3532 = vtanh.pop %v3404
        %v3533 = vtanh.pop %v3405
        %v3534 = vtanh.pop %v3406
        %v3535 = vtanh.pop %v3407
        %v3536 = vtanh.pop %v3408
        %v3537 = vtanh.pop %v3409
        %v3538 = vtanh.pop %v3410
        %v3539 = vtanh.pop %v3411
        %v3540 = vtanh.pop %v3412
        %v3541 = vtanh.pop %v3413
        %v3542 = vtanh.pop %v3414
        %v3543 = vtanh.pop %v3415
        %v3544 = vtanh.pop %v3416
        %v3545 = vtanh.pop %v3417
        %v3546 = vtanh.pop %v3418
        %v3547 = vtanh.pop %v3419
        %v3548 = vtanh.pop %v3420
        %v3549 = vtanh.pop %v3421
        %v3550 = vtanh.pop %v3422
        %v3551 = vtanh.pop %v3423
        %v3552 = vtanh.pop %v3424
        %v3553 = vtanh.pop %v3425
        %v3554 = vtanh.pop %v3426
        %v3557 = vrot.slane %v3042, 1
        %v3558 = vrot.slane %v3042, 2
        %v3559 = vrot.slane %v3042, 3
        %v3560 = vrot.slane %v3042, 4
        %v3561 = vrot.slane %v3042, 5
        %v3562 = vrot.slane %v3042, 6
        %v3563 = vrot.slane %v3042, 7
        %v3564 = vrot.slane %v3043, 1
        %v3565 = vrot.slane %v3043, 2
        %v3566 = vrot.slane %v3043, 3
        %v3567 = vrot.slane %v3043, 4
        %v3568 = vrot.slane %v3043, 5
        %v3569 = vrot.slane %v3043, 6
        %v3570 = vrot.slane %v3043, 7
        %v3571 = vperm.slane %v3042, 0
        %v3572 = vperm.slane %v3557, 0
        %v3573 = vperm.slane %v3558, 0
        %v3574 = vperm.slane %v3559, 0
        %v3575 = vperm.slane %v3560, 0
        %v3576 = vperm.slane %v3561, 0
        %v3577 = vperm.slane %v3562, 0
        %v3578 = vperm.slane %v3563, 0
        %v3579 = vperm.slane %v3043, 0
        %v3580 = vperm.slane %v3564, 0
        %v3581 = vperm.slane %v3565, 0
        %v3582 = vperm.slane %v3566, 0
        %v3583 = vperm.slane %v3567, 0
        %v3584 = vperm.slane %v3568, 0
        %v3585 = vperm.slane %v3569, 0
        %v3586 = vperm.slane %v3570, 0
        %v3603 = vmul.f32 %v3571, %v3427
        %v3604 = vmul.f32 %v3572, %v3428
        %v3605 = vmul.f32 %v3573, %v3429
        %v3606 = vmul.f32 %v3574, %v3430
        %v3607 = vmul.f32 %v3575, %v3431
        %v3608 = vmul.f32 %v3576, %v3432
        %v3609 = vmul.f32 %v3577, %v3433
        %v3610 = vmul.f32 %v3578, %v3434
        %v3611 = vmul.f32 %v3579, %v3435
        %v3612 = vmul.f32 %v3580, %v3436
        %v3613 = vmul.f32 %v3581, %v3437
        %v3614 = vmul.f32 %v3582, %v3438
        %v3615 = vmul.f32 %v3583, %v3439
        %v3616 = vmul.f32 %v3584, %v3440
        %v3617 = vmul.f32 %v3585, %v3441
        %v3618 = vmul.f32 %v3586, %v3442
        %v3619 = vmul.f32 %v3571, %v3443
        %v3620 = vmul.f32 %v3572, %v3444
        %v3621 = vmul.f32 %v3573, %v3445
        %v3622 = vmul.f32 %v3574, %v3446
        %v3623 = vmul.f32 %v3575, %v3447
        %v3624 = vmul.f32 %v3576, %v3448
        %v3625 = vmul.f32 %v3577, %v3449
        %v3626 = vmul.f32 %v3578, %v3450
        %v3627 = vmul.f32 %v3579, %v3451
        %v3628 = vmul.f32 %v3580, %v3452
        %v3629 = vmul.f32 %v3581, %v3453
        %v3630 = vmul.f32 %v3582, %v3454
        %v3631 = vmul.f32 %v3583, %v3455
        %v3632 = vmul.f32 %v3584, %v3456
        %v3633 = vmul.f32 %v3585, %v3457
        %v3634 = vmul.f32 %v3586, %v3458
        %v3635 = vmul.f32 %v3571, %v3459
        %v3636 = vmul.f32 %v3572, %v3460
        %v3637 = vmul.f32 %v3573, %v3461
        %v3638 = vmul.f32 %v3574, %v3462
        %v3639 = vmul.f32 %v3575, %v3463
        %v3640 = vmul.f32 %v3576, %v3464
        %v3641 = vmul.f32 %v3577, %v3465
        %v3642 = vmul.f32 %v3578, %v3466
        %v3643 = vmul.f32 %v3579, %v3467
        %v3644 = vmul.f32 %v3580, %v3468
        %v3645 = vmul.f32 %v3581, %v3469
        %v3646 = vmul.f32 %v3582, %v3470
        %v3647 = vmul.f32 %v3583, %v3471
        %v3648 = vmul.f32 %v3584, %v3472
        %v3649 = vmul.f32 %v3585, %v3473
        %v3650 = vmul.f32 %v3586, %v3474
        %v3651 = vmul.f32 %v3571, %v3475
        %v3652 = vmul.f32 %v3572, %v3476
        %v3653 = vmul.f32 %v3573, %v3477
        %v3654 = vmul.f32 %v3574, %v3478
        %v3655 = vmul.f32 %v3575, %v3479
        %v3656 = vmul.f32 %v3576, %v3480
        %v3657 = vmul.f32 %v3577, %v3481
        %v3658 = vmul.f32 %v3578, %v3482
        %v3659 = vmul.f32 %v3579, %v3483
        %v3660 = vmul.f32 %v3580, %v3484
        %v3661 = vmul.f32 %v3581, %v3485
        %v3662 = vmul.f32 %v3582, %v3486
        %v3663 = vmul.f32 %v3583, %v3487
        %v3664 = vmul.f32 %v3584, %v3488
        %v3665 = vmul.f32 %v3585, %v3489
        %v3666 = vmul.f32 %v3586, %v3490
        %v3667 = vmul.f32 %v3571, %v3491
        %v3668 = vmul.f32 %v3572, %v3492
        %v3669 = vmul.f32 %v3573, %v3493
        %v3670 = vmul.f32 %v3574, %v3494
        %v3671 = vmul.f32 %v3575, %v3495
        %v3672 = vmul.f32 %v3576, %v3496
        %v3673 = vmul.f32 %v3577, %v3497
        %v3674 = vmul.f32 %v3578, %v3498
        %v3675 = vmul.f32 %v3579, %v3499
        %v3676 = vmul.f32 %v3580, %v3500
        %v3677 = vmul.f32 %v3581, %v3501
        %v3678 = vmul.f32 %v3582, %v3502
        %v3679 = vmul.f32 %v3583, %v3503
        %v3680 = vmul.f32 %v3584, %v3504
        %v3681 = vmul.f32 %v3585, %v3505
        %v3682 = vmul.f32 %v3586, %v3506
        %v3683 = vmul.f32 %v3571, %v3507
        %v3684 = vmul.f32 %v3572, %v3508
        %v3685 = vmul.f32 %v3573, %v3509
        %v3686 = vmul.f32 %v3574, %v3510
        %v3687 = vmul.f32 %v3575, %v3511
        %v3688 = vmul.f32 %v3576, %v3512
        %v3689 = vmul.f32 %v3577, %v3513
        %v3690 = vmul.f32 %v3578, %v3514
        %v3691 = vmul.f32 %v3579, %v3515
        %v3692 = vmul.f32 %v3580, %v3516
        %v3693 = vmul.f32 %v3581, %v3517
        %v3694 = vmul.f32 %v3582, %v3518
        %v3695 = vmul.f32 %v3583, %v3519
        %v3696 = vmul.f32 %v3584, %v3520
        %v3697 = vmul.f32 %v3585, %v3521
        %v3698 = vmul.f32 %v3586, %v3522
        %v3699 = vmul.f32 %v3571, %v3523
        %v3700 = vmul.f32 %v3572, %v3524
        %v3701 = vmul.f32 %v3573, %v3525
        %v3702 = vmul.f32 %v3574, %v3526
        %v3703 = vmul.f32 %v3575, %v3527
        %v3704 = vmul.f32 %v3576, %v3528
        %v3705 = vmul.f32 %v3577, %v3529
        %v3706 = vmul.f32 %v3578, %v3530
        %v3707 = vmul.f32 %v3579, %v3531
        %v3708 = vmul.f32 %v3580, %v3532
        %v3709 = vmul.f32 %v3581, %v3533
        %v3710 = vmul.f32 %v3582, %v3534
        %v3711 = vmul.f32 %v3583, %v3535
        %v3712 = vmul.f32 %v3584, %v3536
        %v3713 = vmul.f32 %v3585, %v3537
        %v3714 = vmul.f32 %v3586, %v3538
        %v3715 = vmul.f32 %v3571, %v3539
        %v3716 = vmul.f32 %v3572, %v3540
        %v3717 = vmul.f32 %v3573, %v3541
        %v3718 = vmul.f32 %v3574, %v3542
        %v3719 = vmul.f32 %v3575, %v3543
        %v3720 = vmul.f32 %v3576, %v3544
        %v3721 = vmul.f32 %v3577, %v3545
        %v3722 = vmul.f32 %v3578, %v3546
        %v3723 = vmul.f32 %v3579, %v3547
        %v3724 = vmul.f32 %v3580, %v3548
        %v3725 = vmul.f32 %v3581, %v3549
        %v3726 = vmul.f32 %v3582, %v3550
        %v3727 = vmul.f32 %v3583, %v3551
        %v3728 = vmul.f32 %v3584, %v3552
        %v3729 = vmul.f32 %v3585, %v3553
        %v3730 = vmul.f32 %v3586, %v3554
        %v3731 = vadd.f32 %v2907, %v3603
        %v3732 = vadd.f32 %v2908, %v3604
        %v3733 = vadd.f32 %v2909, %v3605
        %v3734 = vadd.f32 %v2910, %v3606
        %v3735 = vadd.f32 %v2911, %v3607
        %v3736 = vadd.f32 %v2912, %v3608
        %v3737 = vadd.f32 %v2913, %v3609
        %v3738 = vadd.f32 %v2914, %v3610
        %v3739 = vadd.f32 %v2915, %v3611
        %v3740 = vadd.f32 %v2916, %v3612
        %v3741 = vadd.f32 %v2917, %v3613
        %v3742 = vadd.f32 %v2918, %v3614
        %v3743 = vadd.f32 %v2919, %v3615
        %v3744 = vadd.f32 %v2920, %v3616
        %v3745 = vadd.f32 %v2921, %v3617
        %v3746 = vadd.f32 %v2922, %v3618
        %v3747 = vadd.f32 %v2923, %v3619
        %v3748 = vadd.f32 %v2924, %v3620
        %v3749 = vadd.f32 %v2925, %v3621
        %v3750 = vadd.f32 %v2926, %v3622
        %v3751 = vadd.f32 %v2927, %v3623
        %v3752 = vadd.f32 %v2928, %v3624
        %v3753 = vadd.f32 %v2929, %v3625
        %v3754 = vadd.f32 %v2930, %v3626
        %v3755 = vadd.f32 %v2931, %v3627
        %v3756 = vadd.f32 %v2932, %v3628
        %v3757 = vadd.f32 %v2933, %v3629
        %v3758 = vadd.f32 %v2934, %v3630
        %v3759 = vadd.f32 %v2935, %v3631
        %v3760 = vadd.f32 %v2936, %v3632
        %v3761 = vadd.f32 %v2937, %v3633
        %v3762 = vadd.f32 %v2938, %v3634
        %v3763 = vadd.f32 %v2939, %v3635
        %v3764 = vadd.f32 %v2940, %v3636
        %v3765 = vadd.f32 %v2941, %v3637
        %v3766 = vadd.f32 %v2942, %v3638
        %v3767 = vadd.f32 %v2943, %v3639
        %v3768 = vadd.f32 %v2944, %v3640
        %v3769 = vadd.f32 %v2945, %v3641
        %v3770 = vadd.f32 %v2946, %v3642
        %v3771 = vadd.f32 %v2947, %v3643
        %v3772 = vadd.f32 %v2948, %v3644
        %v3773 = vadd.f32 %v2949, %v3645
        %v3774 = vadd.f32 %v2950, %v3646
        %v3775 = vadd.f32 %v2951, %v3647
        %v3776 = vadd.f32 %v2952, %v3648
        %v3777 = vadd.f32 %v2953, %v3649
        %v3778 = vadd.f32 %v2954, %v3650
        %v3779 = vadd.f32 %v2955, %v3651
        %v3780 = vadd.f32 %v2956, %v3652
        %v3781 = vadd.f32 %v2957, %v3653
        %v3782 = vadd.f32 %v2958, %v3654
        %v3783 = vadd.f32 %v2959, %v3655
        %v3784 = vadd.f32 %v2960, %v3656
        %v3785 = vadd.f32 %v2961, %v3657
        %v3786 = vadd.f32 %v2962, %v3658
        %v3787 = vadd.f32 %v2963, %v3659
        %v3788 = vadd.f32 %v2964, %v3660
        %v3789 = vadd.f32 %v2965, %v3661
        %v3790 = vadd.f32 %v2966, %v3662
        %v3791 = vadd.f32 %v2967, %v3663
        %v3792 = vadd.f32 %v2968, %v3664
        %v3793 = vadd.f32 %v2969, %v3665
        %v3794 = vadd.f32 %v2970, %v3666
        %v3795 = vadd.f32 %v2971, %v3667
        %v3796 = vadd.f32 %v2972, %v3668
        %v3797 = vadd.f32 %v2973, %v3669
        %v3798 = vadd.f32 %v2974, %v3670
        %v3799 = vadd.f32 %v2975, %v3671
        %v3800 = vadd.f32 %v2976, %v3672
        %v3801 = vadd.f32 %v2977, %v3673
        %v3802 = vadd.f32 %v2978, %v3674
        %v3803 = vadd.f32 %v2979, %v3675
        %v3804 = vadd.f32 %v2980, %v3676
        %v3805 = vadd.f32 %v2981, %v3677
        %v3806 = vadd.f32 %v2982, %v3678
        %v3807 = vadd.f32 %v2983, %v3679
        %v3808 = vadd.f32 %v2984, %v3680
        %v3809 = vadd.f32 %v2985, %v3681
        %v3810 = vadd.f32 %v2986, %v3682
        %v3811 = vadd.f32 %v2987, %v3683
        %v3812 = vadd.f32 %v2988, %v3684
        %v3813 = vadd.f32 %v2989, %v3685
        %v3814 = vadd.f32 %v2990, %v3686
        %v3815 = vadd.f32 %v2991, %v3687
        %v3816 = vadd.f32 %v2992, %v3688
        %v3817 = vadd.f32 %v2993, %v3689
        %v3818 = vadd.f32 %v2994, %v3690
        %v3819 = vadd.f32 %v2995, %v3691
        %v3820 = vadd.f32 %v2996, %v3692
        %v3821 = vadd.f32 %v2997, %v3693
        %v3822 = vadd.f32 %v2998, %v3694
        %v3823 = vadd.f32 %v2999, %v3695
        %v3824 = vadd.f32 %v3000, %v3696
        %v3825 = vadd.f32 %v3001, %v3697
        %v3826 = vadd.f32 %v3002, %v3698
        %v3827 = vadd.f32 %v3003, %v3699
        %v3828 = vadd.f32 %v3004, %v3700
        %v3829 = vadd.f32 %v3005, %v3701
        %v3830 = vadd.f32 %v3006, %v3702
        %v3831 = vadd.f32 %v3007, %v3703
        %v3832 = vadd.f32 %v3008, %v3704
        %v3833 = vadd.f32 %v3009, %v3705
        %v3834 = vadd.f32 %v3010, %v3706
        %v3835 = vadd.f32 %v3011, %v3707
        %v3836 = vadd.f32 %v3012, %v3708
        %v3837 = vadd.f32 %v3013, %v3709
        %v3838 = vadd.f32 %v3014, %v3710
        %v3839 = vadd.f32 %v3015, %v3711
        %v3840 = vadd.f32 %v3016, %v3712
        %v3841 = vadd.f32 %v3017, %v3713
        %v3842 = vadd.f32 %v3018, %v3714
        %v3843 = vadd.f32 %v3019, %v3715
        %v3844 = vadd.f32 %v3020, %v3716
        %v3845 = vadd.f32 %v3021, %v3717
        %v3846 = vadd.f32 %v3022, %v3718
        %v3847 = vadd.f32 %v3023, %v3719
        %v3848 = vadd.f32 %v3024, %v3720
        %v3849 = vadd.f32 %v3025, %v3721
        %v3850 = vadd.f32 %v3026, %v3722
        %v3851 = vadd.f32 %v3027, %v3723
        %v3852 = vadd.f32 %v3028, %v3724
        %v3853 = vadd.f32 %v3029, %v3725
        %v3854 = vadd.f32 %v3030, %v3726
        %v3855 = vadd.f32 %v3031, %v3727
        %v3856 = vadd.f32 %v3032, %v3728
        %v3857 = vadd.f32 %v3033, %v3729
        %v3858 = vadd.f32 %v3034, %v3730
        %s3859 = scalar_lea.vmem [#allocation7], 64
        %v3860 = vld [vmem:[%s3859] sm:$0xff]
        %v3861 = vld [vmem:[%s3859 + $0x8] sm:$0xff]
        %s3862 = scalar_lea.vmem [#allocation8], 64
        %v3863 = vld [vmem:[%s3862] sm:$0xff]
        %v3864 = vld [vmem:[%s3862 + $0x8] sm:$0xff]
        %s3865 = scalar_lea.vmem [#allocation10], 64
        %v3866 = vld [vmem:[%s3865] sm:$0xff]
        %v3867 = vld [vmem:[%s3865 + $0x8] sm:$0xff]
        %v3870 = vrot.slane %v3860, 1
        %v3871 = vrot.slane %v3860, 2
        %v3872 = vrot.slane %v3860, 3
        %v3873 = vrot.slane %v3860, 4
        %v3874 = vrot.slane %v3860, 5
        %v3875 = vrot.slane %v3860, 6
        %v3876 = vrot.slane %v3860, 7
        %v3877 = vrot.slane %v3861, 1
        %v3878 = vrot.slane %v3861, 2
        %v3879 = vrot.slane %v3861, 3
        %v3880 = vrot.slane %v3861, 4
        %v3881 = vrot.slane %v3861, 5
        %v3882 = vrot.slane %v3861, 6
        %v3883 = vrot.slane %v3861, 7
        %v3884 = vperm.slane %v3860, 0
        %v3885 = vperm.slane %v3870, 0
        %v3886 = vperm.slane %v3871, 0
        %v3887 = vperm.slane %v3872, 0
        %v3888 = vperm.slane %v3873, 0
        %v3889 = vperm.slane %v3874, 0
        %v3890 = vperm.slane %v3875, 0
        %v3891 = vperm.slane %v3876, 0
        %v3892 = vperm.slane %v3861, 0
        %v3893 = vperm.slane %v3877, 0
        %v3894 = vperm.slane %v3878, 0
        %v3895 = vperm.slane %v3879, 0
        %v3896 = vperm.slane %v3880, 0
        %v3897 = vperm.slane %v3881, 0
        %v3898 = vperm.slane %v3882, 0
        %v3899 = vperm.slane %v3883, 0
        %v3916 = vmul.f32 %v3884, %v422
        %v3917 = vmul.f32 %v3885, %v423
        %v3918 = vmul.f32 %v3886, %v424
        %v3919 = vmul.f32 %v3887, %v425
        %v3920 = vmul.f32 %v3888, %v426
        %v3921 = vmul.f32 %v3889, %v427
        %v3922 = vmul.f32 %v3890, %v428
        %v3923 = vmul.f32 %v3891, %v429
        %v3924 = vmul.f32 %v3892, %v430
        %v3925 = vmul.f32 %v3893, %v431
        %v3926 = vmul.f32 %v3894, %v432
        %v3927 = vmul.f32 %v3895, %v433
        %v3928 = vmul.f32 %v3896, %v434
        %v3929 = vmul.f32 %v3897, %v435
        %v3930 = vmul.f32 %v3898, %v436
        %v3931 = vmul.f32 %v3899, %v437
        %v3932 = vadd.f32 %v3916, %v3917
        %v3933 = vadd.f32 %v3932, %v3918
        %v3934 = vadd.f32 %v3933, %v3919
        %v3935 = vadd.f32 %v3934, %v3920
        %v3936 = vadd.f32 %v3935, %v3921
        %v3937 = vadd.f32 %v3936, %v3922
        %v3938 = vadd.f32 %v3937, %v3923
        %v3939 = vadd.f32 %v3938, %v3924
        %v3940 = vadd.f32 %v3939, %v3925
        %v3941 = vadd.f32 %v3940, %v3926
        %v3942 = vadd.f32 %v3941, %v3927
        %v3943 = vadd.f32 %v3942, %v3928
        %v3944 = vadd.f32 %v3943, %v3929
        %v3945 = vadd.f32 %v3944, %v3930
        %v3946 = vadd.f32 %v3945, %v3931
        %v3949 = vrot.slane %v3863, 1
        %v3950 = vrot.slane %v3863, 2
        %v3951 = vrot.slane %v3863, 3
        %v3952 = vrot.slane %v3863, 4
        %v3953 = vrot.slane %v3863, 5
        %v3954 = vrot.slane %v3863, 6
        %v3955 = vrot.slane %v3863, 7
        %v3956 = vrot.slane %v3864, 1
        %v3957 = vrot.slane %v3864, 2
        %v3958 = vrot.slane %v3864, 3
        %v3959 = vrot.slane %v3864, 4
        %v3960 = vrot.slane %v3864, 5
        %v3961 = vrot.slane %v3864, 6
        %v3962 = vrot.slane %v3864, 7
        %v3963 = vperm.slane %v3863, 0
        %v3964 = vperm.slane %v3949, 0
        %v3965 = vperm.slane %v3950, 0
        %v3966 = vperm.slane %v3951, 0
        %v3967 = vperm.slane %v3952, 0
        %v3968 = vperm.slane %v3953, 0
        %v3969 = vperm.slane %v3954, 0
        %v3970 = vperm.slane %v3955, 0
        %v3971 = vperm.slane %v3864, 0
        %v3972 = vperm.slane %v3956, 0
        %v3973 = vperm.slane %v3957, 0
        %v3974 = vperm.slane %v3958, 0
        %v3975 = vperm.slane %v3959, 0
        %v3976 = vperm.slane %v3960, 0
        %v3977 = vperm.slane %v3961, 0
        %v3978 = vperm.slane %v3962, 0
        %v3995 = vmul.f32 %v3963, %v438
        %v3996 = vmul.f32 %v3964, %v439
        %v3997 = vmul.f32 %v3965, %v440
        %v3998 = vmul.f32 %v3966, %v441
        %v3999 = vmul.f32 %v3967, %v442
        %v4000 = vmul.f32 %v3968, %v443
        %v4001 = vmul.f32 %v3969, %v444
        %v4002 = vmul.f32 %v3970, %v445
        %v4003 = vmul.f32 %v3971, %v446
        %v4004 = vmul.f32 %v3972, %v447
        %v4005 = vmul.f32 %v3973, %v448
        %v4006 = vmul.f32 %v3974, %v449
        %v4007 = vmul.f32 %v3975, %v450
        %v4008 = vmul.f32 %v3976, %v451
        %v4009 = vmul.f32 %v3977, %v452
        %v4010 = vmul.f32 %v3978, %v453
        %v4011 = vmul.f32 %v3963, %v454
        %v4012 = vmul.f32 %v3964, %v455
        %v4013 = vmul.f32 %v3965, %v456
        %v4014 = vmul.f32 %v3966, %v457
        %v4015 = vmul.f32 %v3967, %v458
        %v4016 = vmul.f32 %v3968, %v459
        %v4017 = vmul.f32 %v3969, %v460
        %v4018 = vmul.f32 %v3970, %v461
        %v4019 = vmul.f32 %v3971, %v462
        %v4020 = vmul.f32 %v3972, %v463
        %v4021 = vmul.f32 %v3973, %v464
        %v4022 = vmul.f32 %v3974, %v465
        %v4023 = vmul.f32 %v3975, %v466
        %v4024 = vmul.f32 %v3976, %v467
        %v4025 = vmul.f32 %v3977, %v468
        %v4026 = vmul.f32 %v3978, %v469
        %v4027 = vmul.f32 %v3963, %v470
        %v4028 = vmul.f32 %v3964, %v471
        %v4029 = vmul.f32 %v3965, %v472
        %v4030 = vmul.f32 %v3966, %v473
        %v4031 = vmul.f32 %v3967, %v474
        %v4032 = vmul.f32 %v3968, %v475
        %v4033 = vmul.f32 %v3969, %v476
        %v4034 = vmul.f32 %v3970, %v477
        %v4035 = vmul.f32 %v3971, %v478
        %v4036 = vmul.f32 %v3972, %v479
        %v4037 = vmul.f32 %v3973, %v480
        %v4038 = vmul.f32 %v3974, %v481
        %v4039 = vmul.f32 %v3975, %v482
        %v4040 = vmul.f32 %v3976, %v483
        %v4041 = vmul.f32 %v3977, %v484
        %v4042 = vmul.f32 %v3978, %v485
        %v4043 = vmul.f32 %v3963, %v486
        %v4044 = vmul.f32 %v3964, %v487
        %v4045 = vmul.f32 %v3965, %v488
        %v4046 = vmul.f32 %v3966, %v489
        %v4047 = vmul.f32 %v3967, %v490
        %v4048 = vmul.f32 %v3968, %v491
        %v4049 = vmul.f32 %v3969, %v492
        %v4050 = vmul.f32 %v3970, %v493
        %v4051 = vmul.f32 %v3971, %v494
        %v4052 = vmul.f32 %v3972, %v495
        %v4053 = vmul.f32 %v3973, %v496
        %v4054 = vmul.f32 %v3974, %v497
        %v4055 = vmul.f32 %v3975, %v498
        %v4056 = vmul.f32 %v3976, %v499
        %v4057 = vmul.f32 %v3977, %v500
        %v4058 = vmul.f32 %v3978, %v501
        %v4059 = vmul.f32 %v3963, %v502
        %v4060 = vmul.f32 %v3964, %v503
        %v4061 = vmul.f32 %v3965, %v504
        %v4062 = vmul.f32 %v3966, %v505
        %v4063 = vmul.f32 %v3967, %v506
        %v4064 = vmul.f32 %v3968, %v507
        %v4065 = vmul.f32 %v3969, %v508
        %v4066 = vmul.f32 %v3970, %v509
        %v4067 = vmul.f32 %v3971, %v510
        %v4068 = vmul.f32 %v3972, %v511
        %v4069 = vmul.f32 %v3973, %v512
        %v4070 = vmul.f32 %v3974, %v513
        %v4071 = vmul.f32 %v3975, %v514
        %v4072 = vmul.f32 %v3976, %v515
        %v4073 = vmul.f32 %v3977, %v516
        %v4074 = vmul.f32 %v3978, %v517
        %v4075 = vmul.f32 %v3963, %v518
        %v4076 = vmul.f32 %v3964, %v519
        %v4077 = vmul.f32 %v3965, %v520
        %v4078 = vmul.f32 %v3966, %v521
        %v4079 = vmul.f32 %v3967, %v522
        %v4080 = vmul.f32 %v3968, %v523
        %v4081 = vmul.f32 %v3969, %v524
        %v4082 = vmul.f32 %v3970, %v525
        %v4083 = vmul.f32 %v3971, %v526
        %v4084 = vmul.f32 %v3972, %v527
        %v4085 = vmul.f32 %v3973, %v528
        %v4086 = vmul.f32 %v3974, %v529
        %v4087 = vmul.f32 %v3975, %v530
        %v4088 = vmul.f32 %v3976, %v531
        %v4089 = vmul.f32 %v3977, %v532
        %v4090 = vmul.f32 %v3978, %v533
        %v4091 = vmul.f32 %v3963, %v534
        %v4092 = vmul.f32 %v3964, %v535
        %v4093 = vmul.f32 %v3965, %v536
        %v4094 = vmul.f32 %v3966, %v537
        %v4095 = vmul.f32 %v3967, %v538
        %v4096 = vmul.f32 %v3968, %v539
        %v4097 = vmul.f32 %v3969, %v540
        %v4098 = vmul.f32 %v3970, %v541
        %v4099 = vmul.f32 %v3971, %v542
        %v4100 = vmul.f32 %v3972, %v543
        %v4101 = vmul.f32 %v3973, %v544
        %v4102 = vmul.f32 %v3974, %v545
        %v4103 = vmul.f32 %v3975, %v546
        %v4104 = vmul.f32 %v3976, %v547
        %v4105 = vmul.f32 %v3977, %v548
        %v4106 = vmul.f32 %v3978, %v549
        %v4107 = vmul.f32 %v3963, %v550
        %v4108 = vmul.f32 %v3964, %v551
        %v4109 = vmul.f32 %v3965, %v552
        %v4110 = vmul.f32 %v3966, %v553
        %v4111 = vmul.f32 %v3967, %v554
        %v4112 = vmul.f32 %v3968, %v555
        %v4113 = vmul.f32 %v3969, %v556
        %v4114 = vmul.f32 %v3970, %v557
        %v4115 = vmul.f32 %v3971, %v558
        %v4116 = vmul.f32 %v3972, %v559
        %v4117 = vmul.f32 %v3973, %v560
        %v4118 = vmul.f32 %v3974, %v561
        %v4119 = vmul.f32 %v3975, %v562
        %v4120 = vmul.f32 %v3976, %v563
        %v4121 = vmul.f32 %v3977, %v564
        %v4122 = vmul.f32 %v3978, %v565
        %v4123 = vadd.f32 %v3946, %v3995
        %v4124 = vadd.f32 %v3946, %v3996
        %v4125 = vadd.f32 %v3946, %v3997
        %v4126 = vadd.f32 %v3946, %v3998
        %v4127 = vadd.f32 %v3946, %v3999
        %v4128 = vadd.f32 %v3946, %v4000
        %v4129 = vadd.f32 %v3946, %v4001
        %v4130 = vadd.f32 %v3946, %v4002
        %v4131 = vadd.f32 %v3946, %v4003
        %v4132 = vadd.f32 %v3946, %v4004
        %v4133 = vadd.f32 %v3946, %v4005
        %v4134 = vadd.f32 %v3946, %v4006
        %v4135 = vadd.f32 %v3946, %v4007
        %v4136 = vadd.f32 %v3946, %v4008
        %v4137 = vadd.f32 %v3946, %v4009
        %v4138 = vadd.f32 %v3946, %v4010
        %v4139 = vadd.f32 %v3946, %v4011
        %v4140 = vadd.f32 %v3946, %v4012
        %v4141 = vadd.f32 %v3946, %v4013
        %v4142 = vadd.f32 %v3946, %v4014
        %v4143 = vadd.f32 %v3946, %v4015
        %v4144 = vadd.f32 %v3946, %v4016
        %v4145 = vadd.f32 %v3946, %v4017
        %v4146 = vadd.f32 %v3946, %v4018
        %v4147 = vadd.f32 %v3946, %v4019
        %v4148 = vadd.f32 %v3946, %v4020
        %v4149 = vadd.f32 %v3946, %v4021
        %v4150 = vadd.f32 %v3946, %v4022
        %v4151 = vadd.f32 %v3946, %v4023
        %v4152 = vadd.f32 %v3946, %v4024
        %v4153 = vadd.f32 %v3946, %v4025
        %v4154 = vadd.f32 %v3946, %v4026
        %v4155 = vadd.f32 %v3946, %v4027
        %v4156 = vadd.f32 %v3946, %v4028
        %v4157 = vadd.f32 %v3946, %v4029
        %v4158 = vadd.f32 %v3946, %v4030
        %v4159 = vadd.f32 %v3946, %v4031
        %v4160 = vadd.f32 %v3946, %v4032
        %v4161 = vadd.f32 %v3946, %v4033
        %v4162 = vadd.f32 %v3946, %v4034
        %v4163 = vadd.f32 %v3946, %v4035
        %v4164 = vadd.f32 %v3946, %v4036
        %v4165 = vadd.f32 %v3946, %v4037
        %v4166 = vadd.f32 %v3946, %v4038
        %v4167 = vadd.f32 %v3946, %v4039
        %v4168 = vadd.f32 %v3946, %v4040
        %v4169 = vadd.f32 %v3946, %v4041
        %v4170 = vadd.f32 %v3946, %v4042
        %v4171 = vadd.f32 %v3946, %v4043
        %v4172 = vadd.f32 %v3946, %v4044
        %v4173 = vadd.f32 %v3946, %v4045
        %v4174 = vadd.f32 %v3946, %v4046
        %v4175 = vadd.f32 %v3946, %v4047
        %v4176 = vadd.f32 %v3946, %v4048
        %v4177 = vadd.f32 %v3946, %v4049
        %v4178 = vadd.f32 %v3946, %v4050
        %v4179 = vadd.f32 %v3946, %v4051
        %v4180 = vadd.f32 %v3946, %v4052
        %v4181 = vadd.f32 %v3946, %v4053
        %v4182 = vadd.f32 %v3946, %v4054
        %v4183 = vadd.f32 %v3946, %v4055
        %v4184 = vadd.f32 %v3946, %v4056
        %v4185 = vadd.f32 %v3946, %v4057
        %v4186 = vadd.f32 %v3946, %v4058
        %v4187 = vadd.f32 %v3946, %v4059
        %v4188 = vadd.f32 %v3946, %v4060
        %v4189 = vadd.f32 %v3946, %v4061
        %v4190 = vadd.f32 %v3946, %v4062
        %v4191 = vadd.f32 %v3946, %v4063
        %v4192 = vadd.f32 %v3946, %v4064
        %v4193 = vadd.f32 %v3946, %v4065
        %v4194 = vadd.f32 %v3946, %v4066
        %v4195 = vadd.f32 %v3946, %v4067
        %v4196 = vadd.f32 %v3946, %v4068
        %v4197 = vadd.f32 %v3946, %v4069
        %v4198 = vadd.f32 %v3946, %v4070
        %v4199 = vadd.f32 %v3946, %v4071
        %v4200 = vadd.f32 %v3946, %v4072
        %v4201 = vadd.f32 %v3946, %v4073
        %v4202 = vadd.f32 %v3946, %v4074
        %v4203 = vadd.f32 %v3946, %v4075
        %v4204 = vadd.f32 %v3946, %v4076
        %v4205 = vadd.f32 %v3946, %v4077
        %v4206 = vadd.f32 %v3946, %v4078
        %v4207 = vadd.f32 %v3946, %v4079
        %v4208 = vadd.f32 %v3946, %v4080
        %v4209 = vadd.f32 %v3946, %v4081
        %v4210 = vadd.f32 %v3946, %v4082
        %v4211 = vadd.f32 %v3946, %v4083
        %v4212 = vadd.f32 %v3946, %v4084
        %v4213 = vadd.f32 %v3946, %v4085
        %v4214 = vadd.f32 %v3946, %v4086
        %v4215 = vadd.f32 %v3946, %v4087
        %v4216 = vadd.f32 %v3946, %v4088
        %v4217 = vadd.f32 %v3946, %v4089
        %v4218 = vadd.f32 %v3946, %v4090
        %v4219 = vadd.f32 %v3946, %v4091
        %v4220 = vadd.f32 %v3946, %v4092
        %v4221 = vadd.f32 %v3946, %v4093
        %v4222 = vadd.f32 %v3946, %v4094
        %v4223 = vadd.f32 %v3946, %v4095
        %v4224 = vadd.f32 %v3946, %v4096
        %v4225 = vadd.f32 %v3946, %v4097
        %v4226 = vadd.f32 %v3946, %v4098
        %v4227 = vadd.f32 %v3946, %v4099
        %v4228 = vadd.f32 %v3946, %v4100
        %v4229 = vadd.f32 %v3946, %v4101
        %v4230 = vadd.f32 %v3946, %v4102
        %v4231 = vadd.f32 %v3946, %v4103
        %v4232 = vadd.f32 %v3946, %v4104
        %v4233 = vadd.f32 %v3946, %v4105
        %v4234 = vadd.f32 %v3946, %v4106
        %v4235 = vadd.f32 %v3946, %v4107
        %v4236 = vadd.f32 %v3946, %v4108
        %v4237 = vadd.f32 %v3946, %v4109
        %v4238 = vadd.f32 %v3946, %v4110
        %v4239 = vadd.f32 %v3946, %v4111
        %v4240 = vadd.f32 %v3946, %v4112
        %v4241 = vadd.f32 %v3946, %v4113
        %v4242 = vadd.f32 %v3946, %v4114
        %v4243 = vadd.f32 %v3946, %v4115
        %v4244 = vadd.f32 %v3946, %v4116
        %v4245 = vadd.f32 %v3946, %v4117
        %v4246 = vadd.f32 %v3946, %v4118
        %v4247 = vadd.f32 %v3946, %v4119
        %v4248 = vadd.f32 %v3946, %v4120
        %v4249 = vadd.f32 %v3946, %v4121
        %v4250 = vadd.f32 %v3946, %v4122
        %v4251 = vtanh.pop %v4123
        %v4252 = vtanh.pop %v4124
        %v4253 = vtanh.pop %v4125
        %v4254 = vtanh.pop %v4126
        %v4255 = vtanh.pop %v4127
        %v4256 = vtanh.pop %v4128
        %v4257 = vtanh.pop %v4129
        %v4258 = vtanh.pop %v4130
        %v4259 = vtanh.pop %v4131
        %v4260 = vtanh.pop %v4132
        %v4261 = vtanh.pop %v4133
        %v4262 = vtanh.pop %v4134
        %v4263 = vtanh.pop %v4135
        %v4264 = vtanh.pop %v4136
        %v4265 = vtanh.pop %v4137
        %v4266 = vtanh.pop %v4138
        %v4267 = vtanh.pop %v4139
        %v4268 = vtanh.pop %v4140
        %v4269 = vtanh.pop %v4141
        %v4270 = vtanh.pop %v4142
        %v4271 = vtanh.pop %v4143
        %v4272 = vtanh.pop %v4144
        %v4273 = vtanh.pop %v4145
        %v4274 = vtanh.pop %v4146
        %v4275 = vtanh.pop %v4147
        %v4276 = vtanh.pop %v4148
        %v4277 = vtanh.pop %v4149
        %v4278 = vtanh.pop %v4150
        %v4279 = vtanh.pop %v4151
        %v4280 = vtanh.pop %v4152
        %v4281 = vtanh.pop %v4153
        %v4282 = vtanh.pop %v4154
        %v4283 = vtanh.pop %v4155
        %v4284 = vtanh.pop %v4156
        %v4285 = vtanh.pop %v4157
        %v4286 = vtanh.pop %v4158
        %v4287 = vtanh.pop %v4159
        %v4288 = vtanh.pop %v4160
        %v4289 = vtanh.pop %v4161
        %v4290 = vtanh.pop %v4162
        %v4291 = vtanh.pop %v4163
        %v4292 = vtanh.pop %v4164
        %v4293 = vtanh.pop %v4165
        %v4294 = vtanh.pop %v4166
        %v4295 = vtanh.pop %v4167
        %v4296 = vtanh.pop %v4168
        %v4297 = vtanh.pop %v4169
        %v4298 = vtanh.pop %v4170
        %v4299 = vtanh.pop %v4171
        %v4300 = vtanh.pop %v4172
        %v4301 = vtanh.pop %v4173
        %v4302 = vtanh.pop %v4174
        %v4303 = vtanh.pop %v4175
        %v4304 = vtanh.pop %v4176
        %v4305 = vtanh.pop %v4177
        %v4306 = vtanh.pop %v4178
        %v4307 = vtanh.pop %v4179
        %v4308 = vtanh.pop %v4180
        %v4309 = vtanh.pop %v4181
        %v4310 = vtanh.pop %v4182
        %v4311 = vtanh.pop %v4183
        %v4312 = vtanh.pop %v4184
        %v4313 = vtanh.pop %v4185
        %v4314 = vtanh.pop %v4186
        %v4315 = vtanh.pop %v4187
        %v4316 = vtanh.pop %v4188
        %v4317 = vtanh.pop %v4189
        %v4318 = vtanh.pop %v4190
        %v4319 = vtanh.pop %v4191
        %v4320 = vtanh.pop %v4192
        %v4321 = vtanh.pop %v4193
        %v4322 = vtanh.pop %v4194
        %v4323 = vtanh.pop %v4195
        %v4324 = vtanh.pop %v4196
        %v4325 = vtanh.pop %v4197
        %v4326 = vtanh.pop %v4198
        %v4327 = vtanh.pop %v4199
        %v4328 = vtanh.pop %v4200
        %v4329 = vtanh.pop %v4201
        %v4330 = vtanh.pop %v4202
        %v4331 = vtanh.pop %v4203
        %v4332 = vtanh.pop %v4204
        %v4333 = vtanh.pop %v4205
        %v4334 = vtanh.pop %v4206
        %v4335 = vtanh.pop %v4207
        %v4336 = vtanh.pop %v4208
        %v4337 = vtanh.pop %v4209
        %v4338 = vtanh.pop %v4210
        %v4339 = vtanh.pop %v4211
        %v4340 = vtanh.pop %v4212
        %v4341 = vtanh.pop %v4213
        %v4342 = vtanh.pop %v4214
        %v4343 = vtanh.pop %v4215
        %v4344 = vtanh.pop %v4216
        %v4345 = vtanh.pop %v4217
        %v4346 = vtanh.pop %v4218
        %v4347 = vtanh.pop %v4219
        %v4348 = vtanh.pop %v4220
        %v4349 = vtanh.pop %v4221
        %v4350 = vtanh.pop %v4222
        %v4351 = vtanh.pop %v4223
        %v4352 = vtanh.pop %v4224
        %v4353 = vtanh.pop %v4225
        %v4354 = vtanh.pop %v4226
        %v4355 = vtanh.pop %v4227
        %v4356 = vtanh.pop %v4228
        %v4357 = vtanh.pop %v4229
        %v4358 = vtanh.pop %v4230
        %v4359 = vtanh.pop %v4231
        %v4360 = vtanh.pop %v4232
        %v4361 = vtanh.pop %v4233
        %v4362 = vtanh.pop %v4234
        %v4363 = vtanh.pop %v4235
        %v4364 = vtanh.pop %v4236
        %v4365 = vtanh.pop %v4237
        %v4366 = vtanh.pop %v4238
        %v4367 = vtanh.pop %v4239
        %v4368 = vtanh.pop %v4240
        %v4369 = vtanh.pop %v4241
        %v4370 = vtanh.pop %v4242
        %v4371 = vtanh.pop %v4243
        %v4372 = vtanh.pop %v4244
        %v4373 = vtanh.pop %v4245
        %v4374 = vtanh.pop %v4246
        %v4375 = vtanh.pop %v4247
        %v4376 = vtanh.pop %v4248
        %v4377 = vtanh.pop %v4249
        %v4378 = vtanh.pop %v4250
        %v4381 = vrot.slane %v3866, 1
        %v4382 = vrot.slane %v3866, 2
        %v4383 = vrot.slane %v3866, 3
        %v4384 = vrot.slane %v3866, 4
        %v4385 = vrot.slane %v3866, 5
        %v4386 = vrot.slane %v3866, 6
        %v4387 = vrot.slane %v3866, 7
        %v4388 = vrot.slane %v3867, 1
        %v4389 = vrot.slane %v3867, 2
        %v4390 = vrot.slane %v3867, 3
        %v4391 = vrot.slane %v3867, 4
        %v4392 = vrot.slane %v3867, 5
        %v4393 = vrot.slane %v3867, 6
        %v4394 = vrot.slane %v3867, 7
        %v4395 = vperm.slane %v3866, 0
        %v4396 = vperm.slane %v4381, 0
        %v4397 = vperm.slane %v4382, 0
        %v4398 = vperm.slane %v4383, 0
        %v4399 = vperm.slane %v4384, 0
        %v4400 = vperm.slane %v4385, 0
        %v4401 = vperm.slane %v4386, 0
        %v4402 = vperm.slane %v4387, 0
        %v4403 = vperm.slane %v3867, 0
        %v4404 = vperm.slane %v4388, 0
        %v4405 = vperm.slane %v4389, 0
        %v4406 = vperm.slane %v4390, 0
        %v4407 = vperm.slane %v4391, 0
        %v4408 = vperm.slane %v4392, 0
        %v4409 = vperm.slane %v4393, 0
        %v4410 = vperm.slane %v4394, 0
        %v4427 = vmul.f32 %v4395, %v4251
        %v4428 = vmul.f32 %v4396, %v4252
        %v4429 = vmul.f32 %v4397, %v4253
        %v4430 = vmul.f32 %v4398, %v4254
        %v4431 = vmul.f32 %v4399, %v4255
        %v4432 = vmul.f32 %v4400, %v4256
        %v4433 = vmul.f32 %v4401, %v4257
        %v4434 = vmul.f32 %v4402, %v4258
        %v4435 = vmul.f32 %v4403, %v4259
        %v4436 = vmul.f32 %v4404, %v4260
        %v4437 = vmul.f32 %v4405, %v4261
        %v4438 = vmul.f32 %v4406, %v4262
        %v4439 = vmul.f32 %v4407, %v4263
        %v4440 = vmul.f32 %v4408, %v4264
        %v4441 = vmul.f32 %v4409, %v4265
        %v4442 = vmul.f32 %v4410, %v4266
        %v4443 = vmul.f32 %v4395, %v4267
        %v4444 = vmul.f32 %v4396, %v4268
        %v4445 = vmul.f32 %v4397, %v4269
        %v4446 = vmul.f32 %v4398, %v4270
        %v4447 = vmul.f32 %v4399, %v4271
        %v4448 = vmul.f32 %v4400, %v4272
        %v4449 = vmul.f32 %v4401, %v4273
        %v4450 = vmul.f32 %v4402, %v4274
        %v4451 = vmul.f32 %v4403, %v4275
        %v4452 = vmul.f32 %v4404, %v4276
        %v4453 = vmul.f32 %v4405, %v4277
        %v4454 = vmul.f32 %v4406, %v4278
        %v4455 = vmul.f32 %v4407, %v4279
        %v4456 = vmul.f32 %v4408, %v4280
        %v4457 = vmul.f32 %v4409, %v4281
        %v4458 = vmul.f32 %v4410, %v4282
        %v4459 = vmul.f32 %v4395, %v4283
        %v4460 = vmul.f32 %v4396, %v4284
        %v4461 = vmul.f32 %v4397, %v4285
        %v4462 = vmul.f32 %v4398, %v4286
        %v4463 = vmul.f32 %v4399, %v4287
        %v4464 = vmul.f32 %v4400, %v4288
        %v4465 = vmul.f32 %v4401, %v4289
        %v4466 = vmul.f32 %v4402, %v4290
        %v4467 = vmul.f32 %v4403, %v4291
        %v4468 = vmul.f32 %v4404, %v4292
        %v4469 = vmul.f32 %v4405, %v4293
        %v4470 = vmul.f32 %v4406, %v4294
        %v4471 = vmul.f32 %v4407, %v4295
        %v4472 = vmul.f32 %v4408, %v4296
        %v4473 = vmul.f32 %v4409, %v4297
        %v4474 = vmul.f32 %v4410, %v4298
        %v4475 = vmul.f32 %v4395, %v4299
        %v4476 = vmul.f32 %v4396, %v4300
        %v4477 = vmul.f32 %v4397, %v4301
        %v4478 = vmul.f32 %v4398, %v4302
        %v4479 = vmul.f32 %v4399, %v4303
        %v4480 = vmul.f32 %v4400, %v4304
        %v4481 = vmul.f32 %v4401, %v4305
        %v4482 = vmul.f32 %v4402, %v4306
        %v4483 = vmul.f32 %v4403, %v4307
        %v4484 = vmul.f32 %v4404, %v4308
        %v4485 = vmul.f32 %v4405, %v4309
        %v4486 = vmul.f32 %v4406, %v4310
        %v4487 = vmul.f32 %v4407, %v4311
        %v4488 = vmul.f32 %v4408, %v4312
        %v4489 = vmul.f32 %v4409, %v4313
        %v4490 = vmul.f32 %v4410, %v4314
        %v4491 = vmul.f32 %v4395, %v4315
        %v4492 = vmul.f32 %v4396, %v4316
        %v4493 = vmul.f32 %v4397, %v4317
        %v4494 = vmul.f32 %v4398, %v4318
        %v4495 = vmul.f32 %v4399, %v4319
        %v4496 = vmul.f32 %v4400, %v4320
        %v4497 = vmul.f32 %v4401, %v4321
        %v4498 = vmul.f32 %v4402, %v4322
        %v4499 = vmul.f32 %v4403, %v4323
        %v4500 = vmul.f32 %v4404, %v4324
        %v4501 = vmul.f32 %v4405, %v4325
        %v4502 = vmul.f32 %v4406, %v4326
        %v4503 = vmul.f32 %v4407, %v4327
        %v4504 = vmul.f32 %v4408, %v4328
        %v4505 = vmul.f32 %v4409, %v4329
        %v4506 = vmul.f32 %v4410, %v4330
        %v4507 = vmul.f32 %v4395, %v4331
        %v4508 = vmul.f32 %v4396, %v4332
        %v4509 = vmul.f32 %v4397, %v4333
        %v4510 = vmul.f32 %v4398, %v4334
        %v4511 = vmul.f32 %v4399, %v4335
        %v4512 = vmul.f32 %v4400, %v4336
        %v4513 = vmul.f32 %v4401, %v4337
        %v4514 = vmul.f32 %v4402, %v4338
        %v4515 = vmul.f32 %v4403, %v4339
        %v4516 = vmul.f32 %v4404, %v4340
        %v4517 = vmul.f32 %v4405, %v4341
        %v4518 = vmul.f32 %v4406, %v4342
        %v4519 = vmul.f32 %v4407, %v4343
        %v4520 = vmul.f32 %v4408, %v4344
        %v4521 = vmul.f32 %v4409, %v4345
        %v4522 = vmul.f32 %v4410, %v4346
        %v4523 = vmul.f32 %v4395, %v4347
        %v4524 = vmul.f32 %v4396, %v4348
        %v4525 = vmul.f32 %v4397, %v4349
        %v4526 = vmul.f32 %v4398, %v4350
        %v4527 = vmul.f32 %v4399, %v4351
        %v4528 = vmul.f32 %v4400, %v4352
        %v4529 = vmul.f32 %v4401, %v4353
        %v4530 = vmul.f32 %v4402, %v4354
        %v4531 = vmul.f32 %v4403, %v4355
        %v4532 = vmul.f32 %v4404, %v4356
        %v4533 = vmul.f32 %v4405, %v4357
        %v4534 = vmul.f32 %v4406, %v4358
        %v4535 = vmul.f32 %v4407, %v4359
        %v4536 = vmul.f32 %v4408, %v4360
        %v4537 = vmul.f32 %v4409, %v4361
        %v4538 = vmul.f32 %v4410, %v4362
        %v4539 = vmul.f32 %v4395, %v4363
        %v4540 = vmul.f32 %v4396, %v4364
        %v4541 = vmul.f32 %v4397, %v4365
        %v4542 = vmul.f32 %v4398, %v4366
        %v4543 = vmul.f32 %v4399, %v4367
        %v4544 = vmul.f32 %v4400, %v4368
        %v4545 = vmul.f32 %v4401, %v4369
        %v4546 = vmul.f32 %v4402, %v4370
        %v4547 = vmul.f32 %v4403, %v4371
        %v4548 = vmul.f32 %v4404, %v4372
        %v4549 = vmul.f32 %v4405, %v4373
        %v4550 = vmul.f32 %v4406, %v4374
        %v4551 = vmul.f32 %v4407, %v4375
        %v4552 = vmul.f32 %v4408, %v4376
        %v4553 = vmul.f32 %v4409, %v4377
        %v4554 = vmul.f32 %v4410, %v4378
        %v4555 = vadd.f32 %v3731, %v4427
        %v4556 = vadd.f32 %v3732, %v4428
        %v4557 = vadd.f32 %v3733, %v4429
        %v4558 = vadd.f32 %v3734, %v4430
        %v4559 = vadd.f32 %v3735, %v4431
        %v4560 = vadd.f32 %v3736, %v4432
        %v4561 = vadd.f32 %v3737, %v4433
        %v4562 = vadd.f32 %v3738, %v4434
        %v4563 = vadd.f32 %v3739, %v4435
        %v4564 = vadd.f32 %v3740, %v4436
        %v4565 = vadd.f32 %v3741, %v4437
        %v4566 = vadd.f32 %v3742, %v4438
        %v4567 = vadd.f32 %v3743, %v4439
        %v4568 = vadd.f32 %v3744, %v4440
        %v4569 = vadd.f32 %v3745, %v4441
        %v4570 = vadd.f32 %v3746, %v4442
        %v4571 = vadd.f32 %v3747, %v4443
        %v4572 = vadd.f32 %v3748, %v4444
        %v4573 = vadd.f32 %v3749, %v4445
        %v4574 = vadd.f32 %v3750, %v4446
        %v4575 = vadd.f32 %v3751, %v4447
        %v4576 = vadd.f32 %v3752, %v4448
        %v4577 = vadd.f32 %v3753, %v4449
        %v4578 = vadd.f32 %v3754, %v4450
        %v4579 = vadd.f32 %v3755, %v4451
        %v4580 = vadd.f32 %v3756, %v4452
        %v4581 = vadd.f32 %v3757, %v4453
        %v4582 = vadd.f32 %v3758, %v4454
        %v4583 = vadd.f32 %v3759, %v4455
        %v4584 = vadd.f32 %v3760, %v4456
        %v4585 = vadd.f32 %v3761, %v4457
        %v4586 = vadd.f32 %v3762, %v4458
        %v4587 = vadd.f32 %v3763, %v4459
        %v4588 = vadd.f32 %v3764, %v4460
        %v4589 = vadd.f32 %v3765, %v4461
        %v4590 = vadd.f32 %v3766, %v4462
        %v4591 = vadd.f32 %v3767, %v4463
        %v4592 = vadd.f32 %v3768, %v4464
        %v4593 = vadd.f32 %v3769, %v4465
        %v4594 = vadd.f32 %v3770, %v4466
        %v4595 = vadd.f32 %v3771, %v4467
        %v4596 = vadd.f32 %v3772, %v4468
        %v4597 = vadd.f32 %v3773, %v4469
        %v4598 = vadd.f32 %v3774, %v4470
        %v4599 = vadd.f32 %v3775, %v4471
        %v4600 = vadd.f32 %v3776, %v4472
        %v4601 = vadd.f32 %v3777, %v4473
        %v4602 = vadd.f32 %v3778, %v4474
        %v4603 = vadd.f32 %v3779, %v4475
        %v4604 = vadd.f32 %v3780, %v4476
        %v4605 = vadd.f32 %v3781, %v4477
        %v4606 = vadd.f32 %v3782, %v4478
        %v4607 = vadd.f32 %v3783, %v4479
        %v4608 = vadd.f32 %v3784, %v4480
        %v4609 = vadd.f32 %v3785, %v4481
        %v4610 = vadd.f32 %v3786, %v4482
        %v4611 = vadd.f32 %v3787, %v4483
        %v4612 = vadd.f32 %v3788, %v4484
        %v4613 = vadd.f32 %v3789, %v4485
        %v4614 = vadd.f32 %v3790, %v4486
        %v4615 = vadd.f32 %v3791, %v4487
        %v4616 = vadd.f32 %v3792, %v4488
        %v4617 = vadd.f32 %v3793, %v4489
        %v4618 = vadd.f32 %v3794, %v4490
        %v4619 = vadd.f32 %v3795, %v4491
        %v4620 = vadd.f32 %v3796, %v4492
        %v4621 = vadd.f32 %v3797, %v4493
        %v4622 = vadd.f32 %v3798, %v4494
        %v4623 = vadd.f32 %v3799, %v4495
        %v4624 = vadd.f32 %v3800, %v4496
        %v4625 = vadd.f32 %v3801, %v4497
        %v4626 = vadd.f32 %v3802, %v4498
        %v4627 = vadd.f32 %v3803, %v4499
        %v4628 = vadd.f32 %v3804, %v4500
        %v4629 = vadd.f32 %v3805, %v4501
        %v4630 = vadd.f32 %v3806, %v4502
        %v4631 = vadd.f32 %v3807, %v4503
        %v4632 = vadd.f32 %v3808, %v4504
        %v4633 = vadd.f32 %v3809, %v4505
        %v4634 = vadd.f32 %v3810, %v4506
        %v4635 = vadd.f32 %v3811, %v4507
        %v4636 = vadd.f32 %v3812, %v4508
        %v4637 = vadd.f32 %v3813, %v4509
        %v4638 = vadd.f32 %v3814, %v4510
        %v4639 = vadd.f32 %v3815, %v4511
        %v4640 = vadd.f32 %v3816, %v4512
        %v4641 = vadd.f32 %v3817, %v4513
        %v4642 = vadd.f32 %v3818, %v4514
        %v4643 = vadd.f32 %v3819, %v4515
        %v4644 = vadd.f32 %v3820, %v4516
        %v4645 = vadd.f32 %v3821, %v4517
        %v4646 = vadd.f32 %v3822, %v4518
        %v4647 = vadd.f32 %v3823, %v4519
        %v4648 = vadd.f32 %v3824, %v4520
        %v4649 = vadd.f32 %v3825, %v4521
        %v4650 = vadd.f32 %v3826, %v4522
        %v4651 = vadd.f32 %v3827, %v4523
        %v4652 = vadd.f32 %v3828, %v4524
        %v4653 = vadd.f32 %v3829, %v4525
        %v4654 = vadd.f32 %v3830, %v4526
        %v4655 = vadd.f32 %v3831, %v4527
        %v4656 = vadd.f32 %v3832, %v4528
        %v4657 = vadd.f32 %v3833, %v4529
        %v4658 = vadd.f32 %v3834, %v4530
        %v4659 = vadd.f32 %v3835, %v4531
        %v4660 = vadd.f32 %v3836, %v4532
        %v4661 = vadd.f32 %v3837, %v4533
        %v4662 = vadd.f32 %v3838, %v4534
        %v4663 = vadd.f32 %v3839, %v4535
        %v4664 = vadd.f32 %v3840, %v4536
        %v4665 = vadd.f32 %v3841, %v4537
        %v4666 = vadd.f32 %v3842, %v4538
        %v4667 = vadd.f32 %v3843, %v4539
        %v4668 = vadd.f32 %v3844, %v4540
        %v4669 = vadd.f32 %v3845, %v4541
        %v4670 = vadd.f32 %v3846, %v4542
        %v4671 = vadd.f32 %v3847, %v4543
        %v4672 = vadd.f32 %v3848, %v4544
        %v4673 = vadd.f32 %v3849, %v4545
        %v4674 = vadd.f32 %v3850, %v4546
        %v4675 = vadd.f32 %v3851, %v4547
        %v4676 = vadd.f32 %v3852, %v4548
        %v4677 = vadd.f32 %v3853, %v4549
        %v4678 = vadd.f32 %v3854, %v4550
        %v4679 = vadd.f32 %v3855, %v4551
        %v4680 = vadd.f32 %v3856, %v4552
        %v4681 = vadd.f32 %v3857, %v4553
        %v4682 = vadd.f32 %v3858, %v4554
        %s4683 = scalar_lea.vmem [#allocation7], 80
        %v4684 = vld [vmem:[%s4683] sm:$0xff]
        %v4685 = vld [vmem:[%s4683 + $0x8] sm:$0xff]
        %s4686 = scalar_lea.vmem [#allocation8], 80
        %v4687 = vld [vmem:[%s4686] sm:$0xff]
        %v4688 = vld [vmem:[%s4686 + $0x8] sm:$0xff]
        %s4689 = scalar_lea.vmem [#allocation10], 80
        %v4690 = vld [vmem:[%s4689] sm:$0xff]
        %v4691 = vld [vmem:[%s4689 + $0x8] sm:$0xff]
        %v4694 = vrot.slane %v4684, 1
        %v4695 = vrot.slane %v4684, 2
        %v4696 = vrot.slane %v4684, 3
        %v4697 = vrot.slane %v4684, 4
        %v4698 = vrot.slane %v4684, 5
        %v4699 = vrot.slane %v4684, 6
        %v4700 = vrot.slane %v4684, 7
        %v4701 = vrot.slane %v4685, 1
        %v4702 = vrot.slane %v4685, 2
        %v4703 = vrot.slane %v4685, 3
        %v4704 = vrot.slane %v4685, 4
        %v4705 = vrot.slane %v4685, 5
        %v4706 = vrot.slane %v4685, 6
        %v4707 = vrot.slane %v4685, 7
        %v4708 = vperm.slane %v4684, 0
        %v4709 = vperm.slane %v4694, 0
        %v4710 = vperm.slane %v4695, 0
        %v4711 = vperm.slane %v4696, 0
        %v4712 = vperm.slane %v4697, 0
        %v4713 = vperm.slane %v4698, 0
        %v4714 = vperm.slane %v4699, 0
        %v4715 = vperm.slane %v4700, 0
        %v4716 = vperm.slane %v4685, 0
        %v4717 = vperm.slane %v4701, 0
        %v4718 = vperm.slane %v4702, 0
        %v4719 = vperm.slane %v4703, 0
        %v4720 = vperm.slane %v4704, 0
        %v4721 = vperm.slane %v4705, 0
        %v4722 = vperm.slane %v4706, 0
        %v4723 = vperm.slane %v4707, 0
        %v4740 = vmul.f32 %v4708, %v422
        %v4741 = vmul.f32 %v4709, %v423
        %v4742 = vmul.f32 %v4710, %v424
        %v4743 = vmul.f32 %v4711, %v425
        %v4744 = vmul.f32 %v4712, %v426
        %v4745 = vmul.f32 %v4713, %v427
        %v4746 = vmul.f32 %v4714, %v428
        %v4747 = vmul.f32 %v4715, %v429
        %v4748 = vmul.f32 %v4716, %v430
        %v4749 = vmul.f32 %v4717, %v431
        %v4750 = vmul.f32 %v4718, %v432
        %v4751 = vmul.f32 %v4719, %v433
        %v4752 = vmul.f32 %v4720, %v434
        %v4753 = vmul.f32 %v4721, %v435
        %v4754 = vmul.f32 %v4722, %v436
        %v4755 = vmul.f32 %v4723, %v437
        %v4756 = vadd.f32 %v4740, %v4741
        %v4757 = vadd.f32 %v4756, %v4742
        %v4758 = vadd.f32 %v4757, %v4743
        %v4759 = vadd.f32 %v4758, %v4744
        %v4760 = vadd.f32 %v4759, %v4745
        %v4761 = vadd.f32 %v4760, %v4746
        %v4762 = vadd.f32 %v4761, %v4747
        %v4763 = vadd.f32 %v4762, %v4748
        %v4764 = vadd.f32 %v4763, %v4749
        %v4765 = vadd.f32 %v4764, %v4750
        %v4766 = vadd.f32 %v4765, %v4751
        %v4767 = vadd.f32 %v4766, %v4752
        %v4768 = vadd.f32 %v4767, %v4753
        %v4769 = vadd.f32 %v4768, %v4754
        %v4770 = vadd.f32 %v4769, %v4755
        %v4773 = vrot.slane %v4687, 1
        %v4774 = vrot.slane %v4687, 2
        %v4775 = vrot.slane %v4687, 3
        %v4776 = vrot.slane %v4687, 4
        %v4777 = vrot.slane %v4687, 5
        %v4778 = vrot.slane %v4687, 6
        %v4779 = vrot.slane %v4687, 7
        %v4780 = vrot.slane %v4688, 1
        %v4781 = vrot.slane %v4688, 2
        %v4782 = vrot.slane %v4688, 3
        %v4783 = vrot.slane %v4688, 4
        %v4784 = vrot.slane %v4688, 5
        %v4785 = vrot.slane %v4688, 6
        %v4786 = vrot.slane %v4688, 7
        %v4787 = vperm.slane %v4687, 0
        %v4788 = vperm.slane %v4773, 0
        %v4789 = vperm.slane %v4774, 0
        %v4790 = vperm.slane %v4775, 0
        %v4791 = vperm.slane %v4776, 0
        %v4792 = vperm.slane %v4777, 0
        %v4793 = vperm.slane %v4778, 0
        %v4794 = vperm.slane %v4779, 0
        %v4795 = vperm.slane %v4688, 0
        %v4796 = vperm.slane %v4780, 0
        %v4797 = vperm.slane %v4781, 0
        %v4798 = vperm.slane %v4782, 0
        %v4799 = vperm.slane %v4783, 0
        %v4800 = vperm.slane %v4784, 0
        %v4801 = vperm.slane %v4785, 0
        %v4802 = vperm.slane %v4786, 0
        %v4819 = vmul.f32 %v4787, %v438
        %v4820 = vmul.f32 %v4788, %v439
        %v4821 = vmul.f32 %v4789, %v440
        %v4822 = vmul.f32 %v4790, %v441
        %v4823 = vmul.f32 %v4791, %v442
        %v4824 = vmul.f32 %v4792, %v443
        %v4825 = vmul.f32 %v4793, %v444
        %v4826 = vmul.f32 %v4794, %v445
        %v4827 = vmul.f32 %v4795, %v446
        %v4828 = vmul.f32 %v4796, %v447
        %v4829 = vmul.f32 %v4797, %v448
        %v4830 = vmul.f32 %v4798, %v449
        %v4831 = vmul.f32 %v4799, %v450
        %v4832 = vmul.f32 %v4800, %v451
        %v4833 = vmul.f32 %v4801, %v452
        %v4834 = vmul.f32 %v4802, %v453
        %v4835 = vmul.f32 %v4787, %v454
        %v4836 = vmul.f32 %v4788, %v455
        %v4837 = vmul.f32 %v4789, %v456
        %v4838 = vmul.f32 %v4790, %v457
        %v4839 = vmul.f32 %v4791, %v458
        %v4840 = vmul.f32 %v4792, %v459
        %v4841 = vmul.f32 %v4793, %v460
        %v4842 = vmul.f32 %v4794, %v461
        %v4843 = vmul.f32 %v4795, %v462
        %v4844 = vmul.f32 %v4796, %v463
        %v4845 = vmul.f32 %v4797, %v464
        %v4846 = vmul.f32 %v4798, %v465
        %v4847 = vmul.f32 %v4799, %v466
        %v4848 = vmul.f32 %v4800, %v467
        %v4849 = vmul.f32 %v4801, %v468
        %v4850 = vmul.f32 %v4802, %v469
        %v4851 = vmul.f32 %v4787, %v470
        %v4852 = vmul.f32 %v4788, %v471
        %v4853 = vmul.f32 %v4789, %v472
        %v4854 = vmul.f32 %v4790, %v473
        %v4855 = vmul.f32 %v4791, %v474
        %v4856 = vmul.f32 %v4792, %v475
        %v4857 = vmul.f32 %v4793, %v476
        %v4858 = vmul.f32 %v4794, %v477
        %v4859 = vmul.f32 %v4795, %v478
        %v4860 = vmul.f32 %v4796, %v479
        %v4861 = vmul.f32 %v4797, %v480
        %v4862 = vmul.f32 %v4798, %v481
        %v4863 = vmul.f32 %v4799, %v482
        %v4864 = vmul.f32 %v4800, %v483
        %v4865 = vmul.f32 %v4801, %v484
        %v4866 = vmul.f32 %v4802, %v485
        %v4867 = vmul.f32 %v4787, %v486
        %v4868 = vmul.f32 %v4788, %v487
        %v4869 = vmul.f32 %v4789, %v488
        %v4870 = vmul.f32 %v4790, %v489
        %v4871 = vmul.f32 %v4791, %v490
        %v4872 = vmul.f32 %v4792, %v491
        %v4873 = vmul.f32 %v4793, %v492
        %v4874 = vmul.f32 %v4794, %v493
        %v4875 = vmul.f32 %v4795, %v494
        %v4876 = vmul.f32 %v4796, %v495
        %v4877 = vmul.f32 %v4797, %v496
        %v4878 = vmul.f32 %v4798, %v497
        %v4879 = vmul.f32 %v4799, %v498
        %v4880 = vmul.f32 %v4800, %v499
        %v4881 = vmul.f32 %v4801, %v500
        %v4882 = vmul.f32 %v4802, %v501
        %v4883 = vmul.f32 %v4787, %v502
        %v4884 = vmul.f32 %v4788, %v503
        %v4885 = vmul.f32 %v4789, %v504
        %v4886 = vmul.f32 %v4790, %v505
        %v4887 = vmul.f32 %v4791, %v506
        %v4888 = vmul.f32 %v4792, %v507
        %v4889 = vmul.f32 %v4793, %v508
        %v4890 = vmul.f32 %v4794, %v509
        %v4891 = vmul.f32 %v4795, %v510
        %v4892 = vmul.f32 %v4796, %v511
        %v4893 = vmul.f32 %v4797, %v512
        %v4894 = vmul.f32 %v4798, %v513
        %v4895 = vmul.f32 %v4799, %v514
        %v4896 = vmul.f32 %v4800, %v515
        %v4897 = vmul.f32 %v4801, %v516
        %v4898 = vmul.f32 %v4802, %v517
        %v4899 = vmul.f32 %v4787, %v518
        %v4900 = vmul.f32 %v4788, %v519
        %v4901 = vmul.f32 %v4789, %v520
        %v4902 = vmul.f32 %v4790, %v521
        %v4903 = vmul.f32 %v4791, %v522
        %v4904 = vmul.f32 %v4792, %v523
        %v4905 = vmul.f32 %v4793, %v524
        %v4906 = vmul.f32 %v4794, %v525
        %v4907 = vmul.f32 %v4795, %v526
        %v4908 = vmul.f32 %v4796, %v527
        %v4909 = vmul.f32 %v4797, %v528
        %v4910 = vmul.f32 %v4798, %v529
        %v4911 = vmul.f32 %v4799, %v530
        %v4912 = vmul.f32 %v4800, %v531
        %v4913 = vmul.f32 %v4801, %v532
        %v4914 = vmul.f32 %v4802, %v533
        %v4915 = vmul.f32 %v4787, %v534
        %v4916 = vmul.f32 %v4788, %v535
        %v4917 = vmul.f32 %v4789, %v536
        %v4918 = vmul.f32 %v4790, %v537
        %v4919 = vmul.f32 %v4791, %v538
        %v4920 = vmul.f32 %v4792, %v539
        %v4921 = vmul.f32 %v4793, %v540
        %v4922 = vmul.f32 %v4794, %v541
        %v4923 = vmul.f32 %v4795, %v542
        %v4924 = vmul.f32 %v4796, %v543
        %v4925 = vmul.f32 %v4797, %v544
        %v4926 = vmul.f32 %v4798, %v545
        %v4927 = vmul.f32 %v4799, %v546
        %v4928 = vmul.f32 %v4800, %v547
        %v4929 = vmul.f32 %v4801, %v548
        %v4930 = vmul.f32 %v4802, %v549
        %v4931 = vmul.f32 %v4787, %v550
        %v4932 = vmul.f32 %v4788, %v551
        %v4933 = vmul.f32 %v4789, %v552
        %v4934 = vmul.f32 %v4790, %v553
        %v4935 = vmul.f32 %v4791, %v554
        %v4936 = vmul.f32 %v4792, %v555
        %v4937 = vmul.f32 %v4793, %v556
        %v4938 = vmul.f32 %v4794, %v557
        %v4939 = vmul.f32 %v4795, %v558
        %v4940 = vmul.f32 %v4796, %v559
        %v4941 = vmul.f32 %v4797, %v560
        %v4942 = vmul.f32 %v4798, %v561
        %v4943 = vmul.f32 %v4799, %v562
        %v4944 = vmul.f32 %v4800, %v563
        %v4945 = vmul.f32 %v4801, %v564
        %v4946 = vmul.f32 %v4802, %v565
        %v4947 = vadd.f32 %v4770, %v4819
        %v4948 = vadd.f32 %v4770, %v4820
        %v4949 = vadd.f32 %v4770, %v4821
        %v4950 = vadd.f32 %v4770, %v4822
        %v4951 = vadd.f32 %v4770, %v4823
        %v4952 = vadd.f32 %v4770, %v4824
        %v4953 = vadd.f32 %v4770, %v4825
        %v4954 = vadd.f32 %v4770, %v4826
        %v4955 = vadd.f32 %v4770, %v4827
        %v4956 = vadd.f32 %v4770, %v4828
        %v4957 = vadd.f32 %v4770, %v4829
        %v4958 = vadd.f32 %v4770, %v4830
        %v4959 = vadd.f32 %v4770, %v4831
        %v4960 = vadd.f32 %v4770, %v4832
        %v4961 = vadd.f32 %v4770, %v4833
        %v4962 = vadd.f32 %v4770, %v4834
        %v4963 = vadd.f32 %v4770, %v4835
        %v4964 = vadd.f32 %v4770, %v4836
        %v4965 = vadd.f32 %v4770, %v4837
        %v4966 = vadd.f32 %v4770, %v4838
        %v4967 = vadd.f32 %v4770, %v4839
        %v4968 = vadd.f32 %v4770, %v4840
        %v4969 = vadd.f32 %v4770, %v4841
        %v4970 = vadd.f32 %v4770, %v4842
        %v4971 = vadd.f32 %v4770, %v4843
        %v4972 = vadd.f32 %v4770, %v4844
        %v4973 = vadd.f32 %v4770, %v4845
        %v4974 = vadd.f32 %v4770, %v4846
        %v4975 = vadd.f32 %v4770, %v4847
        %v4976 = vadd.f32 %v4770, %v4848
        %v4977 = vadd.f32 %v4770, %v4849
        %v4978 = vadd.f32 %v4770, %v4850
        %v4979 = vadd.f32 %v4770, %v4851
        %v4980 = vadd.f32 %v4770, %v4852
        %v4981 = vadd.f32 %v4770, %v4853
        %v4982 = vadd.f32 %v4770, %v4854
        %v4983 = vadd.f32 %v4770, %v4855
        %v4984 = vadd.f32 %v4770, %v4856
        %v4985 = vadd.f32 %v4770, %v4857
        %v4986 = vadd.f32 %v4770, %v4858
        %v4987 = vadd.f32 %v4770, %v4859
        %v4988 = vadd.f32 %v4770, %v4860
        %v4989 = vadd.f32 %v4770, %v4861
        %v4990 = vadd.f32 %v4770, %v4862
        %v4991 = vadd.f32 %v4770, %v4863
        %v4992 = vadd.f32 %v4770, %v4864
        %v4993 = vadd.f32 %v4770, %v4865
        %v4994 = vadd.f32 %v4770, %v4866
        %v4995 = vadd.f32 %v4770, %v4867
        %v4996 = vadd.f32 %v4770, %v4868
        %v4997 = vadd.f32 %v4770, %v4869
        %v4998 = vadd.f32 %v4770, %v4870
        %v4999 = vadd.f32 %v4770, %v4871
        %v5000 = vadd.f32 %v4770, %v4872
        %v5001 = vadd.f32 %v4770, %v4873
        %v5002 = vadd.f32 %v4770, %v4874
        %v5003 = vadd.f32 %v4770, %v4875
        %v5004 = vadd.f32 %v4770, %v4876
        %v5005 = vadd.f32 %v4770, %v4877
        %v5006 = vadd.f32 %v4770, %v4878
        %v5007 = vadd.f32 %v4770, %v4879
        %v5008 = vadd.f32 %v4770, %v4880
        %v5009 = vadd.f32 %v4770, %v4881
        %v5010 = vadd.f32 %v4770, %v4882
        %v5011 = vadd.f32 %v4770, %v4883
        %v5012 = vadd.f32 %v4770, %v4884
        %v5013 = vadd.f32 %v4770, %v4885
        %v5014 = vadd.f32 %v4770, %v4886
        %v5015 = vadd.f32 %v4770, %v4887
        %v5016 = vadd.f32 %v4770, %v4888
        %v5017 = vadd.f32 %v4770, %v4889
        %v5018 = vadd.f32 %v4770, %v4890
        %v5019 = vadd.f32 %v4770, %v4891
        %v5020 = vadd.f32 %v4770, %v4892
        %v5021 = vadd.f32 %v4770, %v4893
        %v5022 = vadd.f32 %v4770, %v4894
        %v5023 = vadd.f32 %v4770, %v4895
        %v5024 = vadd.f32 %v4770, %v4896
        %v5025 = vadd.f32 %v4770, %v4897
        %v5026 = vadd.f32 %v4770, %v4898
        %v5027 = vadd.f32 %v4770, %v4899
        %v5028 = vadd.f32 %v4770, %v4900
        %v5029 = vadd.f32 %v4770, %v4901
        %v5030 = vadd.f32 %v4770, %v4902
        %v5031 = vadd.f32 %v4770, %v4903
        %v5032 = vadd.f32 %v4770, %v4904
        %v5033 = vadd.f32 %v4770, %v4905
        %v5034 = vadd.f32 %v4770, %v4906
        %v5035 = vadd.f32 %v4770, %v4907
        %v5036 = vadd.f32 %v4770, %v4908
        %v5037 = vadd.f32 %v4770, %v4909
        %v5038 = vadd.f32 %v4770, %v4910
        %v5039 = vadd.f32 %v4770, %v4911
        %v5040 = vadd.f32 %v4770, %v4912
        %v5041 = vadd.f32 %v4770, %v4913
        %v5042 = vadd.f32 %v4770, %v4914
        %v5043 = vadd.f32 %v4770, %v4915
        %v5044 = vadd.f32 %v4770, %v4916
        %v5045 = vadd.f32 %v4770, %v4917
        %v5046 = vadd.f32 %v4770, %v4918
        %v5047 = vadd.f32 %v4770, %v4919
        %v5048 = vadd.f32 %v4770, %v4920
        %v5049 = vadd.f32 %v4770, %v4921
        %v5050 = vadd.f32 %v4770, %v4922
        %v5051 = vadd.f32 %v4770, %v4923
        %v5052 = vadd.f32 %v4770, %v4924
        %v5053 = vadd.f32 %v4770, %v4925
        %v5054 = vadd.f32 %v4770, %v4926
        %v5055 = vadd.f32 %v4770, %v4927
        %v5056 = vadd.f32 %v4770, %v4928
        %v5057 = vadd.f32 %v4770, %v4929
        %v5058 = vadd.f32 %v4770, %v4930
        %v5059 = vadd.f32 %v4770, %v4931
        %v5060 = vadd.f32 %v4770, %v4932
        %v5061 = vadd.f32 %v4770, %v4933
        %v5062 = vadd.f32 %v4770, %v4934
        %v5063 = vadd.f32 %v4770, %v4935
        %v5064 = vadd.f32 %v4770, %v4936
        %v5065 = vadd.f32 %v4770, %v4937
        %v5066 = vadd.f32 %v4770, %v4938
        %v5067 = vadd.f32 %v4770, %v4939
        %v5068 = vadd.f32 %v4770, %v4940
        %v5069 = vadd.f32 %v4770, %v4941
        %v5070 = vadd.f32 %v4770, %v4942
        %v5071 = vadd.f32 %v4770, %v4943
        %v5072 = vadd.f32 %v4770, %v4944
        %v5073 = vadd.f32 %v4770, %v4945
        %v5074 = vadd.f32 %v4770, %v4946
        %v5075 = vtanh.pop %v4947
        %v5076 = vtanh.pop %v4948
        %v5077 = vtanh.pop %v4949
        %v5078 = vtanh.pop %v4950
        %v5079 = vtanh.pop %v4951
        %v5080 = vtanh.pop %v4952
        %v5081 = vtanh.pop %v4953
        %v5082 = vtanh.pop %v4954
        %v5083 = vtanh.pop %v4955
        %v5084 = vtanh.pop %v4956
        %v5085 = vtanh.pop %v4957
        %v5086 = vtanh.pop %v4958
        %v5087 = vtanh.pop %v4959
        %v5088 = vtanh.pop %v4960
        %v5089 = vtanh.pop %v4961
        %v5090 = vtanh.pop %v4962
        %v5091 = vtanh.pop %v4963
        %v5092 = vtanh.pop %v4964
        %v5093 = vtanh.pop %v4965
        %v5094 = vtanh.pop %v4966
        %v5095 = vtanh.pop %v4967
        %v5096 = vtanh.pop %v4968
        %v5097 = vtanh.pop %v4969
        %v5098 = vtanh.pop %v4970
        %v5099 = vtanh.pop %v4971
        %v5100 = vtanh.pop %v4972
        %v5101 = vtanh.pop %v4973
        %v5102 = vtanh.pop %v4974
        %v5103 = vtanh.pop %v4975
        %v5104 = vtanh.pop %v4976
        %v5105 = vtanh.pop %v4977
        %v5106 = vtanh.pop %v4978
        %v5107 = vtanh.pop %v4979
        %v5108 = vtanh.pop %v4980
        %v5109 = vtanh.pop %v4981
        %v5110 = vtanh.pop %v4982
        %v5111 = vtanh.pop %v4983
        %v5112 = vtanh.pop %v4984
        %v5113 = vtanh.pop %v4985
        %v5114 = vtanh.pop %v4986
        %v5115 = vtanh.pop %v4987
        %v5116 = vtanh.pop %v4988
        %v5117 = vtanh.pop %v4989
        %v5118 = vtanh.pop %v4990
        %v5119 = vtanh.pop %v4991
        %v5120 = vtanh.pop %v4992
        %v5121 = vtanh.pop %v4993
        %v5122 = vtanh.pop %v4994
        %v5123 = vtanh.pop %v4995
        %v5124 = vtanh.pop %v4996
        %v5125 = vtanh.pop %v4997
        %v5126 = vtanh.pop %v4998
        %v5127 = vtanh.pop %v4999
        %v5128 = vtanh.pop %v5000
        %v5129 = vtanh.pop %v5001
        %v5130 = vtanh.pop %v5002
        %v5131 = vtanh.pop %v5003
        %v5132 = vtanh.pop %v5004
        %v5133 = vtanh.pop %v5005
        %v5134 = vtanh.pop %v5006
        %v5135 = vtanh.pop %v5007
        %v5136 = vtanh.pop %v5008
        %v5137 = vtanh.pop %v5009
        %v5138 = vtanh.pop %v5010
        %v5139 = vtanh.pop %v5011
        %v5140 = vtanh.pop %v5012
        %v5141 = vtanh.pop %v5013
        %v5142 = vtanh.pop %v5014
        %v5143 = vtanh.pop %v5015
        %v5144 = vtanh.pop %v5016
        %v5145 = vtanh.pop %v5017
        %v5146 = vtanh.pop %v5018
        %v5147 = vtanh.pop %v5019
        %v5148 = vtanh.pop %v5020
        %v5149 = vtanh.pop %v5021
        %v5150 = vtanh.pop %v5022
        %v5151 = vtanh.pop %v5023
        %v5152 = vtanh.pop %v5024
        %v5153 = vtanh.pop %v5025
        %v5154 = vtanh.pop %v5026
        %v5155 = vtanh.pop %v5027
        %v5156 = vtanh.pop %v5028
        %v5157 = vtanh.pop %v5029
        %v5158 = vtanh.pop %v5030
        %v5159 = vtanh.pop %v5031
        %v5160 = vtanh.pop %v5032
        %v5161 = vtanh.pop %v5033
        %v5162 = vtanh.pop %v5034
        %v5163 = vtanh.pop %v5035
        %v5164 = vtanh.pop %v5036
        %v5165 = vtanh.pop %v5037
        %v5166 = vtanh.pop %v5038
        %v5167 = vtanh.pop %v5039
        %v5168 = vtanh.pop %v5040
        %v5169 = vtanh.pop %v5041
        %v5170 = vtanh.pop %v5042
        %v5171 = vtanh.pop %v5043
        %v5172 = vtanh.pop %v5044
        %v5173 = vtanh.pop %v5045
        %v5174 = vtanh.pop %v5046
        %v5175 = vtanh.pop %v5047
        %v5176 = vtanh.pop %v5048
        %v5177 = vtanh.pop %v5049
        %v5178 = vtanh.pop %v5050
        %v5179 = vtanh.pop %v5051
        %v5180 = vtanh.pop %v5052
        %v5181 = vtanh.pop %v5053
        %v5182 = vtanh.pop %v5054
        %v5183 = vtanh.pop %v5055
        %v5184 = vtanh.pop %v5056
        %v5185 = vtanh.pop %v5057
        %v5186 = vtanh.pop %v5058
        %v5187 = vtanh.pop %v5059
        %v5188 = vtanh.pop %v5060
        %v5189 = vtanh.pop %v5061
        %v5190 = vtanh.pop %v5062
        %v5191 = vtanh.pop %v5063
        %v5192 = vtanh.pop %v5064
        %v5193 = vtanh.pop %v5065
        %v5194 = vtanh.pop %v5066
        %v5195 = vtanh.pop %v5067
        %v5196 = vtanh.pop %v5068
        %v5197 = vtanh.pop %v5069
        %v5198 = vtanh.pop %v5070
        %v5199 = vtanh.pop %v5071
        %v5200 = vtanh.pop %v5072
        %v5201 = vtanh.pop %v5073
        %v5202 = vtanh.pop %v5074
        %v5205 = vrot.slane %v4690, 1
        %v5206 = vrot.slane %v4690, 2
        %v5207 = vrot.slane %v4690, 3
        %v5208 = vrot.slane %v4690, 4
        %v5209 = vrot.slane %v4690, 5
        %v5210 = vrot.slane %v4690, 6
        %v5211 = vrot.slane %v4690, 7
        %v5212 = vrot.slane %v4691, 1
        %v5213 = vrot.slane %v4691, 2
        %v5214 = vrot.slane %v4691, 3
        %v5215 = vrot.slane %v4691, 4
        %v5216 = vrot.slane %v4691, 5
        %v5217 = vrot.slane %v4691, 6
        %v5218 = vrot.slane %v4691, 7
        %v5219 = vperm.slane %v4690, 0
        %v5220 = vperm.slane %v5205, 0
        %v5221 = vperm.slane %v5206, 0
        %v5222 = vperm.slane %v5207, 0
        %v5223 = vperm.slane %v5208, 0
        %v5224 = vperm.slane %v5209, 0
        %v5225 = vperm.slane %v5210, 0
        %v5226 = vperm.slane %v5211, 0
        %v5227 = vperm.slane %v4691, 0
        %v5228 = vperm.slane %v5212, 0
        %v5229 = vperm.slane %v5213, 0
        %v5230 = vperm.slane %v5214, 0
        %v5231 = vperm.slane %v5215, 0
        %v5232 = vperm.slane %v5216, 0
        %v5233 = vperm.slane %v5217, 0
        %v5234 = vperm.slane %v5218, 0
        %v5251 = vmul.f32 %v5219, %v5075
        %v5252 = vmul.f32 %v5220, %v5076
        %v5253 = vmul.f32 %v5221, %v5077
        %v5254 = vmul.f32 %v5222, %v5078
        %v5255 = vmul.f32 %v5223, %v5079
        %v5256 = vmul.f32 %v5224, %v5080
        %v5257 = vmul.f32 %v5225, %v5081
        %v5258 = vmul.f32 %v5226, %v5082
        %v5259 = vmul.f32 %v5227, %v5083
        %v5260 = vmul.f32 %v5228, %v5084
        %v5261 = vmul.f32 %v5229, %v5085
        %v5262 = vmul.f32 %v5230, %v5086
        %v5263 = vmul.f32 %v5231, %v5087
        %v5264 = vmul.f32 %v5232, %v5088
        %v5265 = vmul.f32 %v5233, %v5089
        %v5266 = vmul.f32 %v5234, %v5090
        %v5267 = vmul.f32 %v5219, %v5091
        %v5268 = vmul.f32 %v5220, %v5092
        %v5269 = vmul.f32 %v5221, %v5093
        %v5270 = vmul.f32 %v5222, %v5094
        %v5271 = vmul.f32 %v5223, %v5095
        %v5272 = vmul.f32 %v5224, %v5096
        %v5273 = vmul.f32 %v5225, %v5097
        %v5274 = vmul.f32 %v5226, %v5098
        %v5275 = vmul.f32 %v5227, %v5099
        %v5276 = vmul.f32 %v5228, %v5100
        %v5277 = vmul.f32 %v5229, %v5101
        %v5278 = vmul.f32 %v5230, %v5102
        %v5279 = vmul.f32 %v5231, %v5103
        %v5280 = vmul.f32 %v5232, %v5104
        %v5281 = vmul.f32 %v5233, %v5105
        %v5282 = vmul.f32 %v5234, %v5106
        %v5283 = vmul.f32 %v5219, %v5107
        %v5284 = vmul.f32 %v5220, %v5108
        %v5285 = vmul.f32 %v5221, %v5109
        %v5286 = vmul.f32 %v5222, %v5110
        %v5287 = vmul.f32 %v5223, %v5111
        %v5288 = vmul.f32 %v5224, %v5112
        %v5289 = vmul.f32 %v5225, %v5113
        %v5290 = vmul.f32 %v5226, %v5114
        %v5291 = vmul.f32 %v5227, %v5115
        %v5292 = vmul.f32 %v5228, %v5116
        %v5293 = vmul.f32 %v5229, %v5117
        %v5294 = vmul.f32 %v5230, %v5118
        %v5295 = vmul.f32 %v5231, %v5119
        %v5296 = vmul.f32 %v5232, %v5120
        %v5297 = vmul.f32 %v5233, %v5121
        %v5298 = vmul.f32 %v5234, %v5122
        %v5299 = vmul.f32 %v5219, %v5123
        %v5300 = vmul.f32 %v5220, %v5124
        %v5301 = vmul.f32 %v5221, %v5125
        %v5302 = vmul.f32 %v5222, %v5126
        %v5303 = vmul.f32 %v5223, %v5127
        %v5304 = vmul.f32 %v5224, %v5128
        %v5305 = vmul.f32 %v5225, %v5129
        %v5306 = vmul.f32 %v5226, %v5130
        %v5307 = vmul.f32 %v5227, %v5131
        %v5308 = vmul.f32 %v5228, %v5132
        %v5309 = vmul.f32 %v5229, %v5133
        %v5310 = vmul.f32 %v5230, %v5134
        %v5311 = vmul.f32 %v5231, %v5135
        %v5312 = vmul.f32 %v5232, %v5136
        %v5313 = vmul.f32 %v5233, %v5137
        %v5314 = vmul.f32 %v5234, %v5138
        %v5315 = vmul.f32 %v5219, %v5139
        %v5316 = vmul.f32 %v5220, %v5140
        %v5317 = vmul.f32 %v5221, %v5141
        %v5318 = vmul.f32 %v5222, %v5142
        %v5319 = vmul.f32 %v5223, %v5143
        %v5320 = vmul.f32 %v5224, %v5144
        %v5321 = vmul.f32 %v5225, %v5145
        %v5322 = vmul.f32 %v5226, %v5146
        %v5323 = vmul.f32 %v5227, %v5147
        %v5324 = vmul.f32 %v5228, %v5148
        %v5325 = vmul.f32 %v5229, %v5149
        %v5326 = vmul.f32 %v5230, %v5150
        %v5327 = vmul.f32 %v5231, %v5151
        %v5328 = vmul.f32 %v5232, %v5152
        %v5329 = vmul.f32 %v5233, %v5153
        %v5330 = vmul.f32 %v5234, %v5154
        %v5331 = vmul.f32 %v5219, %v5155
        %v5332 = vmul.f32 %v5220, %v5156
        %v5333 = vmul.f32 %v5221, %v5157
        %v5334 = vmul.f32 %v5222, %v5158
        %v5335 = vmul.f32 %v5223, %v5159
        %v5336 = vmul.f32 %v5224, %v5160
        %v5337 = vmul.f32 %v5225, %v5161
        %v5338 = vmul.f32 %v5226, %v5162
        %v5339 = vmul.f32 %v5227, %v5163
        %v5340 = vmul.f32 %v5228, %v5164
        %v5341 = vmul.f32 %v5229, %v5165
        %v5342 = vmul.f32 %v5230, %v5166
        %v5343 = vmul.f32 %v5231, %v5167
        %v5344 = vmul.f32 %v5232, %v5168
        %v5345 = vmul.f32 %v5233, %v5169
        %v5346 = vmul.f32 %v5234, %v5170
        %v5347 = vmul.f32 %v5219, %v5171
        %v5348 = vmul.f32 %v5220, %v5172
        %v5349 = vmul.f32 %v5221, %v5173
        %v5350 = vmul.f32 %v5222, %v5174
        %v5351 = vmul.f32 %v5223, %v5175
        %v5352 = vmul.f32 %v5224, %v5176
        %v5353 = vmul.f32 %v5225, %v5177
        %v5354 = vmul.f32 %v5226, %v5178
        %v5355 = vmul.f32 %v5227, %v5179
        %v5356 = vmul.f32 %v5228, %v5180
        %v5357 = vmul.f32 %v5229, %v5181
        %v5358 = vmul.f32 %v5230, %v5182
        %v5359 = vmul.f32 %v5231, %v5183
        %v5360 = vmul.f32 %v5232, %v5184
        %v5361 = vmul.f32 %v5233, %v5185
        %v5362 = vmul.f32 %v5234, %v5186
        %v5363 = vmul.f32 %v5219, %v5187
        %v5364 = vmul.f32 %v5220, %v5188
        %v5365 = vmul.f32 %v5221, %v5189
        %v5366 = vmul.f32 %v5222, %v5190
        %v5367 = vmul.f32 %v5223, %v5191
        %v5368 = vmul.f32 %v5224, %v5192
        %v5369 = vmul.f32 %v5225, %v5193
        %v5370 = vmul.f32 %v5226, %v5194
        %v5371 = vmul.f32 %v5227, %v5195
        %v5372 = vmul.f32 %v5228, %v5196
        %v5373 = vmul.f32 %v5229, %v5197
        %v5374 = vmul.f32 %v5230, %v5198
        %v5375 = vmul.f32 %v5231, %v5199
        %v5376 = vmul.f32 %v5232, %v5200
        %v5377 = vmul.f32 %v5233, %v5201
        %v5378 = vmul.f32 %v5234, %v5202
        %v5379 = vadd.f32 %v4555, %v5251
        %v5380 = vadd.f32 %v4556, %v5252
        %v5381 = vadd.f32 %v4557, %v5253
        %v5382 = vadd.f32 %v4558, %v5254
        %v5383 = vadd.f32 %v4559, %v5255
        %v5384 = vadd.f32 %v4560, %v5256
        %v5385 = vadd.f32 %v4561, %v5257
        %v5386 = vadd.f32 %v4562, %v5258
        %v5387 = vadd.f32 %v4563, %v5259
        %v5388 = vadd.f32 %v4564, %v5260
        %v5389 = vadd.f32 %v4565, %v5261
        %v5390 = vadd.f32 %v4566, %v5262
        %v5391 = vadd.f32 %v4567, %v5263
        %v5392 = vadd.f32 %v4568, %v5264
        %v5393 = vadd.f32 %v4569, %v5265
        %v5394 = vadd.f32 %v4570, %v5266
        %v5395 = vadd.f32 %v4571, %v5267
        %v5396 = vadd.f32 %v4572, %v5268
        %v5397 = vadd.f32 %v4573, %v5269
        %v5398 = vadd.f32 %v4574, %v5270
        %v5399 = vadd.f32 %v4575, %v5271
        %v5400 = vadd.f32 %v4576, %v5272
        %v5401 = vadd.f32 %v4577, %v5273
        %v5402 = vadd.f32 %v4578, %v5274
        %v5403 = vadd.f32 %v4579, %v5275
        %v5404 = vadd.f32 %v4580, %v5276
        %v5405 = vadd.f32 %v4581, %v5277
        %v5406 = vadd.f32 %v4582, %v5278
        %v5407 = vadd.f32 %v4583, %v5279
        %v5408 = vadd.f32 %v4584, %v5280
        %v5409 = vadd.f32 %v4585, %v5281
        %v5410 = vadd.f32 %v4586, %v5282
        %v5411 = vadd.f32 %v4587, %v5283
        %v5412 = vadd.f32 %v4588, %v5284
        %v5413 = vadd.f32 %v4589, %v5285
        %v5414 = vadd.f32 %v4590, %v5286
        %v5415 = vadd.f32 %v4591, %v5287
        %v5416 = vadd.f32 %v4592, %v5288
        %v5417 = vadd.f32 %v4593, %v5289
        %v5418 = vadd.f32 %v4594, %v5290
        %v5419 = vadd.f32 %v4595, %v5291
        %v5420 = vadd.f32 %v4596, %v5292
        %v5421 = vadd.f32 %v4597, %v5293
        %v5422 = vadd.f32 %v4598, %v5294
        %v5423 = vadd.f32 %v4599, %v5295
        %v5424 = vadd.f32 %v4600, %v5296
        %v5425 = vadd.f32 %v4601, %v5297
        %v5426 = vadd.f32 %v4602, %v5298
        %v5427 = vadd.f32 %v4603, %v5299
        %v5428 = vadd.f32 %v4604, %v5300
        %v5429 = vadd.f32 %v4605, %v5301
        %v5430 = vadd.f32 %v4606, %v5302
        %v5431 = vadd.f32 %v4607, %v5303
        %v5432 = vadd.f32 %v4608, %v5304
        %v5433 = vadd.f32 %v4609, %v5305
        %v5434 = vadd.f32 %v4610, %v5306
        %v5435 = vadd.f32 %v4611, %v5307
        %v5436 = vadd.f32 %v4612, %v5308
        %v5437 = vadd.f32 %v4613, %v5309
        %v5438 = vadd.f32 %v4614, %v5310
        %v5439 = vadd.f32 %v4615, %v5311
        %v5440 = vadd.f32 %v4616, %v5312
        %v5441 = vadd.f32 %v4617, %v5313
        %v5442 = vadd.f32 %v4618, %v5314
        %v5443 = vadd.f32 %v4619, %v5315
        %v5444 = vadd.f32 %v4620, %v5316
        %v5445 = vadd.f32 %v4621, %v5317
        %v5446 = vadd.f32 %v4622, %v5318
        %v5447 = vadd.f32 %v4623, %v5319
        %v5448 = vadd.f32 %v4624, %v5320
        %v5449 = vadd.f32 %v4625, %v5321
        %v5450 = vadd.f32 %v4626, %v5322
        %v5451 = vadd.f32 %v4627, %v5323
        %v5452 = vadd.f32 %v4628, %v5324
        %v5453 = vadd.f32 %v4629, %v5325
        %v5454 = vadd.f32 %v4630, %v5326
        %v5455 = vadd.f32 %v4631, %v5327
        %v5456 = vadd.f32 %v4632, %v5328
        %v5457 = vadd.f32 %v4633, %v5329
        %v5458 = vadd.f32 %v4634, %v5330
        %v5459 = vadd.f32 %v4635, %v5331
        %v5460 = vadd.f32 %v4636, %v5332
        %v5461 = vadd.f32 %v4637, %v5333
        %v5462 = vadd.f32 %v4638, %v5334
        %v5463 = vadd.f32 %v4639, %v5335
        %v5464 = vadd.f32 %v4640, %v5336
        %v5465 = vadd.f32 %v4641, %v5337
        %v5466 = vadd.f32 %v4642, %v5338
        %v5467 = vadd.f32 %v4643, %v5339
        %v5468 = vadd.f32 %v4644, %v5340
        %v5469 = vadd.f32 %v4645, %v5341
        %v5470 = vadd.f32 %v4646, %v5342
        %v5471 = vadd.f32 %v4647, %v5343
        %v5472 = vadd.f32 %v4648, %v5344
        %v5473 = vadd.f32 %v4649, %v5345
        %v5474 = vadd.f32 %v4650, %v5346
        %v5475 = vadd.f32 %v4651, %v5347
        %v5476 = vadd.f32 %v4652, %v5348
        %v5477 = vadd.f32 %v4653, %v5349
        %v5478 = vadd.f32 %v4654, %v5350
        %v5479 = vadd.f32 %v4655, %v5351
        %v5480 = vadd.f32 %v4656, %v5352
        %v5481 = vadd.f32 %v4657, %v5353
        %v5482 = vadd.f32 %v4658, %v5354
        %v5483 = vadd.f32 %v4659, %v5355
        %v5484 = vadd.f32 %v4660, %v5356
        %v5485 = vadd.f32 %v4661, %v5357
        %v5486 = vadd.f32 %v4662, %v5358
        %v5487 = vadd.f32 %v4663, %v5359
        %v5488 = vadd.f32 %v4664, %v5360
        %v5489 = vadd.f32 %v4665, %v5361
        %v5490 = vadd.f32 %v4666, %v5362
        %v5491 = vadd.f32 %v4667, %v5363
        %v5492 = vadd.f32 %v4668, %v5364
        %v5493 = vadd.f32 %v4669, %v5365
        %v5494 = vadd.f32 %v4670, %v5366
        %v5495 = vadd.f32 %v4671, %v5367
        %v5496 = vadd.f32 %v4672, %v5368
        %v5497 = vadd.f32 %v4673, %v5369
        %v5498 = vadd.f32 %v4674, %v5370
        %v5499 = vadd.f32 %v4675, %v5371
        %v5500 = vadd.f32 %v4676, %v5372
        %v5501 = vadd.f32 %v4677, %v5373
        %v5502 = vadd.f32 %v4678, %v5374
        %v5503 = vadd.f32 %v4679, %v5375
        %v5504 = vadd.f32 %v4680, %v5376
        %v5505 = vadd.f32 %v4681, %v5377
        %v5506 = vadd.f32 %v4682, %v5378
        %s5507 = scalar_lea.vmem [#allocation7], 96
        %v5508 = vld [vmem:[%s5507] sm:$0xff]
        %v5509 = vld [vmem:[%s5507 + $0x8] sm:$0xff]
        %s5510 = scalar_lea.vmem [#allocation8], 96
        %v5511 = vld [vmem:[%s5510] sm:$0xff]
        %v5512 = vld [vmem:[%s5510 + $0x8] sm:$0xff]
        %s5513 = scalar_lea.vmem [#allocation10], 96
        %v5514 = vld [vmem:[%s5513] sm:$0xff]
        %v5515 = vld [vmem:[%s5513 + $0x8] sm:$0xff]
        %v5518 = vrot.slane %v5508, 1
        %v5519 = vrot.slane %v5508, 2
        %v5520 = vrot.slane %v5508, 3
        %v5521 = vrot.slane %v5508, 4
        %v5522 = vrot.slane %v5508, 5
        %v5523 = vrot.slane %v5508, 6
        %v5524 = vrot.slane %v5508, 7
        %v5525 = vrot.slane %v5509, 1
        %v5526 = vrot.slane %v5509, 2
        %v5527 = vrot.slane %v5509, 3
        %v5528 = vrot.slane %v5509, 4
        %v5529 = vrot.slane %v5509, 5
        %v5530 = vrot.slane %v5509, 6
        %v5531 = vrot.slane %v5509, 7
        %v5532 = vperm.slane %v5508, 0
        %v5533 = vperm.slane %v5518, 0
        %v5534 = vperm.slane %v5519, 0
        %v5535 = vperm.slane %v5520, 0
        %v5536 = vperm.slane %v5521, 0
        %v5537 = vperm.slane %v5522, 0
        %v5538 = vperm.slane %v5523, 0
        %v5539 = vperm.slane %v5524, 0
        %v5540 = vperm.slane %v5509, 0
        %v5541 = vperm.slane %v5525, 0
        %v5542 = vperm.slane %v5526, 0
        %v5543 = vperm.slane %v5527, 0
        %v5544 = vperm.slane %v5528, 0
        %v5545 = vperm.slane %v5529, 0
        %v5546 = vperm.slane %v5530, 0
        %v5547 = vperm.slane %v5531, 0
        %v5564 = vmul.f32 %v5532, %v422
        %v5565 = vmul.f32 %v5533, %v423
        %v5566 = vmul.f32 %v5534, %v424
        %v5567 = vmul.f32 %v5535, %v425
        %v5568 = vmul.f32 %v5536, %v426
        %v5569 = vmul.f32 %v5537, %v427
        %v5570 = vmul.f32 %v5538, %v428
        %v5571 = vmul.f32 %v5539, %v429
        %v5572 = vmul.f32 %v5540, %v430
        %v5573 = vmul.f32 %v5541, %v431
        %v5574 = vmul.f32 %v5542, %v432
        %v5575 = vmul.f32 %v5543, %v433
        %v5576 = vmul.f32 %v5544, %v434
        %v5577 = vmul.f32 %v5545, %v435
        %v5578 = vmul.f32 %v5546, %v436
        %v5579 = vmul.f32 %v5547, %v437
        %v5580 = vadd.f32 %v5564, %v5565
        %v5581 = vadd.f32 %v5580, %v5566
        %v5582 = vadd.f32 %v5581, %v5567
        %v5583 = vadd.f32 %v5582, %v5568
        %v5584 = vadd.f32 %v5583, %v5569
        %v5585 = vadd.f32 %v5584, %v5570
        %v5586 = vadd.f32 %v5585, %v5571
        %v5587 = vadd.f32 %v5586, %v5572
        %v5588 = vadd.f32 %v5587, %v5573
        %v5589 = vadd.f32 %v5588, %v5574
        %v5590 = vadd.f32 %v5589, %v5575
        %v5591 = vadd.f32 %v5590, %v5576
        %v5592 = vadd.f32 %v5591, %v5577
        %v5593 = vadd.f32 %v5592, %v5578
        %v5594 = vadd.f32 %v5593, %v5579
        %v5597 = vrot.slane %v5511, 1
        %v5598 = vrot.slane %v5511, 2
        %v5599 = vrot.slane %v5511, 3
        %v5600 = vrot.slane %v5511, 4
        %v5601 = vrot.slane %v5511, 5
        %v5602 = vrot.slane %v5511, 6
        %v5603 = vrot.slane %v5511, 7
        %v5604 = vrot.slane %v5512, 1
        %v5605 = vrot.slane %v5512, 2
        %v5606 = vrot.slane %v5512, 3
        %v5607 = vrot.slane %v5512, 4
        %v5608 = vrot.slane %v5512, 5
        %v5609 = vrot.slane %v5512, 6
        %v5610 = vrot.slane %v5512, 7
        %v5611 = vperm.slane %v5511, 0
        %v5612 = vperm.slane %v5597, 0
        %v5613 = vperm.slane %v5598, 0
        %v5614 = vperm.slane %v5599, 0
        %v5615 = vperm.slane %v5600, 0
        %v5616 = vperm.slane %v5601, 0
        %v5617 = vperm.slane %v5602, 0
        %v5618 = vperm.slane %v5603, 0
        %v5619 = vperm.slane %v5512, 0
        %v5620 = vperm.slane %v5604, 0
        %v5621 = vperm.slane %v5605, 0
        %v5622 = vperm.slane %v5606, 0
        %v5623 = vperm.slane %v5607, 0
        %v5624 = vperm.slane %v5608, 0
        %v5625 = vperm.slane %v5609, 0
        %v5626 = vperm.slane %v5610, 0
        %v5643 = vmul.f32 %v5611, %v438
        %v5644 = vmul.f32 %v5612, %v439
        %v5645 = vmul.f32 %v5613, %v440
        %v5646 = vmul.f32 %v5614, %v441
        %v5647 = vmul.f32 %v5615, %v442
        %v5648 = vmul.f32 %v5616, %v443
        %v5649 = vmul.f32 %v5617, %v444
        %v5650 = vmul.f32 %v5618, %v445
        %v5651 = vmul.f32 %v5619, %v446
        %v5652 = vmul.f32 %v5620, %v447
        %v5653 = vmul.f32 %v5621, %v448
        %v5654 = vmul.f32 %v5622, %v449
        %v5655 = vmul.f32 %v5623, %v450
        %v5656 = vmul.f32 %v5624, %v451
        %v5657 = vmul.f32 %v5625, %v452
        %v5658 = vmul.f32 %v5626, %v453
        %v5659 = vmul.f32 %v5611, %v454
        %v5660 = vmul.f32 %v5612, %v455
        %v5661 = vmul.f32 %v5613, %v456
        %v5662 = vmul.f32 %v5614, %v457
        %v5663 = vmul.f32 %v5615, %v458
        %v5664 = vmul.f32 %v5616, %v459
        %v5665 = vmul.f32 %v5617, %v460
        %v5666 = vmul.f32 %v5618, %v461
        %v5667 = vmul.f32 %v5619, %v462
        %v5668 = vmul.f32 %v5620, %v463
        %v5669 = vmul.f32 %v5621, %v464
        %v5670 = vmul.f32 %v5622, %v465
        %v5671 = vmul.f32 %v5623, %v466
        %v5672 = vmul.f32 %v5624, %v467
        %v5673 = vmul.f32 %v5625, %v468
        %v5674 = vmul.f32 %v5626, %v469
        %v5675 = vmul.f32 %v5611, %v470
        %v5676 = vmul.f32 %v5612, %v471
        %v5677 = vmul.f32 %v5613, %v472
        %v5678 = vmul.f32 %v5614, %v473
        %v5679 = vmul.f32 %v5615, %v474
        %v5680 = vmul.f32 %v5616, %v475
        %v5681 = vmul.f32 %v5617, %v476
        %v5682 = vmul.f32 %v5618, %v477
        %v5683 = vmul.f32 %v5619, %v478
        %v5684 = vmul.f32 %v5620, %v479
        %v5685 = vmul.f32 %v5621, %v480
        %v5686 = vmul.f32 %v5622, %v481
        %v5687 = vmul.f32 %v5623, %v482
        %v5688 = vmul.f32 %v5624, %v483
        %v5689 = vmul.f32 %v5625, %v484
        %v5690 = vmul.f32 %v5626, %v485
        %v5691 = vmul.f32 %v5611, %v486
        %v5692 = vmul.f32 %v5612, %v487
        %v5693 = vmul.f32 %v5613, %v488
        %v5694 = vmul.f32 %v5614, %v489
        %v5695 = vmul.f32 %v5615, %v490
        %v5696 = vmul.f32 %v5616, %v491
        %v5697 = vmul.f32 %v5617, %v492
        %v5698 = vmul.f32 %v5618, %v493
        %v5699 = vmul.f32 %v5619, %v494
        %v5700 = vmul.f32 %v5620, %v495
        %v5701 = vmul.f32 %v5621, %v496
        %v5702 = vmul.f32 %v5622, %v497
        %v5703 = vmul.f32 %v5623, %v498
        %v5704 = vmul.f32 %v5624, %v499
        %v5705 = vmul.f32 %v5625, %v500
        %v5706 = vmul.f32 %v5626, %v501
        %v5707 = vmul.f32 %v5611, %v502
        %v5708 = vmul.f32 %v5612, %v503
        %v5709 = vmul.f32 %v5613, %v504
        %v5710 = vmul.f32 %v5614, %v505
        %v5711 = vmul.f32 %v5615, %v506
        %v5712 = vmul.f32 %v5616, %v507
        %v5713 = vmul.f32 %v5617, %v508
        %v5714 = vmul.f32 %v5618, %v509
        %v5715 = vmul.f32 %v5619, %v510
        %v5716 = vmul.f32 %v5620, %v511
        %v5717 = vmul.f32 %v5621, %v512
        %v5718 = vmul.f32 %v5622, %v513
        %v5719 = vmul.f32 %v5623, %v514
        %v5720 = vmul.f32 %v5624, %v515
        %v5721 = vmul.f32 %v5625, %v516
        %v5722 = vmul.f32 %v5626, %v517
        %v5723 = vmul.f32 %v5611, %v518
        %v5724 = vmul.f32 %v5612, %v519
        %v5725 = vmul.f32 %v5613, %v520
        %v5726 = vmul.f32 %v5614, %v521
        %v5727 = vmul.f32 %v5615, %v522
        %v5728 = vmul.f32 %v5616, %v523
        %v5729 = vmul.f32 %v5617, %v524
        %v5730 = vmul.f32 %v5618, %v525
        %v5731 = vmul.f32 %v5619, %v526
        %v5732 = vmul.f32 %v5620, %v527
        %v5733 = vmul.f32 %v5621, %v528
        %v5734 = vmul.f32 %v5622, %v529
        %v5735 = vmul.f32 %v5623, %v530
        %v5736 = vmul.f32 %v5624, %v531
        %v5737 = vmul.f32 %v5625, %v532
        %v5738 = vmul.f32 %v5626, %v533
        %v5739 = vmul.f32 %v5611, %v534
        %v5740 = vmul.f32 %v5612, %v535
        %v5741 = vmul.f32 %v5613, %v536
        %v5742 = vmul.f32 %v5614, %v537
        %v5743 = vmul.f32 %v5615, %v538
        %v5744 = vmul.f32 %v5616, %v539
        %v5745 = vmul.f32 %v5617, %v540
        %v5746 = vmul.f32 %v5618, %v541
        %v5747 = vmul.f32 %v5619, %v542
        %v5748 = vmul.f32 %v5620, %v543
        %v5749 = vmul.f32 %v5621, %v544
        %v5750 = vmul.f32 %v5622, %v545
        %v5751 = vmul.f32 %v5623, %v546
        %v5752 = vmul.f32 %v5624, %v547
        %v5753 = vmul.f32 %v5625, %v548
        %v5754 = vmul.f32 %v5626, %v549
        %v5755 = vmul.f32 %v5611, %v550
        %v5756 = vmul.f32 %v5612, %v551
        %v5757 = vmul.f32 %v5613, %v552
        %v5758 = vmul.f32 %v5614, %v553
        %v5759 = vmul.f32 %v5615, %v554
        %v5760 = vmul.f32 %v5616, %v555
        %v5761 = vmul.f32 %v5617, %v556
        %v5762 = vmul.f32 %v5618, %v557
        %v5763 = vmul.f32 %v5619, %v558
        %v5764 = vmul.f32 %v5620, %v559
        %v5765 = vmul.f32 %v5621, %v560
        %v5766 = vmul.f32 %v5622, %v561
        %v5767 = vmul.f32 %v5623, %v562
        %v5768 = vmul.f32 %v5624, %v563
        %v5769 = vmul.f32 %v5625, %v564
        %v5770 = vmul.f32 %v5626, %v565
        %v5771 = vadd.f32 %v5594, %v5643
        %v5772 = vadd.f32 %v5594, %v5644
        %v5773 = vadd.f32 %v5594, %v5645
        %v5774 = vadd.f32 %v5594, %v5646
        %v5775 = vadd.f32 %v5594, %v5647
        %v5776 = vadd.f32 %v5594, %v5648
        %v5777 = vadd.f32 %v5594, %v5649
        %v5778 = vadd.f32 %v5594, %v5650
        %v5779 = vadd.f32 %v5594, %v5651
        %v5780 = vadd.f32 %v5594, %v5652
        %v5781 = vadd.f32 %v5594, %v5653
        %v5782 = vadd.f32 %v5594, %v5654
        %v5783 = vadd.f32 %v5594, %v5655
        %v5784 = vadd.f32 %v5594, %v5656
        %v5785 = vadd.f32 %v5594, %v5657
        %v5786 = vadd.f32 %v5594, %v5658
        %v5787 = vadd.f32 %v5594, %v5659
        %v5788 = vadd.f32 %v5594, %v5660
        %v5789 = vadd.f32 %v5594, %v5661
        %v5790 = vadd.f32 %v5594, %v5662
        %v5791 = vadd.f32 %v5594, %v5663
        %v5792 = vadd.f32 %v5594, %v5664
        %v5793 = vadd.f32 %v5594, %v5665
        %v5794 = vadd.f32 %v5594, %v5666
        %v5795 = vadd.f32 %v5594, %v5667
        %v5796 = vadd.f32 %v5594, %v5668
        %v5797 = vadd.f32 %v5594, %v5669
        %v5798 = vadd.f32 %v5594, %v5670
        %v5799 = vadd.f32 %v5594, %v5671
        %v5800 = vadd.f32 %v5594, %v5672
        %v5801 = vadd.f32 %v5594, %v5673
        %v5802 = vadd.f32 %v5594, %v5674
        %v5803 = vadd.f32 %v5594, %v5675
        %v5804 = vadd.f32 %v5594, %v5676
        %v5805 = vadd.f32 %v5594, %v5677
        %v5806 = vadd.f32 %v5594, %v5678
        %v5807 = vadd.f32 %v5594, %v5679
        %v5808 = vadd.f32 %v5594, %v5680
        %v5809 = vadd.f32 %v5594, %v5681
        %v5810 = vadd.f32 %v5594, %v5682
        %v5811 = vadd.f32 %v5594, %v5683
        %v5812 = vadd.f32 %v5594, %v5684
        %v5813 = vadd.f32 %v5594, %v5685
        %v5814 = vadd.f32 %v5594, %v5686
        %v5815 = vadd.f32 %v5594, %v5687
        %v5816 = vadd.f32 %v5594, %v5688
        %v5817 = vadd.f32 %v5594, %v5689
        %v5818 = vadd.f32 %v5594, %v5690
        %v5819 = vadd.f32 %v5594, %v5691
        %v5820 = vadd.f32 %v5594, %v5692
        %v5821 = vadd.f32 %v5594, %v5693
        %v5822 = vadd.f32 %v5594, %v5694
        %v5823 = vadd.f32 %v5594, %v5695
        %v5824 = vadd.f32 %v5594, %v5696
        %v5825 = vadd.f32 %v5594, %v5697
        %v5826 = vadd.f32 %v5594, %v5698
        %v5827 = vadd.f32 %v5594, %v5699
        %v5828 = vadd.f32 %v5594, %v5700
        %v5829 = vadd.f32 %v5594, %v5701
        %v5830 = vadd.f32 %v5594, %v5702
        %v5831 = vadd.f32 %v5594, %v5703
        %v5832 = vadd.f32 %v5594, %v5704
        %v5833 = vadd.f32 %v5594, %v5705
        %v5834 = vadd.f32 %v5594, %v5706
        %v5835 = vadd.f32 %v5594, %v5707
        %v5836 = vadd.f32 %v5594, %v5708
        %v5837 = vadd.f32 %v5594, %v5709
        %v5838 = vadd.f32 %v5594, %v5710
        %v5839 = vadd.f32 %v5594, %v5711
        %v5840 = vadd.f32 %v5594, %v5712
        %v5841 = vadd.f32 %v5594, %v5713
        %v5842 = vadd.f32 %v5594, %v5714
        %v5843 = vadd.f32 %v5594, %v5715
        %v5844 = vadd.f32 %v5594, %v5716
        %v5845 = vadd.f32 %v5594, %v5717
        %v5846 = vadd.f32 %v5594, %v5718
        %v5847 = vadd.f32 %v5594, %v5719
        %v5848 = vadd.f32 %v5594, %v5720
        %v5849 = vadd.f32 %v5594, %v5721
        %v5850 = vadd.f32 %v5594, %v5722
        %v5851 = vadd.f32 %v5594, %v5723
        %v5852 = vadd.f32 %v5594, %v5724
        %v5853 = vadd.f32 %v5594, %v5725
        %v5854 = vadd.f32 %v5594, %v5726
        %v5855 = vadd.f32 %v5594, %v5727
        %v5856 = vadd.f32 %v5594, %v5728
        %v5857 = vadd.f32 %v5594, %v5729
        %v5858 = vadd.f32 %v5594, %v5730
        %v5859 = vadd.f32 %v5594, %v5731
        %v5860 = vadd.f32 %v5594, %v5732
        %v5861 = vadd.f32 %v5594, %v5733
        %v5862 = vadd.f32 %v5594, %v5734
        %v5863 = vadd.f32 %v5594, %v5735
        %v5864 = vadd.f32 %v5594, %v5736
        %v5865 = vadd.f32 %v5594, %v5737
        %v5866 = vadd.f32 %v5594, %v5738
        %v5867 = vadd.f32 %v5594, %v5739
        %v5868 = vadd.f32 %v5594, %v5740
        %v5869 = vadd.f32 %v5594, %v5741
        %v5870 = vadd.f32 %v5594, %v5742
        %v5871 = vadd.f32 %v5594, %v5743
        %v5872 = vadd.f32 %v5594, %v5744
        %v5873 = vadd.f32 %v5594, %v5745
        %v5874 = vadd.f32 %v5594, %v5746
        %v5875 = vadd.f32 %v5594, %v5747
        %v5876 = vadd.f32 %v5594, %v5748
        %v5877 = vadd.f32 %v5594, %v5749
        %v5878 = vadd.f32 %v5594, %v5750
        %v5879 = vadd.f32 %v5594, %v5751
        %v5880 = vadd.f32 %v5594, %v5752
        %v5881 = vadd.f32 %v5594, %v5753
        %v5882 = vadd.f32 %v5594, %v5754
        %v5883 = vadd.f32 %v5594, %v5755
        %v5884 = vadd.f32 %v5594, %v5756
        %v5885 = vadd.f32 %v5594, %v5757
        %v5886 = vadd.f32 %v5594, %v5758
        %v5887 = vadd.f32 %v5594, %v5759
        %v5888 = vadd.f32 %v5594, %v5760
        %v5889 = vadd.f32 %v5594, %v5761
        %v5890 = vadd.f32 %v5594, %v5762
        %v5891 = vadd.f32 %v5594, %v5763
        %v5892 = vadd.f32 %v5594, %v5764
        %v5893 = vadd.f32 %v5594, %v5765
        %v5894 = vadd.f32 %v5594, %v5766
        %v5895 = vadd.f32 %v5594, %v5767
        %v5896 = vadd.f32 %v5594, %v5768
        %v5897 = vadd.f32 %v5594, %v5769
        %v5898 = vadd.f32 %v5594, %v5770
        %v5899 = vtanh.pop %v5771
        %v5900 = vtanh.pop %v5772
        %v5901 = vtanh.pop %v5773
        %v5902 = vtanh.pop %v5774
        %v5903 = vtanh.pop %v5775
        %v5904 = vtanh.pop %v5776
        %v5905 = vtanh.pop %v5777
        %v5906 = vtanh.pop %v5778
        %v5907 = vtanh.pop %v5779
        %v5908 = vtanh.pop %v5780
        %v5909 = vtanh.pop %v5781
        %v5910 = vtanh.pop %v5782
        %v5911 = vtanh.pop %v5783
        %v5912 = vtanh.pop %v5784
        %v5913 = vtanh.pop %v5785
        %v5914 = vtanh.pop %v5786
        %v5915 = vtanh.pop %v5787
        %v5916 = vtanh.pop %v5788
        %v5917 = vtanh.pop %v5789
        %v5918 = vtanh.pop %v5790
        %v5919 = vtanh.pop %v5791
        %v5920 = vtanh.pop %v5792
        %v5921 = vtanh.pop %v5793
        %v5922 = vtanh.pop %v5794
        %v5923 = vtanh.pop %v5795
        %v5924 = vtanh.pop %v5796
        %v5925 = vtanh.pop %v5797
        %v5926 = vtanh.pop %v5798
        %v5927 = vtanh.pop %v5799
        %v5928 = vtanh.pop %v5800
        %v5929 = vtanh.pop %v5801
        %v5930 = vtanh.pop %v5802
        %v5931 = vtanh.pop %v5803
        %v5932 = vtanh.pop %v5804
        %v5933 = vtanh.pop %v5805
        %v5934 = vtanh.pop %v5806
        %v5935 = vtanh.pop %v5807
        %v5936 = vtanh.pop %v5808
        %v5937 = vtanh.pop %v5809
        %v5938 = vtanh.pop %v5810
        %v5939 = vtanh.pop %v5811
        %v5940 = vtanh.pop %v5812
        %v5941 = vtanh.pop %v5813
        %v5942 = vtanh.pop %v5814
        %v5943 = vtanh.pop %v5815
        %v5944 = vtanh.pop %v5816
        %v5945 = vtanh.pop %v5817
        %v5946 = vtanh.pop %v5818
        %v5947 = vtanh.pop %v5819
        %v5948 = vtanh.pop %v5820
        %v5949 = vtanh.pop %v5821
        %v5950 = vtanh.pop %v5822
        %v5951 = vtanh.pop %v5823
        %v5952 = vtanh.pop %v5824
        %v5953 = vtanh.pop %v5825
        %v5954 = vtanh.pop %v5826
        %v5955 = vtanh.pop %v5827
        %v5956 = vtanh.pop %v5828
        %v5957 = vtanh.pop %v5829
        %v5958 = vtanh.pop %v5830
        %v5959 = vtanh.pop %v5831
        %v5960 = vtanh.pop %v5832
        %v5961 = vtanh.pop %v5833
        %v5962 = vtanh.pop %v5834
        %v5963 = vtanh.pop %v5835
        %v5964 = vtanh.pop %v5836
        %v5965 = vtanh.pop %v5837
        %v5966 = vtanh.pop %v5838
        %v5967 = vtanh.pop %v5839
        %v5968 = vtanh.pop %v5840
        %v5969 = vtanh.pop %v5841
        %v5970 = vtanh.pop %v5842
        %v5971 = vtanh.pop %v5843
        %v5972 = vtanh.pop %v5844
        %v5973 = vtanh.pop %v5845
        %v5974 = vtanh.pop %v5846
        %v5975 = vtanh.pop %v5847
        %v5976 = vtanh.pop %v5848
        %v5977 = vtanh.pop %v5849
        %v5978 = vtanh.pop %v5850
        %v5979 = vtanh.pop %v5851
        %v5980 = vtanh.pop %v5852
        %v5981 = vtanh.pop %v5853
        %v5982 = vtanh.pop %v5854
        %v5983 = vtanh.pop %v5855
        %v5984 = vtanh.pop %v5856
        %v5985 = vtanh.pop %v5857
        %v5986 = vtanh.pop %v5858
        %v5987 = vtanh.pop %v5859
        %v5988 = vtanh.pop %v5860
        %v5989 = vtanh.pop %v5861
        %v5990 = vtanh.pop %v5862
        %v5991 = vtanh.pop %v5863
        %v5992 = vtanh.pop %v5864
        %v5993 = vtanh.pop %v5865
        %v5994 = vtanh.pop %v5866
        %v5995 = vtanh.pop %v5867
        %v5996 = vtanh.pop %v5868
        %v5997 = vtanh.pop %v5869
        %v5998 = vtanh.pop %v5870
        %v5999 = vtanh.pop %v5871
        %v6000 = vtanh.pop %v5872
        %v6001 = vtanh.pop %v5873
        %v6002 = vtanh.pop %v5874
        %v6003 = vtanh.pop %v5875
        %v6004 = vtanh.pop %v5876
        %v6005 = vtanh.pop %v5877
        %v6006 = vtanh.pop %v5878
        %v6007 = vtanh.pop %v5879
        %v6008 = vtanh.pop %v5880
        %v6009 = vtanh.pop %v5881
        %v6010 = vtanh.pop %v5882
        %v6011 = vtanh.pop %v5883
        %v6012 = vtanh.pop %v5884
        %v6013 = vtanh.pop %v5885
        %v6014 = vtanh.pop %v5886
        %v6015 = vtanh.pop %v5887
        %v6016 = vtanh.pop %v5888
        %v6017 = vtanh.pop %v5889
        %v6018 = vtanh.pop %v5890
        %v6019 = vtanh.pop %v5891
        %v6020 = vtanh.pop %v5892
        %v6021 = vtanh.pop %v5893
        %v6022 = vtanh.pop %v5894
        %v6023 = vtanh.pop %v5895
        %v6024 = vtanh.pop %v5896
        %v6025 = vtanh.pop %v5897
        %v6026 = vtanh.pop %v5898
        %v6029 = vrot.slane %v5514, 1
        %v6030 = vrot.slane %v5514, 2
        %v6031 = vrot.slane %v5514, 3
        %v6032 = vrot.slane %v5514, 4
        %v6033 = vrot.slane %v5514, 5
        %v6034 = vrot.slane %v5514, 6
        %v6035 = vrot.slane %v5514, 7
        %v6036 = vrot.slane %v5515, 1
        %v6037 = vrot.slane %v5515, 2
        %v6038 = vrot.slane %v5515, 3
        %v6039 = vrot.slane %v5515, 4
        %v6040 = vrot.slane %v5515, 5
        %v6041 = vrot.slane %v5515, 6
        %v6042 = vrot.slane %v5515, 7
        %v6043 = vperm.slane %v5514, 0
        %v6044 = vperm.slane %v6029, 0
        %v6045 = vperm.slane %v6030, 0
        %v6046 = vperm.slane %v6031, 0
        %v6047 = vperm.slane %v6032, 0
        %v6048 = vperm.slane %v6033, 0
        %v6049 = vperm.slane %v6034, 0
        %v6050 = vperm.slane %v6035, 0
        %v6051 = vperm.slane %v5515, 0
        %v6052 = vperm.slane %v6036, 0
        %v6053 = vperm.slane %v6037, 0
        %v6054 = vperm.slane %v6038, 0
        %v6055 = vperm.slane %v6039, 0
        %v6056 = vperm.slane %v6040, 0
        %v6057 = vperm.slane %v6041, 0
        %v6058 = vperm.slane %v6042, 0
        %v6075 = vmul.f32 %v6043, %v5899
        %v6076 = vmul.f32 %v6044, %v5900
        %v6077 = vmul.f32 %v6045, %v5901
        %v6078 = vmul.f32 %v6046, %v5902
        %v6079 = vmul.f32 %v6047, %v5903
        %v6080 = vmul.f32 %v6048, %v5904
        %v6081 = vmul.f32 %v6049, %v5905
        %v6082 = vmul.f32 %v6050, %v5906
        %v6083 = vmul.f32 %v6051, %v5907
        %v6084 = vmul.f32 %v6052, %v5908
        %v6085 = vmul.f32 %v6053, %v5909
        %v6086 = vmul.f32 %v6054, %v5910
        %v6087 = vmul.f32 %v6055, %v5911
        %v6088 = vmul.f32 %v6056, %v5912
        %v6089 = vmul.f32 %v6057, %v5913
        %v6090 = vmul.f32 %v6058, %v5914
        %v6091 = vmul.f32 %v6043, %v5915
        %v6092 = vmul.f32 %v6044, %v5916
        %v6093 = vmul.f32 %v6045, %v5917
        %v6094 = vmul.f32 %v6046, %v5918
        %v6095 = vmul.f32 %v6047, %v5919
        %v6096 = vmul.f32 %v6048, %v5920
        %v6097 = vmul.f32 %v6049, %v5921
        %v6098 = vmul.f32 %v6050, %v5922
        %v6099 = vmul.f32 %v6051, %v5923
        %v6100 = vmul.f32 %v6052, %v5924
        %v6101 = vmul.f32 %v6053, %v5925
        %v6102 = vmul.f32 %v6054, %v5926
        %v6103 = vmul.f32 %v6055, %v5927
        %v6104 = vmul.f32 %v6056, %v5928
        %v6105 = vmul.f32 %v6057, %v5929
        %v6106 = vmul.f32 %v6058, %v5930
        %v6107 = vmul.f32 %v6043, %v5931
        %v6108 = vmul.f32 %v6044, %v5932
        %v6109 = vmul.f32 %v6045, %v5933
        %v6110 = vmul.f32 %v6046, %v5934
        %v6111 = vmul.f32 %v6047, %v5935
        %v6112 = vmul.f32 %v6048, %v5936
        %v6113 = vmul.f32 %v6049, %v5937
        %v6114 = vmul.f32 %v6050, %v5938
        %v6115 = vmul.f32 %v6051, %v5939
        %v6116 = vmul.f32 %v6052, %v5940
        %v6117 = vmul.f32 %v6053, %v5941
        %v6118 = vmul.f32 %v6054, %v5942
        %v6119 = vmul.f32 %v6055, %v5943
        %v6120 = vmul.f32 %v6056, %v5944
        %v6121 = vmul.f32 %v6057, %v5945
        %v6122 = vmul.f32 %v6058, %v5946
        %v6123 = vmul.f32 %v6043, %v5947
        %v6124 = vmul.f32 %v6044, %v5948
        %v6125 = vmul.f32 %v6045, %v5949
        %v6126 = vmul.f32 %v6046, %v5950
        %v6127 = vmul.f32 %v6047, %v5951
        %v6128 = vmul.f32 %v6048, %v5952
        %v6129 = vmul.f32 %v6049, %v5953
        %v6130 = vmul.f32 %v6050, %v5954
        %v6131 = vmul.f32 %v6051, %v5955
        %v6132 = vmul.f32 %v6052, %v5956
        %v6133 = vmul.f32 %v6053, %v5957
        %v6134 = vmul.f32 %v6054, %v5958
        %v6135 = vmul.f32 %v6055, %v5959
        %v6136 = vmul.f32 %v6056, %v5960
        %v6137 = vmul.f32 %v6057, %v5961
        %v6138 = vmul.f32 %v6058, %v5962
        %v6139 = vmul.f32 %v6043, %v5963
        %v6140 = vmul.f32 %v6044, %v5964
        %v6141 = vmul.f32 %v6045, %v5965
        %v6142 = vmul.f32 %v6046, %v5966
        %v6143 = vmul.f32 %v6047, %v5967
        %v6144 = vmul.f32 %v6048, %v5968
        %v6145 = vmul.f32 %v6049, %v5969
        %v6146 = vmul.f32 %v6050, %v5970
        %v6147 = vmul.f32 %v6051, %v5971
        %v6148 = vmul.f32 %v6052, %v5972
        %v6149 = vmul.f32 %v6053, %v5973
        %v6150 = vmul.f32 %v6054, %v5974
        %v6151 = vmul.f32 %v6055, %v5975
        %v6152 = vmul.f32 %v6056, %v5976
        %v6153 = vmul.f32 %v6057, %v5977
        %v6154 = vmul.f32 %v6058, %v5978
        %v6155 = vmul.f32 %v6043, %v5979
        %v6156 = vmul.f32 %v6044, %v5980
        %v6157 = vmul.f32 %v6045, %v5981
        %v6158 = vmul.f32 %v6046, %v5982
        %v6159 = vmul.f32 %v6047, %v5983
        %v6160 = vmul.f32 %v6048, %v5984
        %v6161 = vmul.f32 %v6049, %v5985
        %v6162 = vmul.f32 %v6050, %v5986
        %v6163 = vmul.f32 %v6051, %v5987
        %v6164 = vmul.f32 %v6052, %v5988
        %v6165 = vmul.f32 %v6053, %v5989
        %v6166 = vmul.f32 %v6054, %v5990
        %v6167 = vmul.f32 %v6055, %v5991
        %v6168 = vmul.f32 %v6056, %v5992
        %v6169 = vmul.f32 %v6057, %v5993
        %v6170 = vmul.f32 %v6058, %v5994
        %v6171 = vmul.f32 %v6043, %v5995
        %v6172 = vmul.f32 %v6044, %v5996
        %v6173 = vmul.f32 %v6045, %v5997
        %v6174 = vmul.f32 %v6046, %v5998
        %v6175 = vmul.f32 %v6047, %v5999
        %v6176 = vmul.f32 %v6048, %v6000
        %v6177 = vmul.f32 %v6049, %v6001
        %v6178 = vmul.f32 %v6050, %v6002
        %v6179 = vmul.f32 %v6051, %v6003
        %v6180 = vmul.f32 %v6052, %v6004
        %v6181 = vmul.f32 %v6053, %v6005
        %v6182 = vmul.f32 %v6054, %v6006
        %v6183 = vmul.f32 %v6055, %v6007
        %v6184 = vmul.f32 %v6056, %v6008
        %v6185 = vmul.f32 %v6057, %v6009
        %v6186 = vmul.f32 %v6058, %v6010
        %v6187 = vmul.f32 %v6043, %v6011
        %v6188 = vmul.f32 %v6044, %v6012
        %v6189 = vmul.f32 %v6045, %v6013
        %v6190 = vmul.f32 %v6046, %v6014
        %v6191 = vmul.f32 %v6047, %v6015
        %v6192 = vmul.f32 %v6048, %v6016
        %v6193 = vmul.f32 %v6049, %v6017
        %v6194 = vmul.f32 %v6050, %v6018
        %v6195 = vmul.f32 %v6051, %v6019
        %v6196 = vmul.f32 %v6052, %v6020
        %v6197 = vmul.f32 %v6053, %v6021
        %v6198 = vmul.f32 %v6054, %v6022
        %v6199 = vmul.f32 %v6055, %v6023
        %v6200 = vmul.f32 %v6056, %v6024
        %v6201 = vmul.f32 %v6057, %v6025
        %v6202 = vmul.f32 %v6058, %v6026
        %v6203 = vadd.f32 %v5379, %v6075
        %v6204 = vadd.f32 %v5380, %v6076
        %v6205 = vadd.f32 %v5381, %v6077
        %v6206 = vadd.f32 %v5382, %v6078
        %v6207 = vadd.f32 %v5383, %v6079
        %v6208 = vadd.f32 %v5384, %v6080
        %v6209 = vadd.f32 %v5385, %v6081
        %v6210 = vadd.f32 %v5386, %v6082
        %v6211 = vadd.f32 %v5387, %v6083
        %v6212 = vadd.f32 %v5388, %v6084
        %v6213 = vadd.f32 %v5389, %v6085
        %v6214 = vadd.f32 %v5390, %v6086
        %v6215 = vadd.f32 %v5391, %v6087
        %v6216 = vadd.f32 %v5392, %v6088
        %v6217 = vadd.f32 %v5393, %v6089
        %v6218 = vadd.f32 %v5394, %v6090
        %v6219 = vadd.f32 %v5395, %v6091
        %v6220 = vadd.f32 %v5396, %v6092
        %v6221 = vadd.f32 %v5397, %v6093
        %v6222 = vadd.f32 %v5398, %v6094
        %v6223 = vadd.f32 %v5399, %v6095
        %v6224 = vadd.f32 %v5400, %v6096
        %v6225 = vadd.f32 %v5401, %v6097
        %v6226 = vadd.f32 %v5402, %v6098
        %v6227 = vadd.f32 %v5403, %v6099
        %v6228 = vadd.f32 %v5404, %v6100
        %v6229 = vadd.f32 %v5405, %v6101
        %v6230 = vadd.f32 %v5406, %v6102
        %v6231 = vadd.f32 %v5407, %v6103
        %v6232 = vadd.f32 %v5408, %v6104
        %v6233 = vadd.f32 %v5409, %v6105
        %v6234 = vadd.f32 %v5410, %v6106
        %v6235 = vadd.f32 %v5411, %v6107
        %v6236 = vadd.f32 %v5412, %v6108
        %v6237 = vadd.f32 %v5413, %v6109
        %v6238 = vadd.f32 %v5414, %v6110
        %v6239 = vadd.f32 %v5415, %v6111
        %v6240 = vadd.f32 %v5416, %v6112
        %v6241 = vadd.f32 %v5417, %v6113
        %v6242 = vadd.f32 %v5418, %v6114
        %v6243 = vadd.f32 %v5419, %v6115
        %v6244 = vadd.f32 %v5420, %v6116
        %v6245 = vadd.f32 %v5421, %v6117
        %v6246 = vadd.f32 %v5422, %v6118
        %v6247 = vadd.f32 %v5423, %v6119
        %v6248 = vadd.f32 %v5424, %v6120
        %v6249 = vadd.f32 %v5425, %v6121
        %v6250 = vadd.f32 %v5426, %v6122
        %v6251 = vadd.f32 %v5427, %v6123
        %v6252 = vadd.f32 %v5428, %v6124
        %v6253 = vadd.f32 %v5429, %v6125
        %v6254 = vadd.f32 %v5430, %v6126
        %v6255 = vadd.f32 %v5431, %v6127
        %v6256 = vadd.f32 %v5432, %v6128
        %v6257 = vadd.f32 %v5433, %v6129
        %v6258 = vadd.f32 %v5434, %v6130
        %v6259 = vadd.f32 %v5435, %v6131
        %v6260 = vadd.f32 %v5436, %v6132
        %v6261 = vadd.f32 %v5437, %v6133
        %v6262 = vadd.f32 %v5438, %v6134
        %v6263 = vadd.f32 %v5439, %v6135
        %v6264 = vadd.f32 %v5440, %v6136
        %v6265 = vadd.f32 %v5441, %v6137
        %v6266 = vadd.f32 %v5442, %v6138
        %v6267 = vadd.f32 %v5443, %v6139
        %v6268 = vadd.f32 %v5444, %v6140
        %v6269 = vadd.f32 %v5445, %v6141
        %v6270 = vadd.f32 %v5446, %v6142
        %v6271 = vadd.f32 %v5447, %v6143
        %v6272 = vadd.f32 %v5448, %v6144
        %v6273 = vadd.f32 %v5449, %v6145
        %v6274 = vadd.f32 %v5450, %v6146
        %v6275 = vadd.f32 %v5451, %v6147
        %v6276 = vadd.f32 %v5452, %v6148
        %v6277 = vadd.f32 %v5453, %v6149
        %v6278 = vadd.f32 %v5454, %v6150
        %v6279 = vadd.f32 %v5455, %v6151
        %v6280 = vadd.f32 %v5456, %v6152
        %v6281 = vadd.f32 %v5457, %v6153
        %v6282 = vadd.f32 %v5458, %v6154
        %v6283 = vadd.f32 %v5459, %v6155
        %v6284 = vadd.f32 %v5460, %v6156
        %v6285 = vadd.f32 %v5461, %v6157
        %v6286 = vadd.f32 %v5462, %v6158
        %v6287 = vadd.f32 %v5463, %v6159
        %v6288 = vadd.f32 %v5464, %v6160
        %v6289 = vadd.f32 %v5465, %v6161
        %v6290 = vadd.f32 %v5466, %v6162
        %v6291 = vadd.f32 %v5467, %v6163
        %v6292 = vadd.f32 %v5468, %v6164
        %v6293 = vadd.f32 %v5469, %v6165
        %v6294 = vadd.f32 %v5470, %v6166
        %v6295 = vadd.f32 %v5471, %v6167
        %v6296 = vadd.f32 %v5472, %v6168
        %v6297 = vadd.f32 %v5473, %v6169
        %v6298 = vadd.f32 %v5474, %v6170
        %v6299 = vadd.f32 %v5475, %v6171
        %v6300 = vadd.f32 %v5476, %v6172
        %v6301 = vadd.f32 %v5477, %v6173
        %v6302 = vadd.f32 %v5478, %v6174
        %v6303 = vadd.f32 %v5479, %v6175
        %v6304 = vadd.f32 %v5480, %v6176
        %v6305 = vadd.f32 %v5481, %v6177
        %v6306 = vadd.f32 %v5482, %v6178
        %v6307 = vadd.f32 %v5483, %v6179
        %v6308 = vadd.f32 %v5484, %v6180
        %v6309 = vadd.f32 %v5485, %v6181
        %v6310 = vadd.f32 %v5486, %v6182
        %v6311 = vadd.f32 %v5487, %v6183
        %v6312 = vadd.f32 %v5488, %v6184
        %v6313 = vadd.f32 %v5489, %v6185
        %v6314 = vadd.f32 %v5490, %v6186
        %v6315 = vadd.f32 %v5491, %v6187
        %v6316 = vadd.f32 %v5492, %v6188
        %v6317 = vadd.f32 %v5493, %v6189
        %v6318 = vadd.f32 %v5494, %v6190
        %v6319 = vadd.f32 %v5495, %v6191
        %v6320 = vadd.f32 %v5496, %v6192
        %v6321 = vadd.f32 %v5497, %v6193
        %v6322 = vadd.f32 %v5498, %v6194
        %v6323 = vadd.f32 %v5499, %v6195
        %v6324 = vadd.f32 %v5500, %v6196
        %v6325 = vadd.f32 %v5501, %v6197
        %v6326 = vadd.f32 %v5502, %v6198
        %v6327 = vadd.f32 %v5503, %v6199
        %v6328 = vadd.f32 %v5504, %v6200
        %v6329 = vadd.f32 %v5505, %v6201
        %v6330 = vadd.f32 %v5506, %v6202
        %s6331 = scalar_lea.vmem [#allocation7], 112
        %v6332 = vld [vmem:[%s6331] sm:$0xff]
        %v6333 = vld [vmem:[%s6331 + $0x8] sm:$0xff]
        %s6334 = scalar_lea.vmem [#allocation8], 112
        %v6335 = vld [vmem:[%s6334] sm:$0xff]
        %v6336 = vld [vmem:[%s6334 + $0x8] sm:$0xff]
        %s6337 = scalar_lea.vmem [#allocation10], 112
        %v6338 = vld [vmem:[%s6337] sm:$0xff]
        %v6339 = vld [vmem:[%s6337 + $0x8] sm:$0xff]
        %v6342 = vrot.slane %v6332, 1
        %v6343 = vrot.slane %v6332, 2
        %v6344 = vrot.slane %v6332, 3
        %v6345 = vrot.slane %v6332, 4
        %v6346 = vrot.slane %v6332, 5
        %v6347 = vrot.slane %v6332, 6
        %v6348 = vrot.slane %v6332, 7
        %v6349 = vrot.slane %v6333, 1
        %v6350 = vrot.slane %v6333, 2
        %v6351 = vrot.slane %v6333, 3
        %v6352 = vrot.slane %v6333, 4
        %v6353 = vrot.slane %v6333, 5
        %v6354 = vrot.slane %v6333, 6
        %v6355 = vrot.slane %v6333, 7
        %v6356 = vperm.slane %v6332, 0
        %v6357 = vperm.slane %v6342, 0
        %v6358 = vperm.slane %v6343, 0
        %v6359 = vperm.slane %v6344, 0
        %v6360 = vperm.slane %v6345, 0
        %v6361 = vperm.slane %v6346, 0
        %v6362 = vperm.slane %v6347, 0
        %v6363 = vperm.slane %v6348, 0
        %v6364 = vperm.slane %v6333, 0
        %v6365 = vperm.slane %v6349, 0
        %v6366 = vperm.slane %v6350, 0
        %v6367 = vperm.slane %v6351, 0
        %v6368 = vperm.slane %v6352, 0
        %v6369 = vperm.slane %v6353, 0
        %v6370 = vperm.slane %v6354, 0
        %v6371 = vperm.slane %v6355, 0
        %v6388 = vmul.f32 %v6356, %v422
        %v6389 = vmul.f32 %v6357, %v423
        %v6390 = vmul.f32 %v6358, %v424
        %v6391 = vmul.f32 %v6359, %v425
        %v6392 = vmul.f32 %v6360, %v426
        %v6393 = vmul.f32 %v6361, %v427
        %v6394 = vmul.f32 %v6362, %v428
        %v6395 = vmul.f32 %v6363, %v429
        %v6396 = vmul.f32 %v6364, %v430
        %v6397 = vmul.f32 %v6365, %v431
        %v6398 = vmul.f32 %v6366, %v432
        %v6399 = vmul.f32 %v6367, %v433
        %v6400 = vmul.f32 %v6368, %v434
        %v6401 = vmul.f32 %v6369, %v435
        %v6402 = vmul.f32 %v6370, %v436
        %v6403 = vmul.f32 %v6371, %v437
        %v6404 = vadd.f32 %v6388, %v6389
        %v6405 = vadd.f32 %v6404, %v6390
        %v6406 = vadd.f32 %v6405, %v6391
        %v6407 = vadd.f32 %v6406, %v6392
        %v6408 = vadd.f32 %v6407, %v6393
        %v6409 = vadd.f32 %v6408, %v6394
        %v6410 = vadd.f32 %v6409, %v6395
        %v6411 = vadd.f32 %v6410, %v6396
        %v6412 = vadd.f32 %v6411, %v6397
        %v6413 = vadd.f32 %v6412, %v6398
        %v6414 = vadd.f32 %v6413, %v6399
        %v6415 = vadd.f32 %v6414, %v6400
        %v6416 = vadd.f32 %v6415, %v6401
        %v6417 = vadd.f32 %v6416, %v6402
        %v6418 = vadd.f32 %v6417, %v6403
        %v6421 = vrot.slane %v6335, 1
        %v6422 = vrot.slane %v6335, 2
        %v6423 = vrot.slane %v6335, 3
        %v6424 = vrot.slane %v6335, 4
        %v6425 = vrot.slane %v6335, 5
        %v6426 = vrot.slane %v6335, 6
        %v6427 = vrot.slane %v6335, 7
        %v6428 = vrot.slane %v6336, 1
        %v6429 = vrot.slane %v6336, 2
        %v6430 = vrot.slane %v6336, 3
        %v6431 = vrot.slane %v6336, 4
        %v6432 = vrot.slane %v6336, 5
        %v6433 = vrot.slane %v6336, 6
        %v6434 = vrot.slane %v6336, 7
        %v6435 = vperm.slane %v6335, 0
        %v6436 = vperm.slane %v6421, 0
        %v6437 = vperm.slane %v6422, 0
        %v6438 = vperm.slane %v6423, 0
        %v6439 = vperm.slane %v6424, 0
        %v6440 = vperm.slane %v6425, 0
        %v6441 = vperm.slane %v6426, 0
        %v6442 = vperm.slane %v6427, 0
        %v6443 = vperm.slane %v6336, 0
        %v6444 = vperm.slane %v6428, 0
        %v6445 = vperm.slane %v6429, 0
        %v6446 = vperm.slane %v6430, 0
        %v6447 = vperm.slane %v6431, 0
        %v6448 = vperm.slane %v6432, 0
        %v6449 = vperm.slane %v6433, 0
        %v6450 = vperm.slane %v6434, 0
        %v6467 = vmul.f32 %v6435, %v438
        %v6468 = vmul.f32 %v6436, %v439
        %v6469 = vmul.f32 %v6437, %v440
        %v6470 = vmul.f32 %v6438, %v441
        %v6471 = vmul.f32 %v6439, %v442
        %v6472 = vmul.f32 %v6440, %v443
        %v6473 = vmul.f32 %v6441, %v444
        %v6474 = vmul.f32 %v6442, %v445
        %v6475 = vmul.f32 %v6443, %v446
        %v6476 = vmul.f32 %v6444, %v447
        %v6477 = vmul.f32 %v6445, %v448
        %v6478 = vmul.f32 %v6446, %v449
        %v6479 = vmul.f32 %v6447, %v450
        %v6480 = vmul.f32 %v6448, %v451
        %v6481 = vmul.f32 %v6449, %v452
        %v6482 = vmul.f32 %v6450, %v453
        %v6483 = vmul.f32 %v6435, %v454
        %v6484 = vmul.f32 %v6436, %v455
        %v6485 = vmul.f32 %v6437, %v456
        %v6486 = vmul.f32 %v6438, %v457
        %v6487 = vmul.f32 %v6439, %v458
        %v6488 = vmul.f32 %v6440, %v459
        %v6489 = vmul.f32 %v6441, %v460
        %v6490 = vmul.f32 %v6442, %v461
        %v6491 = vmul.f32 %v6443, %v462
        %v6492 = vmul.f32 %v6444, %v463
        %v6493 = vmul.f32 %v6445, %v464
        %v6494 = vmul.f32 %v6446, %v465
        %v6495 = vmul.f32 %v6447, %v466
        %v6496 = vmul.f32 %v6448, %v467
        %v6497 = vmul.f32 %v6449, %v468
        %v6498 = vmul.f32 %v6450, %v469
        %v6499 = vmul.f32 %v6435, %v470
        %v6500 = vmul.f32 %v6436, %v471
        %v6501 = vmul.f32 %v6437, %v472
        %v6502 = vmul.f32 %v6438, %v473
        %v6503 = vmul.f32 %v6439, %v474
        %v6504 = vmul.f32 %v6440, %v475
        %v6505 = vmul.f32 %v6441, %v476
        %v6506 = vmul.f32 %v6442, %v477
        %v6507 = vmul.f32 %v6443, %v478
        %v6508 = vmul.f32 %v6444, %v479
        %v6509 = vmul.f32 %v6445, %v480
        %v6510 = vmul.f32 %v6446, %v481
        %v6511 = vmul.f32 %v6447, %v482
        %v6512 = vmul.f32 %v6448, %v483
        %v6513 = vmul.f32 %v6449, %v484
        %v6514 = vmul.f32 %v6450, %v485
        %v6515 = vmul.f32 %v6435, %v486
        %v6516 = vmul.f32 %v6436, %v487
        %v6517 = vmul.f32 %v6437, %v488
        %v6518 = vmul.f32 %v6438, %v489
        %v6519 = vmul.f32 %v6439, %v490
        %v6520 = vmul.f32 %v6440, %v491
        %v6521 = vmul.f32 %v6441, %v492
        %v6522 = vmul.f32 %v6442, %v493
        %v6523 = vmul.f32 %v6443, %v494
        %v6524 = vmul.f32 %v6444, %v495
        %v6525 = vmul.f32 %v6445, %v496
        %v6526 = vmul.f32 %v6446, %v497
        %v6527 = vmul.f32 %v6447, %v498
        %v6528 = vmul.f32 %v6448, %v499
        %v6529 = vmul.f32 %v6449, %v500
        %v6530 = vmul.f32 %v6450, %v501
        %v6531 = vmul.f32 %v6435, %v502
        %v6532 = vmul.f32 %v6436, %v503
        %v6533 = vmul.f32 %v6437, %v504
        %v6534 = vmul.f32 %v6438, %v505
        %v6535 = vmul.f32 %v6439, %v506
        %v6536 = vmul.f32 %v6440, %v507
        %v6537 = vmul.f32 %v6441, %v508
        %v6538 = vmul.f32 %v6442, %v509
        %v6539 = vmul.f32 %v6443, %v510
        %v6540 = vmul.f32 %v6444, %v511
        %v6541 = vmul.f32 %v6445, %v512
        %v6542 = vmul.f32 %v6446, %v513
        %v6543 = vmul.f32 %v6447, %v514
        %v6544 = vmul.f32 %v6448, %v515
        %v6545 = vmul.f32 %v6449, %v516
        %v6546 = vmul.f32 %v6450, %v517
        %v6547 = vmul.f32 %v6435, %v518
        %v6548 = vmul.f32 %v6436, %v519
        %v6549 = vmul.f32 %v6437, %v520
        %v6550 = vmul.f32 %v6438, %v521
        %v6551 = vmul.f32 %v6439, %v522
        %v6552 = vmul.f32 %v6440, %v523
        %v6553 = vmul.f32 %v6441, %v524
        %v6554 = vmul.f32 %v6442, %v525
        %v6555 = vmul.f32 %v6443, %v526
        %v6556 = vmul.f32 %v6444, %v527
        %v6557 = vmul.f32 %v6445, %v528
        %v6558 = vmul.f32 %v6446, %v529
        %v6559 = vmul.f32 %v6447, %v530
        %v6560 = vmul.f32 %v6448, %v531
        %v6561 = vmul.f32 %v6449, %v532
        %v6562 = vmul.f32 %v6450, %v533
        %v6563 = vmul.f32 %v6435, %v534
        %v6564 = vmul.f32 %v6436, %v535
        %v6565 = vmul.f32 %v6437, %v536
        %v6566 = vmul.f32 %v6438, %v537
        %v6567 = vmul.f32 %v6439, %v538
        %v6568 = vmul.f32 %v6440, %v539
        %v6569 = vmul.f32 %v6441, %v540
        %v6570 = vmul.f32 %v6442, %v541
        %v6571 = vmul.f32 %v6443, %v542
        %v6572 = vmul.f32 %v6444, %v543
        %v6573 = vmul.f32 %v6445, %v544
        %v6574 = vmul.f32 %v6446, %v545
        %v6575 = vmul.f32 %v6447, %v546
        %v6576 = vmul.f32 %v6448, %v547
        %v6577 = vmul.f32 %v6449, %v548
        %v6578 = vmul.f32 %v6450, %v549
        %v6579 = vmul.f32 %v6435, %v550
        %v6580 = vmul.f32 %v6436, %v551
        %v6581 = vmul.f32 %v6437, %v552
        %v6582 = vmul.f32 %v6438, %v553
        %v6583 = vmul.f32 %v6439, %v554
        %v6584 = vmul.f32 %v6440, %v555
        %v6585 = vmul.f32 %v6441, %v556
        %v6586 = vmul.f32 %v6442, %v557
        %v6587 = vmul.f32 %v6443, %v558
        %v6588 = vmul.f32 %v6444, %v559
        %v6589 = vmul.f32 %v6445, %v560
        %v6590 = vmul.f32 %v6446, %v561
        %v6591 = vmul.f32 %v6447, %v562
        %v6592 = vmul.f32 %v6448, %v563
        %v6593 = vmul.f32 %v6449, %v564
        %v6594 = vmul.f32 %v6450, %v565
        %v6595 = vadd.f32 %v6418, %v6467
        %v6596 = vadd.f32 %v6418, %v6468
        %v6597 = vadd.f32 %v6418, %v6469
        %v6598 = vadd.f32 %v6418, %v6470
        %v6599 = vadd.f32 %v6418, %v6471
        %v6600 = vadd.f32 %v6418, %v6472
        %v6601 = vadd.f32 %v6418, %v6473
        %v6602 = vadd.f32 %v6418, %v6474
        %v6603 = vadd.f32 %v6418, %v6475
        %v6604 = vadd.f32 %v6418, %v6476
        %v6605 = vadd.f32 %v6418, %v6477
        %v6606 = vadd.f32 %v6418, %v6478
        %v6607 = vadd.f32 %v6418, %v6479
        %v6608 = vadd.f32 %v6418, %v6480
        %v6609 = vadd.f32 %v6418, %v6481
        %v6610 = vadd.f32 %v6418, %v6482
        %v6611 = vadd.f32 %v6418, %v6483
        %v6612 = vadd.f32 %v6418, %v6484
        %v6613 = vadd.f32 %v6418, %v6485
        %v6614 = vadd.f32 %v6418, %v6486
        %v6615 = vadd.f32 %v6418, %v6487
        %v6616 = vadd.f32 %v6418, %v6488
        %v6617 = vadd.f32 %v6418, %v6489
        %v6618 = vadd.f32 %v6418, %v6490
        %v6619 = vadd.f32 %v6418, %v6491
        %v6620 = vadd.f32 %v6418, %v6492
        %v6621 = vadd.f32 %v6418, %v6493
        %v6622 = vadd.f32 %v6418, %v6494
        %v6623 = vadd.f32 %v6418, %v6495
        %v6624 = vadd.f32 %v6418, %v6496
        %v6625 = vadd.f32 %v6418, %v6497
        %v6626 = vadd.f32 %v6418, %v6498
        %v6627 = vadd.f32 %v6418, %v6499
        %v6628 = vadd.f32 %v6418, %v6500
        %v6629 = vadd.f32 %v6418, %v6501
        %v6630 = vadd.f32 %v6418, %v6502
        %v6631 = vadd.f32 %v6418, %v6503
        %v6632 = vadd.f32 %v6418, %v6504
        %v6633 = vadd.f32 %v6418, %v6505
        %v6634 = vadd.f32 %v6418, %v6506
        %v6635 = vadd.f32 %v6418, %v6507
        %v6636 = vadd.f32 %v6418, %v6508
        %v6637 = vadd.f32 %v6418, %v6509
        %v6638 = vadd.f32 %v6418, %v6510
        %v6639 = vadd.f32 %v6418, %v6511
        %v6640 = vadd.f32 %v6418, %v6512
        %v6641 = vadd.f32 %v6418, %v6513
        %v6642 = vadd.f32 %v6418, %v6514
        %v6643 = vadd.f32 %v6418, %v6515
        %v6644 = vadd.f32 %v6418, %v6516
        %v6645 = vadd.f32 %v6418, %v6517
        %v6646 = vadd.f32 %v6418, %v6518
        %v6647 = vadd.f32 %v6418, %v6519
        %v6648 = vadd.f32 %v6418, %v6520
        %v6649 = vadd.f32 %v6418, %v6521
        %v6650 = vadd.f32 %v6418, %v6522
        %v6651 = vadd.f32 %v6418, %v6523
        %v6652 = vadd.f32 %v6418, %v6524
        %v6653 = vadd.f32 %v6418, %v6525
        %v6654 = vadd.f32 %v6418, %v6526
        %v6655 = vadd.f32 %v6418, %v6527
        %v6656 = vadd.f32 %v6418, %v6528
        %v6657 = vadd.f32 %v6418, %v6529
        %v6658 = vadd.f32 %v6418, %v6530
        %v6659 = vadd.f32 %v6418, %v6531
        %v6660 = vadd.f32 %v6418, %v6532
        %v6661 = vadd.f32 %v6418, %v6533
        %v6662 = vadd.f32 %v6418, %v6534
        %v6663 = vadd.f32 %v6418, %v6535
        %v6664 = vadd.f32 %v6418, %v6536
        %v6665 = vadd.f32 %v6418, %v6537
        %v6666 = vadd.f32 %v6418, %v6538
        %v6667 = vadd.f32 %v6418, %v6539
        %v6668 = vadd.f32 %v6418, %v6540
        %v6669 = vadd.f32 %v6418, %v6541
        %v6670 = vadd.f32 %v6418, %v6542
        %v6671 = vadd.f32 %v6418, %v6543
        %v6672 = vadd.f32 %v6418, %v6544
        %v6673 = vadd.f32 %v6418, %v6545
        %v6674 = vadd.f32 %v6418, %v6546
        %v6675 = vadd.f32 %v6418, %v6547
        %v6676 = vadd.f32 %v6418, %v6548
        %v6677 = vadd.f32 %v6418, %v6549
        %v6678 = vadd.f32 %v6418, %v6550
        %v6679 = vadd.f32 %v6418, %v6551
        %v6680 = vadd.f32 %v6418, %v6552
        %v6681 = vadd.f32 %v6418, %v6553
        %v6682 = vadd.f32 %v6418, %v6554
        %v6683 = vadd.f32 %v6418, %v6555
        %v6684 = vadd.f32 %v6418, %v6556
        %v6685 = vadd.f32 %v6418, %v6557
        %v6686 = vadd.f32 %v6418, %v6558
        %v6687 = vadd.f32 %v6418, %v6559
        %v6688 = vadd.f32 %v6418, %v6560
        %v6689 = vadd.f32 %v6418, %v6561
        %v6690 = vadd.f32 %v6418, %v6562
        %v6691 = vadd.f32 %v6418, %v6563
        %v6692 = vadd.f32 %v6418, %v6564
        %v6693 = vadd.f32 %v6418, %v6565
        %v6694 = vadd.f32 %v6418, %v6566
        %v6695 = vadd.f32 %v6418, %v6567
        %v6696 = vadd.f32 %v6418, %v6568
        %v6697 = vadd.f32 %v6418, %v6569
        %v6698 = vadd.f32 %v6418, %v6570
        %v6699 = vadd.f32 %v6418, %v6571
        %v6700 = vadd.f32 %v6418, %v6572
        %v6701 = vadd.f32 %v6418, %v6573
        %v6702 = vadd.f32 %v6418, %v6574
        %v6703 = vadd.f32 %v6418, %v6575
        %v6704 = vadd.f32 %v6418, %v6576
        %v6705 = vadd.f32 %v6418, %v6577
        %v6706 = vadd.f32 %v6418, %v6578
        %v6707 = vadd.f32 %v6418, %v6579
        %v6708 = vadd.f32 %v6418, %v6580
        %v6709 = vadd.f32 %v6418, %v6581
        %v6710 = vadd.f32 %v6418, %v6582
        %v6711 = vadd.f32 %v6418, %v6583
        %v6712 = vadd.f32 %v6418, %v6584
        %v6713 = vadd.f32 %v6418, %v6585
        %v6714 = vadd.f32 %v6418, %v6586
        %v6715 = vadd.f32 %v6418, %v6587
        %v6716 = vadd.f32 %v6418, %v6588
        %v6717 = vadd.f32 %v6418, %v6589
        %v6718 = vadd.f32 %v6418, %v6590
        %v6719 = vadd.f32 %v6418, %v6591
        %v6720 = vadd.f32 %v6418, %v6592
        %v6721 = vadd.f32 %v6418, %v6593
        %v6722 = vadd.f32 %v6418, %v6594
        %v6723 = vtanh.pop %v6595
        %v6724 = vtanh.pop %v6596
        %v6725 = vtanh.pop %v6597
        %v6726 = vtanh.pop %v6598
        %v6727 = vtanh.pop %v6599
        %v6728 = vtanh.pop %v6600
        %v6729 = vtanh.pop %v6601
        %v6730 = vtanh.pop %v6602
        %v6731 = vtanh.pop %v6603
        %v6732 = vtanh.pop %v6604
        %v6733 = vtanh.pop %v6605
        %v6734 = vtanh.pop %v6606
        %v6735 = vtanh.pop %v6607
        %v6736 = vtanh.pop %v6608
        %v6737 = vtanh.pop %v6609
        %v6738 = vtanh.pop %v6610
        %v6739 = vtanh.pop %v6611
        %v6740 = vtanh.pop %v6612
        %v6741 = vtanh.pop %v6613
        %v6742 = vtanh.pop %v6614
        %v6743 = vtanh.pop %v6615
        %v6744 = vtanh.pop %v6616
        %v6745 = vtanh.pop %v6617
        %v6746 = vtanh.pop %v6618
        %v6747 = vtanh.pop %v6619
        %v6748 = vtanh.pop %v6620
        %v6749 = vtanh.pop %v6621
        %v6750 = vtanh.pop %v6622
        %v6751 = vtanh.pop %v6623
        %v6752 = vtanh.pop %v6624
        %v6753 = vtanh.pop %v6625
        %v6754 = vtanh.pop %v6626
        %v6755 = vtanh.pop %v6627
        %v6756 = vtanh.pop %v6628
        %v6757 = vtanh.pop %v6629
        %v6758 = vtanh.pop %v6630
        %v6759 = vtanh.pop %v6631
        %v6760 = vtanh.pop %v6632
        %v6761 = vtanh.pop %v6633
        %v6762 = vtanh.pop %v6634
        %v6763 = vtanh.pop %v6635
        %v6764 = vtanh.pop %v6636
        %v6765 = vtanh.pop %v6637
        %v6766 = vtanh.pop %v6638
        %v6767 = vtanh.pop %v6639
        %v6768 = vtanh.pop %v6640
        %v6769 = vtanh.pop %v6641
        %v6770 = vtanh.pop %v6642
        %v6771 = vtanh.pop %v6643
        %v6772 = vtanh.pop %v6644
        %v6773 = vtanh.pop %v6645
        %v6774 = vtanh.pop %v6646
        %v6775 = vtanh.pop %v6647
        %v6776 = vtanh.pop %v6648
        %v6777 = vtanh.pop %v6649
        %v6778 = vtanh.pop %v6650
        %v6779 = vtanh.pop %v6651
        %v6780 = vtanh.pop %v6652
        %v6781 = vtanh.pop %v6653
        %v6782 = vtanh.pop %v6654
        %v6783 = vtanh.pop %v6655
        %v6784 = vtanh.pop %v6656
        %v6785 = vtanh.pop %v6657
        %v6786 = vtanh.pop %v6658
        %v6787 = vtanh.pop %v6659
        %v6788 = vtanh.pop %v6660
        %v6789 = vtanh.pop %v6661
        %v6790 = vtanh.pop %v6662
        %v6791 = vtanh.pop %v6663
        %v6792 = vtanh.pop %v6664
        %v6793 = vtanh.pop %v6665
        %v6794 = vtanh.pop %v6666
        %v6795 = vtanh.pop %v6667
        %v6796 = vtanh.pop %v6668
        %v6797 = vtanh.pop %v6669
        %v6798 = vtanh.pop %v6670
        %v6799 = vtanh.pop %v6671
        %v6800 = vtanh.pop %v6672
        %v6801 = vtanh.pop %v6673
        %v6802 = vtanh.pop %v6674
        %v6803 = vtanh.pop %v6675
        %v6804 = vtanh.pop %v6676
        %v6805 = vtanh.pop %v6677
        %v6806 = vtanh.pop %v6678
        %v6807 = vtanh.pop %v6679
        %v6808 = vtanh.pop %v6680
        %v6809 = vtanh.pop %v6681
        %v6810 = vtanh.pop %v6682
        %v6811 = vtanh.pop %v6683
        %v6812 = vtanh.pop %v6684
        %v6813 = vtanh.pop %v6685
        %v6814 = vtanh.pop %v6686
        %v6815 = vtanh.pop %v6687
        %v6816 = vtanh.pop %v6688
        %v6817 = vtanh.pop %v6689
        %v6818 = vtanh.pop %v6690
        %v6819 = vtanh.pop %v6691
        %v6820 = vtanh.pop %v6692
        %v6821 = vtanh.pop %v6693
        %v6822 = vtanh.pop %v6694
        %v6823 = vtanh.pop %v6695
        %v6824 = vtanh.pop %v6696
        %v6825 = vtanh.pop %v6697
        %v6826 = vtanh.pop %v6698
        %v6827 = vtanh.pop %v6699
        %v6828 = vtanh.pop %v6700
        %v6829 = vtanh.pop %v6701
        %v6830 = vtanh.pop %v6702
        %v6831 = vtanh.pop %v6703
        %v6832 = vtanh.pop %v6704
        %v6833 = vtanh.pop %v6705
        %v6834 = vtanh.pop %v6706
        %v6835 = vtanh.pop %v6707
        %v6836 = vtanh.pop %v6708
        %v6837 = vtanh.pop %v6709
        %v6838 = vtanh.pop %v6710
        %v6839 = vtanh.pop %v6711
        %v6840 = vtanh.pop %v6712
        %v6841 = vtanh.pop %v6713
        %v6842 = vtanh.pop %v6714
        %v6843 = vtanh.pop %v6715
        %v6844 = vtanh.pop %v6716
        %v6845 = vtanh.pop %v6717
        %v6846 = vtanh.pop %v6718
        %v6847 = vtanh.pop %v6719
        %v6848 = vtanh.pop %v6720
        %v6849 = vtanh.pop %v6721
        %v6850 = vtanh.pop %v6722
        %v6853 = vrot.slane %v6338, 1
        %v6854 = vrot.slane %v6338, 2
        %v6855 = vrot.slane %v6338, 3
        %v6856 = vrot.slane %v6338, 4
        %v6857 = vrot.slane %v6338, 5
        %v6858 = vrot.slane %v6338, 6
        %v6859 = vrot.slane %v6338, 7
        %v6860 = vrot.slane %v6339, 1
        %v6861 = vrot.slane %v6339, 2
        %v6862 = vrot.slane %v6339, 3
        %v6863 = vrot.slane %v6339, 4
        %v6864 = vrot.slane %v6339, 5
        %v6865 = vrot.slane %v6339, 6
        %v6866 = vrot.slane %v6339, 7
        %v6867 = vperm.slane %v6338, 0
        %v6868 = vperm.slane %v6853, 0
        %v6869 = vperm.slane %v6854, 0
        %v6870 = vperm.slane %v6855, 0
        %v6871 = vperm.slane %v6856, 0
        %v6872 = vperm.slane %v6857, 0
        %v6873 = vperm.slane %v6858, 0
        %v6874 = vperm.slane %v6859, 0
        %v6875 = vperm.slane %v6339, 0
        %v6876 = vperm.slane %v6860, 0
        %v6877 = vperm.slane %v6861, 0
        %v6878 = vperm.slane %v6862, 0
        %v6879 = vperm.slane %v6863, 0
        %v6880 = vperm.slane %v6864, 0
        %v6881 = vperm.slane %v6865, 0
        %v6882 = vperm.slane %v6866, 0
        %v6899 = vmul.f32 %v6867, %v6723
        %v6900 = vmul.f32 %v6868, %v6724
        %v6901 = vmul.f32 %v6869, %v6725
        %v6902 = vmul.f32 %v6870, %v6726
        %v6903 = vmul.f32 %v6871, %v6727
        %v6904 = vmul.f32 %v6872, %v6728
        %v6905 = vmul.f32 %v6873, %v6729
        %v6906 = vmul.f32 %v6874, %v6730
        %v6907 = vmul.f32 %v6875, %v6731
        %v6908 = vmul.f32 %v6876, %v6732
        %v6909 = vmul.f32 %v6877, %v6733
        %v6910 = vmul.f32 %v6878, %v6734
        %v6911 = vmul.f32 %v6879, %v6735
        %v6912 = vmul.f32 %v6880, %v6736
        %v6913 = vmul.f32 %v6881, %v6737
        %v6914 = vmul.f32 %v6882, %v6738
        %v6915 = vmul.f32 %v6867, %v6739
        %v6916 = vmul.f32 %v6868, %v6740
        %v6917 = vmul.f32 %v6869, %v6741
        %v6918 = vmul.f32 %v6870, %v6742
        %v6919 = vmul.f32 %v6871, %v6743
        %v6920 = vmul.f32 %v6872, %v6744
        %v6921 = vmul.f32 %v6873, %v6745
        %v6922 = vmul.f32 %v6874, %v6746
        %v6923 = vmul.f32 %v6875, %v6747
        %v6924 = vmul.f32 %v6876, %v6748
        %v6925 = vmul.f32 %v6877, %v6749
        %v6926 = vmul.f32 %v6878, %v6750
        %v6927 = vmul.f32 %v6879, %v6751
        %v6928 = vmul.f32 %v6880, %v6752
        %v6929 = vmul.f32 %v6881, %v6753
        %v6930 = vmul.f32 %v6882, %v6754
        %v6931 = vmul.f32 %v6867, %v6755
        %v6932 = vmul.f32 %v6868, %v6756
        %v6933 = vmul.f32 %v6869, %v6757
        %v6934 = vmul.f32 %v6870, %v6758
        %v6935 = vmul.f32 %v6871, %v6759
        %v6936 = vmul.f32 %v6872, %v6760
        %v6937 = vmul.f32 %v6873, %v6761
        %v6938 = vmul.f32 %v6874, %v6762
        %v6939 = vmul.f32 %v6875, %v6763
        %v6940 = vmul.f32 %v6876, %v6764
        %v6941 = vmul.f32 %v6877, %v6765
        %v6942 = vmul.f32 %v6878, %v6766
        %v6943 = vmul.f32 %v6879, %v6767
        %v6944 = vmul.f32 %v6880, %v6768
        %v6945 = vmul.f32 %v6881, %v6769
        %v6946 = vmul.f32 %v6882, %v6770
        %v6947 = vmul.f32 %v6867, %v6771
        %v6948 = vmul.f32 %v6868, %v6772
        %v6949 = vmul.f32 %v6869, %v6773
        %v6950 = vmul.f32 %v6870, %v6774
        %v6951 = vmul.f32 %v6871, %v6775
        %v6952 = vmul.f32 %v6872, %v6776
        %v6953 = vmul.f32 %v6873, %v6777
        %v6954 = vmul.f32 %v6874, %v6778
        %v6955 = vmul.f32 %v6875, %v6779
        %v6956 = vmul.f32 %v6876, %v6780
        %v6957 = vmul.f32 %v6877, %v6781
        %v6958 = vmul.f32 %v6878, %v6782
        %v6959 = vmul.f32 %v6879, %v6783
        %v6960 = vmul.f32 %v6880, %v6784
        %v6961 = vmul.f32 %v6881, %v6785
        %v6962 = vmul.f32 %v6882, %v6786
        %v6963 = vmul.f32 %v6867, %v6787
        %v6964 = vmul.f32 %v6868, %v6788
        %v6965 = vmul.f32 %v6869, %v6789
        %v6966 = vmul.f32 %v6870, %v6790
        %v6967 = vmul.f32 %v6871, %v6791
        %v6968 = vmul.f32 %v6872, %v6792
        %v6969 = vmul.f32 %v6873, %v6793
        %v6970 = vmul.f32 %v6874, %v6794
        %v6971 = vmul.f32 %v6875, %v6795
        %v6972 = vmul.f32 %v6876, %v6796
        %v6973 = vmul.f32 %v6877, %v6797
        %v6974 = vmul.f32 %v6878, %v6798
        %v6975 = vmul.f32 %v6879, %v6799
        %v6976 = vmul.f32 %v6880, %v6800
        %v6977 = vmul.f32 %v6881, %v6801
        %v6978 = vmul.f32 %v6882, %v6802
        %v6979 = vmul.f32 %v6867, %v6803
        %v6980 = vmul.f32 %v6868, %v6804
        %v6981 = vmul.f32 %v6869, %v6805
        %v6982 = vmul.f32 %v6870, %v6806
        %v6983 = vmul.f32 %v6871, %v6807
        %v6984 = vmul.f32 %v6872, %v6808
        %v6985 = vmul.f32 %v6873, %v6809
        %v6986 = vmul.f32 %v6874, %v6810
        %v6987 = vmul.f32 %v6875, %v6811
        %v6988 = vmul.f32 %v6876, %v6812
        %v6989 = vmul.f32 %v6877, %v6813
        %v6990 = vmul.f32 %v6878, %v6814
        %v6991 = vmul.f32 %v6879, %v6815
        %v6992 = vmul.f32 %v6880, %v6816
        %v6993 = vmul.f32 %v6881, %v6817
        %v6994 = vmul.f32 %v6882, %v6818
        %v6995 = vmul.f32 %v6867, %v6819
        %v6996 = vmul.f32 %v6868, %v6820
        %v6997 = vmul.f32 %v6869, %v6821
        %v6998 = vmul.f32 %v6870, %v6822
        %v6999 = vmul.f32 %v6871, %v6823
        %v7000 = vmul.f32 %v6872, %v6824
        %v7001 = vmul.f32 %v6873, %v6825
        %v7002 = vmul.f32 %v6874, %v6826
        %v7003 = vmul.f32 %v6875, %v6827
        %v7004 = vmul.f32 %v6876, %v6828
        %v7005 = vmul.f32 %v6877, %v6829
        %v7006 = vmul.f32 %v6878, %v6830
        %v7007 = vmul.f32 %v6879, %v6831
        %v7008 = vmul.f32 %v6880, %v6832
        %v7009 = vmul.f32 %v6881, %v6833
        %v7010 = vmul.f32 %v6882, %v6834
        %v7011 = vmul.f32 %v6867, %v6835
        %v7012 = vmul.f32 %v6868, %v6836
        %v7013 = vmul.f32 %v6869, %v6837
        %v7014 = vmul.f32 %v6870, %v6838
        %v7015 = vmul.f32 %v6871, %v6839
        %v7016 = vmul.f32 %v6872, %v6840
        %v7017 = vmul.f32 %v6873, %v6841
        %v7018 = vmul.f32 %v6874, %v6842
        %v7019 = vmul.f32 %v6875, %v6843
        %v7020 = vmul.f32 %v6876, %v6844
        %v7021 = vmul.f32 %v6877, %v6845
        %v7022 = vmul.f32 %v6878, %v6846
        %v7023 = vmul.f32 %v6879, %v6847
        %v7024 = vmul.f32 %v6880, %v6848
        %v7025 = vmul.f32 %v6881, %v6849
        %v7026 = vmul.f32 %v6882, %v6850
        %v7027 = vadd.f32 %v6203, %v6899
        %v7028 = vadd.f32 %v6204, %v6900
        %v7029 = vadd.f32 %v6205, %v6901
        %v7030 = vadd.f32 %v6206, %v6902
        %v7031 = vadd.f32 %v6207, %v6903
        %v7032 = vadd.f32 %v6208, %v6904
        %v7033 = vadd.f32 %v6209, %v6905
        %v7034 = vadd.f32 %v6210, %v6906
        %v7035 = vadd.f32 %v6211, %v6907
        %v7036 = vadd.f32 %v6212, %v6908
        %v7037 = vadd.f32 %v6213, %v6909
        %v7038 = vadd.f32 %v6214, %v6910
        %v7039 = vadd.f32 %v6215, %v6911
        %v7040 = vadd.f32 %v6216, %v6912
        %v7041 = vadd.f32 %v6217, %v6913
        %v7042 = vadd.f32 %v6218, %v6914
        %v7043 = vadd.f32 %v6219, %v6915
        %v7044 = vadd.f32 %v6220, %v6916
        %v7045 = vadd.f32 %v6221, %v6917
        %v7046 = vadd.f32 %v6222, %v6918
        %v7047 = vadd.f32 %v6223, %v6919
        %v7048 = vadd.f32 %v6224, %v6920
        %v7049 = vadd.f32 %v6225, %v6921
        %v7050 = vadd.f32 %v6226, %v6922
        %v7051 = vadd.f32 %v6227, %v6923
        %v7052 = vadd.f32 %v6228, %v6924
        %v7053 = vadd.f32 %v6229, %v6925
        %v7054 = vadd.f32 %v6230, %v6926
        %v7055 = vadd.f32 %v6231, %v6927
        %v7056 = vadd.f32 %v6232, %v6928
        %v7057 = vadd.f32 %v6233, %v6929
        %v7058 = vadd.f32 %v6234, %v6930
        %v7059 = vadd.f32 %v6235, %v6931
        %v7060 = vadd.f32 %v6236, %v6932
        %v7061 = vadd.f32 %v6237, %v6933
        %v7062 = vadd.f32 %v6238, %v6934
        %v7063 = vadd.f32 %v6239, %v6935
        %v7064 = vadd.f32 %v6240, %v6936
        %v7065 = vadd.f32 %v6241, %v6937
        %v7066 = vadd.f32 %v6242, %v6938
        %v7067 = vadd.f32 %v6243, %v6939
        %v7068 = vadd.f32 %v6244, %v6940
        %v7069 = vadd.f32 %v6245, %v6941
        %v7070 = vadd.f32 %v6246, %v6942
        %v7071 = vadd.f32 %v6247, %v6943
        %v7072 = vadd.f32 %v6248, %v6944
        %v7073 = vadd.f32 %v6249, %v6945
        %v7074 = vadd.f32 %v6250, %v6946
        %v7075 = vadd.f32 %v6251, %v6947
        %v7076 = vadd.f32 %v6252, %v6948
        %v7077 = vadd.f32 %v6253, %v6949
        %v7078 = vadd.f32 %v6254, %v6950
        %v7079 = vadd.f32 %v6255, %v6951
        %v7080 = vadd.f32 %v6256, %v6952
        %v7081 = vadd.f32 %v6257, %v6953
        %v7082 = vadd.f32 %v6258, %v6954
        %v7083 = vadd.f32 %v6259, %v6955
        %v7084 = vadd.f32 %v6260, %v6956
        %v7085 = vadd.f32 %v6261, %v6957
        %v7086 = vadd.f32 %v6262, %v6958
        %v7087 = vadd.f32 %v6263, %v6959
        %v7088 = vadd.f32 %v6264, %v6960
        %v7089 = vadd.f32 %v6265, %v6961
        %v7090 = vadd.f32 %v6266, %v6962
        %v7091 = vadd.f32 %v6267, %v6963
        %v7092 = vadd.f32 %v6268, %v6964
        %v7093 = vadd.f32 %v6269, %v6965
        %v7094 = vadd.f32 %v6270, %v6966
        %v7095 = vadd.f32 %v6271, %v6967
        %v7096 = vadd.f32 %v6272, %v6968
        %v7097 = vadd.f32 %v6273, %v6969
        %v7098 = vadd.f32 %v6274, %v6970
        %v7099 = vadd.f32 %v6275, %v6971
        %v7100 = vadd.f32 %v6276, %v6972
        %v7101 = vadd.f32 %v6277, %v6973
        %v7102 = vadd.f32 %v6278, %v6974
        %v7103 = vadd.f32 %v6279, %v6975
        %v7104 = vadd.f32 %v6280, %v6976
        %v7105 = vadd.f32 %v6281, %v6977
        %v7106 = vadd.f32 %v6282, %v6978
        %v7107 = vadd.f32 %v6283, %v6979
        %v7108 = vadd.f32 %v6284, %v6980
        %v7109 = vadd.f32 %v6285, %v6981
        %v7110 = vadd.f32 %v6286, %v6982
        %v7111 = vadd.f32 %v6287, %v6983
        %v7112 = vadd.f32 %v6288, %v6984
        %v7113 = vadd.f32 %v6289, %v6985
        %v7114 = vadd.f32 %v6290, %v6986
        %v7115 = vadd.f32 %v6291, %v6987
        %v7116 = vadd.f32 %v6292, %v6988
        %v7117 = vadd.f32 %v6293, %v6989
        %v7118 = vadd.f32 %v6294, %v6990
        %v7119 = vadd.f32 %v6295, %v6991
        %v7120 = vadd.f32 %v6296, %v6992
        %v7121 = vadd.f32 %v6297, %v6993
        %v7122 = vadd.f32 %v6298, %v6994
        %v7123 = vadd.f32 %v6299, %v6995
        %v7124 = vadd.f32 %v6300, %v6996
        %v7125 = vadd.f32 %v6301, %v6997
        %v7126 = vadd.f32 %v6302, %v6998
        %v7127 = vadd.f32 %v6303, %v6999
        %v7128 = vadd.f32 %v6304, %v7000
        %v7129 = vadd.f32 %v6305, %v7001
        %v7130 = vadd.f32 %v6306, %v7002
        %v7131 = vadd.f32 %v6307, %v7003
        %v7132 = vadd.f32 %v6308, %v7004
        %v7133 = vadd.f32 %v6309, %v7005
        %v7134 = vadd.f32 %v6310, %v7006
        %v7135 = vadd.f32 %v6311, %v7007
        %v7136 = vadd.f32 %v6312, %v7008
        %v7137 = vadd.f32 %v6313, %v7009
        %v7138 = vadd.f32 %v6314, %v7010
        %v7139 = vadd.f32 %v6315, %v7011
        %v7140 = vadd.f32 %v6316, %v7012
        %v7141 = vadd.f32 %v6317, %v7013
        %v7142 = vadd.f32 %v6318, %v7014
        %v7143 = vadd.f32 %v6319, %v7015
        %v7144 = vadd.f32 %v6320, %v7016
        %v7145 = vadd.f32 %v6321, %v7017
        %v7146 = vadd.f32 %v6322, %v7018
        %v7147 = vadd.f32 %v6323, %v7019
        %v7148 = vadd.f32 %v6324, %v7020
        %v7149 = vadd.f32 %v6325, %v7021
        %v7150 = vadd.f32 %v6326, %v7022
        %v7151 = vadd.f32 %v6327, %v7023
        %v7152 = vadd.f32 %v6328, %v7024
        %v7153 = vadd.f32 %v6329, %v7025
        %v7154 = vadd.f32 %v6330, %v7026
        %v7155 = vmax.f32 %v7027, %v7043
        %v7156 = vmax.f32 %v7155, %v7059
        %v7157 = vmax.f32 %v7156, %v7075
        %v7158 = vmax.f32 %v7157, %v7091
        %v7159 = vmax.f32 %v7158, %v7107
        %v7160 = vmax.f32 %v7159, %v7123
        %v7161 = vmax.f32 %v7160, %v7139
        %v7162 = vmax.f32 %v7028, %v7044
        %v7163 = vmax.f32 %v7162, %v7060
        %v7164 = vmax.f32 %v7163, %v7076
        %v7165 = vmax.f32 %v7164, %v7092
        %v7166 = vmax.f32 %v7165, %v7108
        %v7167 = vmax.f32 %v7166, %v7124
        %v7168 = vmax.f32 %v7167, %v7140
        %v7169 = vmax.f32 %v7029, %v7045
        %v7170 = vmax.f32 %v7169, %v7061
        %v7171 = vmax.f32 %v7170, %v7077
        %v7172 = vmax.f32 %v7171, %v7093
        %v7173 = vmax.f32 %v7172, %v7109
        %v7174 = vmax.f32 %v7173, %v7125
        %v7175 = vmax.f32 %v7174, %v7141
        %v7176 = vmax.f32 %v7030, %v7046
        %v7177 = vmax.f32 %v7176, %v7062
        %v7178 = vmax.f32 %v7177, %v7078
        %v7179 = vmax.f32 %v7178, %v7094
        %v7180 = vmax.f32 %v7179, %v7110
        %v7181 = vmax.f32 %v7180, %v7126
        %v7182 = vmax.f32 %v7181, %v7142
        %v7183 = vmax.f32 %v7031, %v7047
        %v7184 = vmax.f32 %v7183, %v7063
        %v7185 = vmax.f32 %v7184, %v7079
        %v7186 = vmax.f32 %v7185, %v7095
        %v7187 = vmax.f32 %v7186, %v7111
        %v7188 = vmax.f32 %v7187, %v7127
        %v7189 = vmax.f32 %v7188, %v7143
        %v7190 = vmax.f32 %v7032, %v7048
        %v7191 = vmax.f32 %v7190, %v7064
        %v7192 = vmax.f32 %v7191, %v7080
        %v7193 = vmax.f32 %v7192, %v7096
        %v7194 = vmax.f32 %v7193, %v7112
        %v7195 = vmax.f32 %v7194, %v7128
        %v7196 = vmax.f32 %v7195, %v7144
        %v7197 = vmax.f32 %v7033, %v7049
        %v7198 = vmax.f32 %v7197, %v7065
        %v7199 = vmax.f32 %v7198, %v7081
        %v7200 = vmax.f32 %v7199, %v7097
        %v7201 = vmax.f32 %v7200, %v7113
        %v7202 = vmax.f32 %v7201, %v7129
        %v7203 = vmax.f32 %v7202, %v7145
        %v7204 = vmax.f32 %v7034, %v7050
        %v7205 = vmax.f32 %v7204, %v7066
        %v7206 = vmax.f32 %v7205, %v7082
        %v7207 = vmax.f32 %v7206, %v7098
        %v7208 = vmax.f32 %v7207, %v7114
        %v7209 = vmax.f32 %v7208, %v7130
        %v7210 = vmax.f32 %v7209, %v7146
        %v7211 = vmax.f32 %v7035, %v7051
        %v7212 = vmax.f32 %v7211, %v7067
        %v7213 = vmax.f32 %v7212, %v7083
        %v7214 = vmax.f32 %v7213, %v7099
        %v7215 = vmax.f32 %v7214, %v7115
        %v7216 = vmax.f32 %v7215, %v7131
        %v7217 = vmax.f32 %v7216, %v7147
        %v7218 = vmax.f32 %v7036, %v7052
        %v7219 = vmax.f32 %v7218, %v7068
        %v7220 = vmax.f32 %v7219, %v7084
        %v7221 = vmax.f32 %v7220, %v7100
        %v7222 = vmax.f32 %v7221, %v7116
        %v7223 = vmax.f32 %v7222, %v7132
        %v7224 = vmax.f32 %v7223, %v7148
        %v7225 = vmax.f32 %v7037, %v7053
        %v7226 = vmax.f32 %v7225, %v7069
        %v7227 = vmax.f32 %v7226, %v7085
        %v7228 = vmax.f32 %v7227, %v7101
        %v7229 = vmax.f32 %v7228, %v7117
        %v7230 = vmax.f32 %v7229, %v7133
        %v7231 = vmax.f32 %v7230, %v7149
        %v7232 = vmax.f32 %v7038, %v7054
        %v7233 = vmax.f32 %v7232, %v7070
        %v7234 = vmax.f32 %v7233, %v7086
        %v7235 = vmax.f32 %v7234, %v7102
        %v7236 = vmax.f32 %v7235, %v7118
        %v7237 = vmax.f32 %v7236, %v7134
        %v7238 = vmax.f32 %v7237, %v7150
        %v7239 = vmax.f32 %v7039, %v7055
        %v7240 = vmax.f32 %v7239, %v7071
        %v7241 = vmax.f32 %v7240, %v7087
        %v7242 = vmax.f32 %v7241, %v7103
        %v7243 = vmax.f32 %v7242, %v7119
        %v7244 = vmax.f32 %v7243, %v7135
        %v7245 = vmax.f32 %v7244, %v7151
        %v7246 = vmax.f32 %v7040, %v7056
        %v7247 = vmax.f32 %v7246, %v7072
        %v7248 = vmax.f32 %v7247, %v7088
        %v7249 = vmax.f32 %v7248, %v7104
        %v7250 = vmax.f32 %v7249, %v7120
        %v7251 = vmax.f32 %v7250, %v7136
        %v7252 = vmax.f32 %v7251, %v7152
        %v7253 = vmax.f32 %v7041, %v7057
        %v7254 = vmax.f32 %v7253, %v7073
        %v7255 = vmax.f32 %v7254, %v7089
        %v7256 = vmax.f32 %v7255, %v7105
        %v7257 = vmax.f32 %v7256, %v7121
        %v7258 = vmax.f32 %v7257, %v7137
        %v7259 = vmax.f32 %v7258, %v7153
        %v7260 = vmax.f32 %v7042, %v7058
        %v7261 = vmax.f32 %v7260, %v7074
        %v7262 = vmax.f32 %v7261, %v7090
        %v7263 = vmax.f32 %v7262, %v7106
        %v7264 = vmax.f32 %v7263, %v7122
        %v7265 = vmax.f32 %v7264, %v7138
        %v7266 = vmax.f32 %v7265, %v7154
        %v7267 = vsub.f32 %v7027, %v7161
        %v7268 = vsub.f32 %v7028, %v7168
        %v7269 = vsub.f32 %v7029, %v7175
        %v7270 = vsub.f32 %v7030, %v7182
        %v7271 = vsub.f32 %v7031, %v7189
        %v7272 = vsub.f32 %v7032, %v7196
        %v7273 = vsub.f32 %v7033, %v7203
        %v7274 = vsub.f32 %v7034, %v7210
        %v7275 = vsub.f32 %v7035, %v7217
        %v7276 = vsub.f32 %v7036, %v7224
        %v7277 = vsub.f32 %v7037, %v7231
        %v7278 = vsub.f32 %v7038, %v7238
        %v7279 = vsub.f32 %v7039, %v7245
        %v7280 = vsub.f32 %v7040, %v7252
        %v7281 = vsub.f32 %v7041, %v7259
        %v7282 = vsub.f32 %v7042, %v7266
        %v7283 = vsub.f32 %v7043, %v7161
        %v7284 = vsub.f32 %v7044, %v7168
        %v7285 = vsub.f32 %v7045, %v7175
        %v7286 = vsub.f32 %v7046, %v7182
        %v7287 = vsub.f32 %v7047, %v7189
        %v7288 = vsub.f32 %v7048, %v7196
        %v7289 = vsub.f32 %v7049, %v7203
        %v7290 = vsub.f32 %v7050, %v7210
        %v7291 = vsub.f32 %v7051, %v7217
        %v7292 = vsub.f32 %v7052, %v7224
        %v7293 = vsub.f32 %v7053, %v7231
        %v7294 = vsub.f32 %v7054, %v7238
        %v7295 = vsub.f32 %v7055, %v7245
        %v7296 = vsub.f32 %v7056, %v7252
        %v7297 = vsub.f32 %v7057, %v7259
        %v7298 = vsub.f32 %v7058, %v7266
        %v7299 = vsub.f32 %v7059, %v7161
        %v7300 = vsub.f32 %v7060, %v7168
        %v7301 = vsub.f32 %v7061, %v7175
        %v7302 = vsub.f32 %v7062, %v7182
        %v7303 = vsub.f32 %v7063, %v7189
        %v7304 = vsub.f32 %v7064, %v7196
        %v7305 = vsub.f32 %v7065, %v7203
        %v7306 = vsub.f32 %v7066, %v7210
        %v7307 = vsub.f32 %v7067, %v7217
        %v7308 = vsub.f32 %v7068, %v7224
        %v7309 = vsub.f32 %v7069, %v7231
        %v7310 = vsub.f32 %v7070, %v7238
        %v7311 = vsub.f32 %v7071, %v7245
        %v7312 = vsub.f32 %v7072, %v7252
        %v7313 = vsub.f32 %v7073, %v7259
        %v7314 = vsub.f32 %v7074, %v7266
        %v7315 = vsub.f32 %v7075, %v7161
        %v7316 = vsub.f32 %v7076, %v7168
        %v7317 = vsub.f32 %v7077, %v7175
        %v7318 = vsub.f32 %v7078, %v7182
        %v7319 = vsub.f32 %v7079, %v7189
        %v7320 = vsub.f32 %v7080, %v7196
        %v7321 = vsub.f32 %v7081, %v7203
        %v7322 = vsub.f32 %v7082, %v7210
        %v7323 = vsub.f32 %v7083, %v7217
        %v7324 = vsub.f32 %v7084, %v7224
        %v7325 = vsub.f32 %v7085, %v7231
        %v7326 = vsub.f32 %v7086, %v7238
        %v7327 = vsub.f32 %v7087, %v7245
        %v7328 = vsub.f32 %v7088, %v7252
        %v7329 = vsub.f32 %v7089, %v7259
        %v7330 = vsub.f32 %v7090, %v7266
        %v7331 = vsub.f32 %v7091, %v7161
        %v7332 = vsub.f32 %v7092, %v7168
        %v7333 = vsub.f32 %v7093, %v7175
        %v7334 = vsub.f32 %v7094, %v7182
        %v7335 = vsub.f32 %v7095, %v7189
        %v7336 = vsub.f32 %v7096, %v7196
        %v7337 = vsub.f32 %v7097, %v7203
        %v7338 = vsub.f32 %v7098, %v7210
        %v7339 = vsub.f32 %v7099, %v7217
        %v7340 = vsub.f32 %v7100, %v7224
        %v7341 = vsub.f32 %v7101, %v7231
        %v7342 = vsub.f32 %v7102, %v7238
        %v7343 = vsub.f32 %v7103, %v7245
        %v7344 = vsub.f32 %v7104, %v7252
        %v7345 = vsub.f32 %v7105, %v7259
        %v7346 = vsub.f32 %v7106, %v7266
        %v7347 = vsub.f32 %v7107, %v7161
        %v7348 = vsub.f32 %v7108, %v7168
        %v7349 = vsub.f32 %v7109, %v7175
        %v7350 = vsub.f32 %v7110, %v7182
        %v7351 = vsub.f32 %v7111, %v7189
        %v7352 = vsub.f32 %v7112, %v7196
        %v7353 = vsub.f32 %v7113, %v7203
        %v7354 = vsub.f32 %v7114, %v7210
        %v7355 = vsub.f32 %v7115, %v7217
        %v7356 = vsub.f32 %v7116, %v7224
        %v7357 = vsub.f32 %v7117, %v7231
        %v7358 = vsub.f32 %v7118, %v7238
        %v7359 = vsub.f32 %v7119, %v7245
        %v7360 = vsub.f32 %v7120, %v7252
        %v7361 = vsub.f32 %v7121, %v7259
        %v7362 = vsub.f32 %v7122, %v7266
        %v7363 = vsub.f32 %v7123, %v7161
        %v7364 = vsub.f32 %v7124, %v7168
        %v7365 = vsub.f32 %v7125, %v7175
        %v7366 = vsub.f32 %v7126, %v7182
        %v7367 = vsub.f32 %v7127, %v7189
        %v7368 = vsub.f32 %v7128, %v7196
        %v7369 = vsub.f32 %v7129, %v7203
        %v7370 = vsub.f32 %v7130, %v7210
        %v7371 = vsub.f32 %v7131, %v7217
        %v7372 = vsub.f32 %v7132, %v7224
        %v7373 = vsub.f32 %v7133, %v7231
        %v7374 = vsub.f32 %v7134, %v7238
        %v7375 = vsub.f32 %v7135, %v7245
        %v7376 = vsub.f32 %v7136, %v7252
        %v7377 = vsub.f32 %v7137, %v7259
        %v7378 = vsub.f32 %v7138, %v7266
        %v7379 = vsub.f32 %v7139, %v7161
        %v7380 = vsub.f32 %v7140, %v7168
        %v7381 = vsub.f32 %v7141, %v7175
        %v7382 = vsub.f32 %v7142, %v7182
        %v7383 = vsub.f32 %v7143, %v7189
        %v7384 = vsub.f32 %v7144, %v7196
        %v7385 = vsub.f32 %v7145, %v7203
        %v7386 = vsub.f32 %v7146, %v7210
        %v7387 = vsub.f32 %v7147, %v7217
        %v7388 = vsub.f32 %v7148, %v7224
        %v7389 = vsub.f32 %v7149, %v7231
        %v7390 = vsub.f32 %v7150, %v7238
        %v7391 = vsub.f32 %v7151, %v7245
        %v7392 = vsub.f32 %v7152, %v7252
        %v7393 = vsub.f32 %v7153, %v7259
        %v7394 = vsub.f32 %v7154, %v7266
        %v7395 = vmul.f32 %v7267, 1.442695
        %v7396 = vpow.pop %v7395
        %v7397 = vmul.f32 %v7268, 1.442695
        %v7398 = vpow.pop %v7397
        %v7399 = vmul.f32 %v7269, 1.442695
        %v7400 = vpow.pop %v7399
        %v7401 = vmul.f32 %v7270, 1.442695
        %v7402 = vpow.pop %v7401
        %v7403 = vmul.f32 %v7271, 1.442695
        %v7404 = vpow.pop %v7403
        %v7405 = vmul.f32 %v7272, 1.442695
        %v7406 = vpow.pop %v7405
        %v7407 = vmul.f32 %v7273, 1.442695
        %v7408 = vpow.pop %v7407
        %v7409 = vmul.f32 %v7274, 1.442695
        %v7410 = vpow.pop %v7409
        %v7411 = vmul.f32 %v7275, 1.442695
        %v7412 = vpow.pop %v7411
        %v7413 = vmul.f32 %v7276, 1.442695
        %v7414 = vpow.pop %v7413
        %v7415 = vmul.f32 %v7277, 1.442695
        %v7416 = vpow.pop %v7415
        %v7417 = vmul.f32 %v7278, 1.442695
        %v7418 = vpow.pop %v7417
        %v7419 = vmul.f32 %v7279, 1.442695
        %v7420 = vpow.pop %v7419
        %v7421 = vmul.f32 %v7280, 1.442695
        %v7422 = vpow.pop %v7421
        %v7423 = vmul.f32 %v7281, 1.442695
        %v7424 = vpow.pop %v7423
        %v7425 = vmul.f32 %v7282, 1.442695
        %v7426 = vpow.pop %v7425
        %v7427 = vmul.f32 %v7283, 1.442695
        %v7428 = vpow.pop %v7427
        %v7429 = vmul.f32 %v7284, 1.442695
        %v7430 = vpow.pop %v7429
        %v7431 = vmul.f32 %v7285, 1.442695
        %v7432 = vpow.pop %v7431
        %v7433 = vmul.f32 %v7286, 1.442695
        %v7434 = vpow.pop %v7433
        %v7435 = vmul.f32 %v7287, 1.442695
        %v7436 = vpow.pop %v7435
        %v7437 = vmul.f32 %v7288, 1.442695
        %v7438 = vpow.pop %v7437
        %v7439 = vmul.f32 %v7289, 1.442695
        %v7440 = vpow.pop %v7439
        %v7441 = vmul.f32 %v7290, 1.442695
        %v7442 = vpow.pop %v7441
        %v7443 = vmul.f32 %v7291, 1.442695
        %v7444 = vpow.pop %v7443
        %v7445 = vmul.f32 %v7292, 1.442695
        %v7446 = vpow.pop %v7445
        %v7447 = vmul.f32 %v7293, 1.442695
        %v7448 = vpow.pop %v7447
        %v7449 = vmul.f32 %v7294, 1.442695
        %v7450 = vpow.pop %v7449
        %v7451 = vmul.f32 %v7295, 1.442695
        %v7452 = vpow.pop %v7451
        %v7453 = vmul.f32 %v7296, 1.442695
        %v7454 = vpow.pop %v7453
        %v7455 = vmul.f32 %v7297, 1.442695
        %v7456 = vpow.pop %v7455
        %v7457 = vmul.f32 %v7298, 1.442695
        %v7458 = vpow.pop %v7457
        %v7459 = vmul.f32 %v7299, 1.442695
        %v7460 = vpow.pop %v7459
        %v7461 = vmul.f32 %v7300, 1.442695
        %v7462 = vpow.pop %v7461
        %v7463 = vmul.f32 %v7301, 1.442695
        %v7464 = vpow.pop %v7463
        %v7465 = vmul.f32 %v7302, 1.442695
        %v7466 = vpow.pop %v7465
        %v7467 = vmul.f32 %v7303, 1.442695
        %v7468 = vpow.pop %v7467
        %v7469 = vmul.f32 %v7304, 1.442695
        %v7470 = vpow.pop %v7469
        %v7471 = vmul.f32 %v7305, 1.442695
        %v7472 = vpow.pop %v7471
        %v7473 = vmul.f32 %v7306, 1.442695
        %v7474 = vpow.pop %v7473
        %v7475 = vmul.f32 %v7307, 1.442695
        %v7476 = vpow.pop %v7475
        %v7477 = vmul.f32 %v7308, 1.442695
        %v7478 = vpow.pop %v7477
        %v7479 = vmul.f32 %v7309, 1.442695
        %v7480 = vpow.pop %v7479
        %v7481 = vmul.f32 %v7310, 1.442695
        %v7482 = vpow.pop %v7481
        %v7483 = vmul.f32 %v7311, 1.442695
        %v7484 = vpow.pop %v7483
        %v7485 = vmul.f32 %v7312, 1.442695
        %v7486 = vpow.pop %v7485
        %v7487 = vmul.f32 %v7313, 1.442695
        %v7488 = vpow.pop %v7487
        %v7489 = vmul.f32 %v7314, 1.442695
        %v7490 = vpow.pop %v7489
        %v7491 = vmul.f32 %v7315, 1.442695
        %v7492 = vpow.pop %v7491
        %v7493 = vmul.f32 %v7316, 1.442695
        %v7494 = vpow.pop %v7493
        %v7495 = vmul.f32 %v7317, 1.442695
        %v7496 = vpow.pop %v7495
        %v7497 = vmul.f32 %v7318, 1.442695
        %v7498 = vpow.pop %v7497
        %v7499 = vmul.f32 %v7319, 1.442695
        %v7500 = vpow.pop %v7499
        %v7501 = vmul.f32 %v7320, 1.442695
        %v7502 = vpow.pop %v7501
        %v7503 = vmul.f32 %v7321, 1.442695
        %v7504 = vpow.pop %v7503
        %v7505 = vmul.f32 %v7322, 1.442695
        %v7506 = vpow.pop %v7505
        %v7507 = vmul.f32 %v7323, 1.442695
        %v7508 = vpow.pop %v7507
        %v7509 = vmul.f32 %v7324, 1.442695
        %v7510 = vpow.pop %v7509
        %v7511 = vmul.f32 %v7325, 1.442695
        %v7512 = vpow.pop %v7511
        %v7513 = vmul.f32 %v7326, 1.442695
        %v7514 = vpow.pop %v7513
        %v7515 = vmul.f32 %v7327, 1.442695
        %v7516 = vpow.pop %v7515
        %v7517 = vmul.f32 %v7328, 1.442695
        %v7518 = vpow.pop %v7517
        %v7519 = vmul.f32 %v7329, 1.442695
        %v7520 = vpow.pop %v7519
        %v7521 = vmul.f32 %v7330, 1.442695
        %v7522 = vpow.pop %v7521
        %v7523 = vmul.f32 %v7331, 1.442695
        %v7524 = vpow.pop %v7523
        %v7525 = vmul.f32 %v7332, 1.442695
        %v7526 = vpow.pop %v7525
        %v7527 = vmul.f32 %v7333, 1.442695
        %v7528 = vpow.pop %v7527
        %v7529 = vmul.f32 %v7334, 1.442695
        %v7530 = vpow.pop %v7529
        %v7531 = vmul.f32 %v7335, 1.442695
        %v7532 = vpow.pop %v7531
        %v7533 = vmul.f32 %v7336, 1.442695
        %v7534 = vpow.pop %v7533
        %v7535 = vmul.f32 %v7337, 1.442695
        %v7536 = vpow.pop %v7535
        %v7537 = vmul.f32 %v7338, 1.442695
        %v7538 = vpow.pop %v7537
        %v7539 = vmul.f32 %v7339, 1.442695
        %v7540 = vpow.pop %v7539
        %v7541 = vmul.f32 %v7340, 1.442695
        %v7542 = vpow.pop %v7541
        %v7543 = vmul.f32 %v7341, 1.442695
        %v7544 = vpow.pop %v7543
        %v7545 = vmul.f32 %v7342, 1.442695
        %v7546 = vpow.pop %v7545
        %v7547 = vmul.f32 %v7343, 1.442695
        %v7548 = vpow.pop %v7547
        %v7549 = vmul.f32 %v7344, 1.442695
        %v7550 = vpow.pop %v7549
        %v7551 = vmul.f32 %v7345, 1.442695
        %v7552 = vpow.pop %v7551
        %v7553 = vmul.f32 %v7346, 1.442695
        %v7554 = vpow.pop %v7553
        %v7555 = vmul.f32 %v7347, 1.442695
        %v7556 = vpow.pop %v7555
        %v7557 = vmul.f32 %v7348, 1.442695
        %v7558 = vpow.pop %v7557
        %v7559 = vmul.f32 %v7349, 1.442695
        %v7560 = vpow.pop %v7559
        %v7561 = vmul.f32 %v7350, 1.442695
        %v7562 = vpow.pop %v7561
        %v7563 = vmul.f32 %v7351, 1.442695
        %v7564 = vpow.pop %v7563
        %v7565 = vmul.f32 %v7352, 1.442695
        %v7566 = vpow.pop %v7565
        %v7567 = vmul.f32 %v7353, 1.442695
        %v7568 = vpow.pop %v7567
        %v7569 = vmul.f32 %v7354, 1.442695
        %v7570 = vpow.pop %v7569
        %v7571 = vmul.f32 %v7355, 1.442695
        %v7572 = vpow.pop %v7571
        %v7573 = vmul.f32 %v7356, 1.442695
        %v7574 = vpow.pop %v7573
        %v7575 = vmul.f32 %v7357, 1.442695
        %v7576 = vpow.pop %v7575
        %v7577 = vmul.f32 %v7358, 1.442695
        %v7578 = vpow.pop %v7577
        %v7579 = vmul.f32 %v7359, 1.442695
        %v7580 = vpow.pop %v7579
        %v7581 = vmul.f32 %v7360, 1.442695
        %v7582 = vpow.pop %v7581
        %v7583 = vmul.f32 %v7361, 1.442695
        %v7584 = vpow.pop %v7583
        %v7585 = vmul.f32 %v7362, 1.442695
        %v7586 = vpow.pop %v7585
        %v7587 = vmul.f32 %v7363, 1.442695
        %v7588 = vpow.pop %v7587
        %v7589 = vmul.f32 %v7364, 1.442695
        %v7590 = vpow.pop %v7589
        %v7591 = vmul.f32 %v7365, 1.442695
        %v7592 = vpow.pop %v7591
        %v7593 = vmul.f32 %v7366, 1.442695
        %v7594 = vpow.pop %v7593
        %v7595 = vmul.f32 %v7367, 1.442695
        %v7596 = vpow.pop %v7595
        %v7597 = vmul.f32 %v7368, 1.442695
        %v7598 = vpow.pop %v7597
        %v7599 = vmul.f32 %v7369, 1.442695
        %v7600 = vpow.pop %v7599
        %v7601 = vmul.f32 %v7370, 1.442695
        %v7602 = vpow.pop %v7601
        %v7603 = vmul.f32 %v7371, 1.442695
        %v7604 = vpow.pop %v7603
        %v7605 = vmul.f32 %v7372, 1.442695
        %v7606 = vpow.pop %v7605
        %v7607 = vmul.f32 %v7373, 1.442695
        %v7608 = vpow.pop %v7607
        %v7609 = vmul.f32 %v7374, 1.442695
        %v7610 = vpow.pop %v7609
        %v7611 = vmul.f32 %v7375, 1.442695
        %v7612 = vpow.pop %v7611
        %v7613 = vmul.f32 %v7376, 1.442695
        %v7614 = vpow.pop %v7613
        %v7615 = vmul.f32 %v7377, 1.442695
        %v7616 = vpow.pop %v7615
        %v7617 = vmul.f32 %v7378, 1.442695
        %v7618 = vpow.pop %v7617
        %v7619 = vmul.f32 %v7379, 1.442695
        %v7620 = vpow.pop %v7619
        %v7621 = vmul.f32 %v7380, 1.442695
        %v7622 = vpow.pop %v7621
        %v7623 = vmul.f32 %v7381, 1.442695
        %v7624 = vpow.pop %v7623
        %v7625 = vmul.f32 %v7382, 1.442695
        %v7626 = vpow.pop %v7625
        %v7627 = vmul.f32 %v7383, 1.442695
        %v7628 = vpow.pop %v7627
        %v7629 = vmul.f32 %v7384, 1.442695
        %v7630 = vpow.pop %v7629
        %v7631 = vmul.f32 %v7385, 1.442695
        %v7632 = vpow.pop %v7631
        %v7633 = vmul.f32 %v7386, 1.442695
        %v7634 = vpow.pop %v7633
        %v7635 = vmul.f32 %v7387, 1.442695
        %v7636 = vpow.pop %v7635
        %v7637 = vmul.f32 %v7388, 1.442695
        %v7638 = vpow.pop %v7637
        %v7639 = vmul.f32 %v7389, 1.442695
        %v7640 = vpow.pop %v7639
        %v7641 = vmul.f32 %v7390, 1.442695
        %v7642 = vpow.pop %v7641
        %v7643 = vmul.f32 %v7391, 1.442695
        %v7644 = vpow.pop %v7643
        %v7645 = vmul.f32 %v7392, 1.442695
        %v7646 = vpow.pop %v7645
        %v7647 = vmul.f32 %v7393, 1.442695
        %v7648 = vpow.pop %v7647
        %v7649 = vmul.f32 %v7394, 1.442695
        %v7650 = vpow.pop %v7649
        %v7651 = vadd.f32 %v7396, %v7428
        %v7652 = vadd.f32 %v7651, %v7460
        %v7653 = vadd.f32 %v7652, %v7492
        %v7654 = vadd.f32 %v7653, %v7524
        %v7655 = vadd.f32 %v7654, %v7556
        %v7656 = vadd.f32 %v7655, %v7588
        %v7657 = vadd.f32 %v7656, %v7620
        %v7658 = vadd.f32 %v7398, %v7430
        %v7659 = vadd.f32 %v7658, %v7462
        %v7660 = vadd.f32 %v7659, %v7494
        %v7661 = vadd.f32 %v7660, %v7526
        %v7662 = vadd.f32 %v7661, %v7558
        %v7663 = vadd.f32 %v7662, %v7590
        %v7664 = vadd.f32 %v7663, %v7622
        %v7665 = vadd.f32 %v7400, %v7432
        %v7666 = vadd.f32 %v7665, %v7464
        %v7667 = vadd.f32 %v7666, %v7496
        %v7668 = vadd.f32 %v7667, %v7528
        %v7669 = vadd.f32 %v7668, %v7560
        %v7670 = vadd.f32 %v7669, %v7592
        %v7671 = vadd.f32 %v7670, %v7624
        %v7672 = vadd.f32 %v7402, %v7434
        %v7673 = vadd.f32 %v7672, %v7466
        %v7674 = vadd.f32 %v7673, %v7498
        %v7675 = vadd.f32 %v7674, %v7530
        %v7676 = vadd.f32 %v7675, %v7562
        %v7677 = vadd.f32 %v7676, %v7594
        %v7678 = vadd.f32 %v7677, %v7626
        %v7679 = vadd.f32 %v7404, %v7436
        %v7680 = vadd.f32 %v7679, %v7468
        %v7681 = vadd.f32 %v7680, %v7500
        %v7682 = vadd.f32 %v7681, %v7532
        %v7683 = vadd.f32 %v7682, %v7564
        %v7684 = vadd.f32 %v7683, %v7596
        %v7685 = vadd.f32 %v7684, %v7628
        %v7686 = vadd.f32 %v7406, %v7438
        %v7687 = vadd.f32 %v7686, %v7470
        %v7688 = vadd.f32 %v7687, %v7502
        %v7689 = vadd.f32 %v7688, %v7534
        %v7690 = vadd.f32 %v7689, %v7566
        %v7691 = vadd.f32 %v7690, %v7598
        %v7692 = vadd.f32 %v7691, %v7630
        %v7693 = vadd.f32 %v7408, %v7440
        %v7694 = vadd.f32 %v7693, %v7472
        %v7695 = vadd.f32 %v7694, %v7504
        %v7696 = vadd.f32 %v7695, %v7536
        %v7697 = vadd.f32 %v7696, %v7568
        %v7698 = vadd.f32 %v7697, %v7600
        %v7699 = vadd.f32 %v7698, %v7632
        %v7700 = vadd.f32 %v7410, %v7442
        %v7701 = vadd.f32 %v7700, %v7474
        %v7702 = vadd.f32 %v7701, %v7506
        %v7703 = vadd.f32 %v7702, %v7538
        %v7704 = vadd.f32 %v7703, %v7570
        %v7705 = vadd.f32 %v7704, %v7602
        %v7706 = vadd.f32 %v7705, %v7634
        %v7707 = vadd.f32 %v7412, %v7444
        %v7708 = vadd.f32 %v7707, %v7476
        %v7709 = vadd.f32 %v7708, %v7508
        %v7710 = vadd.f32 %v7709, %v7540
        %v7711 = vadd.f32 %v7710, %v7572
        %v7712 = vadd.f32 %v7711, %v7604
        %v7713 = vadd.f32 %v7712, %v7636
        %v7714 = vadd.f32 %v7414, %v7446
        %v7715 = vadd.f32 %v7714, %v7478
        %v7716 = vadd.f32 %v7715, %v7510
        %v7717 = vadd.f32 %v7716, %v7542
        %v7718 = vadd.f32 %v7717, %v7574
        %v7719 = vadd.f32 %v7718, %v7606
        %v7720 = vadd.f32 %v7719, %v7638
        %v7721 = vadd.f32 %v7416, %v7448
        %v7722 = vadd.f32 %v7721, %v7480
        %v7723 = vadd.f32 %v7722, %v7512
        %v7724 = vadd.f32 %v7723, %v7544
        %v7725 = vadd.f32 %v7724, %v7576
        %v7726 = vadd.f32 %v7725, %v7608
        %v7727 = vadd.f32 %v7726, %v7640
        %v7728 = vadd.f32 %v7418, %v7450
        %v7729 = vadd.f32 %v7728, %v7482
        %v7730 = vadd.f32 %v7729, %v7514
        %v7731 = vadd.f32 %v7730, %v7546
        %v7732 = vadd.f32 %v7731, %v7578
        %v7733 = vadd.f32 %v7732, %v7610
        %v7734 = vadd.f32 %v7733, %v7642
        %v7735 = vadd.f32 %v7420, %v7452
        %v7736 = vadd.f32 %v7735, %v7484
        %v7737 = vadd.f32 %v7736, %v7516
        %v7738 = vadd.f32 %v7737, %v7548
        %v7739 = vadd.f32 %v7738, %v7580
        %v7740 = vadd.f32 %v7739, %v7612
        %v7741 = vadd.f32 %v7740, %v7644
        %v7742 = vadd.f32 %v7422, %v7454
        %v7743 = vadd.f32 %v7742, %v7486
        %v7744 = vadd.f32 %v7743, %v7518
        %v7745 = vadd.f32 %v7744, %v7550
        %v7746 = vadd.f32 %v7745, %v7582
        %v7747 = vadd.f32 %v7746, %v7614
        %v7748 = vadd.f32 %v7747, %v7646
        %v7749 = vadd.f32 %v7424, %v7456
        %v7750 = vadd.f32 %v7749, %v7488
        %v7751 = vadd.f32 %v7750, %v7520
        %v7752 = vadd.f32 %v7751, %v7552
        %v7753 = vadd.f32 %v7752, %v7584
        %v7754 = vadd.f32 %v7753, %v7616
        %v7755 = vadd.f32 %v7754, %v7648
        %v7756 = vadd.f32 %v7426, %v7458
        %v7757 = vadd.f32 %v7756, %v7490
        %v7758 = vadd.f32 %v7757, %v7522
        %v7759 = vadd.f32 %v7758, %v7554
        %v7760 = vadd.f32 %v7759, %v7586
        %v7761 = vadd.f32 %v7760, %v7618
        %v7762 = vadd.f32 %v7761, %v7650
        %v7763 = vrcp.pop %v7657
        %v7764 = vrcp.pop %v7664
        %v7765 = vrcp.pop %v7671
        %v7766 = vrcp.pop %v7678
        %v7767 = vrcp.pop %v7685
        %v7768 = vrcp.pop %v7692
        %v7769 = vrcp.pop %v7699
        %v7770 = vrcp.pop %v7706
        %v7771 = vrcp.pop %v7713
        %v7772 = vrcp.pop %v7720
        %v7773 = vrcp.pop %v7727
        %v7774 = vrcp.pop %v7734
        %v7775 = vrcp.pop %v7741
        %v7776 = vrcp.pop %v7748
        %v7777 = vrcp.pop %v7755
        %v7778 = vrcp.pop %v7762
        %v7779 = vmul.f32 %v7396, %v7763
        %v7780 = vmul.f32 %v7398, %v7764
        %v7781 = vmul.f32 %v7400, %v7765
        %v7782 = vmul.f32 %v7402, %v7766
        %v7783 = vmul.f32 %v7404, %v7767
        %v7784 = vmul.f32 %v7406, %v7768
        %v7785 = vmul.f32 %v7408, %v7769
        %v7786 = vmul.f32 %v7410, %v7770
        %v7787 = vmul.f32 %v7412, %v7771
        %v7788 = vmul.f32 %v7414, %v7772
        %v7789 = vmul.f32 %v7416, %v7773
        %v7790 = vmul.f32 %v7418, %v7774
        %v7791 = vmul.f32 %v7420, %v7775
        %v7792 = vmul.f32 %v7422, %v7776
        %v7793 = vmul.f32 %v7424, %v7777
        %v7794 = vmul.f32 %v7426, %v7778
        %v7795 = vmul.f32 %v7428, %v7763
        %v7796 = vmul.f32 %v7430, %v7764
        %v7797 = vmul.f32 %v7432, %v7765
        %v7798 = vmul.f32 %v7434, %v7766
        %v7799 = vmul.f32 %v7436, %v7767
        %v7800 = vmul.f32 %v7438, %v7768
        %v7801 = vmul.f32 %v7440, %v7769
        %v7802 = vmul.f32 %v7442, %v7770
        %v7803 = vmul.f32 %v7444, %v7771
        %v7804 = vmul.f32 %v7446, %v7772
        %v7805 = vmul.f32 %v7448, %v7773
        %v7806 = vmul.f32 %v7450, %v7774
        %v7807 = vmul.f32 %v7452, %v7775
        %v7808 = vmul.f32 %v7454, %v7776
        %v7809 = vmul.f32 %v7456, %v7777
        %v7810 = vmul.f32 %v7458, %v7778
        %v7811 = vmul.f32 %v7460, %v7763
        %v7812 = vmul.f32 %v7462, %v7764
        %v7813 = vmul.f32 %v7464, %v7765
        %v7814 = vmul.f32 %v7466, %v7766
        %v7815 = vmul.f32 %v7468, %v7767
        %v7816 = vmul.f32 %v7470, %v7768
        %v7817 = vmul.f32 %v7472, %v7769
        %v7818 = vmul.f32 %v7474, %v7770
        %v7819 = vmul.f32 %v7476, %v7771
        %v7820 = vmul.f32 %v7478, %v7772
        %v7821 = vmul.f32 %v7480, %v7773
        %v7822 = vmul.f32 %v7482, %v7774
        %v7823 = vmul.f32 %v7484, %v7775
        %v7824 = vmul.f32 %v7486, %v7776
        %v7825 = vmul.f32 %v7488, %v7777
        %v7826 = vmul.f32 %v7490, %v7778
        %v7827 = vmul.f32 %v7492, %v7763
        %v7828 = vmul.f32 %v7494, %v7764
        %v7829 = vmul.f32 %v7496, %v7765
        %v7830 = vmul.f32 %v7498, %v7766
        %v7831 = vmul.f32 %v7500, %v7767
        %v7832 = vmul.f32 %v7502, %v7768
        %v7833 = vmul.f32 %v7504, %v7769
        %v7834 = vmul.f32 %v7506, %v7770
        %v7835 = vmul.f32 %v7508, %v7771
        %v7836 = vmul.f32 %v7510, %v7772
        %v7837 = vmul.f32 %v7512, %v7773
        %v7838 = vmul.f32 %v7514, %v7774
        %v7839 = vmul.f32 %v7516, %v7775
        %v7840 = vmul.f32 %v7518, %v7776
        %v7841 = vmul.f32 %v7520, %v7777
        %v7842 = vmul.f32 %v7522, %v7778
        %v7843 = vmul.f32 %v7524, %v7763
        %v7844 = vmul.f32 %v7526, %v7764
        %v7845 = vmul.f32 %v7528, %v7765
        %v7846 = vmul.f32 %v7530, %v7766
        %v7847 = vmul.f32 %v7532, %v7767
        %v7848 = vmul.f32 %v7534, %v7768
        %v7849 = vmul.f32 %v7536, %v7769
        %v7850 = vmul.f32 %v7538, %v7770
        %v7851 = vmul.f32 %v7540, %v7771
        %v7852 = vmul.f32 %v7542, %v7772
        %v7853 = vmul.f32 %v7544, %v7773
        %v7854 = vmul.f32 %v7546, %v7774
        %v7855 = vmul.f32 %v7548, %v7775
        %v7856 = vmul.f32 %v7550, %v7776
        %v7857 = vmul.f32 %v7552, %v7777
        %v7858 = vmul.f32 %v7554, %v7778
        %v7859 = vmul.f32 %v7556, %v7763
        %v7860 = vmul.f32 %v7558, %v7764
        %v7861 = vmul.f32 %v7560, %v7765
        %v7862 = vmul.f32 %v7562, %v7766
        %v7863 = vmul.f32 %v7564, %v7767
        %v7864 = vmul.f32 %v7566, %v7768
        %v7865 = vmul.f32 %v7568, %v7769
        %v7866 = vmul.f32 %v7570, %v7770
        %v7867 = vmul.f32 %v7572, %v7771
        %v7868 = vmul.f32 %v7574, %v7772
        %v7869 = vmul.f32 %v7576, %v7773
        %v7870 = vmul.f32 %v7578, %v7774
        %v7871 = vmul.f32 %v7580, %v7775
        %v7872 = vmul.f32 %v7582, %v7776
        %v7873 = vmul.f32 %v7584, %v7777
        %v7874 = vmul.f32 %v7586, %v7778
        %v7875 = vmul.f32 %v7588, %v7763
        %v7876 = vmul.f32 %v7590, %v7764
        %v7877 = vmul.f32 %v7592, %v7765
        %v7878 = vmul.f32 %v7594, %v7766
        %v7879 = vmul.f32 %v7596, %v7767
        %v7880 = vmul.f32 %v7598, %v7768
        %v7881 = vmul.f32 %v7600, %v7769
        %v7882 = vmul.f32 %v7602, %v7770
        %v7883 = vmul.f32 %v7604, %v7771
        %v7884 = vmul.f32 %v7606, %v7772
        %v7885 = vmul.f32 %v7608, %v7773
        %v7886 = vmul.f32 %v7610, %v7774
        %v7887 = vmul.f32 %v7612, %v7775
        %v7888 = vmul.f32 %v7614, %v7776
        %v7889 = vmul.f32 %v7616, %v7777
        %v7890 = vmul.f32 %v7618, %v7778
        %v7891 = vmul.f32 %v7620, %v7763
        %v7892 = vmul.f32 %v7622, %v7764
        %v7893 = vmul.f32 %v7624, %v7765
        %v7894 = vmul.f32 %v7626, %v7766
        %v7895 = vmul.f32 %v7628, %v7767
        %v7896 = vmul.f32 %v7630, %v7768
        %v7897 = vmul.f32 %v7632, %v7769
        %v7898 = vmul.f32 %v7634, %v7770
        %v7899 = vmul.f32 %v7636, %v7771
        %v7900 = vmul.f32 %v7638, %v7772
        %v7901 = vmul.f32 %v7640, %v7773
        %v7902 = vmul.f32 %v7642, %v7774
        %v7903 = vmul.f32 %v7644, %v7775
        %v7904 = vmul.f32 %v7646, %v7776
        %v7905 = vmul.f32 %v7648, %v7777
        %v7906 = vmul.f32 %v7650, %v7778
        %v7907 = vmul.f32 %v7779, %v438
        %v7908 = vmul.f32 %v7780, %v439
        %v7909 = vmul.f32 %v7781, %v440
        %v7910 = vmul.f32 %v7782, %v441
        %v7911 = vmul.f32 %v7783, %v442
        %v7912 = vmul.f32 %v7784, %v443
        %v7913 = vmul.f32 %v7785, %v444
        %v7914 = vmul.f32 %v7786, %v445
        %v7915 = vmul.f32 %v7787, %v446
        %v7916 = vmul.f32 %v7788, %v447
        %v7917 = vmul.f32 %v7789, %v448
        %v7918 = vmul.f32 %v7790, %v449
        %v7919 = vmul.f32 %v7791, %v450
        %v7920 = vmul.f32 %v7792, %v451
        %v7921 = vmul.f32 %v7793, %v452
        %v7922 = vmul.f32 %v7794, %v453
        %v7923 = vmul.f32 %v7795, %v454
        %v7924 = vmul.f32 %v7796, %v455
        %v7925 = vmul.f32 %v7797, %v456
        %v7926 = vmul.f32 %v7798, %v457
        %v7927 = vmul.f32 %v7799, %v458
        %v7928 = vmul.f32 %v7800, %v459
        %v7929 = vmul.f32 %v7801, %v460
        %v7930 = vmul.f32 %v7802, %v461
        %v7931 = vmul.f32 %v7803, %v462
        %v7932 = vmul.f32 %v7804, %v463
        %v7933 = vmul.f32 %v7805, %v464
        %v7934 = vmul.f32 %v7806, %v465
        %v7935 = vmul.f32 %v7807, %v466
        %v7936 = vmul.f32 %v7808, %v467
        %v7937 = vmul.f32 %v7809, %v468
        %v7938 = vmul.f32 %v7810, %v469
        %v7939 = vmul.f32 %v7811, %v470
        %v7940 = vmul.f32 %v7812, %v471
        %v7941 = vmul.f32 %v7813, %v472
        %v7942 = vmul.f32 %v7814, %v473
        %v7943 = vmul.f32 %v7815, %v474
        %v7944 = vmul.f32 %v7816, %v475
        %v7945 = vmul.f32 %v7817, %v476
        %v7946 = vmul.f32 %v7818, %v477
        %v7947 = vmul.f32 %v7819, %v478
        %v7948 = vmul.f32 %v7820, %v479
        %v7949 = vmul.f32 %v7821, %v480
        %v7950 = vmul.f32 %v7822, %v481
        %v7951 = vmul.f32 %v7823, %v482
        %v7952 = vmul.f32 %v7824, %v483
        %v7953 = vmul.f32 %v7825, %v484
        %v7954 = vmul.f32 %v7826, %v485
        %v7955 = vmul.f32 %v7827, %v486
        %v7956 = vmul.f32 %v7828, %v487
        %v7957 = vmul.f32 %v7829, %v488
        %v7958 = vmul.f32 %v7830, %v489
        %v7959 = vmul.f32 %v7831, %v490
        %v7960 = vmul.f32 %v7832, %v491
        %v7961 = vmul.f32 %v7833, %v492
        %v7962 = vmul.f32 %v7834, %v493
        %v7963 = vmul.f32 %v7835, %v494
        %v7964 = vmul.f32 %v7836, %v495
        %v7965 = vmul.f32 %v7837, %v496
        %v7966 = vmul.f32 %v7838, %v497
        %v7967 = vmul.f32 %v7839, %v498
        %v7968 = vmul.f32 %v7840, %v499
        %v7969 = vmul.f32 %v7841, %v500
        %v7970 = vmul.f32 %v7842, %v501
        %v7971 = vmul.f32 %v7843, %v502
        %v7972 = vmul.f32 %v7844, %v503
        %v7973 = vmul.f32 %v7845, %v504
        %v7974 = vmul.f32 %v7846, %v505
        %v7975 = vmul.f32 %v7847, %v506
        %v7976 = vmul.f32 %v7848, %v507
        %v7977 = vmul.f32 %v7849, %v508
        %v7978 = vmul.f32 %v7850, %v509
        %v7979 = vmul.f32 %v7851, %v510
        %v7980 = vmul.f32 %v7852, %v511
        %v7981 = vmul.f32 %v7853, %v512
        %v7982 = vmul.f32 %v7854, %v513
        %v7983 = vmul.f32 %v7855, %v514
        %v7984 = vmul.f32 %v7856, %v515
        %v7985 = vmul.f32 %v7857, %v516
        %v7986 = vmul.f32 %v7858, %v517
        %v7987 = vmul.f32 %v7859, %v518
        %v7988 = vmul.f32 %v7860, %v519
        %v7989 = vmul.f32 %v7861, %v520
        %v7990 = vmul.f32 %v7862, %v521
        %v7991 = vmul.f32 %v7863, %v522
        %v7992 = vmul.f32 %v7864, %v523
        %v7993 = vmul.f32 %v7865, %v524
        %v7994 = vmul.f32 %v7866, %v525
        %v7995 = vmul.f32 %v7867, %v526
        %v7996 = vmul.f32 %v7868, %v527
        %v7997 = vmul.f32 %v7869, %v528
        %v7998 = vmul.f32 %v7870, %v529
        %v7999 = vmul.f32 %v7871, %v530
        %v8000 = vmul.f32 %v7872, %v531
        %v8001 = vmul.f32 %v7873, %v532
        %v8002 = vmul.f32 %v7874, %v533
        %v8003 = vmul.f32 %v7875, %v534
        %v8004 = vmul.f32 %v7876, %v535
        %v8005 = vmul.f32 %v7877, %v536
        %v8006 = vmul.f32 %v7878, %v537
        %v8007 = vmul.f32 %v7879, %v538
        %v8008 = vmul.f32 %v7880, %v539
        %v8009 = vmul.f32 %v7881, %v540
        %v8010 = vmul.f32 %v7882, %v541
        %v8011 = vmul.f32 %v7883, %v542
        %v8012 = vmul.f32 %v7884, %v543
        %v8013 = vmul.f32 %v7885, %v544
        %v8014 = vmul.f32 %v7886, %v545
        %v8015 = vmul.f32 %v7887, %v546
        %v8016 = vmul.f32 %v7888, %v547
        %v8017 = vmul.f32 %v7889, %v548
        %v8018 = vmul.f32 %v7890, %v549
        %v8019 = vmul.f32 %v7891, %v550
        %v8020 = vmul.f32 %v7892, %v551
        %v8021 = vmul.f32 %v7893, %v552
        %v8022 = vmul.f32 %v7894, %v553
        %v8023 = vmul.f32 %v7895, %v554
        %v8024 = vmul.f32 %v7896, %v555
        %v8025 = vmul.f32 %v7897, %v556
        %v8026 = vmul.f32 %v7898, %v557
        %v8027 = vmul.f32 %v7899, %v558
        %v8028 = vmul.f32 %v7900, %v559
        %v8029 = vmul.f32 %v7901, %v560
        %v8030 = vmul.f32 %v7902, %v561
        %v8031 = vmul.f32 %v7903, %v562
        %v8032 = vmul.f32 %v7904, %v563
        %v8033 = vmul.f32 %v7905, %v564
        %v8034 = vmul.f32 %v7906, %v565
        %v8035 = vadd.f32 %v7907, %v7923
        %v8036 = vadd.f32 %v8035, %v7939
        %v8037 = vadd.f32 %v8036, %v7955
        %v8038 = vadd.f32 %v8037, %v7971
        %v8039 = vadd.f32 %v8038, %v7987
        %v8040 = vadd.f32 %v8039, %v8003
        %v8041 = vadd.f32 %v8040, %v8019
        %v8042 = vadd.f32 %v7908, %v7924
        %v8043 = vadd.f32 %v8042, %v7940
        %v8044 = vadd.f32 %v8043, %v7956
        %v8045 = vadd.f32 %v8044, %v7972
        %v8046 = vadd.f32 %v8045, %v7988
        %v8047 = vadd.f32 %v8046, %v8004
        %v8048 = vadd.f32 %v8047, %v8020
        %v8049 = vadd.f32 %v7909, %v7925
        %v8050 = vadd.f32 %v8049, %v7941
        %v8051 = vadd.f32 %v8050, %v7957
        %v8052 = vadd.f32 %v8051, %v7973
        %v8053 = vadd.f32 %v8052, %v7989
        %v8054 = vadd.f32 %v8053, %v8005
        %v8055 = vadd.f32 %v8054, %v8021
        %v8056 = vadd.f32 %v7910, %v7926
        %v8057 = vadd.f32 %v8056, %v7942
        %v8058 = vadd.f32 %v8057, %v7958
        %v8059 = vadd.f32 %v8058, %v7974
        %v8060 = vadd.f32 %v8059, %v7990
        %v8061 = vadd.f32 %v8060, %v8006
        %v8062 = vadd.f32 %v8061, %v8022
        %v8063 = vadd.f32 %v7911, %v7927
        %v8064 = vadd.f32 %v8063, %v7943
        %v8065 = vadd.f32 %v8064, %v7959
        %v8066 = vadd.f32 %v8065, %v7975
        %v8067 = vadd.f32 %v8066, %v7991
        %v8068 = vadd.f32 %v8067, %v8007
        %v8069 = vadd.f32 %v8068, %v8023
        %v8070 = vadd.f32 %v7912, %v7928
        %v8071 = vadd.f32 %v8070, %v7944
        %v8072 = vadd.f32 %v8071, %v7960
        %v8073 = vadd.f32 %v8072, %v7976
        %v8074 = vadd.f32 %v8073, %v7992
        %v8075 = vadd.f32 %v8074, %v8008
        %v8076 = vadd.f32 %v8075, %v8024
        %v8077 = vadd.f32 %v7913, %v7929
        %v8078 = vadd.f32 %v8077, %v7945
        %v8079 = vadd.f32 %v8078, %v7961
        %v8080 = vadd.f32 %v8079, %v7977
        %v8081 = vadd.f32 %v8080, %v7993
        %v8082 = vadd.f32 %v8081, %v8009
        %v8083 = vadd.f32 %v8082, %v8025
        %v8084 = vadd.f32 %v7914, %v7930
        %v8085 = vadd.f32 %v8084, %v7946
        %v8086 = vadd.f32 %v8085, %v7962
        %v8087 = vadd.f32 %v8086, %v7978
        %v8088 = vadd.f32 %v8087, %v7994
        %v8089 = vadd.f32 %v8088, %v8010
        %v8090 = vadd.f32 %v8089, %v8026
        %v8091 = vadd.f32 %v7915, %v7931
        %v8092 = vadd.f32 %v8091, %v7947
        %v8093 = vadd.f32 %v8092, %v7963
        %v8094 = vadd.f32 %v8093, %v7979
        %v8095 = vadd.f32 %v8094, %v7995
        %v8096 = vadd.f32 %v8095, %v8011
        %v8097 = vadd.f32 %v8096, %v8027
        %v8098 = vadd.f32 %v7916, %v7932
        %v8099 = vadd.f32 %v8098, %v7948
        %v8100 = vadd.f32 %v8099, %v7964
        %v8101 = vadd.f32 %v8100, %v7980
        %v8102 = vadd.f32 %v8101, %v7996
        %v8103 = vadd.f32 %v8102, %v8012
        %v8104 = vadd.f32 %v8103, %v8028
        %v8105 = vadd.f32 %v7917, %v7933
        %v8106 = vadd.f32 %v8105, %v7949
        %v8107 = vadd.f32 %v8106, %v7965
        %v8108 = vadd.f32 %v8107, %v7981
        %v8109 = vadd.f32 %v8108, %v7997
        %v8110 = vadd.f32 %v8109, %v8013
        %v8111 = vadd.f32 %v8110, %v8029
        %v8112 = vadd.f32 %v7918, %v7934
        %v8113 = vadd.f32 %v8112, %v7950
        %v8114 = vadd.f32 %v8113, %v7966
        %v8115 = vadd.f32 %v8114, %v7982
        %v8116 = vadd.f32 %v8115, %v7998
        %v8117 = vadd.f32 %v8116, %v8014
        %v8118 = vadd.f32 %v8117, %v8030
        %v8119 = vadd.f32 %v7919, %v7935
        %v8120 = vadd.f32 %v8119, %v7951
        %v8121 = vadd.f32 %v8120, %v7967
        %v8122 = vadd.f32 %v8121, %v7983
        %v8123 = vadd.f32 %v8122, %v7999
        %v8124 = vadd.f32 %v8123, %v8015
        %v8125 = vadd.f32 %v8124, %v8031
        %v8126 = vadd.f32 %v7920, %v7936
        %v8127 = vadd.f32 %v8126, %v7952
        %v8128 = vadd.f32 %v8127, %v7968
        %v8129 = vadd.f32 %v8128, %v7984
        %v8130 = vadd.f32 %v8129, %v8000
        %v8131 = vadd.f32 %v8130, %v8016
        %v8132 = vadd.f32 %v8131, %v8032
        %v8133 = vadd.f32 %v7921, %v7937
        %v8134 = vadd.f32 %v8133, %v7953
        %v8135 = vadd.f32 %v8134, %v7969
        %v8136 = vadd.f32 %v8135, %v7985
        %v8137 = vadd.f32 %v8136, %v8001
        %v8138 = vadd.f32 %v8137, %v8017
        %v8139 = vadd.f32 %v8138, %v8033
        %v8140 = vadd.f32 %v7922, %v7938
        %v8141 = vadd.f32 %v8140, %v7954
        %v8142 = vadd.f32 %v8141, %v7970
        %v8143 = vadd.f32 %v8142, %v7986
        %v8144 = vadd.f32 %v8143, %v8002
        %v8145 = vadd.f32 %v8144, %v8018
        %v8146 = vadd.f32 %v8145, %v8034
        %v8147 = vld [vmem:[#allocation11] sm:$0xff]
        %v8148 = vld [vmem:[#allocation11 + $0x8] sm:$0xff]
        %v8149 = vld [vmem:[#allocation11 + $0x10] sm:$0xff]
        %v8150 = vld [vmem:[#allocation11 + $0x18] sm:$0xff]
        %v8151 = vld [vmem:[#allocation11 + $0x20] sm:$0xff]
        %v8152 = vld [vmem:[#allocation11 + $0x28] sm:$0xff]
        %v8153 = vld [vmem:[#allocation11 + $0x30] sm:$0xff]
        %v8154 = vld [vmem:[#allocation11 + $0x38] sm:$0xff]
        %v8155 = vld [vmem:[#allocation11 + $0x40] sm:$0xff]
        %v8156 = vld [vmem:[#allocation11 + $0x48] sm:$0xff]
        %v8157 = vld [vmem:[#allocation11 + $0x50] sm:$0xff]
        %v8158 = vld [vmem:[#allocation11 + $0x58] sm:$0xff]
        %v8159 = vld [vmem:[#allocation11 + $0x60] sm:$0xff]
        %v8160 = vld [vmem:[#allocation11 + $0x68] sm:$0xff]
        %v8161 = vld [vmem:[#allocation11 + $0x70] sm:$0xff]
        %v8162 = vld [vmem:[#allocation11 + $0x78] sm:$0xff]
        %v8163 = vld [vmem:[#allocation11 + $0x80] sm:$0xff]
        %v8164 = vld [vmem:[#allocation11 + $0x88] sm:$0xff]
        %v8165 = vld [vmem:[#allocation11 + $0x90] sm:$0xff]
        %v8166 = vld [vmem:[#allocation11 + $0x98] sm:$0xff]
        %v8167 = vld [vmem:[#allocation11 + $0xa0] sm:$0xff]
        %v8168 = vld [vmem:[#allocation11 + $0xa8] sm:$0xff]
        %v8169 = vld [vmem:[#allocation11 + $0xb0] sm:$0xff]
        %v8170 = vld [vmem:[#allocation11 + $0xb8] sm:$0xff]
        %v8171 = vld [vmem:[#allocation11 + $0xc0] sm:$0xff]
        %v8172 = vld [vmem:[#allocation11 + $0xc8] sm:$0xff]
        %v8173 = vld [vmem:[#allocation11 + $0xd0] sm:$0xff]
        %v8174 = vld [vmem:[#allocation11 + $0xd8] sm:$0xff]
        %v8175 = vld [vmem:[#allocation11 + $0xe0] sm:$0xff]
        %v8176 = vld [vmem:[#allocation11 + $0xe8] sm:$0xff]
        %v8177 = vld [vmem:[#allocation11 + $0xf0] sm:$0xff]
        %v8178 = vld [vmem:[#allocation11 + $0xf8] sm:$0xff]
        %v8179 = vld [vmem:[#allocation11 + $0x100] sm:$0xff]
        %v8180 = vld [vmem:[#allocation11 + $0x108] sm:$0xff]
        %v8181 = vld [vmem:[#allocation11 + $0x110] sm:$0xff]
        %v8182 = vld [vmem:[#allocation11 + $0x118] sm:$0xff]
        %v8183 = vld [vmem:[#allocation11 + $0x120] sm:$0xff]
        %v8184 = vld [vmem:[#allocation11 + $0x128] sm:$0xff]
        %v8185 = vld [vmem:[#allocation11 + $0x130] sm:$0xff]
        %v8186 = vld [vmem:[#allocation11 + $0x138] sm:$0xff]
        %v8187 = vld [vmem:[#allocation11 + $0x140] sm:$0xff]
        %v8188 = vld [vmem:[#allocation11 + $0x148] sm:$0xff]
        %v8189 = vld [vmem:[#allocation11 + $0x150] sm:$0xff]
        %v8190 = vld [vmem:[#allocation11 + $0x158] sm:$0xff]
        %v8191 = vld [vmem:[#allocation11 + $0x160] sm:$0xff]
        %v8192 = vld [vmem:[#allocation11 + $0x168] sm:$0xff]
        %v8193 = vld [vmem:[#allocation11 + $0x170] sm:$0xff]
        %v8194 = vld [vmem:[#allocation11 + $0x178] sm:$0xff]
        %v8195 = vld [vmem:[#allocation11 + $0x180] sm:$0xff]
        %v8196 = vld [vmem:[#allocation11 + $0x188] sm:$0xff]
        %v8197 = vld [vmem:[#allocation11 + $0x190] sm:$0xff]
        %v8198 = vld [vmem:[#allocation11 + $0x198] sm:$0xff]
        %v8199 = vld [vmem:[#allocation11 + $0x1a0] sm:$0xff]
        %v8200 = vld [vmem:[#allocation11 + $0x1a8] sm:$0xff]
        %v8201 = vld [vmem:[#allocation11 + $0x1b0] sm:$0xff]
        %v8202 = vld [vmem:[#allocation11 + $0x1b8] sm:$0xff]
        %v8203 = vld [vmem:[#allocation11 + $0x1c0] sm:$0xff]
        %v8204 = vld [vmem:[#allocation11 + $0x1c8] sm:$0xff]
        %v8205 = vld [vmem:[#allocation11 + $0x1d0] sm:$0xff]
        %v8206 = vld [vmem:[#allocation11 + $0x1d8] sm:$0xff]
        %v8207 = vld [vmem:[#allocation11 + $0x1e0] sm:$0xff]
        %v8208 = vld [vmem:[#allocation11 + $0x1e8] sm:$0xff]
        %v8209 = vld [vmem:[#allocation11 + $0x1f0] sm:$0xff]
        %v8210 = vld [vmem:[#allocation11 + $0x1f8] sm:$0xff]
        %v8211 = vld [vmem:[#allocation13] sm:$0xff]
        %v8212 = vld [vmem:[#allocation13 + $0x8] sm:$0xff]
        %v8213 = vld [vmem:[#allocation13 + $0x10] sm:$0xff]
        %v8214 = vld [vmem:[#allocation13 + $0x18] sm:$0xff]
        %v8231 = vrot.slane %v8041, 1
        %v8232 = vrot.slane %v8041, 2
        %v8233 = vrot.slane %v8041, 3
        %v8234 = vrot.slane %v8041, 4
        %v8235 = vrot.slane %v8041, 5
        %v8236 = vrot.slane %v8041, 6
        %v8237 = vrot.slane %v8041, 7
        %v8238 = vrot.slane %v8048, 1
        %v8239 = vrot.slane %v8048, 2
        %v8240 = vrot.slane %v8048, 3
        %v8241 = vrot.slane %v8048, 4
        %v8242 = vrot.slane %v8048, 5
        %v8243 = vrot.slane %v8048, 6
        %v8244 = vrot.slane %v8048, 7
        %v8245 = vrot.slane %v8055, 1
        %v8246 = vrot.slane %v8055, 2
        %v8247 = vrot.slane %v8055, 3
        %v8248 = vrot.slane %v8055, 4
        %v8249 = vrot.slane %v8055, 5
        %v8250 = vrot.slane %v8055, 6
        %v8251 = vrot.slane %v8055, 7
        %v8252 = vrot.slane %v8062, 1
        %v8253 = vrot.slane %v8062, 2
        %v8254 = vrot.slane %v8062, 3
        %v8255 = vrot.slane %v8062, 4
        %v8256 = vrot.slane %v8062, 5
        %v8257 = vrot.slane %v8062, 6
        %v8258 = vrot.slane %v8062, 7
        %v8259 = vrot.slane %v8069, 1
        %v8260 = vrot.slane %v8069, 2
        %v8261 = vrot.slane %v8069, 3
        %v8262 = vrot.slane %v8069, 4
        %v8263 = vrot.slane %v8069, 5
        %v8264 = vrot.slane %v8069, 6
        %v8265 = vrot.slane %v8069, 7
        %v8266 = vrot.slane %v8076, 1
        %v8267 = vrot.slane %v8076, 2
        %v8268 = vrot.slane %v8076, 3
        %v8269 = vrot.slane %v8076, 4
        %v8270 = vrot.slane %v8076, 5
        %v8271 = vrot.slane %v8076, 6
        %v8272 = vrot.slane %v8076, 7
        %v8273 = vrot.slane %v8083, 1
        %v8274 = vrot.slane %v8083, 2
        %v8275 = vrot.slane %v8083, 3
        %v8276 = vrot.slane %v8083, 4
        %v8277 = vrot.slane %v8083, 5
        %v8278 = vrot.slane %v8083, 6
        %v8279 = vrot.slane %v8083, 7
        %v8280 = vrot.slane %v8090, 1
        %v8281 = vrot.slane %v8090, 2
        %v8282 = vrot.slane %v8090, 3
        %v8283 = vrot.slane %v8090, 4
        %v8284 = vrot.slane %v8090, 5
        %v8285 = vrot.slane %v8090, 6
        %v8286 = vrot.slane %v8090, 7
        %v8287 = vrot.slane %v8097, 1
        %v8288 = vrot.slane %v8097, 2
        %v8289 = vrot.slane %v8097, 3
        %v8290 = vrot.slane %v8097, 4
        %v8291 = vrot.slane %v8097, 5
        %v8292 = vrot.slane %v8097, 6
        %v8293 = vrot.slane %v8097, 7
        %v8294 = vrot.slane %v8104, 1
        %v8295 = vrot.slane %v8104, 2
        %v8296 = vrot.slane %v8104, 3
        %v8297 = vrot.slane %v8104, 4
        %v8298 = vrot.slane %v8104, 5
        %v8299 = vrot.slane %v8104, 6
        %v8300 = vrot.slane %v8104, 7
        %v8301 = vrot.slane %v8111, 1
        %v8302 = vrot.slane %v8111, 2
        %v8303 = vrot.slane %v8111, 3
        %v8304 = vrot.slane %v8111, 4
        %v8305 = vrot.slane %v8111, 5
        %v8306 = vrot.slane %v8111, 6
        %v8307 = vrot.slane %v8111, 7
        %v8308 = vrot.slane %v8118, 1
        %v8309 = vrot.slane %v8118, 2
        %v8310 = vrot.slane %v8118, 3
        %v8311 = vrot.slane %v8118, 4
        %v8312 = vrot.slane %v8118, 5
        %v8313 = vrot.slane %v8118, 6
        %v8314 = vrot.slane %v8118, 7
        %v8315 = vrot.slane %v8125, 1
        %v8316 = vrot.slane %v8125, 2
        %v8317 = vrot.slane %v8125, 3
        %v8318 = vrot.slane %v8125, 4
        %v8319 = vrot.slane %v8125, 5
        %v8320 = vrot.slane %v8125, 6
        %v8321 = vrot.slane %v8125, 7
        %v8322 = vrot.slane %v8132, 1
        %v8323 = vrot.slane %v8132, 2
        %v8324 = vrot.slane %v8132, 3
        %v8325 = vrot.slane %v8132, 4
        %v8326 = vrot.slane %v8132, 5
        %v8327 = vrot.slane %v8132, 6
        %v8328 = vrot.slane %v8132, 7
        %v8329 = vrot.slane %v8139, 1
        %v8330 = vrot.slane %v8139, 2
        %v8331 = vrot.slane %v8139, 3
        %v8332 = vrot.slane %v8139, 4
        %v8333 = vrot.slane %v8139, 5
        %v8334 = vrot.slane %v8139, 6
        %v8335 = vrot.slane %v8139, 7
        %v8336 = vrot.slane %v8146, 1
        %v8337 = vrot.slane %v8146, 2
        %v8338 = vrot.slane %v8146, 3
        %v8339 = vrot.slane %v8146, 4
        %v8340 = vrot.slane %v8146, 5
        %v8341 = vrot.slane %v8146, 6
        %v8342 = vrot.slane %v8146, 7
        %v8343 = vperm.slane %v8041, 0
        %v8344 = vperm.slane %v8231, 0
        %v8345 = vperm.slane %v8232, 0
        %v8346 = vperm.slane %v8233, 0
        %v8347 = vperm.slane %v8234, 0
        %v8348 = vperm.slane %v8235, 0
        %v8349 = vperm.slane %v8236, 0
        %v8350 = vperm.slane %v8237, 0
        %v8351 = vperm.slane %v8048, 0
        %v8352 = vperm.slane %v8238, 0
        %v8353 = vperm.slane %v8239, 0
        %v8354 = vperm.slane %v8240, 0
        %v8355 = vperm.slane %v8241, 0
        %v8356 = vperm.slane %v8242, 0
        %v8357 = vperm.slane %v8243, 0
        %v8358 = vperm.slane %v8244, 0
        %v8359 = vperm.slane %v8055, 0
        %v8360 = vperm.slane %v8245, 0
        %v8361 = vperm.slane %v8246, 0
        %v8362 = vperm.slane %v8247, 0
        %v8363 = vperm.slane %v8248, 0
        %v8364 = vperm.slane %v8249, 0
        %v8365 = vperm.slane %v8250, 0
        %v8366 = vperm.slane %v8251, 0
        %v8367 = vperm.slane %v8062, 0
        %v8368 = vperm.slane %v8252, 0
        %v8369 = vperm.slane %v8253, 0
        %v8370 = vperm.slane %v8254, 0
        %v8371 = vperm.slane %v8255, 0
        %v8372 = vperm.slane %v8256, 0
        %v8373 = vperm.slane %v8257, 0
        %v8374 = vperm.slane %v8258, 0
        %v8375 = vperm.slane %v8069, 0
        %v8376 = vperm.slane %v8259, 0
        %v8377 = vperm.slane %v8260, 0
        %v8378 = vperm.slane %v8261, 0
        %v8379 = vperm.slane %v8262, 0
        %v8380 = vperm.slane %v8263, 0
        %v8381 = vperm.slane %v8264, 0
        %v8382 = vperm.slane %v8265, 0
        %v8383 = vperm.slane %v8076, 0
        %v8384 = vperm.slane %v8266, 0
        %v8385 = vperm.slane %v8267, 0
        %v8386 = vperm.slane %v8268, 0
        %v8387 = vperm.slane %v8269, 0
        %v8388 = vperm.slane %v8270, 0
        %v8389 = vperm.slane %v8271, 0
        %v8390 = vperm.slane %v8272, 0
        %v8391 = vperm.slane %v8083, 0
        %v8392 = vperm.slane %v8273, 0
        %v8393 = vperm.slane %v8274, 0
        %v8394 = vperm.slane %v8275, 0
        %v8395 = vperm.slane %v8276, 0
        %v8396 = vperm.slane %v8277, 0
        %v8397 = vperm.slane %v8278, 0
        %v8398 = vperm.slane %v8279, 0
        %v8399 = vperm.slane %v8090, 0
        %v8400 = vperm.slane %v8280, 0
        %v8401 = vperm.slane %v8281, 0
        %v8402 = vperm.slane %v8282, 0
        %v8403 = vperm.slane %v8283, 0
        %v8404 = vperm.slane %v8284, 0
        %v8405 = vperm.slane %v8285, 0
        %v8406 = vperm.slane %v8286, 0
        %v8407 = vperm.slane %v8097, 0
        %v8408 = vperm.slane %v8287, 0
        %v8409 = vperm.slane %v8288, 0
        %v8410 = vperm.slane %v8289, 0
        %v8411 = vperm.slane %v8290, 0
        %v8412 = vperm.slane %v8291, 0
        %v8413 = vperm.slane %v8292, 0
        %v8414 = vperm.slane %v8293, 0
        %v8415 = vperm.slane %v8104, 0
        %v8416 = vperm.slane %v8294, 0
        %v8417 = vperm.slane %v8295, 0
        %v8418 = vperm.slane %v8296, 0
        %v8419 = vperm.slane %v8297, 0
        %v8420 = vperm.slane %v8298, 0
        %v8421 = vperm.slane %v8299, 0
        %v8422 = vperm.slane %v8300, 0
        %v8423 = vperm.slane %v8111, 0
        %v8424 = vperm.slane %v8301, 0
        %v8425 = vperm.slane %v8302, 0
        %v8426 = vperm.slane %v8303, 0
        %v8427 = vperm.slane %v8304, 0
        %v8428 = vperm.slane %v8305, 0
        %v8429 = vperm.slane %v8306, 0
        %v8430 = vperm.slane %v8307, 0
        %v8431 = vperm.slane %v8118, 0
        %v8432 = vperm.slane %v8308, 0
        %v8433 = vperm.slane %v8309, 0
        %v8434 = vperm.slane %v8310, 0
        %v8435 = vperm.slane %v8311, 0
        %v8436 = vperm.slane %v8312, 0
        %v8437 = vperm.slane %v8313, 0
        %v8438 = vperm.slane %v8314, 0
        %v8439 = vperm.slane %v8125, 0
        %v8440 = vperm.slane %v8315, 0
        %v8441 = vperm.slane %v8316, 0
        %v8442 = vperm.slane %v8317, 0
        %v8443 = vperm.slane %v8318, 0
        %v8444 = vperm.slane %v8319, 0
        %v8445 = vperm.slane %v8320, 0
        %v8446 = vperm.slane %v8321, 0
        %v8447 = vperm.slane %v8132, 0
        %v8448 = vperm.slane %v8322, 0
        %v8449 = vperm.slane %v8323, 0
        %v8450 = vperm.slane %v8324, 0
        %v8451 = vperm.slane %v8325, 0
        %v8452 = vperm.slane %v8326, 0
        %v8453 = vperm.slane %v8327, 0
        %v8454 = vperm.slane %v8328, 0
        %v8455 = vperm.slane %v8139, 0
        %v8456 = vperm.slane %v8329, 0
        %v8457 = vperm.slane %v8330, 0
        %v8458 = vperm.slane %v8331, 0
        %v8459 = vperm.slane %v8332, 0
        %v8460 = vperm.slane %v8333, 0
        %v8461 = vperm.slane %v8334, 0
        %v8462 = vperm.slane %v8335, 0
        %v8463 = vperm.slane %v8146, 0
        %v8464 = vperm.slane %v8336, 0
        %v8465 = vperm.slane %v8337, 0
        %v8466 = vperm.slane %v8338, 0
        %v8467 = vperm.slane %v8339, 0
        %v8468 = vperm.slane %v8340, 0
        %v8469 = vperm.slane %v8341, 0
        %v8470 = vperm.slane %v8342, 0
        %v8599 = vmul.f32 %v8343, %v8147
        %v8600 = vmul.f32 %v8343, %v8148
        %v8601 = vmul.f32 %v8343, %v8149
        %v8602 = vmul.f32 %v8343, %v8150
        %v8603 = vmul.f32 %v8344, %v8147
        %v8604 = vmul.f32 %v8344, %v8148
        %v8605 = vmul.f32 %v8344, %v8149
        %v8606 = vmul.f32 %v8344, %v8150
        %v8607 = vmul.f32 %v8345, %v8147
        %v8608 = vmul.f32 %v8345, %v8148
        %v8609 = vmul.f32 %v8345, %v8149
        %v8610 = vmul.f32 %v8345, %v8150
        %v8611 = vmul.f32 %v8346, %v8147
        %v8612 = vmul.f32 %v8346, %v8148
        %v8613 = vmul.f32 %v8346, %v8149
        %v8614 = vmul.f32 %v8346, %v8150
        %v8615 = vmul.f32 %v8347, %v8147
        %v8616 = vmul.f32 %v8347, %v8148
        %v8617 = vmul.f32 %v8347, %v8149
        %v8618 = vmul.f32 %v8347, %v8150
        %v8619 = vmul.f32 %v8348, %v8147
        %v8620 = vmul.f32 %v8348, %v8148
        %v8621 = vmul.f32 %v8348, %v8149
        %v8622 = vmul.f32 %v8348, %v8150
        %v8623 = vmul.f32 %v8349, %v8147
        %v8624 = vmul.f32 %v8349, %v8148
        %v8625 = vmul.f32 %v8349, %v8149
        %v8626 = vmul.f32 %v8349, %v8150
        %v8627 = vmul.f32 %v8350, %v8147
        %v8628 = vmul.f32 %v8350, %v8148
        %v8629 = vmul.f32 %v8350, %v8149
        %v8630 = vmul.f32 %v8350, %v8150
        %v8631 = vmul.f32 %v8351, %v8151
        %v8632 = vmul.f32 %v8351, %v8152
        %v8633 = vmul.f32 %v8351, %v8153
        %v8634 = vmul.f32 %v8351, %v8154
        %v8635 = vmul.f32 %v8352, %v8151
        %v8636 = vmul.f32 %v8352, %v8152
        %v8637 = vmul.f32 %v8352, %v8153
        %v8638 = vmul.f32 %v8352, %v8154
        %v8639 = vmul.f32 %v8353, %v8151
        %v8640 = vmul.f32 %v8353, %v8152
        %v8641 = vmul.f32 %v8353, %v8153
        %v8642 = vmul.f32 %v8353, %v8154
        %v8643 = vmul.f32 %v8354, %v8151
        %v8644 = vmul.f32 %v8354, %v8152
        %v8645 = vmul.f32 %v8354, %v8153
        %v8646 = vmul.f32 %v8354, %v8154
        %v8647 = vmul.f32 %v8355, %v8151
        %v8648 = vmul.f32 %v8355, %v8152
        %v8649 = vmul.f32 %v8355, %v8153
        %v8650 = vmul.f32 %v8355, %v8154
        %v8651 = vmul.f32 %v8356, %v8151
        %v8652 = vmul.f32 %v8356, %v8152
        %v8653 = vmul.f32 %v8356, %v8153
        %v8654 = vmul.f32 %v8356, %v8154
        %v8655 = vmul.f32 %v8357, %v8151
        %v8656 = vmul.f32 %v8357, %v8152
        %v8657 = vmul.f32 %v8357, %v8153
        %v8658 = vmul.f32 %v8357, %v8154
        %v8659 = vmul.f32 %v8358, %v8151
        %v8660 = vmul.f32 %v8358, %v8152
        %v8661 = vmul.f32 %v8358, %v8153
        %v8662 = vmul.f32 %v8358, %v8154
        %v8663 = vmul.f32 %v8359, %v8155
        %v8664 = vmul.f32 %v8359, %v8156
        %v8665 = vmul.f32 %v8359, %v8157
        %v8666 = vmul.f32 %v8359, %v8158
        %v8667 = vmul.f32 %v8360, %v8155
        %v8668 = vmul.f32 %v8360, %v8156
        %v8669 = vmul.f32 %v8360, %v8157
        %v8670 = vmul.f32 %v8360, %v8158
        %v8671 = vmul.f32 %v8361, %v8155
        %v8672 = vmul.f32 %v8361, %v8156
        %v8673 = vmul.f32 %v8361, %v8157
        %v8674 = vmul.f32 %v8361, %v8158
        %v8675 = vmul.f32 %v8362, %v8155
        %v8676 = vmul.f32 %v8362, %v8156
        %v8677 = vmul.f32 %v8362, %v8157
        %v8678 = vmul.f32 %v8362, %v8158
        %v8679 = vmul.f32 %v8363, %v8155
        %v8680 = vmul.f32 %v8363, %v8156
        %v8681 = vmul.f32 %v8363, %v8157
        %v8682 = vmul.f32 %v8363, %v8158
        %v8683 = vmul.f32 %v8364, %v8155
        %v8684 = vmul.f32 %v8364, %v8156
        %v8685 = vmul.f32 %v8364, %v8157
        %v8686 = vmul.f32 %v8364, %v8158
        %v8687 = vmul.f32 %v8365, %v8155
        %v8688 = vmul.f32 %v8365, %v8156
        %v8689 = vmul.f32 %v8365, %v8157
        %v8690 = vmul.f32 %v8365, %v8158
        %v8691 = vmul.f32 %v8366, %v8155
        %v8692 = vmul.f32 %v8366, %v8156
        %v8693 = vmul.f32 %v8366, %v8157
        %v8694 = vmul.f32 %v8366, %v8158
        %v8695 = vmul.f32 %v8367, %v8159
        %v8696 = vmul.f32 %v8367, %v8160
        %v8697 = vmul.f32 %v8367, %v8161
        %v8698 = vmul.f32 %v8367, %v8162
        %v8699 = vmul.f32 %v8368, %v8159
        %v8700 = vmul.f32 %v8368, %v8160
        %v8701 = vmul.f32 %v8368, %v8161
        %v8702 = vmul.f32 %v8368, %v8162
        %v8703 = vmul.f32 %v8369, %v8159
        %v8704 = vmul.f32 %v8369, %v8160
        %v8705 = vmul.f32 %v8369, %v8161
        %v8706 = vmul.f32 %v8369, %v8162
        %v8707 = vmul.f32 %v8370, %v8159
        %v8708 = vmul.f32 %v8370, %v8160
        %v8709 = vmul.f32 %v8370, %v8161
        %v8710 = vmul.f32 %v8370, %v8162
        %v8711 = vmul.f32 %v8371, %v8159
        %v8712 = vmul.f32 %v8371, %v8160
        %v8713 = vmul.f32 %v8371, %v8161
        %v8714 = vmul.f32 %v8371, %v8162
        %v8715 = vmul.f32 %v8372, %v8159
        %v8716 = vmul.f32 %v8372, %v8160
        %v8717 = vmul.f32 %v8372, %v8161
        %v8718 = vmul.f32 %v8372, %v8162
        %v8719 = vmul.f32 %v8373, %v8159
        %v8720 = vmul.f32 %v8373, %v8160
        %v8721 = vmul.f32 %v8373, %v8161
        %v8722 = vmul.f32 %v8373, %v8162
        %v8723 = vmul.f32 %v8374, %v8159
        %v8724 = vmul.f32 %v8374, %v8160
        %v8725 = vmul.f32 %v8374, %v8161
        %v8726 = vmul.f32 %v8374, %v8162
        %v8727 = vmul.f32 %v8375, %v8163
        %v8728 = vmul.f32 %v8375, %v8164
        %v8729 = vmul.f32 %v8375, %v8165
        %v8730 = vmul.f32 %v8375, %v8166
        %v8731 = vmul.f32 %v8376, %v8163
        %v8732 = vmul.f32 %v8376, %v8164
        %v8733 = vmul.f32 %v8376, %v8165
        %v8734 = vmul.f32 %v8376, %v8166
        %v8735 = vmul.f32 %v8377, %v8163
        %v8736 = vmul.f32 %v8377, %v8164
        %v8737 = vmul.f32 %v8377, %v8165
        %v8738 = vmul.f32 %v8377, %v8166
        %v8739 = vmul.f32 %v8378, %v8163
        %v8740 = vmul.f32 %v8378, %v8164
        %v8741 = vmul.f32 %v8378, %v8165
        %v8742 = vmul.f32 %v8378, %v8166
        %v8743 = vmul.f32 %v8379, %v8163
        %v8744 = vmul.f32 %v8379, %v8164
        %v8745 = vmul.f32 %v8379, %v8165
        %v8746 = vmul.f32 %v8379, %v8166
        %v8747 = vmul.f32 %v8380, %v8163
        %v8748 = vmul.f32 %v8380, %v8164
        %v8749 = vmul.f32 %v8380, %v8165
        %v8750 = vmul.f32 %v8380, %v8166
        %v8751 = vmul.f32 %v8381, %v8163
        %v8752 = vmul.f32 %v8381, %v8164
        %v8753 = vmul.f32 %v8381, %v8165
        %v8754 = vmul.f32 %v8381, %v8166
        %v8755 = vmul.f32 %v8382, %v8163
        %v8756 = vmul.f32 %v8382, %v8164
        %v8757 = vmul.f32 %v8382, %v8165
        %v8758 = vmul.f32 %v8382, %v8166
        %v8759 = vmul.f32 %v8383, %v8167
        %v8760 = vmul.f32 %v8383, %v8168
        %v8761 = vmul.f32 %v8383, %v8169
        %v8762 = vmul.f32 %v8383, %v8170
        %v8763 = vmul.f32 %v8384, %v8167
        %v8764 = vmul.f32 %v8384, %v8168
        %v8765 = vmul.f32 %v8384, %v8169
        %v8766 = vmul.f32 %v8384, %v8170
        %v8767 = vmul.f32 %v8385, %v8167
        %v8768 = vmul.f32 %v8385, %v8168
        %v8769 = vmul.f32 %v8385, %v8169
        %v8770 = vmul.f32 %v8385, %v8170
        %v8771 = vmul.f32 %v8386, %v8167
        %v8772 = vmul.f32 %v8386, %v8168
        %v8773 = vmul.f32 %v8386, %v8169
        %v8774 = vmul.f32 %v8386, %v8170
        %v8775 = vmul.f32 %v8387, %v8167
        %v8776 = vmul.f32 %v8387, %v8168
        %v8777 = vmul.f32 %v8387, %v8169
        %v8778 = vmul.f32 %v8387, %v8170
        %v8779 = vmul.f32 %v8388, %v8167
        %v8780 = vmul.f32 %v8388, %v8168
        %v8781 = vmul.f32 %v8388, %v8169
        %v8782 = vmul.f32 %v8388, %v8170
        %v8783 = vmul.f32 %v8389, %v8167
        %v8784 = vmul.f32 %v8389, %v8168
        %v8785 = vmul.f32 %v8389, %v8169
        %v8786 = vmul.f32 %v8389, %v8170
        %v8787 = vmul.f32 %v8390, %v8167
        %v8788 = vmul.f32 %v8390, %v8168
        %v8789 = vmul.f32 %v8390, %v8169
        %v8790 = vmul.f32 %v8390, %v8170
        %v8791 = vmul.f32 %v8391, %v8171
        %v8792 = vmul.f32 %v8391, %v8172
        %v8793 = vmul.f32 %v8391, %v8173
        %v8794 = vmul.f32 %v8391, %v8174
        %v8795 = vmul.f32 %v8392, %v8171
        %v8796 = vmul.f32 %v8392, %v8172
        %v8797 = vmul.f32 %v8392, %v8173
        %v8798 = vmul.f32 %v8392, %v8174
        %v8799 = vmul.f32 %v8393, %v8171
        %v8800 = vmul.f32 %v8393, %v8172
        %v8801 = vmul.f32 %v8393, %v8173
        %v8802 = vmul.f32 %v8393, %v8174
        %v8803 = vmul.f32 %v8394, %v8171
        %v8804 = vmul.f32 %v8394, %v8172
        %v8805 = vmul.f32 %v8394, %v8173
        %v8806 = vmul.f32 %v8394, %v8174
        %v8807 = vmul.f32 %v8395, %v8171
        %v8808 = vmul.f32 %v8395, %v8172
        %v8809 = vmul.f32 %v8395, %v8173
        %v8810 = vmul.f32 %v8395, %v8174
        %v8811 = vmul.f32 %v8396, %v8171
        %v8812 = vmul.f32 %v8396, %v8172
        %v8813 = vmul.f32 %v8396, %v8173
        %v8814 = vmul.f32 %v8396, %v8174
        %v8815 = vmul.f32 %v8397, %v8171
        %v8816 = vmul.f32 %v8397, %v8172
        %v8817 = vmul.f32 %v8397, %v8173
        %v8818 = vmul.f32 %v8397, %v8174
        %v8819 = vmul.f32 %v8398, %v8171
        %v8820 = vmul.f32 %v8398, %v8172
        %v8821 = vmul.f32 %v8398, %v8173
        %v8822 = vmul.f32 %v8398, %v8174
        %v8823 = vmul.f32 %v8399, %v8175
        %v8824 = vmul.f32 %v8399, %v8176
        %v8825 = vmul.f32 %v8399, %v8177
        %v8826 = vmul.f32 %v8399, %v8178
        %v8827 = vmul.f32 %v8400, %v8175
        %v8828 = vmul.f32 %v8400, %v8176
        %v8829 = vmul.f32 %v8400, %v8177
        %v8830 = vmul.f32 %v8400, %v8178
        %v8831 = vmul.f32 %v8401, %v8175
        %v8832 = vmul.f32 %v8401, %v8176
        %v8833 = vmul.f32 %v8401, %v8177
        %v8834 = vmul.f32 %v8401, %v8178
        %v8835 = vmul.f32 %v8402, %v8175
        %v8836 = vmul.f32 %v8402, %v8176
        %v8837 = vmul.f32 %v8402, %v8177
        %v8838 = vmul.f32 %v8402, %v8178
        %v8839 = vmul.f32 %v8403, %v8175
        %v8840 = vmul.f32 %v8403, %v8176
        %v8841 = vmul.f32 %v8403, %v8177
        %v8842 = vmul.f32 %v8403, %v8178
        %v8843 = vmul.f32 %v8404, %v8175
        %v8844 = vmul.f32 %v8404, %v8176
        %v8845 = vmul.f32 %v8404, %v8177
        %v8846 = vmul.f32 %v8404, %v8178
        %v8847 = vmul.f32 %v8405, %v8175
        %v8848 = vmul.f32 %v8405, %v8176
        %v8849 = vmul.f32 %v8405, %v8177
        %v8850 = vmul.f32 %v8405, %v8178
        %v8851 = vmul.f32 %v8406, %v8175
        %v8852 = vmul.f32 %v8406, %v8176
        %v8853 = vmul.f32 %v8406, %v8177
        %v8854 = vmul.f32 %v8406, %v8178
        %v8855 = vmul.f32 %v8407, %v8179
        %v8856 = vmul.f32 %v8407, %v8180
        %v8857 = vmul.f32 %v8407, %v8181
        %v8858 = vmul.f32 %v8407, %v8182
        %v8859 = vmul.f32 %v8408, %v8179
        %v8860 = vmul.f32 %v8408, %v8180
        %v8861 = vmul.f32 %v8408, %v8181
        %v8862 = vmul.f32 %v8408, %v8182
        %v8863 = vmul.f32 %v8409, %v8179
        %v8864 = vmul.f32 %v8409, %v8180
        %v8865 = vmul.f32 %v8409, %v8181
        %v8866 = vmul.f32 %v8409, %v8182
        %v8867 = vmul.f32 %v8410, %v8179
        %v8868 = vmul.f32 %v8410, %v8180
        %v8869 = vmul.f32 %v8410, %v8181
        %v8870 = vmul.f32 %v8410, %v8182
        %v8871 = vmul.f32 %v8411, %v8179
        %v8872 = vmul.f32 %v8411, %v8180
        %v8873 = vmul.f32 %v8411, %v8181
        %v8874 = vmul.f32 %v8411, %v8182
        %v8875 = vmul.f32 %v8412, %v8179
        %v8876 = vmul.f32 %v8412, %v8180
        %v8877 = vmul.f32 %v8412, %v8181
        %v8878 = vmul.f32 %v8412, %v8182
        %v8879 = vmul.f32 %v8413, %v8179
        %v8880 = vmul.f32 %v8413, %v8180
        %v8881 = vmul.f32 %v8413, %v8181
        %v8882 = vmul.f32 %v8413, %v8182
        %v8883 = vmul.f32 %v8414, %v8179
        %v8884 = vmul.f32 %v8414, %v8180
        %v8885 = vmul.f32 %v8414, %v8181
        %v8886 = vmul.f32 %v8414, %v8182
        %v8887 = vmul.f32 %v8415, %v8183
        %v8888 = vmul.f32 %v8415, %v8184
        %v8889 = vmul.f32 %v8415, %v8185
        %v8890 = vmul.f32 %v8415, %v8186
        %v8891 = vmul.f32 %v8416, %v8183
        %v8892 = vmul.f32 %v8416, %v8184
        %v8893 = vmul.f32 %v8416, %v8185
        %v8894 = vmul.f32 %v8416, %v8186
        %v8895 = vmul.f32 %v8417, %v8183
        %v8896 = vmul.f32 %v8417, %v8184
        %v8897 = vmul.f32 %v8417, %v8185
        %v8898 = vmul.f32 %v8417, %v8186
        %v8899 = vmul.f32 %v8418, %v8183
        %v8900 = vmul.f32 %v8418, %v8184
        %v8901 = vmul.f32 %v8418, %v8185
        %v8902 = vmul.f32 %v8418, %v8186
        %v8903 = vmul.f32 %v8419, %v8183
        %v8904 = vmul.f32 %v8419, %v8184
        %v8905 = vmul.f32 %v8419, %v8185
        %v8906 = vmul.f32 %v8419, %v8186
        %v8907 = vmul.f32 %v8420, %v8183
        %v8908 = vmul.f32 %v8420, %v8184
        %v8909 = vmul.f32 %v8420, %v8185
        %v8910 = vmul.f32 %v8420, %v8186
        %v8911 = vmul.f32 %v8421, %v8183
        %v8912 = vmul.f32 %v8421, %v8184
        %v8913 = vmul.f32 %v8421, %v8185
        %v8914 = vmul.f32 %v8421, %v8186
        %v8915 = vmul.f32 %v8422, %v8183
        %v8916 = vmul.f32 %v8422, %v8184
        %v8917 = vmul.f32 %v8422, %v8185
        %v8918 = vmul.f32 %v8422, %v8186
        %v8919 = vmul.f32 %v8423, %v8187
        %v8920 = vmul.f32 %v8423, %v8188
        %v8921 = vmul.f32 %v8423, %v8189
        %v8922 = vmul.f32 %v8423, %v8190
        %v8923 = vmul.f32 %v8424, %v8187
        %v8924 = vmul.f32 %v8424, %v8188
        %v8925 = vmul.f32 %v8424, %v8189
        %v8926 = vmul.f32 %v8424, %v8190
        %v8927 = vmul.f32 %v8425, %v8187
        %v8928 = vmul.f32 %v8425, %v8188
        %v8929 = vmul.f32 %v8425, %v8189
        %v8930 = vmul.f32 %v8425, %v8190
        %v8931 = vmul.f32 %v8426, %v8187
        %v8932 = vmul.f32 %v8426, %v8188
        %v8933 = vmul.f32 %v8426, %v8189
        %v8934 = vmul.f32 %v8426, %v8190
        %v8935 = vmul.f32 %v8427, %v8187
        %v8936 = vmul.f32 %v8427, %v8188
        %v8937 = vmul.f32 %v8427, %v8189
        %v8938 = vmul.f32 %v8427, %v8190
        %v8939 = vmul.f32 %v8428, %v8187
        %v8940 = vmul.f32 %v8428, %v8188
        %v8941 = vmul.f32 %v8428, %v8189
        %v8942 = vmul.f32 %v8428, %v8190
        %v8943 = vmul.f32 %v8429, %v8187
        %v8944 = vmul.f32 %v8429, %v8188
        %v8945 = vmul.f32 %v8429, %v8189
        %v8946 = vmul.f32 %v8429, %v8190
        %v8947 = vmul.f32 %v8430, %v8187
        %v8948 = vmul.f32 %v8430, %v8188
        %v8949 = vmul.f32 %v8430, %v8189
        %v8950 = vmul.f32 %v8430, %v8190
        %v8951 = vmul.f32 %v8431, %v8191
        %v8952 = vmul.f32 %v8431, %v8192
        %v8953 = vmul.f32 %v8431, %v8193
        %v8954 = vmul.f32 %v8431, %v8194
        %v8955 = vmul.f32 %v8432, %v8191
        %v8956 = vmul.f32 %v8432, %v8192
        %v8957 = vmul.f32 %v8432, %v8193
        %v8958 = vmul.f32 %v8432, %v8194
        %v8959 = vmul.f32 %v8433, %v8191
        %v8960 = vmul.f32 %v8433, %v8192
        %v8961 = vmul.f32 %v8433, %v8193
        %v8962 = vmul.f32 %v8433, %v8194
        %v8963 = vmul.f32 %v8434, %v8191
        %v8964 = vmul.f32 %v8434, %v8192
        %v8965 = vmul.f32 %v8434, %v8193
        %v8966 = vmul.f32 %v8434, %v8194
        %v8967 = vmul.f32 %v8435, %v8191
        %v8968 = vmul.f32 %v8435, %v8192
        %v8969 = vmul.f32 %v8435, %v8193
        %v8970 = vmul.f32 %v8435, %v8194
        %v8971 = vmul.f32 %v8436, %v8191
        %v8972 = vmul.f32 %v8436, %v8192
        %v8973 = vmul.f32 %v8436, %v8193
        %v8974 = vmul.f32 %v8436, %v8194
        %v8975 = vmul.f32 %v8437, %v8191
        %v8976 = vmul.f32 %v8437, %v8192
        %v8977 = vmul.f32 %v8437, %v8193
        %v8978 = vmul.f32 %v8437, %v8194
        %v8979 = vmul.f32 %v8438, %v8191
        %v8980 = vmul.f32 %v8438, %v8192
        %v8981 = vmul.f32 %v8438, %v8193
        %v8982 = vmul.f32 %v8438, %v8194
        %v8983 = vmul.f32 %v8439, %v8195
        %v8984 = vmul.f32 %v8439, %v8196
        %v8985 = vmul.f32 %v8439, %v8197
        %v8986 = vmul.f32 %v8439, %v8198
        %v8987 = vmul.f32 %v8440, %v8195
        %v8988 = vmul.f32 %v8440, %v8196
        %v8989 = vmul.f32 %v8440, %v8197
        %v8990 = vmul.f32 %v8440, %v8198
        %v8991 = vmul.f32 %v8441, %v8195
        %v8992 = vmul.f32 %v8441, %v8196
        %v8993 = vmul.f32 %v8441, %v8197
        %v8994 = vmul.f32 %v8441, %v8198
        %v8995 = vmul.f32 %v8442, %v8195
        %v8996 = vmul.f32 %v8442, %v8196
        %v8997 = vmul.f32 %v8442, %v8197
        %v8998 = vmul.f32 %v8442, %v8198
        %v8999 = vmul.f32 %v8443, %v8195
        %v9000 = vmul.f32 %v8443, %v8196
        %v9001 = vmul.f32 %v8443, %v8197
        %v9002 = vmul.f32 %v8443, %v8198
        %v9003 = vmul.f32 %v8444, %v8195
        %v9004 = vmul.f32 %v8444, %v8196
        %v9005 = vmul.f32 %v8444, %v8197
        %v9006 = vmul.f32 %v8444, %v8198
        %v9007 = vmul.f32 %v8445, %v8195
        %v9008 = vmul.f32 %v8445, %v8196
        %v9009 = vmul.f32 %v8445, %v8197
        %v9010 = vmul.f32 %v8445, %v8198
        %v9011 = vmul.f32 %v8446, %v8195
        %v9012 = vmul.f32 %v8446, %v8196
        %v9013 = vmul.f32 %v8446, %v8197
        %v9014 = vmul.f32 %v8446, %v8198
        %v9015 = vmul.f32 %v8447, %v8199
        %v9016 = vmul.f32 %v8447, %v8200
        %v9017 = vmul.f32 %v8447, %v8201
        %v9018 = vmul.f32 %v8447, %v8202
        %v9019 = vmul.f32 %v8448, %v8199
        %v9020 = vmul.f32 %v8448, %v8200
        %v9021 = vmul.f32 %v8448, %v8201
        %v9022 = vmul.f32 %v8448, %v8202
        %v9023 = vmul.f32 %v8449, %v8199
        %v9024 = vmul.f32 %v8449, %v8200
        %v9025 = vmul.f32 %v8449, %v8201
        %v9026 = vmul.f32 %v8449, %v8202
        %v9027 = vmul.f32 %v8450, %v8199
        %v9028 = vmul.f32 %v8450, %v8200
        %v9029 = vmul.f32 %v8450, %v8201
        %v9030 = vmul.f32 %v8450, %v8202
        %v9031 = vmul.f32 %v8451, %v8199
        %v9032 = vmul.f32 %v8451, %v8200
        %v9033 = vmul.f32 %v8451, %v8201
        %v9034 = vmul.f32 %v8451, %v8202
        %v9035 = vmul.f32 %v8452, %v8199
        %v9036 = vmul.f32 %v8452, %v8200
        %v9037 = vmul.f32 %v8452, %v8201
        %v9038 = vmul.f32 %v8452, %v8202
        %v9039 = vmul.f32 %v8453, %v8199
        %v9040 = vmul.f32 %v8453, %v8200
        %v9041 = vmul.f32 %v8453, %v8201
        %v9042 = vmul.f32 %v8453, %v8202
        %v9043 = vmul.f32 %v8454, %v8199
        %v9044 = vmul.f32 %v8454, %v8200
        %v9045 = vmul.f32 %v8454, %v8201
        %v9046 = vmul.f32 %v8454, %v8202
        %v9047 = vmul.f32 %v8455, %v8203
        %v9048 = vmul.f32 %v8455, %v8204
        %v9049 = vmul.f32 %v8455, %v8205
        %v9050 = vmul.f32 %v8455, %v8206
        %v9051 = vmul.f32 %v8456, %v8203
        %v9052 = vmul.f32 %v8456, %v8204
        %v9053 = vmul.f32 %v8456, %v8205
        %v9054 = vmul.f32 %v8456, %v8206
        %v9055 = vmul.f32 %v8457, %v8203
        %v9056 = vmul.f32 %v8457, %v8204
        %v9057 = vmul.f32 %v8457, %v8205
        %v9058 = vmul.f32 %v8457, %v8206
        %v9059 = vmul.f32 %v8458, %v8203
        %v9060 = vmul.f32 %v8458, %v8204
        %v9061 = vmul.f32 %v8458, %v8205
        %v9062 = vmul.f32 %v8458, %v8206
        %v9063 = vmul.f32 %v8459, %v8203
        %v9064 = vmul.f32 %v8459, %v8204
        %v9065 = vmul.f32 %v8459, %v8205
        %v9066 = vmul.f32 %v8459, %v8206
        %v9067 = vmul.f32 %v8460, %v8203
        %v9068 = vmul.f32 %v8460, %v8204
        %v9069 = vmul.f32 %v8460, %v8205
        %v9070 = vmul.f32 %v8460, %v8206
        %v9071 = vmul.f32 %v8461, %v8203
        %v9072 = vmul.f32 %v8461, %v8204
        %v9073 = vmul.f32 %v8461, %v8205
        %v9074 = vmul.f32 %v8461, %v8206
        %v9075 = vmul.f32 %v8462, %v8203
        %v9076 = vmul.f32 %v8462, %v8204
        %v9077 = vmul.f32 %v8462, %v8205
        %v9078 = vmul.f32 %v8462, %v8206
        %v9079 = vmul.f32 %v8463, %v8207
        %v9080 = vmul.f32 %v8463, %v8208
        %v9081 = vmul.f32 %v8463, %v8209
        %v9082 = vmul.f32 %v8463, %v8210
        %v9083 = vmul.f32 %v8464, %v8207
        %v9084 = vmul.f32 %v8464, %v8208
        %v9085 = vmul.f32 %v8464, %v8209
        %v9086 = vmul.f32 %v8464, %v8210
        %v9087 = vmul.f32 %v8465, %v8207
        %v9088 = vmul.f32 %v8465, %v8208
        %v9089 = vmul.f32 %v8465, %v8209
        %v9090 = vmul.f32 %v8465, %v8210
        %v9091 = vmul.f32 %v8466, %v8207
        %v9092 = vmul.f32 %v8466, %v8208
        %v9093 = vmul.f32 %v8466, %v8209
        %v9094 = vmul.f32 %v8466, %v8210
        %v9095 = vmul.f32 %v8467, %v8207
        %v9096 = vmul.f32 %v8467, %v8208
        %v9097 = vmul.f32 %v8467, %v8209
        %v9098 = vmul.f32 %v8467, %v8210
        %v9099 = vmul.f32 %v8468, %v8207
        %v9100 = vmul.f32 %v8468, %v8208
        %v9101 = vmul.f32 %v8468, %v8209
        %v9102 = vmul.f32 %v8468, %v8210
        %v9103 = vmul.f32 %v8469, %v8207
        %v9104 = vmul.f32 %v8469, %v8208
        %v9105 = vmul.f32 %v8469, %v8209
        %v9106 = vmul.f32 %v8469, %v8210
        %v9107 = vmul.f32 %v8470, %v8207
        %v9108 = vmul.f32 %v8470, %v8208
        %v9109 = vmul.f32 %v8470, %v8209
        %v9110 = vmul.f32 %v8470, %v8210
        %v9111 = vadd.f32 %v8599, %v8631
        %v9112 = vadd.f32 %v9111, %v8663
        %v9113 = vadd.f32 %v9112, %v8695
        %v9114 = vadd.f32 %v9113, %v8727
        %v9115 = vadd.f32 %v9114, %v8759
        %v9116 = vadd.f32 %v9115, %v8791
        %v9117 = vadd.f32 %v9116, %v8823
        %v9118 = vadd.f32 %v9117, %v8855
        %v9119 = vadd.f32 %v9118, %v8887
        %v9120 = vadd.f32 %v9119, %v8919
        %v9121 = vadd.f32 %v9120, %v8951
        %v9122 = vadd.f32 %v9121, %v8983
        %v9123 = vadd.f32 %v9122, %v9015
        %v9124 = vadd.f32 %v9123, %v9047
        %v9125 = vadd.f32 %v9124, %v9079
        %v9126 = vadd.f32 %v8600, %v8632
        %v9127 = vadd.f32 %v9126, %v8664
        %v9128 = vadd.f32 %v9127, %v8696
        %v9129 = vadd.f32 %v9128, %v8728
        %v9130 = vadd.f32 %v9129, %v8760
        %v9131 = vadd.f32 %v9130, %v8792
        %v9132 = vadd.f32 %v9131, %v8824
        %v9133 = vadd.f32 %v9132, %v8856
        %v9134 = vadd.f32 %v9133, %v8888
        %v9135 = vadd.f32 %v9134, %v8920
        %v9136 = vadd.f32 %v9135, %v8952
        %v9137 = vadd.f32 %v9136, %v8984
        %v9138 = vadd.f32 %v9137, %v9016
        %v9139 = vadd.f32 %v9138, %v9048
        %v9140 = vadd.f32 %v9139, %v9080
        %v9141 = vadd.f32 %v8601, %v8633
        %v9142 = vadd.f32 %v9141, %v8665
        %v9143 = vadd.f32 %v9142, %v8697
        %v9144 = vadd.f32 %v9143, %v8729
        %v9145 = vadd.f32 %v9144, %v8761
        %v9146 = vadd.f32 %v9145, %v8793
        %v9147 = vadd.f32 %v9146, %v8825
        %v9148 = vadd.f32 %v9147, %v8857
        %v9149 = vadd.f32 %v9148, %v8889
        %v9150 = vadd.f32 %v9149, %v8921
        %v9151 = vadd.f32 %v9150, %v8953
        %v9152 = vadd.f32 %v9151, %v8985
        %v9153 = vadd.f32 %v9152, %v9017
        %v9154 = vadd.f32 %v9153, %v9049
        %v9155 = vadd.f32 %v9154, %v9081
        %v9156 = vadd.f32 %v8602, %v8634
        %v9157 = vadd.f32 %v9156, %v8666
        %v9158 = vadd.f32 %v9157, %v8698
        %v9159 = vadd.f32 %v9158, %v8730
        %v9160 = vadd.f32 %v9159, %v8762
        %v9161 = vadd.f32 %v9160, %v8794
        %v9162 = vadd.f32 %v9161, %v8826
        %v9163 = vadd.f32 %v9162, %v8858
        %v9164 = vadd.f32 %v9163, %v8890
        %v9165 = vadd.f32 %v9164, %v8922
        %v9166 = vadd.f32 %v9165, %v8954
        %v9167 = vadd.f32 %v9166, %v8986
        %v9168 = vadd.f32 %v9167, %v9018
        %v9169 = vadd.f32 %v9168, %v9050
        %v9170 = vadd.f32 %v9169, %v9082
        %v9171 = vadd.f32 %v8603, %v8635
        %v9172 = vadd.f32 %v9171, %v8667
        %v9173 = vadd.f32 %v9172, %v8699
        %v9174 = vadd.f32 %v9173, %v8731
        %v9175 = vadd.f32 %v9174, %v8763
        %v9176 = vadd.f32 %v9175, %v8795
        %v9177 = vadd.f32 %v9176, %v8827
        %v9178 = vadd.f32 %v9177, %v8859
        %v9179 = vadd.f32 %v9178, %v8891
        %v9180 = vadd.f32 %v9179, %v8923
        %v9181 = vadd.f32 %v9180, %v8955
        %v9182 = vadd.f32 %v9181, %v8987
        %v9183 = vadd.f32 %v9182, %v9019
        %v9184 = vadd.f32 %v9183, %v9051
        %v9185 = vadd.f32 %v9184, %v9083
        %v9186 = vadd.f32 %v8604, %v8636
        %v9187 = vadd.f32 %v9186, %v8668
        %v9188 = vadd.f32 %v9187, %v8700
        %v9189 = vadd.f32 %v9188, %v8732
        %v9190 = vadd.f32 %v9189, %v8764
        %v9191 = vadd.f32 %v9190, %v8796
        %v9192 = vadd.f32 %v9191, %v8828
        %v9193 = vadd.f32 %v9192, %v8860
        %v9194 = vadd.f32 %v9193, %v8892
        %v9195 = vadd.f32 %v9194, %v8924
        %v9196 = vadd.f32 %v9195, %v8956
        %v9197 = vadd.f32 %v9196, %v8988
        %v9198 = vadd.f32 %v9197, %v9020
        %v9199 = vadd.f32 %v9198, %v9052
        %v9200 = vadd.f32 %v9199, %v9084
        %v9201 = vadd.f32 %v8605, %v8637
        %v9202 = vadd.f32 %v9201, %v8669
        %v9203 = vadd.f32 %v9202, %v8701
        %v9204 = vadd.f32 %v9203, %v8733
        %v9205 = vadd.f32 %v9204, %v8765
        %v9206 = vadd.f32 %v9205, %v8797
        %v9207 = vadd.f32 %v9206, %v8829
        %v9208 = vadd.f32 %v9207, %v8861
        %v9209 = vadd.f32 %v9208, %v8893
        %v9210 = vadd.f32 %v9209, %v8925
        %v9211 = vadd.f32 %v9210, %v8957
        %v9212 = vadd.f32 %v9211, %v8989
        %v9213 = vadd.f32 %v9212, %v9021
        %v9214 = vadd.f32 %v9213, %v9053
        %v9215 = vadd.f32 %v9214, %v9085
        %v9216 = vadd.f32 %v8606, %v8638
        %v9217 = vadd.f32 %v9216, %v8670
        %v9218 = vadd.f32 %v9217, %v8702
        %v9219 = vadd.f32 %v9218, %v8734
        %v9220 = vadd.f32 %v9219, %v8766
        %v9221 = vadd.f32 %v9220, %v8798
        %v9222 = vadd.f32 %v9221, %v8830
        %v9223 = vadd.f32 %v9222, %v8862
        %v9224 = vadd.f32 %v9223, %v8894
        %v9225 = vadd.f32 %v9224, %v8926
        %v9226 = vadd.f32 %v9225, %v8958
        %v9227 = vadd.f32 %v9226, %v8990
        %v9228 = vadd.f32 %v9227, %v9022
        %v9229 = vadd.f32 %v9228, %v9054
        %v9230 = vadd.f32 %v9229, %v9086
        %v9231 = vadd.f32 %v8607, %v8639
        %v9232 = vadd.f32 %v9231, %v8671
        %v9233 = vadd.f32 %v9232, %v8703
        %v9234 = vadd.f32 %v9233, %v8735
        %v9235 = vadd.f32 %v9234, %v8767
        %v9236 = vadd.f32 %v9235, %v8799
        %v9237 = vadd.f32 %v9236, %v8831
        %v9238 = vadd.f32 %v9237, %v8863
        %v9239 = vadd.f32 %v9238, %v8895
        %v9240 = vadd.f32 %v9239, %v8927
        %v9241 = vadd.f32 %v9240, %v8959
        %v9242 = vadd.f32 %v9241, %v8991
        %v9243 = vadd.f32 %v9242, %v9023
        %v9244 = vadd.f32 %v9243, %v9055
        %v9245 = vadd.f32 %v9244, %v9087
        %v9246 = vadd.f32 %v8608, %v8640
        %v9247 = vadd.f32 %v9246, %v8672
        %v9248 = vadd.f32 %v9247, %v8704
        %v9249 = vadd.f32 %v9248, %v8736
        %v9250 = vadd.f32 %v9249, %v8768
        %v9251 = vadd.f32 %v9250, %v8800
        %v9252 = vadd.f32 %v9251, %v8832
        %v9253 = vadd.f32 %v9252, %v8864
        %v9254 = vadd.f32 %v9253, %v8896
        %v9255 = vadd.f32 %v9254, %v8928
        %v9256 = vadd.f32 %v9255, %v8960
        %v9257 = vadd.f32 %v9256, %v8992
        %v9258 = vadd.f32 %v9257, %v9024
        %v9259 = vadd.f32 %v9258, %v9056
        %v9260 = vadd.f32 %v9259, %v9088
        %v9261 = vadd.f32 %v8609, %v8641
        %v9262 = vadd.f32 %v9261, %v8673
        %v9263 = vadd.f32 %v9262, %v8705
        %v9264 = vadd.f32 %v9263, %v8737
        %v9265 = vadd.f32 %v9264, %v8769
        %v9266 = vadd.f32 %v9265, %v8801
        %v9267 = vadd.f32 %v9266, %v8833
        %v9268 = vadd.f32 %v9267, %v8865
        %v9269 = vadd.f32 %v9268, %v8897
        %v9270 = vadd.f32 %v9269, %v8929
        %v9271 = vadd.f32 %v9270, %v8961
        %v9272 = vadd.f32 %v9271, %v8993
        %v9273 = vadd.f32 %v9272, %v9025
        %v9274 = vadd.f32 %v9273, %v9057
        %v9275 = vadd.f32 %v9274, %v9089
        %v9276 = vadd.f32 %v8610, %v8642
        %v9277 = vadd.f32 %v9276, %v8674
        %v9278 = vadd.f32 %v9277, %v8706
        %v9279 = vadd.f32 %v9278, %v8738
        %v9280 = vadd.f32 %v9279, %v8770
        %v9281 = vadd.f32 %v9280, %v8802
        %v9282 = vadd.f32 %v9281, %v8834
        %v9283 = vadd.f32 %v9282, %v8866
        %v9284 = vadd.f32 %v9283, %v8898
        %v9285 = vadd.f32 %v9284, %v8930
        %v9286 = vadd.f32 %v9285, %v8962
        %v9287 = vadd.f32 %v9286, %v8994
        %v9288 = vadd.f32 %v9287, %v9026
        %v9289 = vadd.f32 %v9288, %v9058
        %v9290 = vadd.f32 %v9289, %v9090
        %v9291 = vadd.f32 %v8611, %v8643
        %v9292 = vadd.f32 %v9291, %v8675
        %v9293 = vadd.f32 %v9292, %v8707
        %v9294 = vadd.f32 %v9293, %v8739
        %v9295 = vadd.f32 %v9294, %v8771
        %v9296 = vadd.f32 %v9295, %v8803
        %v9297 = vadd.f32 %v9296, %v8835
        %v9298 = vadd.f32 %v9297, %v8867
        %v9299 = vadd.f32 %v9298, %v8899
        %v9300 = vadd.f32 %v9299, %v8931
        %v9301 = vadd.f32 %v9300, %v8963
        %v9302 = vadd.f32 %v9301, %v8995
        %v9303 = vadd.f32 %v9302, %v9027
        %v9304 = vadd.f32 %v9303, %v9059
        %v9305 = vadd.f32 %v9304, %v9091
        %v9306 = vadd.f32 %v8612, %v8644
        %v9307 = vadd.f32 %v9306, %v8676
        %v9308 = vadd.f32 %v9307, %v8708
        %v9309 = vadd.f32 %v9308, %v8740
        %v9310 = vadd.f32 %v9309, %v8772
        %v9311 = vadd.f32 %v9310, %v8804
        %v9312 = vadd.f32 %v9311, %v8836
        %v9313 = vadd.f32 %v9312, %v8868
        %v9314 = vadd.f32 %v9313, %v8900
        %v9315 = vadd.f32 %v9314, %v8932
        %v9316 = vadd.f32 %v9315, %v8964
        %v9317 = vadd.f32 %v9316, %v8996
        %v9318 = vadd.f32 %v9317, %v9028
        %v9319 = vadd.f32 %v9318, %v9060
        %v9320 = vadd.f32 %v9319, %v9092
        %v9321 = vadd.f32 %v8613, %v8645
        %v9322 = vadd.f32 %v9321, %v8677
        %v9323 = vadd.f32 %v9322, %v8709
        %v9324 = vadd.f32 %v9323, %v8741
        %v9325 = vadd.f32 %v9324, %v8773
        %v9326 = vadd.f32 %v9325, %v8805
        %v9327 = vadd.f32 %v9326, %v8837
        %v9328 = vadd.f32 %v9327, %v8869
        %v9329 = vadd.f32 %v9328, %v8901
        %v9330 = vadd.f32 %v9329, %v8933
        %v9331 = vadd.f32 %v9330, %v8965
        %v9332 = vadd.f32 %v9331, %v8997
        %v9333 = vadd.f32 %v9332, %v9029
        %v9334 = vadd.f32 %v9333, %v9061
        %v9335 = vadd.f32 %v9334, %v9093
        %v9336 = vadd.f32 %v8614, %v8646
        %v9337 = vadd.f32 %v9336, %v8678
        %v9338 = vadd.f32 %v9337, %v8710
        %v9339 = vadd.f32 %v9338, %v8742
        %v9340 = vadd.f32 %v9339, %v8774
        %v9341 = vadd.f32 %v9340, %v8806
        %v9342 = vadd.f32 %v9341, %v8838
        %v9343 = vadd.f32 %v9342, %v8870
        %v9344 = vadd.f32 %v9343, %v8902
        %v9345 = vadd.f32 %v9344, %v8934
        %v9346 = vadd.f32 %v9345, %v8966
        %v9347 = vadd.f32 %v9346, %v8998
        %v9348 = vadd.f32 %v9347, %v9030
        %v9349 = vadd.f32 %v9348, %v9062
        %v9350 = vadd.f32 %v9349, %v9094
        %v9351 = vadd.f32 %v8615, %v8647
        %v9352 = vadd.f32 %v9351, %v8679
        %v9353 = vadd.f32 %v9352, %v8711
        %v9354 = vadd.f32 %v9353, %v8743
        %v9355 = vadd.f32 %v9354, %v8775
        %v9356 = vadd.f32 %v9355, %v8807
        %v9357 = vadd.f32 %v9356, %v8839
        %v9358 = vadd.f32 %v9357, %v8871
        %v9359 = vadd.f32 %v9358, %v8903
        %v9360 = vadd.f32 %v9359, %v8935
        %v9361 = vadd.f32 %v9360, %v8967
        %v9362 = vadd.f32 %v9361, %v8999
        %v9363 = vadd.f32 %v9362, %v9031
        %v9364 = vadd.f32 %v9363, %v9063
        %v9365 = vadd.f32 %v9364, %v9095
        %v9366 = vadd.f32 %v8616, %v8648
        %v9367 = vadd.f32 %v9366, %v8680
        %v9368 = vadd.f32 %v9367, %v8712
        %v9369 = vadd.f32 %v9368, %v8744
        %v9370 = vadd.f32 %v9369, %v8776
        %v9371 = vadd.f32 %v9370, %v8808
        %v9372 = vadd.f32 %v9371, %v8840
        %v9373 = vadd.f32 %v9372, %v8872
        %v9374 = vadd.f32 %v9373, %v8904
        %v9375 = vadd.f32 %v9374, %v8936
        %v9376 = vadd.f32 %v9375, %v8968
        %v9377 = vadd.f32 %v9376, %v9000
        %v9378 = vadd.f32 %v9377, %v9032
        %v9379 = vadd.f32 %v9378, %v9064
        %v9380 = vadd.f32 %v9379, %v9096
        %v9381 = vadd.f32 %v8617, %v8649
        %v9382 = vadd.f32 %v9381, %v8681
        %v9383 = vadd.f32 %v9382, %v8713
        %v9384 = vadd.f32 %v9383, %v8745
        %v9385 = vadd.f32 %v9384, %v8777
        %v9386 = vadd.f32 %v9385, %v8809
        %v9387 = vadd.f32 %v9386, %v8841
        %v9388 = vadd.f32 %v9387, %v8873
        %v9389 = vadd.f32 %v9388, %v8905
        %v9390 = vadd.f32 %v9389, %v8937
        %v9391 = vadd.f32 %v9390, %v8969
        %v9392 = vadd.f32 %v9391, %v9001
        %v9393 = vadd.f32 %v9392, %v9033
        %v9394 = vadd.f32 %v9393, %v9065
        %v9395 = vadd.f32 %v9394, %v9097
        %v9396 = vadd.f32 %v8618, %v8650
        %v9397 = vadd.f32 %v9396, %v8682
        %v9398 = vadd.f32 %v9397, %v8714
        %v9399 = vadd.f32 %v9398, %v8746
        %v9400 = vadd.f32 %v9399, %v8778
        %v9401 = vadd.f32 %v9400, %v8810
        %v9402 = vadd.f32 %v9401, %v8842
        %v9403 = vadd.f32 %v9402, %v8874
        %v9404 = vadd.f32 %v9403, %v8906
        %v9405 = vadd.f32 %v9404, %v8938
        %v9406 = vadd.f32 %v9405, %v8970
        %v9407 = vadd.f32 %v9406, %v9002
        %v9408 = vadd.f32 %v9407, %v9034
        %v9409 = vadd.f32 %v9408, %v9066
        %v9410 = vadd.f32 %v9409, %v9098
        %v9411 = vadd.f32 %v8619, %v8651
        %v9412 = vadd.f32 %v9411, %v8683
        %v9413 = vadd.f32 %v9412, %v8715
        %v9414 = vadd.f32 %v9413, %v8747
        %v9415 = vadd.f32 %v9414, %v8779
        %v9416 = vadd.f32 %v9415, %v8811
        %v9417 = vadd.f32 %v9416, %v8843
        %v9418 = vadd.f32 %v9417, %v8875
        %v9419 = vadd.f32 %v9418, %v8907
        %v9420 = vadd.f32 %v9419, %v8939
        %v9421 = vadd.f32 %v9420, %v8971
        %v9422 = vadd.f32 %v9421, %v9003
        %v9423 = vadd.f32 %v9422, %v9035
        %v9424 = vadd.f32 %v9423, %v9067
        %v9425 = vadd.f32 %v9424, %v9099
        %v9426 = vadd.f32 %v8620, %v8652
        %v9427 = vadd.f32 %v9426, %v8684
        %v9428 = vadd.f32 %v9427, %v8716
        %v9429 = vadd.f32 %v9428, %v8748
        %v9430 = vadd.f32 %v9429, %v8780
        %v9431 = vadd.f32 %v9430, %v8812
        %v9432 = vadd.f32 %v9431, %v8844
        %v9433 = vadd.f32 %v9432, %v8876
        %v9434 = vadd.f32 %v9433, %v8908
        %v9435 = vadd.f32 %v9434, %v8940
        %v9436 = vadd.f32 %v9435, %v8972
        %v9437 = vadd.f32 %v9436, %v9004
        %v9438 = vadd.f32 %v9437, %v9036
        %v9439 = vadd.f32 %v9438, %v9068
        %v9440 = vadd.f32 %v9439, %v9100
        %v9441 = vadd.f32 %v8621, %v8653
        %v9442 = vadd.f32 %v9441, %v8685
        %v9443 = vadd.f32 %v9442, %v8717
        %v9444 = vadd.f32 %v9443, %v8749
        %v9445 = vadd.f32 %v9444, %v8781
        %v9446 = vadd.f32 %v9445, %v8813
        %v9447 = vadd.f32 %v9446, %v8845
        %v9448 = vadd.f32 %v9447, %v8877
        %v9449 = vadd.f32 %v9448, %v8909
        %v9450 = vadd.f32 %v9449, %v8941
        %v9451 = vadd.f32 %v9450, %v8973
        %v9452 = vadd.f32 %v9451, %v9005
        %v9453 = vadd.f32 %v9452, %v9037
        %v9454 = vadd.f32 %v9453, %v9069
        %v9455 = vadd.f32 %v9454, %v9101
        %v9456 = vadd.f32 %v8622, %v8654
        %v9457 = vadd.f32 %v9456, %v8686
        %v9458 = vadd.f32 %v9457, %v8718
        %v9459 = vadd.f32 %v9458, %v8750
        %v9460 = vadd.f32 %v9459, %v8782
        %v9461 = vadd.f32 %v9460, %v8814
        %v9462 = vadd.f32 %v9461, %v8846
        %v9463 = vadd.f32 %v9462, %v8878
        %v9464 = vadd.f32 %v9463, %v8910
        %v9465 = vadd.f32 %v9464, %v8942
        %v9466 = vadd.f32 %v9465, %v8974
        %v9467 = vadd.f32 %v9466, %v9006
        %v9468 = vadd.f32 %v9467, %v9038
        %v9469 = vadd.f32 %v9468, %v9070
        %v9470 = vadd.f32 %v9469, %v9102
        %v9471 = vadd.f32 %v8623, %v8655
        %v9472 = vadd.f32 %v9471, %v8687
        %v9473 = vadd.f32 %v9472, %v8719
        %v9474 = vadd.f32 %v9473, %v8751
        %v9475 = vadd.f32 %v9474, %v8783
        %v9476 = vadd.f32 %v9475, %v8815
        %v9477 = vadd.f32 %v9476, %v8847
        %v9478 = vadd.f32 %v9477, %v8879
        %v9479 = vadd.f32 %v9478, %v8911
        %v9480 = vadd.f32 %v9479, %v8943
        %v9481 = vadd.f32 %v9480, %v8975
        %v9482 = vadd.f32 %v9481, %v9007
        %v9483 = vadd.f32 %v9482, %v9039
        %v9484 = vadd.f32 %v9483, %v9071
        %v9485 = vadd.f32 %v9484, %v9103
        %v9486 = vadd.f32 %v8624, %v8656
        %v9487 = vadd.f32 %v9486, %v8688
        %v9488 = vadd.f32 %v9487, %v8720
        %v9489 = vadd.f32 %v9488, %v8752
        %v9490 = vadd.f32 %v9489, %v8784
        %v9491 = vadd.f32 %v9490, %v8816
        %v9492 = vadd.f32 %v9491, %v8848
        %v9493 = vadd.f32 %v9492, %v8880
        %v9494 = vadd.f32 %v9493, %v8912
        %v9495 = vadd.f32 %v9494, %v8944
        %v9496 = vadd.f32 %v9495, %v8976
        %v9497 = vadd.f32 %v9496, %v9008
        %v9498 = vadd.f32 %v9497, %v9040
        %v9499 = vadd.f32 %v9498, %v9072
        %v9500 = vadd.f32 %v9499, %v9104
        %v9501 = vadd.f32 %v8625, %v8657
        %v9502 = vadd.f32 %v9501, %v8689
        %v9503 = vadd.f32 %v9502, %v8721
        %v9504 = vadd.f32 %v9503, %v8753
        %v9505 = vadd.f32 %v9504, %v8785
        %v9506 = vadd.f32 %v9505, %v8817
        %v9507 = vadd.f32 %v9506, %v8849
        %v9508 = vadd.f32 %v9507, %v8881
        %v9509 = vadd.f32 %v9508, %v8913
        %v9510 = vadd.f32 %v9509, %v8945
        %v9511 = vadd.f32 %v9510, %v8977
        %v9512 = vadd.f32 %v9511, %v9009
        %v9513 = vadd.f32 %v9512, %v9041
        %v9514 = vadd.f32 %v9513, %v9073
        %v9515 = vadd.f32 %v9514, %v9105
        %v9516 = vadd.f32 %v8626, %v8658
        %v9517 = vadd.f32 %v9516, %v8690
        %v9518 = vadd.f32 %v9517, %v8722
        %v9519 = vadd.f32 %v9518, %v8754
        %v9520 = vadd.f32 %v9519, %v8786
        %v9521 = vadd.f32 %v9520, %v8818
        %v9522 = vadd.f32 %v9521, %v8850
        %v9523 = vadd.f32 %v9522, %v8882
        %v9524 = vadd.f32 %v9523, %v8914
        %v9525 = vadd.f32 %v9524, %v8946
        %v9526 = vadd.f32 %v9525, %v8978
        %v9527 = vadd.f32 %v9526, %v9010
        %v9528 = vadd.f32 %v9527, %v9042
        %v9529 = vadd.f32 %v9528, %v9074
        %v9530 = vadd.f32 %v9529, %v9106
        %v9531 = vadd.f32 %v8627, %v8659
        %v9532 = vadd.f32 %v9531, %v8691
        %v9533 = vadd.f32 %v9532, %v8723
        %v9534 = vadd.f32 %v9533, %v8755
        %v9535 = vadd.f32 %v9534, %v8787
        %v9536 = vadd.f32 %v9535, %v8819
        %v9537 = vadd.f32 %v9536, %v8851
        %v9538 = vadd.f32 %v9537, %v8883
        %v9539 = vadd.f32 %v9538, %v8915
        %v9540 = vadd.f32 %v9539, %v8947
        %v9541 = vadd.f32 %v9540, %v8979
        %v9542 = vadd.f32 %v9541, %v9011
        %v9543 = vadd.f32 %v9542, %v9043
        %v9544 = vadd.f32 %v9543, %v9075
        %v9545 = vadd.f32 %v9544, %v9107
        %v9546 = vadd.f32 %v8628, %v8660
        %v9547 = vadd.f32 %v9546, %v8692
        %v9548 = vadd.f32 %v9547, %v8724
        %v9549 = vadd.f32 %v9548, %v8756
        %v9550 = vadd.f32 %v9549, %v8788
        %v9551 = vadd.f32 %v9550, %v8820
        %v9552 = vadd.f32 %v9551, %v8852
        %v9553 = vadd.f32 %v9552, %v8884
        %v9554 = vadd.f32 %v9553, %v8916
        %v9555 = vadd.f32 %v9554, %v8948
        %v9556 = vadd.f32 %v9555, %v8980
        %v9557 = vadd.f32 %v9556, %v9012
        %v9558 = vadd.f32 %v9557, %v9044
        %v9559 = vadd.f32 %v9558, %v9076
        %v9560 = vadd.f32 %v9559, %v9108
        %v9561 = vadd.f32 %v8629, %v8661
        %v9562 = vadd.f32 %v9561, %v8693
        %v9563 = vadd.f32 %v9562, %v8725
        %v9564 = vadd.f32 %v9563, %v8757
        %v9565 = vadd.f32 %v9564, %v8789
        %v9566 = vadd.f32 %v9565, %v8821
        %v9567 = vadd.f32 %v9566, %v8853
        %v9568 = vadd.f32 %v9567, %v8885
        %v9569 = vadd.f32 %v9568, %v8917
        %v9570 = vadd.f32 %v9569, %v8949
        %v9571 = vadd.f32 %v9570, %v8981
        %v9572 = vadd.f32 %v9571, %v9013
        %v9573 = vadd.f32 %v9572, %v9045
        %v9574 = vadd.f32 %v9573, %v9077
        %v9575 = vadd.f32 %v9574, %v9109
        %v9576 = vadd.f32 %v8630, %v8662
        %v9577 = vadd.f32 %v9576, %v8694
        %v9578 = vadd.f32 %v9577, %v8726
        %v9579 = vadd.f32 %v9578, %v8758
        %v9580 = vadd.f32 %v9579, %v8790
        %v9581 = vadd.f32 %v9580, %v8822
        %v9582 = vadd.f32 %v9581, %v8854
        %v9583 = vadd.f32 %v9582, %v8886
        %v9584 = vadd.f32 %v9583, %v8918
        %v9585 = vadd.f32 %v9584, %v8950
        %v9586 = vadd.f32 %v9585, %v8982
        %v9587 = vadd.f32 %v9586, %v9014
        %v9588 = vadd.f32 %v9587, %v9046
        %v9589 = vadd.f32 %v9588, %v9078
        %v9590 = vadd.f32 %v9589, %v9110
        %v9591 = vadd.f32 %v9125, %v8211
        %v9592 = vadd.f32 %v9140, %v8212
        %v9593 = vadd.f32 %v9155, %v8213
        %v9594 = vadd.f32 %v9170, %v8214
        %v9595 = vadd.f32 %v9185, %v8211
        %v9596 = vadd.f32 %v9200, %v8212
        %v9597 = vadd.f32 %v9215, %v8213
        %v9598 = vadd.f32 %v9230, %v8214
        %v9599 = vadd.f32 %v9245, %v8211
        %v9600 = vadd.f32 %v9260, %v8212
        %v9601 = vadd.f32 %v9275, %v8213
        %v9602 = vadd.f32 %v9290, %v8214
        %v9603 = vadd.f32 %v9305, %v8211
        %v9604 = vadd.f32 %v9320, %v8212
        %v9605 = vadd.f32 %v9335, %v8213
        %v9606 = vadd.f32 %v9350, %v8214
        %v9607 = vadd.f32 %v9365, %v8211
        %v9608 = vadd.f32 %v9380, %v8212
        %v9609 = vadd.f32 %v9395, %v8213
        %v9610 = vadd.f32 %v9410, %v8214
        %v9611 = vadd.f32 %v9425, %v8211
        %v9612 = vadd.f32 %v9440, %v8212
        %v9613 = vadd.f32 %v9455, %v8213
        %v9614 = vadd.f32 %v9470, %v8214
        %v9615 = vadd.f32 %v9485, %v8211
        %v9616 = vadd.f32 %v9500, %v8212
        %v9617 = vadd.f32 %v9515, %v8213
        %v9618 = vadd.f32 %v9530, %v8214
        %v9619 = vadd.f32 %v9545, %v8211
        %v9620 = vadd.f32 %v9560, %v8212
        %v9621 = vadd.f32 %v9575, %v8213
        %v9622 = vadd.f32 %v9590, %v8214
        %9623 = vst [vmem:[%s420] sm:$0xff] %v9591
        %9624 = vst [vmem:[%s420 + $0x8] sm:$0xff] %v9592
        %9625 = vst [vmem:[%s420 + $0x10] sm:$0xff] %v9593
        %9626 = vst [vmem:[%s420 + $0x18] sm:$0xff] %v9594
        %9627 = vst [vmem:[%s420 + $0x20] sm:$0xff] %v9595
        %9628 = vst [vmem:[%s420 + $0x28] sm:$0xff] %v9596
        %9629 = vst [vmem:[%s420 + $0x30] sm:$0xff] %v9597
        %9630 = vst [vmem:[%s420 + $0x38] sm:$0xff] %v9598
        %9631 = vst [vmem:[%s420 + $0x40] sm:$0xff] %v9599
        %9632 = vst [vmem:[%s420 + $0x48] sm:$0xff] %v9600
        %9633 = vst [vmem:[%s420 + $0x50] sm:$0xff] %v9601
        %9634 = vst [vmem:[%s420 + $0x58] sm:$0xff] %v9602
        %9635 = vst [vmem:[%s420 + $0x60] sm:$0xff] %v9603
        %9636 = vst [vmem:[%s420 + $0x68] sm:$0xff] %v9604
        %9637 = vst [vmem:[%s420 + $0x70] sm:$0xff] %v9605
        %9638 = vst [vmem:[%s420 + $0x78] sm:$0xff] %v9606
        %9639 = vst [vmem:[%s420 + $0x80] sm:$0xff] %v9607
        %9640 = vst [vmem:[%s420 + $0x88] sm:$0xff] %v9608
        %9641 = vst [vmem:[%s420 + $0x90] sm:$0xff] %v9609
        %9642 = vst [vmem:[%s420 + $0x98] sm:$0xff] %v9610
        %9643 = vst [vmem:[%s420 + $0xa0] sm:$0xff] %v9611
        %9644 = vst [vmem:[%s420 + $0xa8] sm:$0xff] %v9612
        %9645 = vst [vmem:[%s420 + $0xb0] sm:$0xff] %v9613
        %9646 = vst [vmem:[%s420 + $0xb8] sm:$0xff] %v9614
        %9647 = vst [vmem:[%s420 + $0xc0] sm:$0xff] %v9615
        %9648 = vst [vmem:[%s420 + $0xc8] sm:$0xff] %v9616
        %9649 = vst [vmem:[%s420 + $0xd0] sm:$0xff] %v9617
        %9650 = vst [vmem:[%s420 + $0xd8] sm:$0xff] %v9618
        %9651 = vst [vmem:[%s420 + $0xe0] sm:$0xff] %v9619
        %9652 = vst [vmem:[%s420 + $0xe8] sm:$0xff] %v9620
        %9653 = vst [vmem:[%s420 + $0xf0] sm:$0xff] %v9621
        %9654 = vst [vmem:[%s420 + $0xf8] sm:$0xff] %v9622
        %s9655 = sand.u32 %s194, 1
        %s9656 = scalar_lea.sflag [#allocation4], %s9655
        %s9657 = sand.u32 %s194, 1
        %s9658 = smul.addr %s9657, 256
        %s9659 = scalar_lea.vmem [#allocation14], %s9658
        // Predicated region
        $region77: #{tpu_custom_call.1} parent=47 // pred_check
          %p9660 = pneg %p204
        $region78: #{tpu_custom_call.1} parent=47 // pred_check_branch
          %9662 = sbr.rel (%p9660) target = $region80
        $region79: #{tpu_custom_call.1} parent=47 // pred_region
          %s9663 = smul.u32 8, %s29
          %9665 = vsyncadd %s9656, 0
          %s9666 = smul.addr %s9663, 4
          %s9667 = smul.addr %s9666, 8
          %s9668 = scalar_lea.hbm %s7, %s9667
          %s9669 = sshll.u32 %s9659, 4
          %s9670 = int_to_ptr.vmem [resolvable:$true] %s9669
          %s9671 = sshll.u32 %s9668, 4
          %s9672 = int_to_ptr.hbm [resolvable:$true] %s9671
          %9677 = dma.vmem_to_hbm [thread:$0]  %s9670, 4096, %s9672, %s9656, 128, 128, 8
        $region80: #{tpu_custom_call.1} parent=47 // pred_fallthru
          _
      $region48: #{tpu_custom_call.1} parent=5 // pred_fallthru
        _
      %p9678 = scmp.le.s32.totalorder 2, %s24
      // Predicated region
      $region81: #{tpu_custom_call.1} parent=5 // pred_check
        %p9679 = pneg %p9678
      $region82: #{tpu_custom_call.1} parent=5 // pred_check_branch
        %9681 = sbr.rel (%p9679) target = $region84
      $region83: #{tpu_custom_call.1} parent=5 // pred_region
        %s9682 = ssub.s32 %s24, 2
        // Predicated region
        $region85: #{tpu_custom_call.1} parent=83 // pred_check
          %p9683 = pneg %p210
        $region86: #{tpu_custom_call.1} parent=83 // pred_check_branch
          %9685 = sbr.rel (%p9683) target = $region88
        $region87: #{tpu_custom_call.1} parent=83 // pred_region
          %s9686 = sand.u32 %s195, 1
          %s9687 = scalar_lea.sflag [#allocation4], %s9686
          %s9688 = sand.u32 %s195, 1
          %s9689 = smul.addr %s9688, 256
          %s9690 = scalar_lea.vmem [#allocation14], %s9689
          %9692 = dma.done %s9687, 4096
        $region88: #{tpu_custom_call.1} parent=83 // pred_fallthru
          _
      $region84: #{tpu_custom_call.1} parent=5 // pred_fallthru
        _
    $region6: #{tpu_custom_call.1} parent=1 // loop_footer
      %s28 = sadd.s32 1, %s24
    $region7: #{tpu_custom_call.1} parent=1 // loop_footer_branch
      %23 = sbr.rel target = $region3
    $region8: #{tpu_custom_call.1} parent=1 // loop_exit
      _
    %9693 = vsyncpa [#allocation3], 1
    %s9694 = scalar_lea.sflag [#allocation3], 1
    %9695 = vsyncpa %s9694, 1
    %9696 = vsyncpa [#allocation6], 1
    %s9697 = scalar_lea.sflag [#allocation6], 1
    %9698 = vsyncpa %s9697, 1
    %9699 = vsyncpa [#allocation9], 1
    %9700 = vsyncpa [#allocation12], 1
    %9701 = vsyncpa [#allocation4], 1
    %s9702 = scalar_lea.sflag [#allocation4], 1
    %9703 = vsyncpa %s9702, 1

</llo_original>
